<compile_context>
chip_gen: v7x
topology: tpu7x:2x2x1
jax: 0.10.0
libtpu: 0.0.40
codegen_flags: <defaults>
</compile_context>

<pallas_src>
import math
import jax
import jax.numpy as jnp
from jax.experimental import pallas as pl
from jax.experimental.pallas import tpu as pltpu

# ----------------------------- model configuration (small demo sizes) ------------------------------
B = 2
HOP = 160                       # LEAF window_stride (10 ms @ 16 kHz)
L_FRAMES = 8                    # number of LEAF output frames (small "time_length")
T_WAVE = HOP * L_FRAMES         # 1280 waveform samples
N_FILTERS = 128                 # LEAF n_filters == AST input_fdim
W_GABOR = 33                    # TODO(synk): real LEAF Gabor kernel is 401 taps (25 ms); reduced for the demo
W_POOL = 33                     # gaussian lowpass pooling window
PAD_SAMP = (W_GABOR - 1) // 2
SEG_LEN = W_POOL + W_GABOR - 1  # 65 samples feed all conv positions of one pooling window

EMBED_DIM = 192                 # SSAST model_size='tiny'
DEPTH = 12
NUM_HEADS = 3
HEAD_DIM = EMBED_DIM // NUM_HEADS     # 64
HEAD_PAD = 128                        # head dim zero-padded to a full lane tile (exact math, aligned slices)
MLP_DIM = 4 * EMBED_DIM
TSHAPE = 2
TSTRIDE = 1
CLS_TOKEN_NUM = 2               # SSAST uses cls + dist tokens
NUM_CLASSES = 4
N_PATCHES = (L_FRAMES - TSHAPE) // TSTRIDE + 1   # 7
N_TOK = N_PATCHES + CLS_TOKEN_NUM                # 9
QKV_COLS = 3 * NUM_HEADS * HEAD_PAD              # 1152
PROJ_ROWS = NUM_HEADS * HEAD_PAD                 # 384


# ----------------------------------------- kernel helpers ------------------------------------------
def _layernorm(x, gamma, beta, eps):
    mu = jnp.mean(x, axis=-1, keepdims=True)
    var = jnp.mean(jnp.square(x - mu), axis=-1, keepdims=True)
    return (x - mu) * jax.lax.rsqrt(var + eps) * gamma + beta


def _pospow(x, p):
    # x ** p for strictly positive x, written as exp(p*log(x)) for robust Mosaic/EUP lowering.
    return jnp.exp(p * jnp.log(x))


# ----------------------- fused LEAF frontend + SSAST patch embed (one pallas_call) ------------------
def frontend_kernel(seg_ref, wband_ref, gauss_ref, alpha_ref, delta_ref, root_ref,
                    smooth_ref, patchw_ref, patchb_ref, clsdist_ref, pos_ref, o_ref):
    # ---- Gabor conv (real+imag fused), all frames / all pool positions in one MXU matmul ----
    seg = seg_ref[...]                                                     # [B*L, 65] f32
    conv = jnp.dot(seg.astype(jnp.bfloat16), wband_ref[...],
                   preferred_element_type=jnp.float32)                     # [B*L, W_POOL*2F]

    # ---- squared modulus + gaussian lowpass pooling (128-lane-aligned slices) ----
    gauss = gauss_ref[...]                                                 # [W_POOL, F]
    pooled = jnp.zeros((B * L_FRAMES, N_FILTERS), jnp.float32)
    for j in range(W_POOL):
        base = j * 2 * N_FILTERS
        re = conv[:, base:base + N_FILTERS]
        im = conv[:, base + N_FILTERS:base + 2 * N_FILTERS]
        pooled = pooled + gauss[j:j + 1, :] * (re * re + im * im)
    pooled = jnp.maximum(pooled, 1e-5)                                     # [B*L, F]

    # ---- sPCEN: only the EMA recurrence runs per frame; compression applied once on the tile ----
    alpha = alpha_ref[...]
    delta = delta_ref[...]
    smooth = smooth_ref[...]
    one_over_root = 1.0 / root_ref[...]
    m_rows = []
    for b in range(B):
        base = b * L_FRAMES
        m = pooled[base:base + 1, :]                                       # EMA init with first frame
        m_rows.append(m)
        for t in range(1, L_FRAMES):
            m = (1.0 - smooth) * m + smooth * pooled[base + t:base + t + 1, :]
            m_rows.append(m)
    m_all = jnp.concatenate(m_rows, axis=0)                                # [B*L, F]
    delta_root = _pospow(delta, one_over_root)                             # loop-invariant, computed once
    mel = _pospow(pooled / _pospow(1e-6 + m_all, alpha) + delta, one_over_root) - delta_root

    # ---- SSAST patch embedding: Conv2d kernel (128,2), stride (128,1) == linear on 2-frame slabs ----
    p2_rows = []
    for b in range(B):
        base = b * L_FRAMES
        p2_rows.append(jnp.concatenate([mel[base:base + N_PATCHES, :],
                                        mel[base + 1:base + 1 + N_PATCHES, :]], axis=-1))
    p2 = jnp.concatenate(p2_rows, axis=0)                                  # [B*N_PATCHES, 2F]
    tok = jnp.dot(p2.astype(jnp.bfloat16), patchw_ref[...],
                  preferred_element_type=jnp.float32) + patchb_ref[...]    # [B*N_PATCHES, D]

    # ---- prepend cls/dist tokens and add positional embedding ----
    pos = pos_ref[...]                                                     # [N_TOK, D]
    cls_dist = clsdist_ref[...] + pos[0:CLS_TOKEN_NUM, :]                  # [2, D]
    rows = []
    for b in range(B):
        rows.append(cls_dist)
        rows.append(tok[b * N_PATCHES:(b + 1) * N_PATCHES, :] + pos[CLS_TOKEN_NUM:, :])
    o_ref[...] = jnp.concatenate(rows, axis=0)                             # [B*N_TOK, D]


def leaf_frontend_and_embed(seg, wband, params):
    def full_spec(a):
        nd = a.ndim
        return pl.BlockSpec(a.shape, lambda i, _nd=nd: (0,) * _nd)

    args = [seg, wband, params['gauss_win'], params['pcen_alpha'], params['pcen_delta'],
            params['pcen_root'], params['pcen_smooth'], params['patch_w'], params['patch_b'],
            params['cls_dist'], params['pos_embed']]
    return pl.pallas_call(
        frontend_kernel,
        out_shape=jax.ShapeDtypeStruct((B * N_TOK, EMBED_DIM), jnp.float32),
        grid=(1,),
        in_specs=[full_spec(a) for a in args],
        out_specs=pl.BlockSpec((B * N_TOK, EMBED_DIM), lambda i: (0, 0)),
        compiler_params=pltpu.CompilerParams(dimension_semantics=("arbitrary",)),
    )(*args)


# -------------- fused 12-layer ViT stack + final norm + avg-tok + mlp_head (one pallas_call) --------
_LAYER_PARAM_NAMES = ('ln1_g', 'ln1_b', 'qkv_w', 'qkv_b', 'proj_w', 'proj_b',
                      'ln2_g', 'ln2_b', 'fc1_w', 'fc1_b', 'fc2_w', 'fc2_b')
_HEAD_PARAM_NAMES = ('vit_norm_g', 'vit_norm_b', 'head_ln_g', 'head_ln_b', 'head_w', 'head_b')


def stack_kernel(x0_ref, ln1g_ref, ln1b_ref, qkvw_ref, qkvb_ref, projw_ref, projb_ref,
                 ln2g_ref, ln2b_ref, f1w_ref, f1b_ref, f2w_ref, f2b_ref,
                 ng_ref, nb_ref, hlng_ref, hlnb_ref, hw_ref, hbias_ref,
                 logits_ref, x_sc):
    layer = pl.program_id(0)

    @pl.when(layer == 0)
    def _():
        x_sc[...] = x0_ref[...]                                            # tokens resident in VMEM

    x = x_sc[...]                                                          # [B*N_TOK, D] f32

    # ---- multi-head self attention (fused QKV, fused output projection) ----
    h = _layernorm(x, ln1g_ref[0], ln1b_ref[0], 1e-6)
    qkv = jnp.dot(h.astype(jnp.bfloat16), qkvw_ref[0],
                  preferred_element_type=jnp.float32) + qkvb_ref[0]        # [B*N_TOK, 3*NH*128]
    scale = 1.0 / math.sqrt(HEAD_DIM)
    per_batch = []
    for b in range(B):
        r0 = b * N_TOK
        heads = []
        for hd in range(NUM_HEADS):
            q = qkv[r0:r0 + N_TOK, hd * HEAD_PAD:(hd + 1) * HEAD_PAD]
            k = qkv[r0:r0 + N_TOK, (NUM_HEADS + hd) * HEAD_PAD:(NUM_HEADS + hd + 1) * HEAD_PAD]
            v = qkv[r0:r0 + N_TOK, (2 * NUM_HEADS + hd) * HEAD_PAD:(2 * NUM_HEADS + hd + 1) * HEAD_PAD]
            att = jax.lax.dot_general(q, k, (((1,), (1,)), ((), ())),
                                      preferred_element_type=jnp.float32) * scale   # [N, N]
            att = att - jnp.max(att, axis=-1, keepdims=True)
            att = jnp.exp(att)
            att = att / jnp.sum(att, axis=-1, keepdims=True)
            heads.append(jnp.dot(att, v, preferred_element_type=jnp.float32))       # [N, 128]
        per_batch.append(jnp.concatenate(heads, axis=-1))                  # [N_TOK, NH*128]
    attn = jnp.concatenate(per_batch, axis=0)                              # [B*N_TOK, NH*128]
    x = x + jnp.dot(attn.astype(jnp.bfloat16), projw_ref[0],
                    preferred_element_type=jnp.float32) + projb_ref[0]

    # ---- MLP ----
    h2 = _layernorm(x, ln2g_ref[0], ln2b_ref[0], 1e-6)
    h2 = jnp.dot(h2.astype(jnp.bfloat16), f1w_ref[0],
                 preferred_element_type=jnp.float32) + f1b_ref[0]
    # TODO(synk): timm ViT uses exact erf-GELU; tanh approximation kept for TPU lowering safety.
    h2 = jax.nn.gelu(h2, approximate=True)
    h2 = jnp.dot(h2.astype(jnp.bfloat16), f2w_ref[0],
                 preferred_element_type=jnp.float32) + f2b_ref[0]
    x = x + h2
    x_sc[...] = x

    # ---- final norm + 'ft_avgtok' patch-token mean + mlp_head (LN + Linear), last layer only ----
    @pl.when(layer == DEPTH - 1)
    def _():
        xn = _layernorm(x, ng_ref[...], nb_ref[...], 1e-6)
        avg_rows = []
        for b in range(B):
            r0 = b * N_TOK
            avg_rows.append(jnp.mean(xn[r0 + CLS_TOKEN_NUM:r0 + N_TOK, :], axis=0, keepdims=True))
        avg = jnp.concatenate(avg_rows, axis=0)                            # [B, D]
        hn = _layernorm(avg, hlng_ref[...], hlnb_ref[...], 1e-5)
        logits_ref[...] = (jnp.dot(hn, hw_ref[...], preferred_element_type=jnp.float32)
                           + hbias_ref[...])


def transformer_stack(x0, layer_params, params):
    layer_args = [layer_params[n] for n in _LAYER_PARAM_NAMES]
    head_args = [params[n] for n in _HEAD_PARAM_NAMES]

    # per-layer weights: block = one layer slab, streamed (double-buffered) along the DEPTH grid axis
    layer_specs = [pl.BlockSpec((1,) + a.shape[1:], lambda l: (l, 0, 0)) for a in layer_args]

    def rep_spec(a):
        nd = a.ndim
        return pl.BlockSpec(a.shape, lambda l, _nd=nd: (0,) * _nd)

    return pl.pallas_call(
        stack_kernel,
        out_shape=jax.ShapeDtypeStruct((B, NUM_CLASSES), jnp.float32),
        grid=(DEPTH,),
        in_specs=([pl.BlockSpec((B * N_TOK, EMBED_DIM), lambda l: (0, 0))]
                  + layer_specs + [rep_spec(a) for a in head_args]),
        out_specs=pl.BlockSpec((B, NUM_CLASSES), lambda l: (0, 0)),
        scratch_shapes=[pltpu.VMEM((B * N_TOK, EMBED_DIM), jnp.float32)],
        compiler_params=pltpu.CompilerParams(dimension_semantics=("arbitrary",)),
    )(x0, *layer_args, *head_args)


# -------------------------------------------- forward ----------------------------------------------
def build_banded_gabor(gabor_real, gabor_imag):
    """Real+imag Gabor filters -> banded [SEG_LEN, W_POOL*2F] weight so the conv at all W_POOL
    pooling positions of one frame segment is a single lane-dense matmul."""
    filt = jnp.concatenate([gabor_real, gabor_imag], axis=1)               # [W_GABOR, 2F]
    w = jnp.zeros((SEG_LEN, W_POOL, 2 * N_FILTERS), jnp.float32)
    for j in range(W_POOL):
        w = w.at[j:j + W_GABOR, j, :].set(filt)
    return w.reshape(SEG_LEN, W_POOL * 2 * N_FILTERS).astype(jnp.bfloat16)


def emonet_ssast_forward(wave, params):
    # LEAF windowing glue: only [B*L, 65] frame segments go to HBM (no [B,T,W] im2col blow-up).
    xpad = jnp.pad(wave, ((0, 0), (PAD_SAMP, PAD_SAMP)))
    seg = jnp.stack([xpad[:, t * HOP:t * HOP + SEG_LEN] for t in range(L_FRAMES)], axis=1)
    seg = seg.reshape(B * L_FRAMES, SEG_LEN)                               # rows ordered (batch, frame)
    wband = build_banded_gabor(params['gabor_real'], params['gabor_imag'])

    x0 = leaf_frontend_and_embed(seg, wband, params)                       # [B*N_TOK, D]
    return transformer_stack(x0, params['blocks'], params)                 # [B, num_classes]


# ----------------------------------------- parameter init ------------------------------------------
def make_gabor_filters(n_filters, width):
    t = jnp.arange(width, dtype=jnp.float32) - (width - 1) / 2.0
    center = jnp.linspace(0.14, 2.8, n_filters, dtype=jnp.float32)
    sigma = jnp.linspace(1.5, 6.0, n_filters, dtype=jnp.float32)
    gauss = jnp.exp(-0.5 * (t[:, None] / sigma[None, :]) ** 2)
    norm = 1.0 / (jnp.sqrt(2.0 * jnp.pi) * sigma)[None, :]
    real = norm * gauss * jnp.cos(center[None, :] * t[:, None])
    imag = norm * gauss * jnp.sin(center[None, :] * t[:, None])
    return real.astype(jnp.float32), imag.astype(jnp.float32)              # each [W, F]


def make_gauss_window(width, n_filters, sigma=0.4):
    n = jnp.arange(width, dtype=jnp.float32)
    center = (width - 1) / 2.0
    denom = sigma * 0.5 * (width - 1)
    w = jnp.exp(-0.5 * ((n - center) / denom) ** 2)
    w = w / jnp.sum(w)
    return jnp.tile(w[:, None], (1, n_filters)).astype(jnp.float32)        # [Wp, F]


def init_layer_stack(key, scale=0.02):
    f32, bf16 = jnp.float32, jnp.bfloat16
    ks = jax.random.split(key, 4)
    # QKV: [D, 3, heads, head_dim], zero-padded head_dim -> 128 so in-kernel slices are lane-aligned.
    qkv = scale * jax.random.normal(ks[0], (DEPTH, EMBED_DIM, 3, NUM_HEADS, HEAD_DIM), f32)
    qkv = jnp.pad(qkv, ((0, 0), (0, 0), (0, 0), (0, 0), (0, HEAD_PAD - HEAD_DIM)))
    proj = scale * jax.random.normal(ks[1], (DEPTH, NUM_HEADS, HEAD_DIM, EMBED_DIM), f32)
    proj = jnp.pad(proj, ((0, 0), (0, 0), (0, HEAD_PAD - HEAD_DIM), (0, 0)))
    return dict(
        ln1_g=jnp.ones((DEPTH, 1, EMBED_DIM), f32),
        ln1_b=jnp.zeros((DEPTH, 1, EMBED_DIM), f32),
        qkv_w=qkv.reshape(DEPTH, EMBED_DIM, QKV_COLS).astype(bf16),
        qkv_b=jnp.zeros((DEPTH, 1, QKV_COLS), f32),
        proj_w=proj.reshape(DEPTH, PROJ_ROWS, EMBED_DIM).astype(bf16),
        proj_b=jnp.zeros((DEPTH, 1, EMBED_DIM), f32),
        ln2_g=jnp.ones((DEPTH, 1, EMBED_DIM), f32),
        ln2_b=jnp.zeros((DEPTH, 1, EMBED_DIM), f32),
        fc1_w=(scale * jax.random.normal(ks[2], (DEPTH, EMBED_DIM, MLP_DIM), f32)).astype(bf16),
        fc1_b=jnp.zeros((DEPTH, 1, MLP_DIM), f32),
        fc2_w=(scale * jax.random.normal(ks[3], (DEPTH, MLP_DIM, EMBED_DIM), f32)).astype(bf16),
        fc2_b=jnp.zeros((DEPTH, 1, EMBED_DIM), f32),
    )


def init_params(key):
    f32 = jnp.float32
    keys = jax.random.split(key, 5)
    g_real, g_imag = make_gabor_filters(N_FILTERS, W_GABOR)
    # TODO(synk): pretrained SSAST checkpoint loading (ARGS.MODEL_NAME_SSAST) not reproduced;
    # weights are randomly initialized in-script.
    return dict(
        gabor_real=g_real, gabor_imag=g_imag,
        gauss_win=make_gauss_window(W_POOL, N_FILTERS),
        pcen_alpha=jnp.full((1, N_FILTERS), 0.96, f32),
        pcen_delta=jnp.full((1, N_FILTERS), 2.0, f32),
        pcen_root=jnp.full((1, N_FILTERS), 2.0, f32),
        pcen_smooth=jnp.full((1, N_FILTERS), 0.04, f32),
        patch_w=(0.02 * jax.random.normal(keys[0], (2 * N_FILTERS, EMBED_DIM), f32)).astype(jnp.bfloat16),
        patch_b=jnp.zeros((1, EMBED_DIM), f32),
        cls_dist=0.02 * jax.random.normal(keys[1], (CLS_TOKEN_NUM, EMBED_DIM), f32),
        pos_embed=0.02 * jax.random.normal(keys[2], (N_TOK, EMBED_DIM), f32),
        vit_norm_g=jnp.ones((1, EMBED_DIM), f32), vit_norm_b=jnp.zeros((1, EMBED_DIM), f32),
        head_ln_g=jnp.ones((1, EMBED_DIM), f32), head_ln_b=jnp.zeros((1, EMBED_DIM), f32),
        head_w=0.02 * jax.random.normal(keys[3], (EMBED_DIM, NUM_CLASSES), f32),
        head_b=jnp.zeros((1, NUM_CLASSES), f32),
        blocks=init_layer_stack(keys[4]),
    )


# ------------------------------------------------ main ---------------------------------------------
if __name__ == "__main__":
    key = jax.random.PRNGKey(0)
    pkey, xkey = jax.random.split(key)
    params = init_params(pkey)
    wave = jax.random.normal(xkey, (B, T_WAVE), jnp.float32)               # [B, waveform]

    logits = jax.jit(emonet_ssast_forward)(wave, params)
    jax.block_until_ready(logits)
    assert logits.shape == (B, NUM_CLASSES)
    assert bool(jnp.all(jnp.isfinite(logits)))
    print("KERNEL_OK")
</pallas_src>

<mosaic_0001>
module attributes {stable_mosaic.version = 11 : i64} {
  func.func @frontend_kernel(%arg0: i32, %arg1: memref<16x65xf32, #tpu.memory_space<vmem>>, %arg2: memref<65x8448xbf16, #tpu.memory_space<vmem>>, %arg3: memref<33x128xf32, #tpu.memory_space<vmem>>, %arg4: memref<1x128xf32, #tpu.memory_space<vmem>>, %arg5: memref<1x128xf32, #tpu.memory_space<vmem>>, %arg6: memref<1x128xf32, #tpu.memory_space<vmem>>, %arg7: memref<1x128xf32, #tpu.memory_space<vmem>>, %arg8: memref<256x192xbf16, #tpu.memory_space<vmem>>, %arg9: memref<1x192xf32, #tpu.memory_space<vmem>>, %arg10: memref<2x192xf32, #tpu.memory_space<vmem>>, %arg11: memref<9x192xf32, #tpu.memory_space<vmem>>, %arg12: memref<18x192xf32, #tpu.memory_space<vmem>>) attributes {dimension_semantics = [#tpu.dimension_semantics<arbitrary>], iteration_bounds = array<i64: 1>, scalar_prefetch = 0 : i64, scratch_operands = 0 : i64, tpu.core_type = #tpu.core_type<tc>, window_params = [{pipeline_mode = #tpu.pipeline_mode<synchronous>, transform_indices = @transform_0, window_bounds = array<i64: 16, 65>}, {pipeline_mode = #tpu.pipeline_mode<synchronous>, transform_indices = @transform_1, window_bounds = array<i64: 65, 8448>}, {pipeline_mode = #tpu.pipeline_mode<synchronous>, transform_indices = @transform_2, window_bounds = array<i64: 33, 128>}, {pipeline_mode = #tpu.pipeline_mode<synchronous>, transform_indices = @transform_3, window_bounds = array<i64: 1, 128>}, {pipeline_mode = #tpu.pipeline_mode<synchronous>, transform_indices = @transform_4, window_bounds = array<i64: 1, 128>}, {pipeline_mode = #tpu.pipeline_mode<synchronous>, transform_indices = @transform_5, window_bounds = array<i64: 1, 128>}, {pipeline_mode = #tpu.pipeline_mode<synchronous>, transform_indices = @transform_6, window_bounds = array<i64: 1, 128>}, {pipeline_mode = #tpu.pipeline_mode<synchronous>, transform_indices = @transform_7, window_bounds = array<i64: 256, 192>}, {pipeline_mode = #tpu.pipeline_mode<synchronous>, transform_indices = @transform_8, window_bounds = array<i64: 1, 192>}, {pipeline_mode = #tpu.pipeline_mode<synchronous>, transform_indices = @transform_9, window_bounds = array<i64: 2, 192>}, {pipeline_mode = #tpu.pipeline_mode<synchronous>, transform_indices = @transform_10, window_bounds = array<i64: 9, 192>}, {pipeline_mode = #tpu.pipeline_mode<synchronous>, transform_indices = @transform_11, window_bounds = array<i64: 18, 192>}]} {
    %c0 = arith.constant 0 : index
    %c0_0 = arith.constant 0 : index
    %0 = vector.load %arg1[%c0, %c0_0] : memref<16x65xf32, #tpu.memory_space<vmem>>, vector<16x65xf32>
    %1 = arith.truncf %0 : vector<16x65xf32> to vector<16x65xbf16>
    %c0_1 = arith.constant 0 : index
    %c0_2 = arith.constant 0 : index
    %2 = vector.load %arg2[%c0_1, %c0_2] : memref<65x8448xbf16, #tpu.memory_space<vmem>>, vector<65x8448xbf16>
    %cst = arith.constant dense<0.000000e+00> : vector<16x8448xf32>
    %3 = tpu.matmul %1, %2, %cst {dimension_numbers = #tpu.dot_dimension_numbers<[1], [0], [0], [1], [0, 0, 1, 1], [], []>} : vector<16x65xbf16>, vector<65x8448xbf16>, vector<16x8448xf32> -> vector<16x8448xf32>
    %c0_3 = arith.constant 0 : index
    %c0_4 = arith.constant 0 : index
    %4 = vector.load %arg3[%c0_3, %c0_4] : memref<33x128xf32, #tpu.memory_space<vmem>>, vector<33x128xf32>
    %cst_5 = arith.constant 0.000000e+00 : f32
    %5 = vector.broadcast %cst_5 : f32 to vector<16x128xf32>
    %6 = vector.extract_strided_slice %3 {offsets = [0, 0], sizes = [16, 128], strides = [1, 1]} : vector<16x8448xf32> to vector<16x128xf32>
    %7 = vector.extract_strided_slice %3 {offsets = [0, 128], sizes = [16, 128], strides = [1, 1]} : vector<16x8448xf32> to vector<16x128xf32>
    %8 = vector.extract_strided_slice %4 {offsets = [0, 0], sizes = [1, 128], strides = [1, 1]} : vector<33x128xf32> to vector<1x128xf32>
    %9 = arith.mulf %6, %6 : vector<16x128xf32>
    %10 = arith.mulf %7, %7 : vector<16x128xf32>
    %11 = arith.addf %9, %10 : vector<16x128xf32>
    %12 = vector.broadcast %8 : vector<1x128xf32> to vector<16x128xf32>
    %13 = arith.mulf %12, %11 : vector<16x128xf32>
    %14 = arith.addf %5, %13 : vector<16x128xf32>
    %15 = vector.extract_strided_slice %3 {offsets = [0, 256], sizes = [16, 128], strides = [1, 1]} : vector<16x8448xf32> to vector<16x128xf32>
    %16 = vector.extract_strided_slice %3 {offsets = [0, 384], sizes = [16, 128], strides = [1, 1]} : vector<16x8448xf32> to vector<16x128xf32>
    %17 = vector.extract_strided_slice %4 {offsets = [1, 0], sizes = [1, 128], strides = [1, 1]} : vector<33x128xf32> to vector<1x128xf32>
    %18 = arith.mulf %15, %15 : vector<16x128xf32>
    %19 = arith.mulf %16, %16 : vector<16x128xf32>
    %20 = arith.addf %18, %19 : vector<16x128xf32>
    %21 = vector.broadcast %17 : vector<1x128xf32> to vector<16x128xf32>
    %22 = arith.mulf %21, %20 : vector<16x128xf32>
    %23 = arith.addf %14, %22 : vector<16x128xf32>
    %24 = vector.extract_strided_slice %3 {offsets = [0, 512], sizes = [16, 128], strides = [1, 1]} : vector<16x8448xf32> to vector<16x128xf32>
    %25 = vector.extract_strided_slice %3 {offsets = [0, 640], sizes = [16, 128], strides = [1, 1]} : vector<16x8448xf32> to vector<16x128xf32>
    %26 = vector.extract_strided_slice %4 {offsets = [2, 0], sizes = [1, 128], strides = [1, 1]} : vector<33x128xf32> to vector<1x128xf32>
    %27 = arith.mulf %24, %24 : vector<16x128xf32>
    %28 = arith.mulf %25, %25 : vector<16x128xf32>
    %29 = arith.addf %27, %28 : vector<16x128xf32>
    %30 = vector.broadcast %26 : vector<1x128xf32> to vector<16x128xf32>
    %31 = arith.mulf %30, %29 : vector<16x128xf32>
    %32 = arith.addf %23, %31 : vector<16x128xf32>
    %33 = vector.extract_strided_slice %3 {offsets = [0, 768], sizes = [16, 128], strides = [1, 1]} : vector<16x8448xf32> to vector<16x128xf32>
    %34 = vector.extract_strided_slice %3 {offsets = [0, 896], sizes = [16, 128], strides = [1, 1]} : vector<16x8448xf32> to vector<16x128xf32>
    %35 = vector.extract_strided_slice %4 {offsets = [3, 0], sizes = [1, 128], strides = [1, 1]} : vector<33x128xf32> to vector<1x128xf32>
    %36 = arith.mulf %33, %33 : vector<16x128xf32>
    %37 = arith.mulf %34, %34 : vector<16x128xf32>
    %38 = arith.addf %36, %37 : vector<16x128xf32>
    %39 = vector.broadcast %35 : vector<1x128xf32> to vector<16x128xf32>
    %40 = arith.mulf %39, %38 : vector<16x128xf32>
    %41 = arith.addf %32, %40 : vector<16x128xf32>
    %42 = vector.extract_strided_slice %3 {offsets = [0, 1024], sizes = [16, 128], strides = [1, 1]} : vector<16x8448xf32> to vector<16x128xf32>
    %43 = vector.extract_strided_slice %3 {offsets = [0, 1152], sizes = [16, 128], strides = [1, 1]} : vector<16x8448xf32> to vector<16x128xf32>
    %44 = vector.extract_strided_slice %4 {offsets = [4, 0], sizes = [1, 128], strides = [1, 1]} : vector<33x128xf32> to vector<1x128xf32>
    %45 = arith.mulf %42, %42 : vector<16x128xf32>
    %46 = arith.mulf %43, %43 : vector<16x128xf32>
    %47 = arith.addf %45, %46 : vector<16x128xf32>
    %48 = vector.broadcast %44 : vector<1x128xf32> to vector<16x128xf32>
    %49 = arith.mulf %48, %47 : vector<16x128xf32>
    %50 = arith.addf %41, %49 : vector<16x128xf32>
    %51 = vector.extract_strided_slice %3 {offsets = [0, 1280], sizes = [16, 128], strides = [1, 1]} : vector<16x8448xf32> to vector<16x128xf32>
    %52 = vector.extract_strided_slice %3 {offsets = [0, 1408], sizes = [16, 128], strides = [1, 1]} : vector<16x8448xf32> to vector<16x128xf32>
    %53 = vector.extract_strided_slice %4 {offsets = [5, 0], sizes = [1, 128], strides = [1, 1]} : vector<33x128xf32> to vector<1x128xf32>
    %54 = arith.mulf %51, %51 : vector<16x128xf32>
    %55 = arith.mulf %52, %52 : vector<16x128xf32>
    %56 = arith.addf %54, %55 : vector<16x128xf32>
    %57 = vector.broadcast %53 : vector<1x128xf32> to vector<16x128xf32>
    %58 = arith.mulf %57, %56 : vector<16x128xf32>
    %59 = arith.addf %50, %58 : vector<16x128xf32>
    %60 = vector.extract_strided_slice %3 {offsets = [0, 1536], sizes = [16, 128], strides = [1, 1]} : vector<16x8448xf32> to vector<16x128xf32>
    %61 = vector.extract_strided_slice %3 {offsets = [0, 1664], sizes = [16, 128], strides = [1, 1]} : vector<16x8448xf32> to vector<16x128xf32>
    %62 = vector.extract_strided_slice %4 {offsets = [6, 0], sizes = [1, 128], strides = [1, 1]} : vector<33x128xf32> to vector<1x128xf32>
    %63 = arith.mulf %60, %60 : vector<16x128xf32>
    %64 = arith.mulf %61, %61 : vector<16x128xf32>
    %65 = arith.addf %63, %64 : vector<16x128xf32>
    %66 = vector.broadcast %62 : vector<1x128xf32> to vector<16x128xf32>
    %67 = arith.mulf %66, %65 : vector<16x128xf32>
    %68 = arith.addf %59, %67 : vector<16x128xf32>
    %69 = vector.extract_strided_slice %3 {offsets = [0, 1792], sizes = [16, 128], strides = [1, 1]} : vector<16x8448xf32> to vector<16x128xf32>
    %70 = vector.extract_strided_slice %3 {offsets = [0, 1920], sizes = [16, 128], strides = [1, 1]} : vector<16x8448xf32> to vector<16x128xf32>
    %71 = vector.extract_strided_slice %4 {offsets = [7, 0], sizes = [1, 128], strides = [1, 1]} : vector<33x128xf32> to vector<1x128xf32>
    %72 = arith.mulf %69, %69 : vector<16x128xf32>
    %73 = arith.mulf %70, %70 : vector<16x128xf32>
    %74 = arith.addf %72, %73 : vector<16x128xf32>
    %75 = vector.broadcast %71 : vector<1x128xf32> to vector<16x128xf32>
    %76 = arith.mulf %75, %74 : vector<16x128xf32>
    %77 = arith.addf %68, %76 : vector<16x128xf32>
    %78 = vector.extract_strided_slice %3 {offsets = [0, 2048], sizes = [16, 128], strides = [1, 1]} : vector<16x8448xf32> to vector<16x128xf32>
    %79 = vector.extract_strided_slice %3 {offsets = [0, 2176], sizes = [16, 128], strides = [1, 1]} : vector<16x8448xf32> to vector<16x128xf32>
    %80 = vector.extract_strided_slice %4 {offsets = [8, 0], sizes = [1, 128], strides = [1, 1]} : vector<33x128xf32> to vector<1x128xf32>
    %81 = arith.mulf %78, %78 : vector<16x128xf32>
    %82 = arith.mulf %79, %79 : vector<16x128xf32>
    %83 = arith.addf %81, %82 : vector<16x128xf32>
    %84 = vector.broadcast %80 : vector<1x128xf32> to vector<16x128xf32>
    %85 = arith.mulf %84, %83 : vector<16x128xf32>
    %86 = arith.addf %77, %85 : vector<16x128xf32>
    %87 = vector.extract_strided_slice %3 {offsets = [0, 2304], sizes = [16, 128], strides = [1, 1]} : vector<16x8448xf32> to vector<16x128xf32>
    %88 = vector.extract_strided_slice %3 {offsets = [0, 2432], sizes = [16, 128], strides = [1, 1]} : vector<16x8448xf32> to vector<16x128xf32>
    %89 = vector.extract_strided_slice %4 {offsets = [9, 0], sizes = [1, 128], strides = [1, 1]} : vector<33x128xf32> to vector<1x128xf32>
    %90 = arith.mulf %87, %87 : vector<16x128xf32>
    %91 = arith.mulf %88, %88 : vector<16x128xf32>
    %92 = arith.addf %90, %91 : vector<16x128xf32>
    %93 = vector.broadcast %89 : vector<1x128xf32> to vector<16x128xf32>
    %94 = arith.mulf %93, %92 : vector<16x128xf32>
    %95 = arith.addf %86, %94 : vector<16x128xf32>
    %96 = vector.extract_strided_slice %3 {offsets = [0, 2560], sizes = [16, 128], strides = [1, 1]} : vector<16x8448xf32> to vector<16x128xf32>
    %97 = vector.extract_strided_slice %3 {offsets = [0, 2688], sizes = [16, 128], strides = [1, 1]} : vector<16x8448xf32> to vector<16x128xf32>
    %98 = vector.extract_strided_slice %4 {offsets = [10, 0], sizes = [1, 128], strides = [1, 1]} : vector<33x128xf32> to vector<1x128xf32>
    %99 = arith.mulf %96, %96 : vector<16x128xf32>
    %100 = arith.mulf %97, %97 : vector<16x128xf32>
    %101 = arith.addf %99, %100 : vector<16x128xf32>
    %102 = vector.broadcast %98 : vector<1x128xf32> to vector<16x128xf32>
    %103 = arith.mulf %102, %101 : vector<16x128xf32>
    %104 = arith.addf %95, %103 : vector<16x128xf32>
    %105 = vector.extract_strided_slice %3 {offsets = [0, 2816], sizes = [16, 128], strides = [1, 1]} : vector<16x8448xf32> to vector<16x128xf32>
    %106 = vector.extract_strided_slice %3 {offsets = [0, 2944], sizes = [16, 128], strides = [1, 1]} : vector<16x8448xf32> to vector<16x128xf32>
    %107 = vector.extract_strided_slice %4 {offsets = [11, 0], sizes = [1, 128], strides = [1, 1]} : vector<33x128xf32> to vector<1x128xf32>
    %108 = arith.mulf %105, %105 : vector<16x128xf32>
    %109 = arith.mulf %106, %106 : vector<16x128xf32>
    %110 = arith.addf %108, %109 : vector<16x128xf32>
    %111 = vector.broadcast %107 : vector<1x128xf32> to vector<16x128xf32>
    %112 = arith.mulf %111, %110 : vector<16x128xf32>
    %113 = arith.addf %104, %112 : vector<16x128xf32>
    %114 = vector.extract_strided_slice %3 {offsets = [0, 3072], sizes = [16, 128], strides = [1, 1]} : vector<16x8448xf32> to vector<16x128xf32>
    %115 = vector.extract_strided_slice %3 {offsets = [0, 3200], sizes = [16, 128], strides = [1, 1]} : vector<16x8448xf32> to vector<16x128xf32>
    %116 = vector.extract_strided_slice %4 {offsets = [12, 0], sizes = [1, 128], strides = [1, 1]} : vector<33x128xf32> to vector<1x128xf32>
    %117 = arith.mulf %114, %114 : vector<16x128xf32>
    %118 = arith.mulf %115, %115 : vector<16x128xf32>
    %119 = arith.addf %117, %118 : vector<16x128xf32>
    %120 = vector.broadcast %116 : vector<1x128xf32> to vector<16x128xf32>
    %121 = arith.mulf %120, %119 : vector<16x128xf32>
    %122 = arith.addf %113, %121 : vector<16x128xf32>
    %123 = vector.extract_strided_slice %3 {offsets = [0, 3328], sizes = [16, 128], strides = [1, 1]} : vector<16x8448xf32> to vector<16x128xf32>
    %124 = vector.extract_strided_slice %3 {offsets = [0, 3456], sizes = [16, 128], strides = [1, 1]} : vector<16x8448xf32> to vector<16x128xf32>
    %125 = vector.extract_strided_slice %4 {offsets = [13, 0], sizes = [1, 128], strides = [1, 1]} : vector<33x128xf32> to vector<1x128xf32>
    %126 = arith.mulf %123, %123 : vector<16x128xf32>
    %127 = arith.mulf %124, %124 : vector<16x128xf32>
    %128 = arith.addf %126, %127 : vector<16x128xf32>
    %129 = vector.broadcast %125 : vector<1x128xf32> to vector<16x128xf32>
    %130 = arith.mulf %129, %128 : vector<16x128xf32>
    %131 = arith.addf %122, %130 : vector<16x128xf32>
    %132 = vector.extract_strided_slice %3 {offsets = [0, 3584], sizes = [16, 128], strides = [1, 1]} : vector<16x8448xf32> to vector<16x128xf32>
    %133 = vector.extract_strided_slice %3 {offsets = [0, 3712], sizes = [16, 128], strides = [1, 1]} : vector<16x8448xf32> to vector<16x128xf32>
    %134 = vector.extract_strided_slice %4 {offsets = [14, 0], sizes = [1, 128], strides = [1, 1]} : vector<33x128xf32> to vector<1x128xf32>
    %135 = arith.mulf %132, %132 : vector<16x128xf32>
    %136 = arith.mulf %133, %133 : vector<16x128xf32>
    %137 = arith.addf %135, %136 : vector<16x128xf32>
    %138 = vector.broadcast %134 : vector<1x128xf32> to vector<16x128xf32>
    %139 = arith.mulf %138, %137 : vector<16x128xf32>
    %140 = arith.addf %131, %139 : vector<16x128xf32>
    %141 = vector.extract_strided_slice %3 {offsets = [0, 3840], sizes = [16, 128], strides = [1, 1]} : vector<16x8448xf32> to vector<16x128xf32>
    %142 = vector.extract_strided_slice %3 {offsets = [0, 3968], sizes = [16, 128], strides = [1, 1]} : vector<16x8448xf32> to vector<16x128xf32>
    %143 = vector.extract_strided_slice %4 {offsets = [15, 0], sizes = [1, 128], strides = [1, 1]} : vector<33x128xf32> to vector<1x128xf32>
    %144 = arith.mulf %141, %141 : vector<16x128xf32>
    %145 = arith.mulf %142, %142 : vector<16x128xf32>
    %146 = arith.addf %144, %145 : vector<16x128xf32>
    %147 = vector.broadcast %143 : vector<1x128xf32> to vector<16x128xf32>
    %148 = arith.mulf %147, %146 : vector<16x128xf32>
    %149 = arith.addf %140, %148 : vector<16x128xf32>
    %150 = vector.extract_strided_slice %3 {offsets = [0, 4096], sizes = [16, 128], strides = [1, 1]} : vector<16x8448xf32> to vector<16x128xf32>
    %151 = vector.extract_strided_slice %3 {offsets = [0, 4224], sizes = [16, 128], strides = [1, 1]} : vector<16x8448xf32> to vector<16x128xf32>
    %152 = vector.extract_strided_slice %4 {offsets = [16, 0], sizes = [1, 128], strides = [1, 1]} : vector<33x128xf32> to vector<1x128xf32>
    %153 = arith.mulf %150, %150 : vector<16x128xf32>
    %154 = arith.mulf %151, %151 : vector<16x128xf32>
    %155 = arith.addf %153, %154 : vector<16x128xf32>
    %156 = vector.broadcast %152 : vector<1x128xf32> to vector<16x128xf32>
    %157 = arith.mulf %156, %155 : vector<16x128xf32>
    %158 = arith.addf %149, %157 : vector<16x128xf32>
    %159 = vector.extract_strided_slice %3 {offsets = [0, 4352], sizes = [16, 128], strides = [1, 1]} : vector<16x8448xf32> to vector<16x128xf32>
    %160 = vector.extract_strided_slice %3 {offsets = [0, 4480], sizes = [16, 128], strides = [1, 1]} : vector<16x8448xf32> to vector<16x128xf32>
    %161 = vector.extract_strided_slice %4 {offsets = [17, 0], sizes = [1, 128], strides = [1, 1]} : vector<33x128xf32> to vector<1x128xf32>
    %162 = arith.mulf %159, %159 : vector<16x128xf32>
    %163 = arith.mulf %160, %160 : vector<16x128xf32>
    %164 = arith.addf %162, %163 : vector<16x128xf32>
    %165 = vector.broadcast %161 : vector<1x128xf32> to vector<16x128xf32>
    %166 = arith.mulf %165, %164 : vector<16x128xf32>
    %167 = arith.addf %158, %166 : vector<16x128xf32>
    %168 = vector.extract_strided_slice %3 {offsets = [0, 4608], sizes = [16, 128], strides = [1, 1]} : vector<16x8448xf32> to vector<16x128xf32>
    %169 = vector.extract_strided_slice %3 {offsets = [0, 4736], sizes = [16, 128], strides = [1, 1]} : vector<16x8448xf32> to vector<16x128xf32>
    %170 = vector.extract_strided_slice %4 {offsets = [18, 0], sizes = [1, 128], strides = [1, 1]} : vector<33x128xf32> to vector<1x128xf32>
    %171 = arith.mulf %168, %168 : vector<16x128xf32>
    %172 = arith.mulf %169, %169 : vector<16x128xf32>
    %173 = arith.addf %171, %172 : vector<16x128xf32>
    %174 = vector.broadcast %170 : vector<1x128xf32> to vector<16x128xf32>
    %175 = arith.mulf %174, %173 : vector<16x128xf32>
    %176 = arith.addf %167, %175 : vector<16x128xf32>
    %177 = vector.extract_strided_slice %3 {offsets = [0, 4864], sizes = [16, 128], strides = [1, 1]} : vector<16x8448xf32> to vector<16x128xf32>
    %178 = vector.extract_strided_slice %3 {offsets = [0, 4992], sizes = [16, 128], strides = [1, 1]} : vector<16x8448xf32> to vector<16x128xf32>
    %179 = vector.extract_strided_slice %4 {offsets = [19, 0], sizes = [1, 128], strides = [1, 1]} : vector<33x128xf32> to vector<1x128xf32>
    %180 = arith.mulf %177, %177 : vector<16x128xf32>
    %181 = arith.mulf %178, %178 : vector<16x128xf32>
    %182 = arith.addf %180, %181 : vector<16x128xf32>
    %183 = vector.broadcast %179 : vector<1x128xf32> to vector<16x128xf32>
    %184 = arith.mulf %183, %182 : vector<16x128xf32>
    %185 = arith.addf %176, %184 : vector<16x128xf32>
    %186 = vector.extract_strided_slice %3 {offsets = [0, 5120], sizes = [16, 128], strides = [1, 1]} : vector<16x8448xf32> to vector<16x128xf32>
    %187 = vector.extract_strided_slice %3 {offsets = [0, 5248], sizes = [16, 128], strides = [1, 1]} : vector<16x8448xf32> to vector<16x128xf32>
    %188 = vector.extract_strided_slice %4 {offsets = [20, 0], sizes = [1, 128], strides = [1, 1]} : vector<33x128xf32> to vector<1x128xf32>
    %189 = arith.mulf %186, %186 : vector<16x128xf32>
    %190 = arith.mulf %187, %187 : vector<16x128xf32>
    %191 = arith.addf %189, %190 : vector<16x128xf32>
    %192 = vector.broadcast %188 : vector<1x128xf32> to vector<16x128xf32>
    %193 = arith.mulf %192, %191 : vector<16x128xf32>
    %194 = arith.addf %185, %193 : vector<16x128xf32>
    %195 = vector.extract_strided_slice %3 {offsets = [0, 5376], sizes = [16, 128], strides = [1, 1]} : vector<16x8448xf32> to vector<16x128xf32>
    %196 = vector.extract_strided_slice %3 {offsets = [0, 5504], sizes = [16, 128], strides = [1, 1]} : vector<16x8448xf32> to vector<16x128xf32>
    %197 = vector.extract_strided_slice %4 {offsets = [21, 0], sizes = [1, 128], strides = [1, 1]} : vector<33x128xf32> to vector<1x128xf32>
    %198 = arith.mulf %195, %195 : vector<16x128xf32>
    %199 = arith.mulf %196, %196 : vector<16x128xf32>
    %200 = arith.addf %198, %199 : vector<16x128xf32>
    %201 = vector.broadcast %197 : vector<1x128xf32> to vector<16x128xf32>
    %202 = arith.mulf %201, %200 : vector<16x128xf32>
    %203 = arith.addf %194, %202 : vector<16x128xf32>
    %204 = vector.extract_strided_slice %3 {offsets = [0, 5632], sizes = [16, 128], strides = [1, 1]} : vector<16x8448xf32> to vector<16x128xf32>
    %205 = vector.extract_strided_slice %3 {offsets = [0, 5760], sizes = [16, 128], strides = [1, 1]} : vector<16x8448xf32> to vector<16x128xf32>
    %206 = vector.extract_strided_slice %4 {offsets = [22, 0], sizes = [1, 128], strides = [1, 1]} : vector<33x128xf32> to vector<1x128xf32>
    %207 = arith.mulf %204, %204 : vector<16x128xf32>
    %208 = arith.mulf %205, %205 : vector<16x128xf32>
    %209 = arith.addf %207, %208 : vector<16x128xf32>
    %210 = vector.broadcast %206 : vector<1x128xf32> to vector<16x128xf32>
    %211 = arith.mulf %210, %209 : vector<16x128xf32>
    %212 = arith.addf %203, %211 : vector<16x128xf32>
    %213 = vector.extract_strided_slice %3 {offsets = [0, 5888], sizes = [16, 128], strides = [1, 1]} : vector<16x8448xf32> to vector<16x128xf32>
    %214 = vector.extract_strided_slice %3 {offsets = [0, 6016], sizes = [16, 128], strides = [1, 1]} : vector<16x8448xf32> to vector<16x128xf32>
    %215 = vector.extract_strided_slice %4 {offsets = [23, 0], sizes = [1, 128], strides = [1, 1]} : vector<33x128xf32> to vector<1x128xf32>
    %216 = arith.mulf %213, %213 : vector<16x128xf32>
    %217 = arith.mulf %214, %214 : vector<16x128xf32>
    %218 = arith.addf %216, %217 : vector<16x128xf32>
    %219 = vector.broadcast %215 : vector<1x128xf32> to vector<16x128xf32>
    %220 = arith.mulf %219, %218 : vector<16x128xf32>
    %221 = arith.addf %212, %220 : vector<16x128xf32>
    %222 = vector.extract_strided_slice %3 {offsets = [0, 6144], sizes = [16, 128], strides = [1, 1]} : vector<16x8448xf32> to vector<16x128xf32>
    %223 = vector.extract_strided_slice %3 {offsets = [0, 6272], sizes = [16, 128], strides = [1, 1]} : vector<16x8448xf32> to vector<16x128xf32>
    %224 = vector.extract_strided_slice %4 {offsets = [24, 0], sizes = [1, 128], strides = [1, 1]} : vector<33x128xf32> to vector<1x128xf32>
    %225 = arith.mulf %222, %222 : vector<16x128xf32>
    %226 = arith.mulf %223, %223 : vector<16x128xf32>
    %227 = arith.addf %225, %226 : vector<16x128xf32>
    %228 = vector.broadcast %224 : vector<1x128xf32> to vector<16x128xf32>
    %229 = arith.mulf %228, %227 : vector<16x128xf32>
    %230 = arith.addf %221, %229 : vector<16x128xf32>
    %231 = vector.extract_strided_slice %3 {offsets = [0, 6400], sizes = [16, 128], strides = [1, 1]} : vector<16x8448xf32> to vector<16x128xf32>
    %232 = vector.extract_strided_slice %3 {offsets = [0, 6528], sizes = [16, 128], strides = [1, 1]} : vector<16x8448xf32> to vector<16x128xf32>
    %233 = vector.extract_strided_slice %4 {offsets = [25, 0], sizes = [1, 128], strides = [1, 1]} : vector<33x128xf32> to vector<1x128xf32>
    %234 = arith.mulf %231, %231 : vector<16x128xf32>
    %235 = arith.mulf %232, %232 : vector<16x128xf32>
    %236 = arith.addf %234, %235 : vector<16x128xf32>
    %237 = vector.broadcast %233 : vector<1x128xf32> to vector<16x128xf32>
    %238 = arith.mulf %237, %236 : vector<16x128xf32>
    %239 = arith.addf %230, %238 : vector<16x128xf32>
    %240 = vector.extract_strided_slice %3 {offsets = [0, 6656], sizes = [16, 128], strides = [1, 1]} : vector<16x8448xf32> to vector<16x128xf32>
    %241 = vector.extract_strided_slice %3 {offsets = [0, 6784], sizes = [16, 128], strides = [1, 1]} : vector<16x8448xf32> to vector<16x128xf32>
    %242 = vector.extract_strided_slice %4 {offsets = [26, 0], sizes = [1, 128], strides = [1, 1]} : vector<33x128xf32> to vector<1x128xf32>
    %243 = arith.mulf %240, %240 : vector<16x128xf32>
    %244 = arith.mulf %241, %241 : vector<16x128xf32>
    %245 = arith.addf %243, %244 : vector<16x128xf32>
    %246 = vector.broadcast %242 : vector<1x128xf32> to vector<16x128xf32>
    %247 = arith.mulf %246, %245 : vector<16x128xf32>
    %248 = arith.addf %239, %247 : vector<16x128xf32>
    %249 = vector.extract_strided_slice %3 {offsets = [0, 6912], sizes = [16, 128], strides = [1, 1]} : vector<16x8448xf32> to vector<16x128xf32>
    %250 = vector.extract_strided_slice %3 {offsets = [0, 7040], sizes = [16, 128], strides = [1, 1]} : vector<16x8448xf32> to vector<16x128xf32>
    %251 = vector.extract_strided_slice %4 {offsets = [27, 0], sizes = [1, 128], strides = [1, 1]} : vector<33x128xf32> to vector<1x128xf32>
    %252 = arith.mulf %249, %249 : vector<16x128xf32>
    %253 = arith.mulf %250, %250 : vector<16x128xf32>
    %254 = arith.addf %252, %253 : vector<16x128xf32>
    %255 = vector.broadcast %251 : vector<1x128xf32> to vector<16x128xf32>
    %256 = arith.mulf %255, %254 : vector<16x128xf32>
    %257 = arith.addf %248, %256 : vector<16x128xf32>
    %258 = vector.extract_strided_slice %3 {offsets = [0, 7168], sizes = [16, 128], strides = [1, 1]} : vector<16x8448xf32> to vector<16x128xf32>
    %259 = vector.extract_strided_slice %3 {offsets = [0, 7296], sizes = [16, 128], strides = [1, 1]} : vector<16x8448xf32> to vector<16x128xf32>
    %260 = vector.extract_strided_slice %4 {offsets = [28, 0], sizes = [1, 128], strides = [1, 1]} : vector<33x128xf32> to vector<1x128xf32>
    %261 = arith.mulf %258, %258 : vector<16x128xf32>
    %262 = arith.mulf %259, %259 : vector<16x128xf32>
    %263 = arith.addf %261, %262 : vector<16x128xf32>
    %264 = vector.broadcast %260 : vector<1x128xf32> to vector<16x128xf32>
    %265 = arith.mulf %264, %263 : vector<16x128xf32>
    %266 = arith.addf %257, %265 : vector<16x128xf32>
    %267 = vector.extract_strided_slice %3 {offsets = [0, 7424], sizes = [16, 128], strides = [1, 1]} : vector<16x8448xf32> to vector<16x128xf32>
    %268 = vector.extract_strided_slice %3 {offsets = [0, 7552], sizes = [16, 128], strides = [1, 1]} : vector<16x8448xf32> to vector<16x128xf32>
    %269 = vector.extract_strided_slice %4 {offsets = [29, 0], sizes = [1, 128], strides = [1, 1]} : vector<33x128xf32> to vector<1x128xf32>
    %270 = arith.mulf %267, %267 : vector<16x128xf32>
    %271 = arith.mulf %268, %268 : vector<16x128xf32>
    %272 = arith.addf %270, %271 : vector<16x128xf32>
    %273 = vector.broadcast %269 : vector<1x128xf32> to vector<16x128xf32>
    %274 = arith.mulf %273, %272 : vector<16x128xf32>
    %275 = arith.addf %266, %274 : vector<16x128xf32>
    %276 = vector.extract_strided_slice %3 {offsets = [0, 7680], sizes = [16, 128], strides = [1, 1]} : vector<16x8448xf32> to vector<16x128xf32>
    %277 = vector.extract_strided_slice %3 {offsets = [0, 7808], sizes = [16, 128], strides = [1, 1]} : vector<16x8448xf32> to vector<16x128xf32>
    %278 = vector.extract_strided_slice %4 {offsets = [30, 0], sizes = [1, 128], strides = [1, 1]} : vector<33x128xf32> to vector<1x128xf32>
    %279 = arith.mulf %276, %276 : vector<16x128xf32>
    %280 = arith.mulf %277, %277 : vector<16x128xf32>
    %281 = arith.addf %279, %280 : vector<16x128xf32>
    %282 = vector.broadcast %278 : vector<1x128xf32> to vector<16x128xf32>
    %283 = arith.mulf %282, %281 : vector<16x128xf32>
    %284 = arith.addf %275, %283 : vector<16x128xf32>
    %285 = vector.extract_strided_slice %3 {offsets = [0, 7936], sizes = [16, 128], strides = [1, 1]} : vector<16x8448xf32> to vector<16x128xf32>
    %286 = vector.extract_strided_slice %3 {offsets = [0, 8064], sizes = [16, 128], strides = [1, 1]} : vector<16x8448xf32> to vector<16x128xf32>
    %287 = vector.extract_strided_slice %4 {offsets = [31, 0], sizes = [1, 128], strides = [1, 1]} : vector<33x128xf32> to vector<1x128xf32>
    %288 = arith.mulf %285, %285 : vector<16x128xf32>
    %289 = arith.mulf %286, %286 : vector<16x128xf32>
    %290 = arith.addf %288, %289 : vector<16x128xf32>
    %291 = vector.broadcast %287 : vector<1x128xf32> to vector<16x128xf32>
    %292 = arith.mulf %291, %290 : vector<16x128xf32>
    %293 = arith.addf %284, %292 : vector<16x128xf32>
    %294 = vector.extract_strided_slice %3 {offsets = [0, 8192], sizes = [16, 128], strides = [1, 1]} : vector<16x8448xf32> to vector<16x128xf32>
    %295 = vector.extract_strided_slice %3 {offsets = [0, 8320], sizes = [16, 128], strides = [1, 1]} : vector<16x8448xf32> to vector<16x128xf32>
    %296 = vector.extract_strided_slice %4 {offsets = [32, 0], sizes = [1, 128], strides = [1, 1]} : vector<33x128xf32> to vector<1x128xf32>
    %297 = arith.mulf %294, %294 : vector<16x128xf32>
    %298 = arith.mulf %295, %295 : vector<16x128xf32>
    %299 = arith.addf %297, %298 : vector<16x128xf32>
    %300 = vector.broadcast %296 : vector<1x128xf32> to vector<16x128xf32>
    %301 = arith.mulf %300, %299 : vector<16x128xf32>
    %302 = arith.addf %293, %301 : vector<16x128xf32>
    %cst_6 = arith.constant 9.99999974E-6 : f32
    %303 = vector.broadcast %cst_6 : f32 to vector<16x128xf32>
    %304 = arith.maximumf %302, %303 : vector<16x128xf32>
    %c0_7 = arith.constant 0 : index
    %c0_8 = arith.constant 0 : index
    %305 = vector.load %arg4[%c0_7, %c0_8] : memref<1x128xf32, #tpu.memory_space<vmem>>, vector<1x128xf32>
    %c0_9 = arith.constant 0 : index
    %c0_10 = arith.constant 0 : index
    %306 = vector.load %arg5[%c0_9, %c0_10] : memref<1x128xf32, #tpu.memory_space<vmem>>, vector<1x128xf32>
    %c0_11 = arith.constant 0 : index
    %c0_12 = arith.constant 0 : index
    %307 = vector.load %arg7[%c0_11, %c0_12] : memref<1x128xf32, #tpu.memory_space<vmem>>, vector<1x128xf32>
    %c0_13 = arith.constant 0 : index
    %c0_14 = arith.constant 0 : index
    %308 = vector.load %arg6[%c0_13, %c0_14] : memref<1x128xf32, #tpu.memory_space<vmem>>, vector<1x128xf32>
    %cst_15 = arith.constant 1.000000e+00 : f32
    %309 = vector.broadcast %cst_15 : f32 to vector<1x128xf32>
    %310 = arith.divf %309, %308 : vector<1x128xf32>
    %311 = vector.extract_strided_slice %304 {offsets = [0, 0], sizes = [1, 128], strides = [1, 1]} : vector<16x128xf32> to vector<1x128xf32>
    %cst_16 = arith.constant 1.000000e+00 : f32
    %312 = vector.broadcast %cst_16 : f32 to vector<1x128xf32>
    %313 = arith.subf %312, %307 : vector<1x128xf32>
    %314 = arith.mulf %313, %311 : vector<1x128xf32>
    %315 = vector.extract_strided_slice %304 {offsets = [1, 0], sizes = [1, 128], strides = [1, 1]} : vector<16x128xf32> to vector<1x128xf32>
    %316 = arith.mulf %307, %315 : vector<1x128xf32>
    %317 = arith.addf %314, %316 : vector<1x128xf32>
    %cst_17 = arith.constant 1.000000e+00 : f32
    %318 = vector.broadcast %cst_17 : f32 to vector<1x128xf32>
    %319 = arith.subf %318, %307 : vector<1x128xf32>
    %320 = arith.mulf %319, %317 : vector<1x128xf32>
    %321 = vector.extract_strided_slice %304 {offsets = [2, 0], sizes = [1, 128], strides = [1, 1]} : vector<16x128xf32> to vector<1x128xf32>
    %322 = arith.mulf %307, %321 : vector<1x128xf32>
    %323 = arith.addf %320, %322 : vector<1x128xf32>
    %cst_18 = arith.constant 1.000000e+00 : f32
    %324 = vector.broadcast %cst_18 : f32 to vector<1x128xf32>
    %325 = arith.subf %324, %307 : vector<1x128xf32>
    %326 = arith.mulf %325, %323 : vector<1x128xf32>
    %327 = vector.extract_strided_slice %304 {offsets = [3, 0], sizes = [1, 128], strides = [1, 1]} : vector<16x128xf32> to vector<1x128xf32>
    %328 = arith.mulf %307, %327 : vector<1x128xf32>
    %329 = arith.addf %326, %328 : vector<1x128xf32>
    %cst_19 = arith.constant 1.000000e+00 : f32
    %330 = vector.broadcast %cst_19 : f32 to vector<1x128xf32>
    %331 = arith.subf %330, %307 : vector<1x128xf32>
    %332 = arith.mulf %331, %329 : vector<1x128xf32>
    %333 = vector.extract_strided_slice %304 {offsets = [4, 0], sizes = [1, 128], strides = [1, 1]} : vector<16x128xf32> to vector<1x128xf32>
    %334 = arith.mulf %307, %333 : vector<1x128xf32>
    %335 = arith.addf %332, %334 : vector<1x128xf32>
    %cst_20 = arith.constant 1.000000e+00 : f32
    %336 = vector.broadcast %cst_20 : f32 to vector<1x128xf32>
    %337 = arith.subf %336, %307 : vector<1x128xf32>
    %338 = arith.mulf %337, %335 : vector<1x128xf32>
    %339 = vector.extract_strided_slice %304 {offsets = [5, 0], sizes = [1, 128], strides = [1, 1]} : vector<16x128xf32> to vector<1x128xf32>
    %340 = arith.mulf %307, %339 : vector<1x128xf32>
    %341 = arith.addf %338, %340 : vector<1x128xf32>
    %cst_21 = arith.constant 1.000000e+00 : f32
    %342 = vector.broadcast %cst_21 : f32 to vector<1x128xf32>
    %343 = arith.subf %342, %307 : vector<1x128xf32>
    %344 = arith.mulf %343, %341 : vector<1x128xf32>
    %345 = vector.extract_strided_slice %304 {offsets = [6, 0], sizes = [1, 128], strides = [1, 1]} : vector<16x128xf32> to vector<1x128xf32>
    %346 = arith.mulf %307, %345 : vector<1x128xf32>
    %347 = arith.addf %344, %346 : vector<1x128xf32>
    %cst_22 = arith.constant 1.000000e+00 : f32
    %348 = vector.broadcast %cst_22 : f32 to vector<1x128xf32>
    %349 = arith.subf %348, %307 : vector<1x128xf32>
    %350 = arith.mulf %349, %347 : vector<1x128xf32>
    %351 = vector.extract_strided_slice %304 {offsets = [7, 0], sizes = [1, 128], strides = [1, 1]} : vector<16x128xf32> to vector<1x128xf32>
    %352 = arith.mulf %307, %351 : vector<1x128xf32>
    %353 = arith.addf %350, %352 : vector<1x128xf32>
    %354 = vector.extract_strided_slice %304 {offsets = [8, 0], sizes = [1, 128], strides = [1, 1]} : vector<16x128xf32> to vector<1x128xf32>
    %cst_23 = arith.constant 1.000000e+00 : f32
    %355 = vector.broadcast %cst_23 : f32 to vector<1x128xf32>
    %356 = arith.subf %355, %307 : vector<1x128xf32>
    %357 = arith.mulf %356, %354 : vector<1x128xf32>
    %358 = vector.extract_strided_slice %304 {offsets = [9, 0], sizes = [1, 128], strides = [1, 1]} : vector<16x128xf32> to vector<1x128xf32>
    %359 = arith.mulf %307, %358 : vector<1x128xf32>
    %360 = arith.addf %357, %359 : vector<1x128xf32>
    %cst_24 = arith.constant 1.000000e+00 : f32
    %361 = vector.broadcast %cst_24 : f32 to vector<1x128xf32>
    %362 = arith.subf %361, %307 : vector<1x128xf32>
    %363 = arith.mulf %362, %360 : vector<1x128xf32>
    %364 = vector.extract_strided_slice %304 {offsets = [10, 0], sizes = [1, 128], strides = [1, 1]} : vector<16x128xf32> to vector<1x128xf32>
    %365 = arith.mulf %307, %364 : vector<1x128xf32>
    %366 = arith.addf %363, %365 : vector<1x128xf32>
    %cst_25 = arith.constant 1.000000e+00 : f32
    %367 = vector.broadcast %cst_25 : f32 to vector<1x128xf32>
    %368 = arith.subf %367, %307 : vector<1x128xf32>
    %369 = arith.mulf %368, %366 : vector<1x128xf32>
    %370 = vector.extract_strided_slice %304 {offsets = [11, 0], sizes = [1, 128], strides = [1, 1]} : vector<16x128xf32> to vector<1x128xf32>
    %371 = arith.mulf %307, %370 : vector<1x128xf32>
    %372 = arith.addf %369, %371 : vector<1x128xf32>
    %cst_26 = arith.constant 1.000000e+00 : f32
    %373 = vector.broadcast %cst_26 : f32 to vector<1x128xf32>
    %374 = arith.subf %373, %307 : vector<1x128xf32>
    %375 = arith.mulf %374, %372 : vector<1x128xf32>
    %376 = vector.extract_strided_slice %304 {offsets = [12, 0], sizes = [1, 128], strides = [1, 1]} : vector<16x128xf32> to vector<1x128xf32>
    %377 = arith.mulf %307, %376 : vector<1x128xf32>
    %378 = arith.addf %375, %377 : vector<1x128xf32>
    %cst_27 = arith.constant 1.000000e+00 : f32
    %379 = vector.broadcast %cst_27 : f32 to vector<1x128xf32>
    %380 = arith.subf %379, %307 : vector<1x128xf32>
    %381 = arith.mulf %380, %378 : vector<1x128xf32>
    %382 = vector.extract_strided_slice %304 {offsets = [13, 0], sizes = [1, 128], strides = [1, 1]} : vector<16x128xf32> to vector<1x128xf32>
    %383 = arith.mulf %307, %382 : vector<1x128xf32>
    %384 = arith.addf %381, %383 : vector<1x128xf32>
    %cst_28 = arith.constant 1.000000e+00 : f32
    %385 = vector.broadcast %cst_28 : f32 to vector<1x128xf32>
    %386 = arith.subf %385, %307 : vector<1x128xf32>
    %387 = arith.mulf %386, %384 : vector<1x128xf32>
    %388 = vector.extract_strided_slice %304 {offsets = [14, 0], sizes = [1, 128], strides = [1, 1]} : vector<16x128xf32> to vector<1x128xf32>
    %389 = arith.mulf %307, %388 : vector<1x128xf32>
    %390 = arith.addf %387, %389 : vector<1x128xf32>
    %cst_29 = arith.constant 1.000000e+00 : f32
    %391 = vector.broadcast %cst_29 : f32 to vector<1x128xf32>
    %392 = arith.subf %391, %307 : vector<1x128xf32>
    %393 = arith.mulf %392, %390 : vector<1x128xf32>
    %394 = vector.extract_strided_slice %304 {offsets = [15, 0], sizes = [1, 128], strides = [1, 1]} : vector<16x128xf32> to vector<1x128xf32>
    %395 = arith.mulf %307, %394 : vector<1x128xf32>
    %396 = arith.addf %393, %395 : vector<1x128xf32>
    %397 = tpu.concatenate %311, %317, %323, %329, %335, %341, %347, %353, %354, %360, %366, %372, %378, %384, %390, %396 in 0 : vector<1x128xf32>, vector<1x128xf32>, vector<1x128xf32>, vector<1x128xf32>, vector<1x128xf32>, vector<1x128xf32>, vector<1x128xf32>, vector<1x128xf32>, vector<1x128xf32>, vector<1x128xf32>, vector<1x128xf32>, vector<1x128xf32>, vector<1x128xf32>, vector<1x128xf32>, vector<1x128xf32>, vector<1x128xf32> -> vector<16x128xf32>
    %398 = math.log %306 : vector<1x128xf32>
    %399 = arith.mulf %310, %398 : vector<1x128xf32>
    %400 = math.exp %399 : vector<1x128xf32>
    %cst_30 = arith.constant 9.99999997E-7 : f32
    %401 = vector.broadcast %cst_30 : f32 to vector<16x128xf32>
    %402 = arith.addf %401, %397 : vector<16x128xf32>
    %403 = math.log %402 : vector<16x128xf32>
    %404 = vector.broadcast %305 : vector<1x128xf32> to vector<16x128xf32>
    %405 = arith.mulf %404, %403 : vector<16x128xf32>
    %406 = math.exp %405 : vector<16x128xf32>
    %407 = arith.divf %304, %406 : vector<16x128xf32>
    %408 = vector.broadcast %306 : vector<1x128xf32> to vector<16x128xf32>
    %409 = arith.addf %407, %408 : vector<16x128xf32>
    %410 = math.log %409 : vector<16x128xf32>
    %411 = vector.broadcast %310 : vector<1x128xf32> to vector<16x128xf32>
    %412 = arith.mulf %411, %410 : vector<16x128xf32>
    %413 = math.exp %412 : vector<16x128xf32>
    %414 = vector.broadcast %400 : vector<1x128xf32> to vector<16x128xf32>
    %415 = arith.subf %413, %414 : vector<16x128xf32>
    %416 = vector.extract_strided_slice %415 {offsets = [0, 0], sizes = [7, 128], strides = [1, 1]} : vector<16x128xf32> to vector<7x128xf32>
    %417 = vector.extract_strided_slice %415 {offsets = [1, 0], sizes = [7, 128], strides = [1, 1]} : vector<16x128xf32> to vector<7x128xf32>
    %418 = tpu.concatenate %416, %417 in 1 : vector<7x128xf32>, vector<7x128xf32> -> vector<7x256xf32>
    %419 = vector.extract_strided_slice %415 {offsets = [8, 0], sizes = [7, 128], strides = [1, 1]} : vector<16x128xf32> to vector<7x128xf32>
    %420 = vector.extract_strided_slice %415 {offsets = [9, 0], sizes = [7, 128], strides = [1, 1]} : vector<16x128xf32> to vector<7x128xf32>
    %421 = tpu.concatenate %419, %420 in 1 : vector<7x128xf32>, vector<7x128xf32> -> vector<7x256xf32>
    %422 = tpu.concatenate %418, %421 in 0 : vector<7x256xf32>, vector<7x256xf32> -> vector<14x256xf32>
    %423 = arith.truncf %422 : vector<14x256xf32> to vector<14x256xbf16>
    %c0_31 = arith.constant 0 : index
    %c0_32 = arith.constant 0 : index
    %424 = vector.load %arg8[%c0_31, %c0_32] : memref<256x192xbf16, #tpu.memory_space<vmem>>, vector<256x192xbf16>
    %cst_33 = arith.constant dense<0.000000e+00> : vector<14x192xf32>
    %425 = tpu.matmul %423, %424, %cst_33 {dimension_numbers = #tpu.dot_dimension_numbers<[1], [0], [0], [1], [0, 0, 1, 1], [], []>} : vector<14x256xbf16>, vector<256x192xbf16>, vector<14x192xf32> -> vector<14x192xf32>
    %c0_34 = arith.constant 0 : index
    %c0_35 = arith.constant 0 : index
    %426 = vector.load %arg9[%c0_34, %c0_35] : memref<1x192xf32, #tpu.memory_space<vmem>>, vector<1x192xf32>
    %427 = vector.broadcast %426 : vector<1x192xf32> to vector<14x192xf32>
    %428 = arith.addf %425, %427 : vector<14x192xf32>
    %c0_36 = arith.constant 0 : index
    %c0_37 = arith.constant 0 : index
    %429 = vector.load %arg11[%c0_36, %c0_37] : memref<9x192xf32, #tpu.memory_space<vmem>>, vector<9x192xf32>
    %c0_38 = arith.constant 0 : index
    %c0_39 = arith.constant 0 : index
    %430 = vector.load %arg10[%c0_38, %c0_39] : memref<2x192xf32, #tpu.memory_space<vmem>>, vector<2x192xf32>
    %431 = vector.extract_strided_slice %429 {offsets = [0, 0], sizes = [2, 192], strides = [1, 1]} : vector<9x192xf32> to vector<2x192xf32>
    %432 = arith.addf %430, %431 : vector<2x192xf32>
    %433 = vector.extract_strided_slice %428 {offsets = [0, 0], sizes = [7, 192], strides = [1, 1]} : vector<14x192xf32> to vector<7x192xf32>
    %434 = vector.extract_strided_slice %429 {offsets = [2, 0], sizes = [7, 192], strides = [1, 1]} : vector<9x192xf32> to vector<7x192xf32>
    %435 = arith.addf %433, %434 : vector<7x192xf32>
    %436 = vector.extract_strided_slice %428 {offsets = [7, 0], sizes = [7, 192], strides = [1, 1]} : vector<14x192xf32> to vector<7x192xf32>
    %437 = vector.extract_strided_slice %429 {offsets = [2, 0], sizes = [7, 192], strides = [1, 1]} : vector<9x192xf32> to vector<7x192xf32>
    %438 = arith.addf %436, %437 : vector<7x192xf32>
    %439 = tpu.concatenate %432, %435, %432, %438 in 0 : vector<2x192xf32>, vector<7x192xf32>, vector<2x192xf32>, vector<7x192xf32> -> vector<18x192xf32>
    %c0_40 = arith.constant 0 : index
    %c0_41 = arith.constant 0 : index
    %440 = vector.load %arg12[%c0_40, %c0_41] : memref<18x192xf32, #tpu.memory_space<vmem>>, vector<18x192xf32>
    tpu.vector_store %arg12[%c0_40, %c0_41], %439 {strides = array<i32>} : memref<18x192xf32, #tpu.memory_space<vmem>>, vector<18x192xf32>,
    return
  }
  func.func @transform_0(%arg0: i32) -> (i32, i32) {
    %c0_i32 = arith.constant 0 : i32
    %c0_i32_0 = arith.constant 0 : i32
    %c0_i32_1 = arith.constant 0 : i32
    return %c0_i32, %c0_i32_0 : i32, i32
  }
  func.func @transform_1(%arg0: i32) -> (i32, i32) {
    %c0_i32 = arith.constant 0 : i32
    %c0_i32_0 = arith.constant 0 : i32
    %c0_i32_1 = arith.constant 0 : i32
    return %c0_i32, %c0_i32_0 : i32, i32
  }
  func.func @transform_2(%arg0: i32) -> (i32, i32) {
    %c0_i32 = arith.constant 0 : i32
    %c0_i32_0 = arith.constant 0 : i32
    %c0_i32_1 = arith.constant 0 : i32
    return %c0_i32, %c0_i32_0 : i32, i32
  }
  func.func @transform_3(%arg0: i32) -> (i32, i32) {
    %c0_i32 = arith.constant 0 : i32
    %c0_i32_0 = arith.constant 0 : i32
    %c0_i32_1 = arith.constant 0 : i32
    return %c0_i32, %c0_i32_0 : i32, i32
  }
  func.func @transform_4(%arg0: i32) -> (i32, i32) {
    %c0_i32 = arith.constant 0 : i32
    %c0_i32_0 = arith.constant 0 : i32
    %c0_i32_1 = arith.constant 0 : i32
    return %c0_i32, %c0_i32_0 : i32, i32
  }
  func.func @transform_5(%arg0: i32) -> (i32, i32) {
    %c0_i32 = arith.constant 0 : i32
    %c0_i32_0 = arith.constant 0 : i32
    %c0_i32_1 = arith.constant 0 : i32
    return %c0_i32, %c0_i32_0 : i32, i32
  }
  func.func @transform_6(%arg0: i32) -> (i32, i32) {
    %c0_i32 = arith.constant 0 : i32
    %c0_i32_0 = arith.constant 0 : i32
    %c0_i32_1 = arith.constant 0 : i32
    return %c0_i32, %c0_i32_0 : i32, i32
  }
  func.func @transform_7(%arg0: i32) -> (i32, i32) {
    %c0_i32 = arith.constant 0 : i32
    %c0_i32_0 = arith.constant 0 : i32
    %c0_i32_1 = arith.constant 0 : i32
    return %c0_i32, %c0_i32_0 : i32, i32
  }
  func.func @transform_8(%arg0: i32) -> (i32, i32) {
    %c0_i32 = arith.constant 0 : i32
    %c0_i32_0 = arith.constant 0 : i32
    %c0_i32_1 = arith.constant 0 : i32
    return %c0_i32, %c0_i32_0 : i32, i32
  }
  func.func @transform_9(%arg0: i32) -> (i32, i32) {
    %c0_i32 = arith.constant 0 : i32
    %c0_i32_0 = arith.constant 0 : i32
    %c0_i32_1 = arith.constant 0 : i32
    return %c0_i32, %c0_i32_0 : i32, i32
  }
  func.func @transform_10(%arg0: i32) -> (i32, i32) {
    %c0_i32 = arith.constant 0 : i32
    %c0_i32_0 = arith.constant 0 : i32
    %c0_i32_1 = arith.constant 0 : i32
    return %c0_i32, %c0_i32_0 : i32, i32
  }
  func.func @transform_11(%arg0: i32) -> (i32, i32) {
    %c0_i32 = arith.constant 0 : i32
    %c0_i32_0 = arith.constant 0 : i32
    %c0_i32_1 = arith.constant 0 : i32
    return %c0_i32, %c0_i32_0 : i32, i32
  }
}

module attributes {stable_mosaic.version = 11 : i64} {
  func.func @stack_kernel(%arg0: i32, %arg1: memref<18x192xf32, #tpu.memory_space<vmem>>, %arg2: memref<1x1x192xf32, #tpu.memory_space<vmem>>, %arg3: memref<1x1x192xf32, #tpu.memory_space<vmem>>, %arg4: memref<1x192x1152xbf16, #tpu.memory_space<vmem>>, %arg5: memref<1x1x1152xf32, #tpu.memory_space<vmem>>, %arg6: memref<1x384x192xbf16, #tpu.memory_space<vmem>>, %arg7: memref<1x1x192xf32, #tpu.memory_space<vmem>>, %arg8: memref<1x1x192xf32, #tpu.memory_space<vmem>>, %arg9: memref<1x1x192xf32, #tpu.memory_space<vmem>>, %arg10: memref<1x192x768xbf16, #tpu.memory_space<vmem>>, %arg11: memref<1x1x768xf32, #tpu.memory_space<vmem>>, %arg12: memref<1x768x192xbf16, #tpu.memory_space<vmem>>, %arg13: memref<1x1x192xf32, #tpu.memory_space<vmem>>, %arg14: memref<1x192xf32, #tpu.memory_space<vmem>>, %arg15: memref<1x192xf32, #tpu.memory_space<vmem>>, %arg16: memref<1x192xf32, #tpu.memory_space<vmem>>, %arg17: memref<1x192xf32, #tpu.memory_space<vmem>>, %arg18: memref<192x4xf32, #tpu.memory_space<vmem>>, %arg19: memref<1x4xf32, #tpu.memory_space<vmem>>, %arg20: memref<2x4xf32, #tpu.memory_space<vmem>>, %arg21: memref<18x192xf32, #tpu.memory_space<vmem>>) attributes {dimension_semantics = [#tpu.dimension_semantics<arbitrary>], iteration_bounds = array<i64: 12>, scalar_prefetch = 0 : i64, scratch_operands = 1 : i64, tpu.core_type = #tpu.core_type<tc>, window_params = [{pipeline_mode = #tpu.pipeline_mode<synchronous>, transform_indices = @transform_0, window_bounds = array<i64: 18, 192>}, {transform_indices = @transform_1, window_bounds = array<i64: 1, 1, 192>}, {transform_indices = @transform_2, window_bounds = array<i64: 1, 1, 192>}, {transform_indices = @transform_3, window_bounds = array<i64: 1, 192, 1152>}, {transform_indices = @transform_4, window_bounds = array<i64: 1, 1, 1152>}, {transform_indices = @transform_5, window_bounds = array<i64: 1, 384, 192>}, {transform_indices = @transform_6, window_bounds = array<i64: 1, 1, 192>}, {transform_indices = @transform_7, window_bounds = array<i64: 1, 1, 192>}, {transform_indices = @transform_8, window_bounds = array<i64: 1, 1, 192>}, {transform_indices = @transform_9, window_bounds = array<i64: 1, 192, 768>}, {transform_indices = @transform_10, window_bounds = array<i64: 1, 1, 768>}, {transform_indices = @transform_11, window_bounds = array<i64: 1, 768, 192>}, {transform_indices = @transform_12, window_bounds = array<i64: 1, 1, 192>}, {pipeline_mode = #tpu.pipeline_mode<synchronous>, transform_indices = @transform_13, window_bounds = array<i64: 1, 192>}, {pipeline_mode = #tpu.pipeline_mode<synchronous>, transform_indices = @transform_14, window_bounds = array<i64: 1, 192>}, {pipeline_mode = #tpu.pipeline_mode<synchronous>, transform_indices = @transform_15, window_bounds = array<i64: 1, 192>}, {pipeline_mode = #tpu.pipeline_mode<synchronous>, transform_indices = @transform_16, window_bounds = array<i64: 1, 192>}, {pipeline_mode = #tpu.pipeline_mode<synchronous>, transform_indices = @transform_17, window_bounds = array<i64: 192, 4>}, {pipeline_mode = #tpu.pipeline_mode<synchronous>, transform_indices = @transform_18, window_bounds = array<i64: 1, 4>}, {pipeline_mode = #tpu.pipeline_mode<synchronous>, transform_indices = @transform_19, window_bounds = array<i64: 2, 4>}]} {
    %c0_i32 = arith.constant 0 : i32
    %0 = arith.cmpi eq, %arg0, %c0_i32 : i32
    %1 = arith.extui %0 : i1 to i32
    %c0_i32_0 = arith.constant 0 : i32
    %2 = arith.cmpi ne, %1, %c0_i32_0 : i32
    scf.if %2 {
      %c0_88 = arith.constant 0 : index
      %c0_89 = arith.constant 0 : index
      %206 = vector.load %arg1[%c0_88, %c0_89] : memref<18x192xf32, #tpu.memory_space<vmem>>, vector<18x192xf32>
      %c0_90 = arith.constant 0 : index
      %c0_91 = arith.constant 0 : index
      %207 = vector.load %arg21[%c0_90, %c0_91] : memref<18x192xf32, #tpu.memory_space<vmem>>, vector<18x192xf32>
      tpu.vector_store %arg21[%c0_90, %c0_91], %206 {strides = array<i32>} : memref<18x192xf32, #tpu.memory_space<vmem>>, vector<18x192xf32>,
    } else {
    }
    %c0 = arith.constant 0 : index
    %c0_1 = arith.constant 0 : index
    %3 = vector.load %arg21[%c0, %c0_1] : memref<18x192xf32, #tpu.memory_space<vmem>>, vector<18x192xf32>
    %c0_2 = arith.constant 0 : index
    %c0_3 = arith.constant 0 : index
    %c0_4 = arith.constant 0 : index
    %4 = vector.load %arg2[%c0_2, %c0_3, %c0_4] : memref<1x1x192xf32, #tpu.memory_space<vmem>>, vector<1x1x192xf32>
    %5 = vector.shape_cast %4 : vector<1x1x192xf32> to vector<1x192xf32>
    %c0_5 = arith.constant 0 : index
    %c0_6 = arith.constant 0 : index
    %c0_7 = arith.constant 0 : index
    %6 = vector.load %arg3[%c0_5, %c0_6, %c0_7] : memref<1x1x192xf32, #tpu.memory_space<vmem>>, vector<1x1x192xf32>
    %7 = vector.shape_cast %6 : vector<1x1x192xf32> to vector<1x192xf32>
    %cst = arith.constant dense<0.000000e+00> : vector<18xf32>
    %8 = vector.multi_reduction <add>, %3, %cst [1] : vector<18x192xf32> to vector<18xf32>
    %9 = vector.shape_cast %8 : vector<18xf32> to vector<18x1xf32>
    %cst_8 = arith.constant 1.920000e+02 : f32
    %10 = vector.broadcast %cst_8 : f32 to vector<18x1xf32>
    %11 = arith.divf %9, %10 : vector<18x1xf32>
    %12 = vector.broadcast %11 : vector<18x1xf32> to vector<18x192xf32>
    %13 = arith.subf %3, %12 : vector<18x192xf32>
    %14 = arith.mulf %13, %13 : vector<18x192xf32>
    %cst_9 = arith.constant dense<0.000000e+00> : vector<18xf32>
    %15 = vector.multi_reduction <add>, %14, %cst_9 [1] : vector<18x192xf32> to vector<18xf32>
    %16 = vector.shape_cast %15 : vector<18xf32> to vector<18x1xf32>
    %cst_10 = arith.constant 1.920000e+02 : f32
    %17 = vector.broadcast %cst_10 : f32 to vector<18x1xf32>
    %18 = arith.divf %16, %17 : vector<18x1xf32>
    %19 = vector.broadcast %11 : vector<18x1xf32> to vector<18x192xf32>
    %20 = arith.subf %3, %19 : vector<18x192xf32>
    %cst_11 = arith.constant 9.99999997E-7 : f32
    %21 = vector.broadcast %cst_11 : f32 to vector<18x1xf32>
    %22 = arith.addf %18, %21 : vector<18x1xf32>
    %23 = math.rsqrt %22 : vector<18x1xf32>
    %24 = vector.broadcast %23 : vector<18x1xf32> to vector<18x192xf32>
    %25 = arith.mulf %20, %24 : vector<18x192xf32>
    %26 = vector.broadcast %5 : vector<1x192xf32> to vector<18x192xf32>
    %27 = arith.mulf %25, %26 : vector<18x192xf32>
    %28 = vector.broadcast %7 : vector<1x192xf32> to vector<18x192xf32>
    %29 = arith.addf %27, %28 : vector<18x192xf32>
    %30 = arith.truncf %29 : vector<18x192xf32> to vector<18x192xbf16>
    %c0_12 = arith.constant 0 : index
    %c0_13 = arith.constant 0 : index
    %c0_14 = arith.constant 0 : index
    %31 = vector.load %arg4[%c0_12, %c0_13, %c0_14] : memref<1x192x1152xbf16, #tpu.memory_space<vmem>>, vector<1x192x1152xbf16>
    %32 = vector.shape_cast %31 : vector<1x192x1152xbf16> to vector<192x1152xbf16>
    %cst_15 = arith.constant dense<0.000000e+00> : vector<18x1152xf32>
    %33 = tpu.matmul %30, %32, %cst_15 {dimension_numbers = #tpu.dot_dimension_numbers<[1], [0], [0], [1], [0, 0, 1, 1], [], []>} : vector<18x192xbf16>, vector<192x1152xbf16>, vector<18x1152xf32> -> vector<18x1152xf32>
    %c0_16 = arith.constant 0 : index
    %c0_17 = arith.constant 0 : index
    %c0_18 = arith.constant 0 : index
    %34 = vector.load %arg5[%c0_16, %c0_17, %c0_18] : memref<1x1x1152xf32, #tpu.memory_space<vmem>>, vector<1x1x1152xf32>
    %35 = vector.shape_cast %34 : vector<1x1x1152xf32> to vector<1x1152xf32>
    %36 = vector.broadcast %35 : vector<1x1152xf32> to vector<18x1152xf32>
    %37 = arith.addf %33, %36 : vector<18x1152xf32>
    %38 = vector.extract_strided_slice %37 {offsets = [0, 0], sizes = [9, 128], strides = [1, 1]} : vector<18x1152xf32> to vector<9x128xf32>
    %39 = vector.extract_strided_slice %37 {offsets = [0, 384], sizes = [9, 128], strides = [1, 1]} : vector<18x1152xf32> to vector<9x128xf32>
    %40 = vector.extract_strided_slice %37 {offsets = [0, 768], sizes = [9, 128], strides = [1, 1]} : vector<18x1152xf32> to vector<9x128xf32>
    %cst_19 = arith.constant dense<0.000000e+00> : vector<9x9xf32>
    %41 = tpu.matmul %38, %39, %cst_19 {dimension_numbers = #tpu.dot_dimension_numbers<[1], [1], [0], [0], [0, 0, 1, 0], [], []>} : vector<9x128xf32>, vector<9x128xf32>, vector<9x9xf32> -> vector<9x9xf32>
    %cst_20 = arith.constant 1.250000e-01 : f32
    %42 = vector.broadcast %cst_20 : f32 to vector<9x9xf32>
    %43 = arith.mulf %41, %42 : vector<9x9xf32>
    %cst_21 = arith.constant dense<0xFF800000> : vector<9xf32>
    %44 = vector.multi_reduction <maximumf>, %43, %cst_21 [1] : vector<9x9xf32> to vector<9xf32>
    %45 = vector.shape_cast %44 : vector<9xf32> to vector<9x1xf32>
    %46 = vector.broadcast %45 : vector<9x1xf32> to vector<9x9xf32>
    %47 = arith.subf %43, %46 : vector<9x9xf32>
    %48 = math.exp %47 : vector<9x9xf32>
    %cst_22 = arith.constant dense<0.000000e+00> : vector<9xf32>
    %49 = vector.multi_reduction <add>, %48, %cst_22 [1] : vector<9x9xf32> to vector<9xf32>
    %50 = vector.shape_cast %49 : vector<9xf32> to vector<9x1xf32>
    %51 = vector.broadcast %50 : vector<9x1xf32> to vector<9x9xf32>
    %52 = arith.divf %48, %51 : vector<9x9xf32>
    %cst_23 = arith.constant dense<0.000000e+00> : vector<9x128xf32>
    %53 = tpu.matmul %52, %40, %cst_23 {dimension_numbers = #tpu.dot_dimension_numbers<[1], [0], [0], [1], [0, 0, 1, 1], [], []>} : vector<9x9xf32>, vector<9x128xf32>, vector<9x128xf32> -> vector<9x128xf32>
    %54 = vector.extract_strided_slice %37 {offsets = [0, 128], sizes = [9, 128], strides = [1, 1]} : vector<18x1152xf32> to vector<9x128xf32>
    %55 = vector.extract_strided_slice %37 {offsets = [0, 512], sizes = [9, 128], strides = [1, 1]} : vector<18x1152xf32> to vector<9x128xf32>
    %56 = vector.extract_strided_slice %37 {offsets = [0, 896], sizes = [9, 128], strides = [1, 1]} : vector<18x1152xf32> to vector<9x128xf32>
    %cst_24 = arith.constant dense<0.000000e+00> : vector<9x9xf32>
    %57 = tpu.matmul %54, %55, %cst_24 {dimension_numbers = #tpu.dot_dimension_numbers<[1], [1], [0], [0], [0, 0, 1, 0], [], []>} : vector<9x128xf32>, vector<9x128xf32>, vector<9x9xf32> -> vector<9x9xf32>
    %cst_25 = arith.constant 1.250000e-01 : f32
    %58 = vector.broadcast %cst_25 : f32 to vector<9x9xf32>
    %59 = arith.mulf %57, %58 : vector<9x9xf32>
    %cst_26 = arith.constant dense<0xFF800000> : vector<9xf32>
    %60 = vector.multi_reduction <maximumf>, %59, %cst_26 [1] : vector<9x9xf32> to vector<9xf32>
    %61 = vector.shape_cast %60 : vector<9xf32> to vector<9x1xf32>
    %62 = vector.broadcast %61 : vector<9x1xf32> to vector<9x9xf32>
    %63 = arith.subf %59, %62 : vector<9x9xf32>
    %64 = math.exp %63 : vector<9x9xf32>
    %cst_27 = arith.constant dense<0.000000e+00> : vector<9xf32>
    %65 = vector.multi_reduction <add>, %64, %cst_27 [1] : vector<9x9xf32> to vector<9xf32>
    %66 = vector.shape_cast %65 : vector<9xf32> to vector<9x1xf32>
    %67 = vector.broadcast %66 : vector<9x1xf32> to vector<9x9xf32>
    %68 = arith.divf %64, %67 : vector<9x9xf32>
    %cst_28 = arith.constant dense<0.000000e+00> : vector<9x128xf32>
    %69 = tpu.matmul %68, %56, %cst_28 {dimension_numbers = #tpu.dot_dimension_numbers<[1], [0], [0], [1], [0, 0, 1, 1], [], []>} : vector<9x9xf32>, vector<9x128xf32>, vector<9x128xf32> -> vector<9x128xf32>
    %70 = vector.extract_strided_slice %37 {offsets = [0, 256], sizes = [9, 128], strides = [1, 1]} : vector<18x1152xf32> to vector<9x128xf32>
    %71 = vector.extract_strided_slice %37 {offsets = [0, 640], sizes = [9, 128], strides = [1, 1]} : vector<18x1152xf32> to vector<9x128xf32>
    %72 = vector.extract_strided_slice %37 {offsets = [0, 1024], sizes = [9, 128], strides = [1, 1]} : vector<18x1152xf32> to vector<9x128xf32>
    %cst_29 = arith.constant dense<0.000000e+00> : vector<9x9xf32>
    %73 = tpu.matmul %70, %71, %cst_29 {dimension_numbers = #tpu.dot_dimension_numbers<[1], [1], [0], [0], [0, 0, 1, 0], [], []>} : vector<9x128xf32>, vector<9x128xf32>, vector<9x9xf32> -> vector<9x9xf32>
    %cst_30 = arith.constant 1.250000e-01 : f32
    %74 = vector.broadcast %cst_30 : f32 to vector<9x9xf32>
    %75 = arith.mulf %73, %74 : vector<9x9xf32>
    %cst_31 = arith.constant dense<0xFF800000> : vector<9xf32>
    %76 = vector.multi_reduction <maximumf>, %75, %cst_31 [1] : vector<9x9xf32> to vector<9xf32>
    %77 = vector.shape_cast %76 : vector<9xf32> to vector<9x1xf32>
    %78 = vector.broadcast %77 : vector<9x1xf32> to vector<9x9xf32>
    %79 = arith.subf %75, %78 : vector<9x9xf32>
    %80 = math.exp %79 : vector<9x9xf32>
    %cst_32 = arith.constant dense<0.000000e+00> : vector<9xf32>
    %81 = vector.multi_reduction <add>, %80, %cst_32 [1] : vector<9x9xf32> to vector<9xf32>
    %82 = vector.shape_cast %81 : vector<9xf32> to vector<9x1xf32>
    %83 = vector.broadcast %82 : vector<9x1xf32> to vector<9x9xf32>
    %84 = arith.divf %80, %83 : vector<9x9xf32>
    %cst_33 = arith.constant dense<0.000000e+00> : vector<9x128xf32>
    %85 = tpu.matmul %84, %72, %cst_33 {dimension_numbers = #tpu.dot_dimension_numbers<[1], [0], [0], [1], [0, 0, 1, 1], [], []>} : vector<9x9xf32>, vector<9x128xf32>, vector<9x128xf32> -> vector<9x128xf32>
    %86 = tpu.concatenate %53, %69, %85 in 1 : vector<9x128xf32>, vector<9x128xf32>, vector<9x128xf32> -> vector<9x384xf32>
    %87 = vector.extract_strided_slice %37 {offsets = [9, 0], sizes = [9, 128], strides = [1, 1]} : vector<18x1152xf32> to vector<9x128xf32>
    %88 = vector.extract_strided_slice %37 {offsets = [9, 384], sizes = [9, 128], strides = [1, 1]} : vector<18x1152xf32> to vector<9x128xf32>
    %89 = vector.extract_strided_slice %37 {offsets = [9, 768], sizes = [9, 128], strides = [1, 1]} : vector<18x1152xf32> to vector<9x128xf32>
    %cst_34 = arith.constant dense<0.000000e+00> : vector<9x9xf32>
    %90 = tpu.matmul %87, %88, %cst_34 {dimension_numbers = #tpu.dot_dimension_numbers<[1], [1], [0], [0], [0, 0, 1, 0], [], []>} : vector<9x128xf32>, vector<9x128xf32>, vector<9x9xf32> -> vector<9x9xf32>
    %cst_35 = arith.constant 1.250000e-01 : f32
    %91 = vector.broadcast %cst_35 : f32 to vector<9x9xf32>
    %92 = arith.mulf %90, %91 : vector<9x9xf32>
    %cst_36 = arith.constant dense<0xFF800000> : vector<9xf32>
    %93 = vector.multi_reduction <maximumf>, %92, %cst_36 [1] : vector<9x9xf32> to vector<9xf32>
    %94 = vector.shape_cast %93 : vector<9xf32> to vector<9x1xf32>
    %95 = vector.broadcast %94 : vector<9x1xf32> to vector<9x9xf32>
    %96 = arith.subf %92, %95 : vector<9x9xf32>
    %97 = math.exp %96 : vector<9x9xf32>
    %cst_37 = arith.constant dense<0.000000e+00> : vector<9xf32>
    %98 = vector.multi_reduction <add>, %97, %cst_37 [1] : vector<9x9xf32> to vector<9xf32>
    %99 = vector.shape_cast %98 : vector<9xf32> to vector<9x1xf32>
    %100 = vector.broadcast %99 : vector<9x1xf32> to vector<9x9xf32>
    %101 = arith.divf %97, %100 : vector<9x9xf32>
    %cst_38 = arith.constant dense<0.000000e+00> : vector<9x128xf32>
    %102 = tpu.matmul %101, %89, %cst_38 {dimension_numbers = #tpu.dot_dimension_numbers<[1], [0], [0], [1], [0, 0, 1, 1], [], []>} : vector<9x9xf32>, vector<9x128xf32>, vector<9x128xf32> -> vector<9x128xf32>
    %103 = vector.extract_strided_slice %37 {offsets = [9, 128], sizes = [9, 128], strides = [1, 1]} : vector<18x1152xf32> to vector<9x128xf32>
    %104 = vector.extract_strided_slice %37 {offsets = [9, 512], sizes = [9, 128], strides = [1, 1]} : vector<18x1152xf32> to vector<9x128xf32>
    %105 = vector.extract_strided_slice %37 {offsets = [9, 896], sizes = [9, 128], strides = [1, 1]} : vector<18x1152xf32> to vector<9x128xf32>
    %cst_39 = arith.constant dense<0.000000e+00> : vector<9x9xf32>
    %106 = tpu.matmul %103, %104, %cst_39 {dimension_numbers = #tpu.dot_dimension_numbers<[1], [1], [0], [0], [0, 0, 1, 0], [], []>} : vector<9x128xf32>, vector<9x128xf32>, vector<9x9xf32> -> vector<9x9xf32>
    %cst_40 = arith.constant 1.250000e-01 : f32
    %107 = vector.broadcast %cst_40 : f32 to vector<9x9xf32>
    %108 = arith.mulf %106, %107 : vector<9x9xf32>
    %cst_41 = arith.constant dense<0xFF800000> : vector<9xf32>
    %109 = vector.multi_reduction <maximumf>, %108, %cst_41 [1] : vector<9x9xf32> to vector<9xf32>
    %110 = vector.shape_cast %109 : vector<9xf32> to vector<9x1xf32>
    %111 = vector.broadcast %110 : vector<9x1xf32> to vector<9x9xf32>
    %112 = arith.subf %108, %111 : vector<9x9xf32>
    %113 = math.exp %112 : vector<9x9xf32>
    %cst_42 = arith.constant dense<0.000000e+00> : vector<9xf32>
    %114 = vector.multi_reduction <add>, %113, %cst_42 [1] : vector<9x9xf32> to vector<9xf32>
    %115 = vector.shape_cast %114 : vector<9xf32> to vector<9x1xf32>
    %116 = vector.broadcast %115 : vector<9x1xf32> to vector<9x9xf32>
    %117 = arith.divf %113, %116 : vector<9x9xf32>
    %cst_43 = arith.constant dense<0.000000e+00> : vector<9x128xf32>
    %118 = tpu.matmul %117, %105, %cst_43 {dimension_numbers = #tpu.dot_dimension_numbers<[1], [0], [0], [1], [0, 0, 1, 1], [], []>} : vector<9x9xf32>, vector<9x128xf32>, vector<9x128xf32> -> vector<9x128xf32>
    %119 = vector.extract_strided_slice %37 {offsets = [9, 256], sizes = [9, 128], strides = [1, 1]} : vector<18x1152xf32> to vector<9x128xf32>
    %120 = vector.extract_strided_slice %37 {offsets = [9, 640], sizes = [9, 128], strides = [1, 1]} : vector<18x1152xf32> to vector<9x128xf32>
    %121 = vector.extract_strided_slice %37 {offsets = [9, 1024], sizes = [9, 128], strides = [1, 1]} : vector<18x1152xf32> to vector<9x128xf32>
    %cst_44 = arith.constant dense<0.000000e+00> : vector<9x9xf32>
    %122 = tpu.matmul %119, %120, %cst_44 {dimension_numbers = #tpu.dot_dimension_numbers<[1], [1], [0], [0], [0, 0, 1, 0], [], []>} : vector<9x128xf32>, vector<9x128xf32>, vector<9x9xf32> -> vector<9x9xf32>
    %cst_45 = arith.constant 1.250000e-01 : f32
    %123 = vector.broadcast %cst_45 : f32 to vector<9x9xf32>
    %124 = arith.mulf %122, %123 : vector<9x9xf32>
    %cst_46 = arith.constant dense<0xFF800000> : vector<9xf32>
    %125 = vector.multi_reduction <maximumf>, %124, %cst_46 [1] : vector<9x9xf32> to vector<9xf32>
    %126 = vector.shape_cast %125 : vector<9xf32> to vector<9x1xf32>
    %127 = vector.broadcast %126 : vector<9x1xf32> to vector<9x9xf32>
    %128 = arith.subf %124, %127 : vector<9x9xf32>
    %129 = math.exp %128 : vector<9x9xf32>
    %cst_47 = arith.constant dense<0.000000e+00> : vector<9xf32>
    %130 = vector.multi_reduction <add>, %129, %cst_47 [1] : vector<9x9xf32> to vector<9xf32>
    %131 = vector.shape_cast %130 : vector<9xf32> to vector<9x1xf32>
    %132 = vector.broadcast %131 : vector<9x1xf32> to vector<9x9xf32>
    %133 = arith.divf %129, %132 : vector<9x9xf32>
    %cst_48 = arith.constant dense<0.000000e+00> : vector<9x128xf32>
    %134 = tpu.matmul %133, %121, %cst_48 {dimension_numbers = #tpu.dot_dimension_numbers<[1], [0], [0], [1], [0, 0, 1, 1], [], []>} : vector<9x9xf32>, vector<9x128xf32>, vector<9x128xf32> -> vector<9x128xf32>
    %135 = tpu.concatenate %102, %118, %134 in 1 : vector<9x128xf32>, vector<9x128xf32>, vector<9x128xf32> -> vector<9x384xf32>
    %136 = tpu.concatenate %86, %135 in 0 : vector<9x384xf32>, vector<9x384xf32> -> vector<18x384xf32>
    %137 = arith.truncf %136 : vector<18x384xf32> to vector<18x384xbf16>
    %c0_49 = arith.constant 0 : index
    %c0_50 = arith.constant 0 : index
    %c0_51 = arith.constant 0 : index
    %138 = vector.load %arg6[%c0_49, %c0_50, %c0_51] : memref<1x384x192xbf16, #tpu.memory_space<vmem>>, vector<1x384x192xbf16>
    %139 = vector.shape_cast %138 : vector<1x384x192xbf16> to vector<384x192xbf16>
    %cst_52 = arith.constant dense<0.000000e+00> : vector<18x192xf32>
    %140 = tpu.matmul %137, %139, %cst_52 {dimension_numbers = #tpu.dot_dimension_numbers<[1], [0], [0], [1], [0, 0, 1, 1], [], []>} : vector<18x384xbf16>, vector<384x192xbf16>, vector<18x192xf32> -> vector<18x192xf32>
    %141 = arith.addf %3, %140 : vector<18x192xf32>
    %c0_53 = arith.constant 0 : index
    %c0_54 = arith.constant 0 : index
    %c0_55 = arith.constant 0 : index
    %142 = vector.load %arg7[%c0_53, %c0_54, %c0_55] : memref<1x1x192xf32, #tpu.memory_space<vmem>>, vector<1x1x192xf32>
    %143 = vector.shape_cast %142 : vector<1x1x192xf32> to vector<1x192xf32>
    %144 = vector.broadcast %143 : vector<1x192xf32> to vector<18x192xf32>
    %145 = arith.addf %141, %144 : vector<18x192xf32>
    %c0_56 = arith.constant 0 : index
    %c0_57 = arith.constant 0 : index
    %c0_58 = arith.constant 0 : index
    %146 = vector.load %arg8[%c0_56, %c0_57, %c0_58] : memref<1x1x192xf32, #tpu.memory_space<vmem>>, vector<1x1x192xf32>
    %147 = vector.shape_cast %146 : vector<1x1x192xf32> to vector<1x192xf32>
    %c0_59 = arith.constant 0 : index
    %c0_60 = arith.constant 0 : index
    %c0_61 = arith.constant 0 : index
    %148 = vector.load %arg9[%c0_59, %c0_60, %c0_61] : memref<1x1x192xf32, #tpu.memory_space<vmem>>, vector<1x1x192xf32>
    %149 = vector.shape_cast %148 : vector<1x1x192xf32> to vector<1x192xf32>
    %cst_62 = arith.constant dense<0.000000e+00> : vector<18xf32>
    %150 = vector.multi_reduction <add>, %145, %cst_62 [1] : vector<18x192xf32> to vector<18xf32>
    %151 = vector.shape_cast %150 : vector<18xf32> to vector<18x1xf32>
    %cst_63 = arith.constant 1.920000e+02 : f32
    %152 = vector.broadcast %cst_63 : f32 to vector<18x1xf32>
    %153 = arith.divf %151, %152 : vector<18x1xf32>
    %154 = vector.broadcast %153 : vector<18x1xf32> to vector<18x192xf32>
    %155 = arith.subf %145, %154 : vector<18x192xf32>
    %156 = arith.mulf %155, %155 : vector<18x192xf32>
    %cst_64 = arith.constant dense<0.000000e+00> : vector<18xf32>
    %157 = vector.multi_reduction <add>, %156, %cst_64 [1] : vector<18x192xf32> to vector<18xf32>
    %158 = vector.shape_cast %157 : vector<18xf32> to vector<18x1xf32>
    %cst_65 = arith.constant 1.920000e+02 : f32
    %159 = vector.broadcast %cst_65 : f32 to vector<18x1xf32>
    %160 = arith.divf %158, %159 : vector<18x1xf32>
    %161 = vector.broadcast %153 : vector<18x1xf32> to vector<18x192xf32>
    %162 = arith.subf %145, %161 : vector<18x192xf32>
    %cst_66 = arith.constant 9.99999997E-7 : f32
    %163 = vector.broadcast %cst_66 : f32 to vector<18x1xf32>
    %164 = arith.addf %160, %163 : vector<18x1xf32>
    %165 = math.rsqrt %164 : vector<18x1xf32>
    %166 = vector.broadcast %165 : vector<18x1xf32> to vector<18x192xf32>
    %167 = arith.mulf %162, %166 : vector<18x192xf32>
    %168 = vector.broadcast %147 : vector<1x192xf32> to vector<18x192xf32>
    %169 = arith.mulf %167, %168 : vector<18x192xf32>
    %170 = vector.broadcast %149 : vector<1x192xf32> to vector<18x192xf32>
    %171 = arith.addf %169, %170 : vector<18x192xf32>
    %172 = arith.truncf %171 : vector<18x192xf32> to vector<18x192xbf16>
    %c0_67 = arith.constant 0 : index
    %c0_68 = arith.constant 0 : index
    %c0_69 = arith.constant 0 : index
    %173 = vector.load %arg10[%c0_67, %c0_68, %c0_69] : memref<1x192x768xbf16, #tpu.memory_space<vmem>>, vector<1x192x768xbf16>
    %174 = vector.shape_cast %173 : vector<1x192x768xbf16> to vector<192x768xbf16>
    %cst_70 = arith.constant dense<0.000000e+00> : vector<18x768xf32>
    %175 = tpu.matmul %172, %174, %cst_70 {dimension_numbers = #tpu.dot_dimension_numbers<[1], [0], [0], [1], [0, 0, 1, 1], [], []>} : vector<18x192xbf16>, vector<192x768xbf16>, vector<18x768xf32> -> vector<18x768xf32>
    %c0_71 = arith.constant 0 : index
    %c0_72 = arith.constant 0 : index
    %c0_73 = arith.constant 0 : index
    %176 = vector.load %arg11[%c0_71, %c0_72, %c0_73] : memref<1x1x768xf32, #tpu.memory_space<vmem>>, vector<1x1x768xf32>
    %177 = vector.shape_cast %176 : vector<1x1x768xf32> to vector<1x768xf32>
    %178 = vector.broadcast %177 : vector<1x768xf32> to vector<18x768xf32>
    %179 = arith.addf %175, %178 : vector<18x768xf32>
    %180 = arith.mulf %179, %179 : vector<18x768xf32>
    %181 = arith.mulf %179, %180 : vector<18x768xf32>
    %cst_74 = arith.constant 4.471500e-02 : f32
    %182 = vector.broadcast %cst_74 : f32 to vector<18x768xf32>
    %183 = arith.mulf %182, %181 : vector<18x768xf32>
    %184 = arith.addf %179, %183 : vector<18x768xf32>
    %cst_75 = arith.constant 0.797884583 : f32
    %185 = vector.broadcast %cst_75 : f32 to vector<18x768xf32>
    %186 = arith.mulf %185, %184 : vector<18x768xf32>
    %187 = math.tanh %186 : vector<18x768xf32>
    %cst_76 = arith.constant 1.000000e+00 : f32
    %188 = vector.broadcast %cst_76 : f32 to vector<18x768xf32>
    %189 = arith.addf %188, %187 : vector<18x768xf32>
    %cst_77 = arith.constant 5.000000e-01 : f32
    %190 = vector.broadcast %cst_77 : f32 to vector<18x768xf32>
    %191 = arith.mulf %190, %189 : vector<18x768xf32>
    %192 = arith.mulf %179, %191 : vector<18x768xf32>
    %193 = arith.truncf %192 : vector<18x768xf32> to vector<18x768xbf16>
    %c0_78 = arith.constant 0 : index
    %c0_79 = arith.constant 0 : index
    %c0_80 = arith.constant 0 : index
    %194 = vector.load %arg12[%c0_78, %c0_79, %c0_80] : memref<1x768x192xbf16, #tpu.memory_space<vmem>>, vector<1x768x192xbf16>
    %195 = vector.shape_cast %194 : vector<1x768x192xbf16> to vector<768x192xbf16>
    %cst_81 = arith.constant dense<0.000000e+00> : vector<18x192xf32>
    %196 = tpu.matmul %193, %195, %cst_81 {dimension_numbers = #tpu.dot_dimension_numbers<[1], [0], [0], [1], [0, 0, 1, 1], [], []>} : vector<18x768xbf16>, vector<768x192xbf16>, vector<18x192xf32> -> vector<18x192xf32>
    %c0_82 = arith.constant 0 : index
    %c0_83 = arith.constant 0 : index
    %c0_84 = arith.constant 0 : index
    %197 = vector.load %arg13[%c0_82, %c0_83, %c0_84] : memref<1x1x192xf32, #tpu.memory_space<vmem>>, vector<1x1x192xf32>
    %198 = vector.shape_cast %197 : vector<1x1x192xf32> to vector<1x192xf32>
    %199 = vector.broadcast %198 : vector<1x192xf32> to vector<18x192xf32>
    %200 = arith.addf %196, %199 : vector<18x192xf32>
    %201 = arith.addf %145, %200 : vector<18x192xf32>
    %c0_85 = arith.constant 0 : index
    %c0_86 = arith.constant 0 : index
    %202 = vector.load %arg21[%c0_85, %c0_86] : memref<18x192xf32, #tpu.memory_space<vmem>>, vector<18x192xf32>
    tpu.vector_store %arg21[%c0_85, %c0_86], %201 {strides = array<i32>} : memref<18x192xf32, #tpu.memory_space<vmem>>, vector<18x192xf32>,
    %c11_i32 = arith.constant 11 : i32
    %203 = arith.cmpi eq, %arg0, %c11_i32 : i32
    %204 = arith.extui %203 : i1 to i32
    %c0_i32_87 = arith.constant 0 : i32
    %205 = arith.cmpi ne, %204, %c0_i32_87 : i32
    scf.if %205 {
      %c0_88 = arith.constant 0 : index
      %c0_89 = arith.constant 0 : index
      %206 = vector.load %arg14[%c0_88, %c0_89] : memref<1x192xf32, #tpu.memory_space<vmem>>, vector<1x192xf32>
      %c0_90 = arith.constant 0 : index
      %c0_91 = arith.constant 0 : index
      %207 = vector.load %arg15[%c0_90, %c0_91] : memref<1x192xf32, #tpu.memory_space<vmem>>, vector<1x192xf32>
      %cst_92 = arith.constant dense<0.000000e+00> : vector<18xf32>
      %208 = vector.multi_reduction <add>, %201, %cst_92 [1] : vector<18x192xf32> to vector<18xf32>
      %209 = vector.shape_cast %208 : vector<18xf32> to vector<18x1xf32>
      %cst_93 = arith.constant 1.920000e+02 : f32
      %210 = vector.broadcast %cst_93 : f32 to vector<18x1xf32>
      %211 = arith.divf %209, %210 : vector<18x1xf32>
      %212 = vector.broadcast %211 : vector<18x1xf32> to vector<18x192xf32>
      %213 = arith.subf %201, %212 : vector<18x192xf32>
      %214 = arith.mulf %213, %213 : vector<18x192xf32>
      %cst_94 = arith.constant dense<0.000000e+00> : vector<18xf32>
      %215 = vector.multi_reduction <add>, %214, %cst_94 [1] : vector<18x192xf32> to vector<18xf32>
      %216 = vector.shape_cast %215 : vector<18xf32> to vector<18x1xf32>
      %cst_95 = arith.constant 1.920000e+02 : f32
      %217 = vector.broadcast %cst_95 : f32 to vector<18x1xf32>
      %218 = arith.divf %216, %217 : vector<18x1xf32>
      %219 = vector.broadcast %211 : vector<18x1xf32> to vector<18x192xf32>
      %220 = arith.subf %201, %219 : vector<18x192xf32>
      %cst_96 = arith.constant 9.99999997E-7 : f32
      %221 = vector.broadcast %cst_96 : f32 to vector<18x1xf32>
      %222 = arith.addf %218, %221 : vector<18x1xf32>
      %223 = math.rsqrt %222 : vector<18x1xf32>
      %224 = vector.broadcast %223 : vector<18x1xf32> to vector<18x192xf32>
      %225 = arith.mulf %220, %224 : vector<18x192xf32>
      %226 = vector.broadcast %206 : vector<1x192xf32> to vector<18x192xf32>
      %227 = arith.mulf %225, %226 : vector<18x192xf32>
      %228 = vector.broadcast %207 : vector<1x192xf32> to vector<18x192xf32>
      %229 = arith.addf %227, %228 : vector<18x192xf32>
      %230 = vector.extract_strided_slice %229 {offsets = [2, 0], sizes = [7, 192], strides = [1, 1]} : vector<18x192xf32> to vector<7x192xf32>
      %cst_97 = arith.constant dense<0.000000e+00> : vector<192xf32>
      %231 = vector.multi_reduction <add>, %230, %cst_97 [0] : vector<7x192xf32> to vector<192xf32>
      %232 = vector.shape_cast %231 : vector<192xf32> to vector<1x192xf32>
      %cst_98 = arith.constant 7.000000e+00 : f32
      %233 = vector.broadcast %cst_98 : f32 to vector<1x192xf32>
      %234 = arith.divf %232, %233 : vector<1x192xf32>
      %235 = vector.extract_strided_slice %229 {offsets = [11, 0], sizes = [7, 192], strides = [1, 1]} : vector<18x192xf32> to vector<7x192xf32>
      %cst_99 = arith.constant dense<0.000000e+00> : vector<192xf32>
      %236 = vector.multi_reduction <add>, %235, %cst_99 [0] : vector<7x192xf32> to vector<192xf32>
      %237 = vector.shape_cast %236 : vector<192xf32> to vector<1x192xf32>
      %cst_100 = arith.constant 7.000000e+00 : f32
      %238 = vector.broadcast %cst_100 : f32 to vector<1x192xf32>
      %239 = arith.divf %237, %238 : vector<1x192xf32>
      %240 = tpu.concatenate %234, %239 in 0 : vector<1x192xf32>, vector<1x192xf32> -> vector<2x192xf32>
      %c0_101 = arith.constant 0 : index
      %c0_102 = arith.constant 0 : index
      %241 = vector.load %arg16[%c0_101, %c0_102] : memref<1x192xf32, #tpu.memory_space<vmem>>, vector<1x192xf32>
      %c0_103 = arith.constant 0 : index
      %c0_104 = arith.constant 0 : index
      %242 = vector.load %arg17[%c0_103, %c0_104] : memref<1x192xf32, #tpu.memory_space<vmem>>, vector<1x192xf32>
      %cst_105 = arith.constant dense<0.000000e+00> : vector<2xf32>
      %243 = vector.multi_reduction <add>, %240, %cst_105 [1] : vector<2x192xf32> to vector<2xf32>
      %244 = vector.shape_cast %243 : vector<2xf32> to vector<2x1xf32>
      %cst_106 = arith.constant 1.920000e+02 : f32
      %245 = vector.broadcast %cst_106 : f32 to vector<2x1xf32>
      %246 = arith.divf %244, %245 : vector<2x1xf32>
      %247 = vector.broadcast %246 : vector<2x1xf32> to vector<2x192xf32>
      %248 = arith.subf %240, %247 : vector<2x192xf32>
      %249 = arith.mulf %248, %248 : vector<2x192xf32>
      %cst_107 = arith.constant dense<0.000000e+00> : vector<2xf32>
      %250 = vector.multi_reduction <add>, %249, %cst_107 [1] : vector<2x192xf32> to vector<2xf32>
      %251 = vector.shape_cast %250 : vector<2xf32> to vector<2x1xf32>
      %cst_108 = arith.constant 1.920000e+02 : f32
      %252 = vector.broadcast %cst_108 : f32 to vector<2x1xf32>
      %253 = arith.divf %251, %252 : vector<2x1xf32>
      %254 = vector.broadcast %246 : vector<2x1xf32> to vector<2x192xf32>
      %255 = arith.subf %240, %254 : vector<2x192xf32>
      %cst_109 = arith.constant 9.99999974E-6 : f32
      %256 = vector.broadcast %cst_109 : f32 to vector<2x1xf32>
      %257 = arith.addf %253, %256 : vector<2x1xf32>
      %258 = math.rsqrt %257 : vector<2x1xf32>
      %259 = vector.broadcast %258 : vector<2x1xf32> to vector<2x192xf32>
      %260 = arith.mulf %255, %259 : vector<2x192xf32>
      %261 = vector.broadcast %241 : vector<1x192xf32> to vector<2x192xf32>
      %262 = arith.mulf %260, %261 : vector<2x192xf32>
      %263 = vector.broadcast %242 : vector<1x192xf32> to vector<2x192xf32>
      %264 = arith.addf %262, %263 : vector<2x192xf32>
      %c0_110 = arith.constant 0 : index
      %c0_111 = arith.constant 0 : index
      %265 = vector.load %arg18[%c0_110, %c0_111] : memref<192x4xf32, #tpu.memory_space<vmem>>, vector<192x4xf32>
      %cst_112 = arith.constant dense<0.000000e+00> : vector<2x4xf32>
      %266 = tpu.matmul %264, %265, %cst_112 {dimension_numbers = #tpu.dot_dimension_numbers<[1], [0], [0], [1], [0, 0, 1, 1], [], []>} : vector<2x192xf32>, vector<192x4xf32>, vector<2x4xf32> -> vector<2x4xf32>
      %c0_113 = arith.constant 0 : index
      %c0_114 = arith.constant 0 : index
      %267 = vector.load %arg19[%c0_113, %c0_114] : memref<1x4xf32, #tpu.memory_space<vmem>>, vector<1x4xf32>
      %268 = vector.broadcast %267 : vector<1x4xf32> to vector<2x4xf32>
      %269 = arith.addf %266, %268 : vector<2x4xf32>
      %c0_115 = arith.constant 0 : index
      %c0_116 = arith.constant 0 : index
      %270 = vector.load %arg20[%c0_115, %c0_116] : memref<2x4xf32, #tpu.memory_space<vmem>>, vector<2x4xf32>
      tpu.vector_store %arg20[%c0_115, %c0_116], %269 {strides = array<i32>} : memref<2x4xf32, #tpu.memory_space<vmem>>, vector<2x4xf32>,
    } else {
    }
    return
  }
  func.func @transform_0(%arg0: i32) -> (i32, i32) {
    %c0_i32 = arith.constant 0 : i32
    %c0_i32_0 = arith.constant 0 : i32
    %c0_i32_1 = arith.constant 0 : i32
    return %c0_i32, %c0_i32_0 : i32, i32
  }
  func.func @transform_1(%arg0: i32) -> (i32, i32, i32) {
    %c0_i32 = arith.constant 0 : i32
    %c0_i32_0 = arith.constant 0 : i32
    %c0_i32_1 = arith.constant 0 : i32
    return %arg0, %c0_i32, %c0_i32_0 : i32, i32, i32
  }
  func.func @transform_2(%arg0: i32) -> (i32, i32, i32) {
    %c0_i32 = arith.constant 0 : i32
    %c0_i32_0 = arith.constant 0 : i32
    %c0_i32_1 = arith.constant 0 : i32
    return %arg0, %c0_i32, %c0_i32_0 : i32, i32, i32
  }
  func.func @transform_3(%arg0: i32) -> (i32, i32, i32) {
    %c0_i32 = arith.constant 0 : i32
    %c0_i32_0 = arith.constant 0 : i32
    %c0_i32_1 = arith.constant 0 : i32
    return %arg0, %c0_i32, %c0_i32_0 : i32, i32, i32
  }
  func.func @transform_4(%arg0: i32) -> (i32, i32, i32) {
    %c0_i32 = arith.constant 0 : i32
    %c0_i32_0 = arith.constant 0 : i32
    %c0_i32_1 = arith.constant 0 : i32
    return %arg0, %c0_i32, %c0_i32_0 : i32, i32, i32
  }
  func.func @transform_5(%arg0: i32) -> (i32, i32, i32) {
    %c0_i32 = arith.constant 0 : i32
    %c0_i32_0 = arith.constant 0 : i32
    %c0_i32_1 = arith.constant 0 : i32
    return %arg0, %c0_i32, %c0_i32_0 : i32, i32, i32
  }
  func.func @transform_6(%arg0: i32) -> (i32, i32, i32) {
    %c0_i32 = arith.constant 0 : i32
    %c0_i32_0 = arith.constant 0 : i32
    %c0_i32_1 = arith.constant 0 : i32
    return %arg0, %c0_i32, %c0_i32_0 : i32, i32, i32
  }
  func.func @transform_7(%arg0: i32) -> (i32, i32, i32) {
    %c0_i32 = arith.constant 0 : i32
    %c0_i32_0 = arith.constant 0 : i32
    %c0_i32_1 = arith.constant 0 : i32
    return %arg0, %c0_i32, %c0_i32_0 : i32, i32, i32
  }
  func.func @transform_8(%arg0: i32) -> (i32, i32, i32) {
    %c0_i32 = arith.constant 0 : i32
    %c0_i32_0 = arith.constant 0 : i32
    %c0_i32_1 = arith.constant 0 : i32
    return %arg0, %c0_i32, %c0_i32_0 : i32, i32, i32
  }
  func.func @transform_9(%arg0: i32) -> (i32, i32, i32) {
    %c0_i32 = arith.constant 0 : i32
    %c0_i32_0 = arith.constant 0 : i32
    %c0_i32_1 = arith.constant 0 : i32
    return %arg0, %c0_i32, %c0_i32_0 : i32, i32, i32
  }
  func.func @transform_10(%arg0: i32) -> (i32, i32, i32) {
    %c0_i32 = arith.constant 0 : i32
    %c0_i32_0 = arith.constant 0 : i32
    %c0_i32_1 = arith.constant 0 : i32
    return %arg0, %c0_i32, %c0_i32_0 : i32, i32, i32
  }
  func.func @transform_11(%arg0: i32) -> (i32, i32, i32) {
    %c0_i32 = arith.constant 0 : i32
    %c0_i32_0 = arith.constant 0 : i32
    %c0_i32_1 = arith.constant 0 : i32
    return %arg0, %c0_i32, %c0_i32_0 : i32, i32, i32
  }
  func.func @transform_12(%arg0: i32) -> (i32, i32, i32) {
    %c0_i32 = arith.constant 0 : i32
    %c0_i32_0 = arith.constant 0 : i32
    %c0_i32_1 = arith.constant 0 : i32
    return %arg0, %c0_i32, %c0_i32_0 : i32, i32, i32
  }
  func.func @transform_13(%arg0: i32) -> (i32, i32) {
    %c0_i32 = arith.constant 0 : i32
    %c0_i32_0 = arith.constant 0 : i32
    %c0_i32_1 = arith.constant 0 : i32
    return %c0_i32, %c0_i32_0 : i32, i32
  }
  func.func @transform_14(%arg0: i32) -> (i32, i32) {
    %c0_i32 = arith.constant 0 : i32
    %c0_i32_0 = arith.constant 0 : i32
    %c0_i32_1 = arith.constant 0 : i32
    return %c0_i32, %c0_i32_0 : i32, i32
  }
  func.func @transform_15(%arg0: i32) -> (i32, i32) {
    %c0_i32 = arith.constant 0 : i32
    %c0_i32_0 = arith.constant 0 : i32
    %c0_i32_1 = arith.constant 0 : i32
    return %c0_i32, %c0_i32_0 : i32, i32
  }
  func.func @transform_16(%arg0: i32) -> (i32, i32) {
    %c0_i32 = arith.constant 0 : i32
    %c0_i32_0 = arith.constant 0 : i32
    %c0_i32_1 = arith.constant 0 : i32
    return %c0_i32, %c0_i32_0 : i32, i32
  }
  func.func @transform_17(%arg0: i32) -> (i32, i32) {
    %c0_i32 = arith.constant 0 : i32
    %c0_i32_0 = arith.constant 0 : i32
    %c0_i32_1 = arith.constant 0 : i32
    return %c0_i32, %c0_i32_0 : i32, i32
  }
  func.func @transform_18(%arg0: i32) -> (i32, i32) {
    %c0_i32 = arith.constant 0 : i32
    %c0_i32_0 = arith.constant 0 : i32
    %c0_i32_1 = arith.constant 0 : i32
    return %c0_i32, %c0_i32_0 : i32, i32
  }
  func.func @transform_19(%arg0: i32) -> (i32, i32) {
    %c0_i32 = arith.constant 0 : i32
    %c0_i32_0 = arith.constant 0 : i32
    %c0_i32_1 = arith.constant 0 : i32
    return %c0_i32, %c0_i32_0 : i32, i32
  }
}

</mosaic_0001>

<llo_original>
// kernel: emonet_ssast_forward.2
$region0: #{emonet_ssast_forward.2}
  #allocation0 [shape = 'u32[]', space=smem, size = 0x4, offset = 0x4, fixed_abs, tag = 'smem constant byte address 0x4 - core index']
  #allocation1 [shape = 'u32[144,128]{1,0:T(1,128)}', space=vmem, size = 0x12000, scoped, tag = 'internal scratch']
  %s0 = inlined_call_operand.vmem [shape: f32[16,65], index: 0, kind: input, shape index: {}]
  %s1 = inlined_call_operand.vmem [shape: bf16[65,8448], index: 1, kind: input, shape index: {}]
  %s2 = inlined_call_operand.vmem [shape: f32[33,128], index: 2, kind: input, shape index: {}]
  %s3 = inlined_call_operand.vmem [shape: f32[1,128], index: 3, kind: input, shape index: {}]
  %s4 = inlined_call_operand.vmem [shape: f32[1,128], index: 4, kind: input, shape index: {}]
  %s5 = inlined_call_operand.vmem [shape: f32[1,128], index: 5, kind: input, shape index: {}]
  %s6 = inlined_call_operand.vmem [shape: f32[1,128], index: 6, kind: input, shape index: {}]
  %s7 = inlined_call_operand.vmem [shape: bf16[256,192], index: 7, kind: input, shape index: {}]
  %s8 = inlined_call_operand.vmem [shape: f32[1,192], index: 8, kind: input, shape index: {}]
  %s9 = inlined_call_operand.vmem [shape: f32[2,192], index: 9, kind: input, shape index: {}]
  %s10 = inlined_call_operand.vmem [shape: f32[9,192], index: 10, kind: input, shape index: {}]
  %s11 = inlined_call_operand.vmem [shape: f32[18,192], index: 11, kind: output, shape index: {}]
  %s12 = sld [smem:[#allocation0]]
  $region54: #{emonet_ssast_forward.2} parent=0
    _
  %s14 = ssub.s32 1, %s12
  %s15 = scalar_select 0, %s14, %s12
  // Predicated region
  $region2: #{emonet_ssast_forward.2} parent=0 // pred_check
    _
  $region3: #{emonet_ssast_forward.2} parent=0 // pred_check_branch
    %17 = sbr.rel (0) target = $region5
  $region4: #{emonet_ssast_forward.2} parent=0 // pred_region
    _
  $region5: #{emonet_ssast_forward.2} parent=0 // pred_fallthru
    _
  // Predicated region
  $region6: #{emonet_ssast_forward.2} parent=0 // pred_check
    _
  $region7: #{emonet_ssast_forward.2} parent=0 // pred_check_branch
    %19 = sbr.rel (0) target = $region9
  $region8: #{emonet_ssast_forward.2} parent=0 // pred_region
    _
  $region9: #{emonet_ssast_forward.2} parent=0 // pred_fallthru
    _
  // Predicated region
  $region10: #{emonet_ssast_forward.2} parent=0 // pred_check
    _
  $region11: #{emonet_ssast_forward.2} parent=0 // pred_check_branch
    %21 = sbr.rel (0) target = $region13
  $region12: #{emonet_ssast_forward.2} parent=0 // pred_region
    _
  $region13: #{emonet_ssast_forward.2} parent=0 // pred_fallthru
    _
  // Predicated region
  $region14: #{emonet_ssast_forward.2} parent=0 // pred_check
    _
  $region15: #{emonet_ssast_forward.2} parent=0 // pred_check_branch
    %23 = sbr.rel (0) target = $region17
  $region16: #{emonet_ssast_forward.2} parent=0 // pred_region
    _
  $region17: #{emonet_ssast_forward.2} parent=0 // pred_fallthru
    _
  // Predicated region
  $region18: #{emonet_ssast_forward.2} parent=0 // pred_check
    _
  $region19: #{emonet_ssast_forward.2} parent=0 // pred_check_branch
    %25 = sbr.rel (0) target = $region21
  $region20: #{emonet_ssast_forward.2} parent=0 // pred_region
    _
  $region21: #{emonet_ssast_forward.2} parent=0 // pred_fallthru
    _
  // Predicated region
  $region22: #{emonet_ssast_forward.2} parent=0 // pred_check
    _
  $region23: #{emonet_ssast_forward.2} parent=0 // pred_check_branch
    %27 = sbr.rel (0) target = $region25
  $region24: #{emonet_ssast_forward.2} parent=0 // pred_region
    _
  $region25: #{emonet_ssast_forward.2} parent=0 // pred_fallthru
    _
  // Predicated region
  $region26: #{emonet_ssast_forward.2} parent=0 // pred_check
    _
  $region27: #{emonet_ssast_forward.2} parent=0 // pred_check_branch
    %29 = sbr.rel (0) target = $region29
  $region28: #{emonet_ssast_forward.2} parent=0 // pred_region
    _
  $region29: #{emonet_ssast_forward.2} parent=0 // pred_fallthru
    _
  // Predicated region
  $region30: #{emonet_ssast_forward.2} parent=0 // pred_check
    _
  $region31: #{emonet_ssast_forward.2} parent=0 // pred_check_branch
    %31 = sbr.rel (0) target = $region33
  $region32: #{emonet_ssast_forward.2} parent=0 // pred_region
    _
  $region33: #{emonet_ssast_forward.2} parent=0 // pred_fallthru
    _
  // Predicated region
  $region34: #{emonet_ssast_forward.2} parent=0 // pred_check
    _
  $region35: #{emonet_ssast_forward.2} parent=0 // pred_check_branch
    %33 = sbr.rel (0) target = $region37
  $region36: #{emonet_ssast_forward.2} parent=0 // pred_region
    _
  $region37: #{emonet_ssast_forward.2} parent=0 // pred_fallthru
    _
  // Predicated region
  $region38: #{emonet_ssast_forward.2} parent=0 // pred_check
    _
  $region39: #{emonet_ssast_forward.2} parent=0 // pred_check_branch
    %35 = sbr.rel (0) target = $region41
  $region40: #{emonet_ssast_forward.2} parent=0 // pred_region
    _
  $region41: #{emonet_ssast_forward.2} parent=0 // pred_fallthru
    _
  // Predicated region
  $region42: #{emonet_ssast_forward.2} parent=0 // pred_check
    _
  $region43: #{emonet_ssast_forward.2} parent=0 // pred_check_branch
    %37 = sbr.rel (0) target = $region45
  $region44: #{emonet_ssast_forward.2} parent=0 // pred_region
    _
  $region45: #{emonet_ssast_forward.2} parent=0 // pred_fallthru
    _
  %v39 = vld [vmem:[%s0] sm:$0xff]
  %v40 = vld [vmem:[%s0 + $0x8] sm:$0xff]
  %v41 = vpack.c.bf16 %v40, %v39
  %v42 = vld [vmem:[%s1] sm:$0xff]
  %v43 = vld [vmem:[%s1 + $0x8] sm:$0xff]
  %v44 = vld [vmem:[%s1 + $0x10] sm:$0xff]
  %v45 = vld [vmem:[%s1 + $0x18] sm:$0xff]
  %v46 = vld [vmem:[%s1 + $0x20] sm:$0xff]
  %v47 = vld [vmem:[%s1 + $0x28] sm:$0xff]
  %v48 = vld [vmem:[%s1 + $0x30] sm:$0xff]
  %v49 = vld [vmem:[%s1 + $0x38] sm:$0xff]
  %v50 = vld [vmem:[%s1 + $0x40] sm:$0xff]
  %v51 = vld [vmem:[%s1 + $0x48] sm:$0xff]
  %v52 = vld [vmem:[%s1 + $0x50] sm:$0xff]
  %v53 = vld [vmem:[%s1 + $0x58] sm:$0xff]
  %v54 = vld [vmem:[%s1 + $0x60] sm:$0xff]
  %v55 = vld [vmem:[%s1 + $0x68] sm:$0xff]
  %v56 = vld [vmem:[%s1 + $0x70] sm:$0xff]
  %v57 = vld [vmem:[%s1 + $0x78] sm:$0xff]
  %v58 = vld [vmem:[%s1 + $0x80] sm:$0xff]
  %v59 = vld [vmem:[%s1 + $0x88] sm:$0xff]
  %v60 = vld [vmem:[%s1 + $0x90] sm:$0xff]
  %v61 = vld [vmem:[%s1 + $0x98] sm:$0xff]
  %v62 = vld [vmem:[%s1 + $0xa0] sm:$0xff]
  %v63 = vld [vmem:[%s1 + $0xa8] sm:$0xff]
  %v64 = vld [vmem:[%s1 + $0xb0] sm:$0xff]
  %v65 = vld [vmem:[%s1 + $0xb8] sm:$0xff]
  %v66 = vld [vmem:[%s1 + $0xc0] sm:$0xff]
  %v67 = vld [vmem:[%s1 + $0xc8] sm:$0xff]
  %v68 = vld [vmem:[%s1 + $0xd0] sm:$0xff]
  %v69 = vld [vmem:[%s1 + $0xd8] sm:$0xff]
  %v70 = vld [vmem:[%s1 + $0xe0] sm:$0xff]
  %v71 = vld [vmem:[%s1 + $0xe8] sm:$0xff]
  %v72 = vld [vmem:[%s1 + $0xf0] sm:$0xff]
  %v73 = vld [vmem:[%s1 + $0xf8] sm:$0xff]
  %v74 = vld [vmem:[%s1 + $0x100] sm:$0xff]
  %v75 = vld [vmem:[%s1 + $0x108] sm:$0xff]
  %v76 = vld [vmem:[%s1 + $0x110] sm:$0xff]
  %v77 = vld [vmem:[%s1 + $0x118] sm:$0xff]
  %v78 = vld [vmem:[%s1 + $0x120] sm:$0xff]
  %v79 = vld [vmem:[%s1 + $0x128] sm:$0xff]
  %v80 = vld [vmem:[%s1 + $0x130] sm:$0xff]
  %v81 = vld [vmem:[%s1 + $0x138] sm:$0xff]
  %v82 = vld [vmem:[%s1 + $0x140] sm:$0xff]
  %v83 = vld [vmem:[%s1 + $0x148] sm:$0xff]
  %v84 = vld [vmem:[%s1 + $0x150] sm:$0xff]
  %v85 = vld [vmem:[%s1 + $0x158] sm:$0xff]
  %v86 = vld [vmem:[%s1 + $0x160] sm:$0xff]
  %v87 = vld [vmem:[%s1 + $0x168] sm:$0xff]
  %v88 = vld [vmem:[%s1 + $0x170] sm:$0xff]
  %v89 = vld [vmem:[%s1 + $0x178] sm:$0xff]
  %v90 = vld [vmem:[%s1 + $0x180] sm:$0xff]
  %v91 = vld [vmem:[%s1 + $0x188] sm:$0xff]
  %v92 = vld [vmem:[%s1 + $0x190] sm:$0xff]
  %v93 = vld [vmem:[%s1 + $0x198] sm:$0xff]
  %v94 = vld [vmem:[%s1 + $0x1a0] sm:$0xff]
  %v95 = vld [vmem:[%s1 + $0x1a8] sm:$0xff]
  %v96 = vld [vmem:[%s1 + $0x1b0] sm:$0xff]
  %v97 = vld [vmem:[%s1 + $0x1b8] sm:$0xff]
  %v98 = vld [vmem:[%s1 + $0x1c0] sm:$0xff]
  %v99 = vld [vmem:[%s1 + $0x1c8] sm:$0xff]
  %v100 = vld [vmem:[%s1 + $0x1d0] sm:$0xff]
  %v101 = vld [vmem:[%s1 + $0x1d8] sm:$0xff]
  %v102 = vld [vmem:[%s1 + $0x1e0] sm:$0xff]
  %v103 = vld [vmem:[%s1 + $0x1e8] sm:$0xff]
  %v104 = vld [vmem:[%s1 + $0x1f0] sm:$0xff]
  %v105 = vld [vmem:[%s1 + $0x1f8] sm:$0xff]
  %v106 = vld [vmem:[%s1 + $0x200] sm:$0xff]
  %v107 = vld [vmem:[%s1 + $0x208] sm:$0xff]
  %v108 = vld [vmem:[%s1 + $0x210] sm:$0xff]
  %v109 = vld [vmem:[%s1 + $0x218] sm:$0xff]
  %v110 = vld [vmem:[%s1 + $0x220] sm:$0xff]
  %v111 = vld [vmem:[%s1 + $0x228] sm:$0xff]
  %v112 = vld [vmem:[%s1 + $0x230] sm:$0xff]
  %v113 = vld [vmem:[%s1 + $0x238] sm:$0xff]
  %v114 = vld [vmem:[%s1 + $0x240] sm:$0xff]
  %v115 = vld [vmem:[%s1 + $0x248] sm:$0xff]
  %v116 = vld [vmem:[%s1 + $0x250] sm:$0xff]
  %v117 = vld [vmem:[%s1 + $0x258] sm:$0xff]
  %v118 = vld [vmem:[%s1 + $0x260] sm:$0xff]
  %v119 = vld [vmem:[%s1 + $0x268] sm:$0xff]
  %v120 = vld [vmem:[%s1 + $0x270] sm:$0xff]
  %v121 = vld [vmem:[%s1 + $0x278] sm:$0xff]
  %v122 = vld [vmem:[%s1 + $0x280] sm:$0xff]
  %v123 = vld [vmem:[%s1 + $0x288] sm:$0xff]
  %v124 = vld [vmem:[%s1 + $0x290] sm:$0xff]
  %v125 = vld [vmem:[%s1 + $0x298] sm:$0xff]
  %v126 = vld [vmem:[%s1 + $0x2a0] sm:$0xff]
  %v127 = vld [vmem:[%s1 + $0x2a8] sm:$0xff]
  %v128 = vld [vmem:[%s1 + $0x2b0] sm:$0xff]
  %v129 = vld [vmem:[%s1 + $0x2b8] sm:$0xff]
  %v130 = vld [vmem:[%s1 + $0x2c0] sm:$0xff]
  %v131 = vld [vmem:[%s1 + $0x2c8] sm:$0xff]
  %v132 = vld [vmem:[%s1 + $0x2d0] sm:$0xff]
  %v133 = vld [vmem:[%s1 + $0x2d8] sm:$0xff]
  %v134 = vld [vmem:[%s1 + $0x2e0] sm:$0xff]
  %v135 = vld [vmem:[%s1 + $0x2e8] sm:$0xff]
  %v136 = vld [vmem:[%s1 + $0x2f0] sm:$0xff]
  %v137 = vld [vmem:[%s1 + $0x2f8] sm:$0xff]
  %v138 = vld [vmem:[%s1 + $0x300] sm:$0xff]
  %v139 = vld [vmem:[%s1 + $0x308] sm:$0xff]
  %v140 = vld [vmem:[%s1 + $0x310] sm:$0xff]
  %v141 = vld [vmem:[%s1 + $0x318] sm:$0xff]
  %v142 = vld [vmem:[%s1 + $0x320] sm:$0xff]
  %v143 = vld [vmem:[%s1 + $0x328] sm:$0xff]
  %v144 = vld [vmem:[%s1 + $0x330] sm:$0xff]
  %v145 = vld [vmem:[%s1 + $0x338] sm:$0xff]
  %v146 = vld [vmem:[%s1 + $0x340] sm:$0xff]
  %v147 = vld [vmem:[%s1 + $0x348] sm:$0xff]
  %v148 = vld [vmem:[%s1 + $0x350] sm:$0xff]
  %v149 = vld [vmem:[%s1 + $0x358] sm:$0xff]
  %v150 = vld [vmem:[%s1 + $0x360] sm:$0xff]
  %v151 = vld [vmem:[%s1 + $0x368] sm:$0xff]
  %v152 = vld [vmem:[%s1 + $0x370] sm:$0xff]
  %v153 = vld [vmem:[%s1 + $0x378] sm:$0xff]
  %v154 = vld [vmem:[%s1 + $0x380] sm:$0xff]
  %v155 = vld [vmem:[%s1 + $0x388] sm:$0xff]
  %v156 = vld [vmem:[%s1 + $0x390] sm:$0xff]
  %v157 = vld [vmem:[%s1 + $0x398] sm:$0xff]
  %v158 = vld [vmem:[%s1 + $0x3a0] sm:$0xff]
  %v159 = vld [vmem:[%s1 + $0x3a8] sm:$0xff]
  %v160 = vld [vmem:[%s1 + $0x3b0] sm:$0xff]
  %v161 = vld [vmem:[%s1 + $0x3b8] sm:$0xff]
  %v162 = vld [vmem:[%s1 + $0x3c0] sm:$0xff]
  %v163 = vld [vmem:[%s1 + $0x3c8] sm:$0xff]
  %v164 = vld [vmem:[%s1 + $0x3d0] sm:$0xff]
  %v165 = vld [vmem:[%s1 + $0x3d8] sm:$0xff]
  %v166 = vld [vmem:[%s1 + $0x3e0] sm:$0xff]
  %v167 = vld [vmem:[%s1 + $0x3e8] sm:$0xff]
  %v168 = vld [vmem:[%s1 + $0x3f0] sm:$0xff]
  %v169 = vld [vmem:[%s1 + $0x3f8] sm:$0xff]
  %v170 = vld [vmem:[%s1 + $0x400] sm:$0xff]
  %v171 = vld [vmem:[%s1 + $0x408] sm:$0xff]
  %v172 = vld [vmem:[%s1 + $0x410] sm:$0xff]
  %v173 = vld [vmem:[%s1 + $0x418] sm:$0xff]
  %v174 = vld [vmem:[%s1 + $0x420] sm:$0xff]
  %v175 = vld [vmem:[%s1 + $0x428] sm:$0xff]
  %v176 = vld [vmem:[%s1 + $0x430] sm:$0xff]
  %v177 = vld [vmem:[%s1 + $0x438] sm:$0xff]
  %v178 = vld [vmem:[%s1 + $0x440] sm:$0xff]
  %v179 = vld [vmem:[%s1 + $0x448] sm:$0xff]
  %v180 = vld [vmem:[%s1 + $0x450] sm:$0xff]
  %v181 = vld [vmem:[%s1 + $0x458] sm:$0xff]
  %v182 = vld [vmem:[%s1 + $0x460] sm:$0xff]
  %v183 = vld [vmem:[%s1 + $0x468] sm:$0xff]
  %v184 = vld [vmem:[%s1 + $0x470] sm:$0xff]
  %v185 = vld [vmem:[%s1 + $0x478] sm:$0xff]
  %v186 = vld [vmem:[%s1 + $0x480] sm:$0xff]
  %v187 = vld [vmem:[%s1 + $0x488] sm:$0xff]
  %v188 = vld [vmem:[%s1 + $0x490] sm:$0xff]
  %v189 = vld [vmem:[%s1 + $0x498] sm:$0xff]
  %v190 = vld [vmem:[%s1 + $0x4a0] sm:$0xff]
  %v191 = vld [vmem:[%s1 + $0x4a8] sm:$0xff]
  %v192 = vld [vmem:[%s1 + $0x4b0] sm:$0xff]
  %v193 = vld [vmem:[%s1 + $0x4b8] sm:$0xff]
  %v194 = vld [vmem:[%s1 + $0x4c0] sm:$0xff]
  %v195 = vld [vmem:[%s1 + $0x4c8] sm:$0xff]
  %v196 = vld [vmem:[%s1 + $0x4d0] sm:$0xff]
  %v197 = vld [vmem:[%s1 + $0x4d8] sm:$0xff]
  %v198 = vld [vmem:[%s1 + $0x4e0] sm:$0xff]
  %v199 = vld [vmem:[%s1 + $0x4e8] sm:$0xff]
  %v200 = vld [vmem:[%s1 + $0x4f0] sm:$0xff]
  %v201 = vld [vmem:[%s1 + $0x4f8] sm:$0xff]
  %v202 = vld [vmem:[%s1 + $0x500] sm:$0xff]
  %v203 = vld [vmem:[%s1 + $0x508] sm:$0xff]
  %v204 = vld [vmem:[%s1 + $0x510] sm:$0xff]
  %v205 = vld [vmem:[%s1 + $0x518] sm:$0xff]
  %v206 = vld [vmem:[%s1 + $0x520] sm:$0xff]
  %v207 = vld [vmem:[%s1 + $0x528] sm:$0xff]
  %v208 = vld [vmem:[%s1 + $0x530] sm:$0xff]
  %v209 = vld [vmem:[%s1 + $0x538] sm:$0xff]
  %v210 = vld [vmem:[%s1 + $0x540] sm:$0xff]
  %v211 = vld [vmem:[%s1 + $0x548] sm:$0xff]
  %v212 = vld [vmem:[%s1 + $0x550] sm:$0xff]
  %v213 = vld [vmem:[%s1 + $0x558] sm:$0xff]
  %v214 = vld [vmem:[%s1 + $0x560] sm:$0xff]
  %v215 = vld [vmem:[%s1 + $0x568] sm:$0xff]
  %v216 = vld [vmem:[%s1 + $0x570] sm:$0xff]
  %v217 = vld [vmem:[%s1 + $0x578] sm:$0xff]
  %v218 = vld [vmem:[%s1 + $0x580] sm:$0xff]
  %v219 = vld [vmem:[%s1 + $0x588] sm:$0xff]
  %v220 = vld [vmem:[%s1 + $0x590] sm:$0xff]
  %v221 = vld [vmem:[%s1 + $0x598] sm:$0xff]
  %v222 = vld [vmem:[%s1 + $0x5a0] sm:$0xff]
  %v223 = vld [vmem:[%s1 + $0x5a8] sm:$0xff]
  %v224 = vld [vmem:[%s1 + $0x5b0] sm:$0xff]
  %v225 = vld [vmem:[%s1 + $0x5b8] sm:$0xff]
  %v226 = vld [vmem:[%s1 + $0x5c0] sm:$0xff]
  %v227 = vld [vmem:[%s1 + $0x5c8] sm:$0xff]
  %v228 = vld [vmem:[%s1 + $0x5d0] sm:$0xff]
  %v229 = vld [vmem:[%s1 + $0x5d8] sm:$0xff]
  %v230 = vld [vmem:[%s1 + $0x5e0] sm:$0xff]
  %v231 = vld [vmem:[%s1 + $0x5e8] sm:$0xff]
  %v232 = vld [vmem:[%s1 + $0x5f0] sm:$0xff]
  %v233 = vld [vmem:[%s1 + $0x5f8] sm:$0xff]
  %v234 = vld [vmem:[%s1 + $0x600] sm:$0xff]
  %v235 = vld [vmem:[%s1 + $0x608] sm:$0xff]
  %v236 = vld [vmem:[%s1 + $0x610] sm:$0xff]
  %v237 = vld [vmem:[%s1 + $0x618] sm:$0xff]
  %v238 = vld [vmem:[%s1 + $0x620] sm:$0xff]
  %v239 = vld [vmem:[%s1 + $0x628] sm:$0xff]
  %v240 = vld [vmem:[%s1 + $0x630] sm:$0xff]
  %v241 = vld [vmem:[%s1 + $0x638] sm:$0xff]
  %v242 = vld [vmem:[%s1 + $0x640] sm:$0xff]
  %v243 = vld [vmem:[%s1 + $0x648] sm:$0xff]
  %v244 = vld [vmem:[%s1 + $0x650] sm:$0xff]
  %v245 = vld [vmem:[%s1 + $0x658] sm:$0xff]
  %v246 = vld [vmem:[%s1 + $0x660] sm:$0xff]
  %v247 = vld [vmem:[%s1 + $0x668] sm:$0xff]
  %v248 = vld [vmem:[%s1 + $0x670] sm:$0xff]
  %v249 = vld [vmem:[%s1 + $0x678] sm:$0xff]
  %v250 = vld [vmem:[%s1 + $0x680] sm:$0xff]
  %v251 = vld [vmem:[%s1 + $0x688] sm:$0xff]
  %v252 = vld [vmem:[%s1 + $0x690] sm:$0xff]
  %v253 = vld [vmem:[%s1 + $0x698] sm:$0xff]
  %v254 = vld [vmem:[%s1 + $0x6a0] sm:$0xff]
  %v255 = vld [vmem:[%s1 + $0x6a8] sm:$0xff]
  %v256 = vld [vmem:[%s1 + $0x6b0] sm:$0xff]
  %v257 = vld [vmem:[%s1 + $0x6b8] sm:$0xff]
  %v258 = vld [vmem:[%s1 + $0x6c0] sm:$0xff]
  %v259 = vld [vmem:[%s1 + $0x6c8] sm:$0xff]
  %v260 = vld [vmem:[%s1 + $0x6d0] sm:$0xff]
  %v261 = vld [vmem:[%s1 + $0x6d8] sm:$0xff]
  %v262 = vld [vmem:[%s1 + $0x6e0] sm:$0xff]
  %v263 = vld [vmem:[%s1 + $0x6e8] sm:$0xff]
  %v264 = vld [vmem:[%s1 + $0x6f0] sm:$0xff]
  %v265 = vld [vmem:[%s1 + $0x6f8] sm:$0xff]
  %v266 = vld [vmem:[%s1 + $0x700] sm:$0xff]
  %v267 = vld [vmem:[%s1 + $0x708] sm:$0xff]
  %v268 = vld [vmem:[%s1 + $0x710] sm:$0xff]
  %v269 = vld [vmem:[%s1 + $0x718] sm:$0xff]
  %v270 = vld [vmem:[%s1 + $0x720] sm:$0xff]
  %v271 = vld [vmem:[%s1 + $0x728] sm:$0xff]
  %v272 = vld [vmem:[%s1 + $0x730] sm:$0xff]
  %v273 = vld [vmem:[%s1 + $0x738] sm:$0xff]
  %v274 = vld [vmem:[%s1 + $0x740] sm:$0xff]
  %v275 = vld [vmem:[%s1 + $0x748] sm:$0xff]
  %v276 = vld [vmem:[%s1 + $0x750] sm:$0xff]
  %v277 = vld [vmem:[%s1 + $0x758] sm:$0xff]
  %v278 = vld [vmem:[%s1 + $0x760] sm:$0xff]
  %v279 = vld [vmem:[%s1 + $0x768] sm:$0xff]
  %v280 = vld [vmem:[%s1 + $0x770] sm:$0xff]
  %v281 = vld [vmem:[%s1 + $0x778] sm:$0xff]
  %v282 = vld [vmem:[%s1 + $0x780] sm:$0xff]
  %v283 = vld [vmem:[%s1 + $0x788] sm:$0xff]
  %v284 = vld [vmem:[%s1 + $0x790] sm:$0xff]
  %v285 = vld [vmem:[%s1 + $0x798] sm:$0xff]
  %v286 = vld [vmem:[%s1 + $0x7a0] sm:$0xff]
  %v287 = vld [vmem:[%s1 + $0x7a8] sm:$0xff]
  %v288 = vld [vmem:[%s1 + $0x7b0] sm:$0xff]
  %v289 = vld [vmem:[%s1 + $0x7b8] sm:$0xff]
  %v290 = vld [vmem:[%s1 + $0x7c0] sm:$0xff]
  %v291 = vld [vmem:[%s1 + $0x7c8] sm:$0xff]
  %v292 = vld [vmem:[%s1 + $0x7d0] sm:$0xff]
  %v293 = vld [vmem:[%s1 + $0x7d8] sm:$0xff]
  %v294 = vld [vmem:[%s1 + $0x7e0] sm:$0xff]
  %v295 = vld [vmem:[%s1 + $0x7e8] sm:$0xff]
  %v296 = vld [vmem:[%s1 + $0x7f0] sm:$0xff]
  %v297 = vld [vmem:[%s1 + $0x7f8] sm:$0xff]
  %v298 = vld [vmem:[%s1 + $0x800] sm:$0xff]
  %v299 = vld [vmem:[%s1 + $0x808] sm:$0xff]
  %v300 = vld [vmem:[%s1 + $0x810] sm:$0xff]
  %v301 = vld [vmem:[%s1 + $0x818] sm:$0xff]
  %v302 = vld [vmem:[%s1 + $0x820] sm:$0xff]
  %v303 = vld [vmem:[%s1 + $0x828] sm:$0xff]
  %v304 = vld [vmem:[%s1 + $0x830] sm:$0xff]
  %v305 = vld [vmem:[%s1 + $0x838] sm:$0xff]
  %v306 = vld [vmem:[%s1 + $0x840] sm:$0x11]
  %v307 = vld [vmem:[%s1 + $0x848] sm:$0x11]
  %v308 = vld [vmem:[%s1 + $0x850] sm:$0x11]
  %v309 = vld [vmem:[%s1 + $0x858] sm:$0x11]
  %v310 = vld [vmem:[%s1 + $0x860] sm:$0x11]
  %v311 = vld [vmem:[%s1 + $0x868] sm:$0x11]
  %v312 = vld [vmem:[%s1 + $0x870] sm:$0x11]
  %v313 = vld [vmem:[%s1 + $0x878] sm:$0x11]
  %v314 = vld [vmem:[%s1 + $0x880] sm:$0x11]
  %v315 = vld [vmem:[%s1 + $0x888] sm:$0x11]
  %v316 = vld [vmem:[%s1 + $0x890] sm:$0x11]
  %v317 = vld [vmem:[%s1 + $0x898] sm:$0x11]
  %v318 = vld [vmem:[%s1 + $0x8a0] sm:$0x11]
  %v319 = vld [vmem:[%s1 + $0x8a8] sm:$0x11]
  %v320 = vld [vmem:[%s1 + $0x8b0] sm:$0x11]
  %v321 = vld [vmem:[%s1 + $0x8b8] sm:$0x11]
  %v322 = vld [vmem:[%s1 + $0x8c0] sm:$0x11]
  %v323 = vld [vmem:[%s1 + $0x8c8] sm:$0x11]
  %v324 = vld [vmem:[%s1 + $0x8d0] sm:$0x11]
  %v325 = vld [vmem:[%s1 + $0x8d8] sm:$0x11]
  %v326 = vld [vmem:[%s1 + $0x8e0] sm:$0x11]
  %v327 = vld [vmem:[%s1 + $0x8e8] sm:$0x11]
  %v328 = vld [vmem:[%s1 + $0x8f0] sm:$0x11]
  %v329 = vld [vmem:[%s1 + $0x8f8] sm:$0x11]
  %v330 = vld [vmem:[%s1 + $0x900] sm:$0x11]
  %v331 = vld [vmem:[%s1 + $0x908] sm:$0x11]
  %v332 = vld [vmem:[%s1 + $0x910] sm:$0x11]
  %v333 = vld [vmem:[%s1 + $0x918] sm:$0x11]
  %v334 = vld [vmem:[%s1 + $0x920] sm:$0x11]
  %v335 = vld [vmem:[%s1 + $0x928] sm:$0x11]
  %v336 = vld [vmem:[%s1 + $0x930] sm:$0x11]
  %v337 = vld [vmem:[%s1 + $0x938] sm:$0x11]
  %v338 = vld [vmem:[%s1 + $0x940] sm:$0x11]
  %v636 = vunpack.c.l.b16 %v42
  %v637 = vunpack.c.h.b16 %v42
  %v638 = vunpack.c.l.b16 %v43
  %v639 = vunpack.c.h.b16 %v43
  %v640 = vunpack.c.l.b16 %v44
  %v641 = vunpack.c.h.b16 %v44
  %v642 = vunpack.c.l.b16 %v45
  %v643 = vunpack.c.h.b16 %v45
  %v644 = vunpack.c.l.b16 %v46
  %v645 = vunpack.c.h.b16 %v46
  %v646 = vunpack.c.l.b16 %v47
  %v647 = vunpack.c.h.b16 %v47
  %v648 = vunpack.c.l.b16 %v48
  %v649 = vunpack.c.h.b16 %v48
  %v650 = vunpack.c.l.b16 %v49
  %v651 = vunpack.c.h.b16 %v49
  %v652 = vunpack.c.l.b16 %v50
  %v653 = vunpack.c.h.b16 %v50
  %v654 = vunpack.c.l.b16 %v51
  %v655 = vunpack.c.h.b16 %v51
  %v656 = vunpack.c.l.b16 %v52
  %v657 = vunpack.c.h.b16 %v52
  %v658 = vunpack.c.l.b16 %v53
  %v659 = vunpack.c.h.b16 %v53
  %v660 = vunpack.c.l.b16 %v54
  %v661 = vunpack.c.h.b16 %v54
  %v662 = vunpack.c.l.b16 %v55
  %v663 = vunpack.c.h.b16 %v55
  %v664 = vunpack.c.l.b16 %v56
  %v665 = vunpack.c.h.b16 %v56
  %v666 = vunpack.c.l.b16 %v57
  %v667 = vunpack.c.h.b16 %v57
  %v668 = vunpack.c.l.b16 %v58
  %v669 = vunpack.c.h.b16 %v58
  %v670 = vunpack.c.l.b16 %v59
  %v671 = vunpack.c.h.b16 %v59
  %v672 = vunpack.c.l.b16 %v60
  %v673 = vunpack.c.h.b16 %v60
  %v674 = vunpack.c.l.b16 %v61
  %v675 = vunpack.c.h.b16 %v61
  %v676 = vunpack.c.l.b16 %v62
  %v677 = vunpack.c.h.b16 %v62
  %v678 = vunpack.c.l.b16 %v63
  %v679 = vunpack.c.h.b16 %v63
  %v680 = vunpack.c.l.b16 %v64
  %v681 = vunpack.c.h.b16 %v64
  %v682 = vunpack.c.l.b16 %v65
  %v683 = vunpack.c.h.b16 %v65
  %v684 = vunpack.c.l.b16 %v66
  %v685 = vunpack.c.h.b16 %v66
  %v686 = vunpack.c.l.b16 %v67
  %v687 = vunpack.c.h.b16 %v67
  %v688 = vunpack.c.l.b16 %v68
  %v689 = vunpack.c.h.b16 %v68
  %v690 = vunpack.c.l.b16 %v69
  %v691 = vunpack.c.h.b16 %v69
  %v692 = vunpack.c.l.b16 %v70
  %v693 = vunpack.c.h.b16 %v70
  %v694 = vunpack.c.l.b16 %v71
  %v695 = vunpack.c.h.b16 %v71
  %v696 = vunpack.c.l.b16 %v72
  %v697 = vunpack.c.h.b16 %v72
  %v698 = vunpack.c.l.b16 %v73
  %v699 = vunpack.c.h.b16 %v73
  %v700 = vunpack.c.l.b16 %v74
  %v701 = vunpack.c.h.b16 %v74
  %v702 = vunpack.c.l.b16 %v75
  %v703 = vunpack.c.h.b16 %v75
  %v704 = vunpack.c.l.b16 %v76
  %v705 = vunpack.c.h.b16 %v76
  %v706 = vunpack.c.l.b16 %v77
  %v707 = vunpack.c.h.b16 %v77
  %v708 = vunpack.c.l.b16 %v78
  %v709 = vunpack.c.h.b16 %v78
  %v710 = vunpack.c.l.b16 %v79
  %v711 = vunpack.c.h.b16 %v79
  %v712 = vunpack.c.l.b16 %v80
  %v713 = vunpack.c.h.b16 %v80
  %v714 = vunpack.c.l.b16 %v81
  %v715 = vunpack.c.h.b16 %v81
  %v716 = vunpack.c.l.b16 %v82
  %v717 = vunpack.c.h.b16 %v82
  %v718 = vunpack.c.l.b16 %v83
  %v719 = vunpack.c.h.b16 %v83
  %v720 = vunpack.c.l.b16 %v84
  %v721 = vunpack.c.h.b16 %v84
  %v722 = vunpack.c.l.b16 %v85
  %v723 = vunpack.c.h.b16 %v85
  %v724 = vunpack.c.l.b16 %v86
  %v725 = vunpack.c.h.b16 %v86
  %v726 = vunpack.c.l.b16 %v87
  %v727 = vunpack.c.h.b16 %v87
  %v728 = vunpack.c.l.b16 %v88
  %v729 = vunpack.c.h.b16 %v88
  %v730 = vunpack.c.l.b16 %v89
  %v731 = vunpack.c.h.b16 %v89
  %v732 = vunpack.c.l.b16 %v90
  %v733 = vunpack.c.h.b16 %v90
  %v734 = vunpack.c.l.b16 %v91
  %v735 = vunpack.c.h.b16 %v91
  %v736 = vunpack.c.l.b16 %v92
  %v737 = vunpack.c.h.b16 %v92
  %v738 = vunpack.c.l.b16 %v93
  %v739 = vunpack.c.h.b16 %v93
  %v740 = vunpack.c.l.b16 %v94
  %v741 = vunpack.c.h.b16 %v94
  %v742 = vunpack.c.l.b16 %v95
  %v743 = vunpack.c.h.b16 %v95
  %v744 = vunpack.c.l.b16 %v96
  %v745 = vunpack.c.h.b16 %v96
  %v746 = vunpack.c.l.b16 %v97
  %v747 = vunpack.c.h.b16 %v97
  %v748 = vunpack.c.l.b16 %v98
  %v749 = vunpack.c.h.b16 %v98
  %v750 = vunpack.c.l.b16 %v99
  %v751 = vunpack.c.h.b16 %v99
  %v752 = vunpack.c.l.b16 %v100
  %v753 = vunpack.c.h.b16 %v100
  %v754 = vunpack.c.l.b16 %v101
  %v755 = vunpack.c.h.b16 %v101
  %v756 = vunpack.c.l.b16 %v102
  %v757 = vunpack.c.h.b16 %v102
  %v758 = vunpack.c.l.b16 %v103
  %v759 = vunpack.c.h.b16 %v103
  %v760 = vunpack.c.l.b16 %v104
  %v761 = vunpack.c.h.b16 %v104
  %v762 = vunpack.c.l.b16 %v105
  %v763 = vunpack.c.h.b16 %v105
  %v764 = vunpack.c.l.b16 %v106
  %v765 = vunpack.c.h.b16 %v106
  %v766 = vunpack.c.l.b16 %v107
  %v767 = vunpack.c.h.b16 %v107
  %v768 = vunpack.c.l.b16 %v108
  %v769 = vunpack.c.h.b16 %v108
  %v770 = vunpack.c.l.b16 %v109
  %v771 = vunpack.c.h.b16 %v109
  %v772 = vunpack.c.l.b16 %v110
  %v773 = vunpack.c.h.b16 %v110
  %v774 = vunpack.c.l.b16 %v111
  %v775 = vunpack.c.h.b16 %v111
  %v776 = vunpack.c.l.b16 %v112
  %v777 = vunpack.c.h.b16 %v112
  %v778 = vunpack.c.l.b16 %v113
  %v779 = vunpack.c.h.b16 %v113
  %v780 = vunpack.c.l.b16 %v114
  %v781 = vunpack.c.h.b16 %v114
  %v782 = vunpack.c.l.b16 %v115
  %v783 = vunpack.c.h.b16 %v115
  %v784 = vunpack.c.l.b16 %v116
  %v785 = vunpack.c.h.b16 %v116
  %v786 = vunpack.c.l.b16 %v117
  %v787 = vunpack.c.h.b16 %v117
  %v788 = vunpack.c.l.b16 %v118
  %v789 = vunpack.c.h.b16 %v118
  %v790 = vunpack.c.l.b16 %v119
  %v791 = vunpack.c.h.b16 %v119
  %v792 = vunpack.c.l.b16 %v120
  %v793 = vunpack.c.h.b16 %v120
  %v794 = vunpack.c.l.b16 %v121
  %v795 = vunpack.c.h.b16 %v121
  %v796 = vunpack.c.l.b16 %v122
  %v797 = vunpack.c.h.b16 %v122
  %v798 = vunpack.c.l.b16 %v123
  %v799 = vunpack.c.h.b16 %v123
  %v800 = vunpack.c.l.b16 %v124
  %v801 = vunpack.c.h.b16 %v124
  %v802 = vunpack.c.l.b16 %v125
  %v803 = vunpack.c.h.b16 %v125
  %v804 = vunpack.c.l.b16 %v126
  %v805 = vunpack.c.h.b16 %v126
  %v806 = vunpack.c.l.b16 %v127
  %v807 = vunpack.c.h.b16 %v127
  %v808 = vunpack.c.l.b16 %v128
  %v809 = vunpack.c.h.b16 %v128
  %v810 = vunpack.c.l.b16 %v129
  %v811 = vunpack.c.h.b16 %v129
  %v812 = vunpack.c.l.b16 %v130
  %v813 = vunpack.c.h.b16 %v130
  %v814 = vunpack.c.l.b16 %v131
  %v815 = vunpack.c.h.b16 %v131
  %v816 = vunpack.c.l.b16 %v132
  %v817 = vunpack.c.h.b16 %v132
  %v818 = vunpack.c.l.b16 %v133
  %v819 = vunpack.c.h.b16 %v133
  %v820 = vunpack.c.l.b16 %v134
  %v821 = vunpack.c.h.b16 %v134
  %v822 = vunpack.c.l.b16 %v135
  %v823 = vunpack.c.h.b16 %v135
  %v824 = vunpack.c.l.b16 %v136
  %v825 = vunpack.c.h.b16 %v136
  %v826 = vunpack.c.l.b16 %v137
  %v827 = vunpack.c.h.b16 %v137
  %v828 = vunpack.c.l.b16 %v138
  %v829 = vunpack.c.h.b16 %v138
  %v830 = vunpack.c.l.b16 %v139
  %v831 = vunpack.c.h.b16 %v139
  %v832 = vunpack.c.l.b16 %v140
  %v833 = vunpack.c.h.b16 %v140
  %v834 = vunpack.c.l.b16 %v141
  %v835 = vunpack.c.h.b16 %v141
  %v836 = vunpack.c.l.b16 %v142
  %v837 = vunpack.c.h.b16 %v142
  %v838 = vunpack.c.l.b16 %v143
  %v839 = vunpack.c.h.b16 %v143
  %v840 = vunpack.c.l.b16 %v144
  %v841 = vunpack.c.h.b16 %v144
  %v842 = vunpack.c.l.b16 %v145
  %v843 = vunpack.c.h.b16 %v145
  %v844 = vunpack.c.l.b16 %v146
  %v845 = vunpack.c.h.b16 %v146
  %v846 = vunpack.c.l.b16 %v147
  %v847 = vunpack.c.h.b16 %v147
  %v848 = vunpack.c.l.b16 %v148
  %v849 = vunpack.c.h.b16 %v148
  %v850 = vunpack.c.l.b16 %v149
  %v851 = vunpack.c.h.b16 %v149
  %v852 = vunpack.c.l.b16 %v150
  %v853 = vunpack.c.h.b16 %v150
  %v854 = vunpack.c.l.b16 %v151
  %v855 = vunpack.c.h.b16 %v151
  %v856 = vunpack.c.l.b16 %v152
  %v857 = vunpack.c.h.b16 %v152
  %v858 = vunpack.c.l.b16 %v153
  %v859 = vunpack.c.h.b16 %v153
  %v860 = vunpack.c.l.b16 %v154
  %v861 = vunpack.c.h.b16 %v154
  %v862 = vunpack.c.l.b16 %v155
  %v863 = vunpack.c.h.b16 %v155
  %v864 = vunpack.c.l.b16 %v156
  %v865 = vunpack.c.h.b16 %v156
  %v866 = vunpack.c.l.b16 %v157
  %v867 = vunpack.c.h.b16 %v157
  %v868 = vunpack.c.l.b16 %v158
  %v869 = vunpack.c.h.b16 %v158
  %v870 = vunpack.c.l.b16 %v159
  %v871 = vunpack.c.h.b16 %v159
  %v872 = vunpack.c.l.b16 %v160
  %v873 = vunpack.c.h.b16 %v160
  %v874 = vunpack.c.l.b16 %v161
  %v875 = vunpack.c.h.b16 %v161
  %v876 = vunpack.c.l.b16 %v162
  %v877 = vunpack.c.h.b16 %v162
  %v878 = vunpack.c.l.b16 %v163
  %v879 = vunpack.c.h.b16 %v163
  %v880 = vunpack.c.l.b16 %v164
  %v881 = vunpack.c.h.b16 %v164
  %v882 = vunpack.c.l.b16 %v165
  %v883 = vunpack.c.h.b16 %v165
  %v884 = vunpack.c.l.b16 %v166
  %v885 = vunpack.c.h.b16 %v166
  %v886 = vunpack.c.l.b16 %v167
  %v887 = vunpack.c.h.b16 %v167
  %v888 = vunpack.c.l.b16 %v168
  %v889 = vunpack.c.h.b16 %v168
  %v890 = vunpack.c.l.b16 %v169
  %v891 = vunpack.c.h.b16 %v169
  %v892 = vunpack.c.l.b16 %v170
  %v893 = vunpack.c.h.b16 %v170
  %v894 = vunpack.c.l.b16 %v171
  %v895 = vunpack.c.h.b16 %v171
  %v896 = vunpack.c.l.b16 %v172
  %v897 = vunpack.c.h.b16 %v172
  %v898 = vunpack.c.l.b16 %v173
  %v899 = vunpack.c.h.b16 %v173
  %v900 = vunpack.c.l.b16 %v174
  %v901 = vunpack.c.h.b16 %v174
  %v902 = vunpack.c.l.b16 %v175
  %v903 = vunpack.c.h.b16 %v175
  %v904 = vunpack.c.l.b16 %v176
  %v905 = vunpack.c.h.b16 %v176
  %v906 = vunpack.c.l.b16 %v177
  %v907 = vunpack.c.h.b16 %v177
  %v908 = vunpack.c.l.b16 %v178
  %v909 = vunpack.c.h.b16 %v178
  %v910 = vunpack.c.l.b16 %v179
  %v911 = vunpack.c.h.b16 %v179
  %v912 = vunpack.c.l.b16 %v180
  %v913 = vunpack.c.h.b16 %v180
  %v914 = vunpack.c.l.b16 %v181
  %v915 = vunpack.c.h.b16 %v181
  %v916 = vunpack.c.l.b16 %v182
  %v917 = vunpack.c.h.b16 %v182
  %v918 = vunpack.c.l.b16 %v183
  %v919 = vunpack.c.h.b16 %v183
  %v920 = vunpack.c.l.b16 %v184
  %v921 = vunpack.c.h.b16 %v184
  %v922 = vunpack.c.l.b16 %v185
  %v923 = vunpack.c.h.b16 %v185
  %v924 = vunpack.c.l.b16 %v186
  %v925 = vunpack.c.h.b16 %v186
  %v926 = vunpack.c.l.b16 %v187
  %v927 = vunpack.c.h.b16 %v187
  %v928 = vunpack.c.l.b16 %v188
  %v929 = vunpack.c.h.b16 %v188
  %v930 = vunpack.c.l.b16 %v189
  %v931 = vunpack.c.h.b16 %v189
  %v932 = vunpack.c.l.b16 %v190
  %v933 = vunpack.c.h.b16 %v190
  %v934 = vunpack.c.l.b16 %v191
  %v935 = vunpack.c.h.b16 %v191
  %v936 = vunpack.c.l.b16 %v192
  %v937 = vunpack.c.h.b16 %v192
  %v938 = vunpack.c.l.b16 %v193
  %v939 = vunpack.c.h.b16 %v193
  %v940 = vunpack.c.l.b16 %v194
  %v941 = vunpack.c.h.b16 %v194
  %v942 = vunpack.c.l.b16 %v195
  %v943 = vunpack.c.h.b16 %v195
  %v944 = vunpack.c.l.b16 %v196
  %v945 = vunpack.c.h.b16 %v196
  %v946 = vunpack.c.l.b16 %v197
  %v947 = vunpack.c.h.b16 %v197
  %v948 = vunpack.c.l.b16 %v198
  %v949 = vunpack.c.h.b16 %v198
  %v950 = vunpack.c.l.b16 %v199
  %v951 = vunpack.c.h.b16 %v199
  %v952 = vunpack.c.l.b16 %v200
  %v953 = vunpack.c.h.b16 %v200
  %v954 = vunpack.c.l.b16 %v201
  %v955 = vunpack.c.h.b16 %v201
  %v956 = vunpack.c.l.b16 %v202
  %v957 = vunpack.c.h.b16 %v202
  %v958 = vunpack.c.l.b16 %v203
  %v959 = vunpack.c.h.b16 %v203
  %v960 = vunpack.c.l.b16 %v204
  %v961 = vunpack.c.h.b16 %v204
  %v962 = vunpack.c.l.b16 %v205
  %v963 = vunpack.c.h.b16 %v205
  %v964 = vunpack.c.l.b16 %v206
  %v965 = vunpack.c.h.b16 %v206
  %v966 = vunpack.c.l.b16 %v207
  %v967 = vunpack.c.h.b16 %v207
  %v968 = vunpack.c.l.b16 %v208
  %v969 = vunpack.c.h.b16 %v208
  %v970 = vunpack.c.l.b16 %v209
  %v971 = vunpack.c.h.b16 %v209
  %v972 = vunpack.c.l.b16 %v210
  %v973 = vunpack.c.h.b16 %v210
  %v974 = vunpack.c.l.b16 %v211
  %v975 = vunpack.c.h.b16 %v211
  %v976 = vunpack.c.l.b16 %v212
  %v977 = vunpack.c.h.b16 %v212
  %v978 = vunpack.c.l.b16 %v213
  %v979 = vunpack.c.h.b16 %v213
  %v980 = vunpack.c.l.b16 %v214
  %v981 = vunpack.c.h.b16 %v214
  %v982 = vunpack.c.l.b16 %v215
  %v983 = vunpack.c.h.b16 %v215
  %v984 = vunpack.c.l.b16 %v216
  %v985 = vunpack.c.h.b16 %v216
  %v986 = vunpack.c.l.b16 %v217
  %v987 = vunpack.c.h.b16 %v217
  %v988 = vunpack.c.l.b16 %v218
  %v989 = vunpack.c.h.b16 %v218
  %v990 = vunpack.c.l.b16 %v219
  %v991 = vunpack.c.h.b16 %v219
  %v992 = vunpack.c.l.b16 %v220
  %v993 = vunpack.c.h.b16 %v220
  %v994 = vunpack.c.l.b16 %v221
  %v995 = vunpack.c.h.b16 %v221
  %v996 = vunpack.c.l.b16 %v222
  %v997 = vunpack.c.h.b16 %v222
  %v998 = vunpack.c.l.b16 %v223
  %v999 = vunpack.c.h.b16 %v223
  %v1000 = vunpack.c.l.b16 %v224
  %v1001 = vunpack.c.h.b16 %v224
  %v1002 = vunpack.c.l.b16 %v225
  %v1003 = vunpack.c.h.b16 %v225
  %v1004 = vunpack.c.l.b16 %v226
  %v1005 = vunpack.c.h.b16 %v226
  %v1006 = vunpack.c.l.b16 %v227
  %v1007 = vunpack.c.h.b16 %v227
  %v1008 = vunpack.c.l.b16 %v228
  %v1009 = vunpack.c.h.b16 %v228
  %v1010 = vunpack.c.l.b16 %v229
  %v1011 = vunpack.c.h.b16 %v229
  %v1012 = vunpack.c.l.b16 %v230
  %v1013 = vunpack.c.h.b16 %v230
  %v1014 = vunpack.c.l.b16 %v231
  %v1015 = vunpack.c.h.b16 %v231
  %v1016 = vunpack.c.l.b16 %v232
  %v1017 = vunpack.c.h.b16 %v232
  %v1018 = vunpack.c.l.b16 %v233
  %v1019 = vunpack.c.h.b16 %v233
  %v1020 = vunpack.c.l.b16 %v234
  %v1021 = vunpack.c.h.b16 %v234
  %v1022 = vunpack.c.l.b16 %v235
  %v1023 = vunpack.c.h.b16 %v235
  %v1024 = vunpack.c.l.b16 %v236
  %v1025 = vunpack.c.h.b16 %v236
  %v1026 = vunpack.c.l.b16 %v237
  %v1027 = vunpack.c.h.b16 %v237
  %v1028 = vunpack.c.l.b16 %v238
  %v1029 = vunpack.c.h.b16 %v238
  %v1030 = vunpack.c.l.b16 %v239
  %v1031 = vunpack.c.h.b16 %v239
  %v1032 = vunpack.c.l.b16 %v240
  %v1033 = vunpack.c.h.b16 %v240
  %v1034 = vunpack.c.l.b16 %v241
  %v1035 = vunpack.c.h.b16 %v241
  %v1036 = vunpack.c.l.b16 %v242
  %v1037 = vunpack.c.h.b16 %v242
  %v1038 = vunpack.c.l.b16 %v243
  %v1039 = vunpack.c.h.b16 %v243
  %v1040 = vunpack.c.l.b16 %v244
  %v1041 = vunpack.c.h.b16 %v244
  %v1042 = vunpack.c.l.b16 %v245
  %v1043 = vunpack.c.h.b16 %v245
  %v1044 = vunpack.c.l.b16 %v246
  %v1045 = vunpack.c.h.b16 %v246
  %v1046 = vunpack.c.l.b16 %v247
  %v1047 = vunpack.c.h.b16 %v247
  %v1048 = vunpack.c.l.b16 %v248
  %v1049 = vunpack.c.h.b16 %v248
  %v1050 = vunpack.c.l.b16 %v249
  %v1051 = vunpack.c.h.b16 %v249
  %v1052 = vunpack.c.l.b16 %v250
  %v1053 = vunpack.c.h.b16 %v250
  %v1054 = vunpack.c.l.b16 %v251
  %v1055 = vunpack.c.h.b16 %v251
  %v1056 = vunpack.c.l.b16 %v252
  %v1057 = vunpack.c.h.b16 %v252
  %v1058 = vunpack.c.l.b16 %v253
  %v1059 = vunpack.c.h.b16 %v253
  %v1060 = vunpack.c.l.b16 %v254
  %v1061 = vunpack.c.h.b16 %v254
  %v1062 = vunpack.c.l.b16 %v255
  %v1063 = vunpack.c.h.b16 %v255
  %v1064 = vunpack.c.l.b16 %v256
  %v1065 = vunpack.c.h.b16 %v256
  %v1066 = vunpack.c.l.b16 %v257
  %v1067 = vunpack.c.h.b16 %v257
  %v1068 = vunpack.c.l.b16 %v258
  %v1069 = vunpack.c.h.b16 %v258
  %v1070 = vunpack.c.l.b16 %v259
  %v1071 = vunpack.c.h.b16 %v259
  %v1072 = vunpack.c.l.b16 %v260
  %v1073 = vunpack.c.h.b16 %v260
  %v1074 = vunpack.c.l.b16 %v261
  %v1075 = vunpack.c.h.b16 %v261
  %v1076 = vunpack.c.l.b16 %v262
  %v1077 = vunpack.c.h.b16 %v262
  %v1078 = vunpack.c.l.b16 %v263
  %v1079 = vunpack.c.h.b16 %v263
  %v1080 = vunpack.c.l.b16 %v264
  %v1081 = vunpack.c.h.b16 %v264
  %v1082 = vunpack.c.l.b16 %v265
  %v1083 = vunpack.c.h.b16 %v265
  %v1084 = vunpack.c.l.b16 %v266
  %v1085 = vunpack.c.h.b16 %v266
  %v1086 = vunpack.c.l.b16 %v267
  %v1087 = vunpack.c.h.b16 %v267
  %v1088 = vunpack.c.l.b16 %v268
  %v1089 = vunpack.c.h.b16 %v268
  %v1090 = vunpack.c.l.b16 %v269
  %v1091 = vunpack.c.h.b16 %v269
  %v1092 = vunpack.c.l.b16 %v270
  %v1093 = vunpack.c.h.b16 %v270
  %v1094 = vunpack.c.l.b16 %v271
  %v1095 = vunpack.c.h.b16 %v271
  %v1096 = vunpack.c.l.b16 %v272
  %v1097 = vunpack.c.h.b16 %v272
  %v1098 = vunpack.c.l.b16 %v273
  %v1099 = vunpack.c.h.b16 %v273
  %v1100 = vunpack.c.l.b16 %v274
  %v1101 = vunpack.c.h.b16 %v274
  %v1102 = vunpack.c.l.b16 %v275
  %v1103 = vunpack.c.h.b16 %v275
  %v1104 = vunpack.c.l.b16 %v276
  %v1105 = vunpack.c.h.b16 %v276
  %v1106 = vunpack.c.l.b16 %v277
  %v1107 = vunpack.c.h.b16 %v277
  %v1108 = vunpack.c.l.b16 %v278
  %v1109 = vunpack.c.h.b16 %v278
  %v1110 = vunpack.c.l.b16 %v279
  %v1111 = vunpack.c.h.b16 %v279
  %v1112 = vunpack.c.l.b16 %v280
  %v1113 = vunpack.c.h.b16 %v280
  %v1114 = vunpack.c.l.b16 %v281
  %v1115 = vunpack.c.h.b16 %v281
  %v1116 = vunpack.c.l.b16 %v282
  %v1117 = vunpack.c.h.b16 %v282
  %v1118 = vunpack.c.l.b16 %v283
  %v1119 = vunpack.c.h.b16 %v283
  %v1120 = vunpack.c.l.b16 %v284
  %v1121 = vunpack.c.h.b16 %v284
  %v1122 = vunpack.c.l.b16 %v285
  %v1123 = vunpack.c.h.b16 %v285
  %v1124 = vunpack.c.l.b16 %v286
  %v1125 = vunpack.c.h.b16 %v286
  %v1126 = vunpack.c.l.b16 %v287
  %v1127 = vunpack.c.h.b16 %v287
  %v1128 = vunpack.c.l.b16 %v288
  %v1129 = vunpack.c.h.b16 %v288
  %v1130 = vunpack.c.l.b16 %v289
  %v1131 = vunpack.c.h.b16 %v289
  %v1132 = vunpack.c.l.b16 %v290
  %v1133 = vunpack.c.h.b16 %v290
  %v1134 = vunpack.c.l.b16 %v291
  %v1135 = vunpack.c.h.b16 %v291
  %v1136 = vunpack.c.l.b16 %v292
  %v1137 = vunpack.c.h.b16 %v292
  %v1138 = vunpack.c.l.b16 %v293
  %v1139 = vunpack.c.h.b16 %v293
  %v1140 = vunpack.c.l.b16 %v294
  %v1141 = vunpack.c.h.b16 %v294
  %v1142 = vunpack.c.l.b16 %v295
  %v1143 = vunpack.c.h.b16 %v295
  %v1144 = vunpack.c.l.b16 %v296
  %v1145 = vunpack.c.h.b16 %v296
  %v1146 = vunpack.c.l.b16 %v297
  %v1147 = vunpack.c.h.b16 %v297
  %v1148 = vunpack.c.l.b16 %v298
  %v1149 = vunpack.c.h.b16 %v298
  %v1150 = vunpack.c.l.b16 %v299
  %v1151 = vunpack.c.h.b16 %v299
  %v1152 = vunpack.c.l.b16 %v300
  %v1153 = vunpack.c.h.b16 %v300
  %v1154 = vunpack.c.l.b16 %v301
  %v1155 = vunpack.c.h.b16 %v301
  %v1156 = vunpack.c.l.b16 %v302
  %v1157 = vunpack.c.h.b16 %v302
  %v1158 = vunpack.c.l.b16 %v303
  %v1159 = vunpack.c.h.b16 %v303
  %v1160 = vunpack.c.l.b16 %v304
  %v1161 = vunpack.c.h.b16 %v304
  %v1162 = vunpack.c.l.b16 %v305
  %v1163 = vunpack.c.h.b16 %v305
  %v1164 = vunpack.c.l.b16 %v306
  %v1165 = vunpack.c.h.b16 %v306
  %v1166 = vunpack.c.l.b16 %v307
  %v1167 = vunpack.c.h.b16 %v307
  %v1168 = vunpack.c.l.b16 %v308
  %v1169 = vunpack.c.h.b16 %v308
  %v1170 = vunpack.c.l.b16 %v309
  %v1171 = vunpack.c.h.b16 %v309
  %v1172 = vunpack.c.l.b16 %v310
  %v1173 = vunpack.c.h.b16 %v310
  %v1174 = vunpack.c.l.b16 %v311
  %v1175 = vunpack.c.h.b16 %v311
  %v1176 = vunpack.c.l.b16 %v312
  %v1177 = vunpack.c.h.b16 %v312
  %v1178 = vunpack.c.l.b16 %v313
  %v1179 = vunpack.c.h.b16 %v313
  %v1180 = vunpack.c.l.b16 %v314
  %v1181 = vunpack.c.h.b16 %v314
  %v1182 = vunpack.c.l.b16 %v315
  %v1183 = vunpack.c.h.b16 %v315
  %v1184 = vunpack.c.l.b16 %v316
  %v1185 = vunpack.c.h.b16 %v316
  %v1186 = vunpack.c.l.b16 %v317
  %v1187 = vunpack.c.h.b16 %v317
  %v1188 = vunpack.c.l.b16 %v318
  %v1189 = vunpack.c.h.b16 %v318
  %v1190 = vunpack.c.l.b16 %v319
  %v1191 = vunpack.c.h.b16 %v319
  %v1192 = vunpack.c.l.b16 %v320
  %v1193 = vunpack.c.h.b16 %v320
  %v1194 = vunpack.c.l.b16 %v321
  %v1195 = vunpack.c.h.b16 %v321
  %v1196 = vunpack.c.l.b16 %v322
  %v1197 = vunpack.c.h.b16 %v322
  %v1198 = vunpack.c.l.b16 %v323
  %v1199 = vunpack.c.h.b16 %v323
  %v1200 = vunpack.c.l.b16 %v324
  %v1201 = vunpack.c.h.b16 %v324
  %v1202 = vunpack.c.l.b16 %v325
  %v1203 = vunpack.c.h.b16 %v325
  %v1204 = vunpack.c.l.b16 %v326
  %v1205 = vunpack.c.h.b16 %v326
  %v1206 = vunpack.c.l.b16 %v327
  %v1207 = vunpack.c.h.b16 %v327
  %v1208 = vunpack.c.l.b16 %v328
  %v1209 = vunpack.c.h.b16 %v328
  %v1210 = vunpack.c.l.b16 %v329
  %v1211 = vunpack.c.h.b16 %v329
  %v1212 = vunpack.c.l.b16 %v330
  %v1213 = vunpack.c.h.b16 %v330
  %v1214 = vunpack.c.l.b16 %v331
  %v1215 = vunpack.c.h.b16 %v331
  %v1216 = vunpack.c.l.b16 %v332
  %v1217 = vunpack.c.h.b16 %v332
  %v1218 = vunpack.c.l.b16 %v333
  %v1219 = vunpack.c.h.b16 %v333
  %v1220 = vunpack.c.l.b16 %v334
  %v1221 = vunpack.c.h.b16 %v334
  %v1222 = vunpack.c.l.b16 %v335
  %v1223 = vunpack.c.h.b16 %v335
  %v1224 = vunpack.c.l.b16 %v336
  %v1225 = vunpack.c.h.b16 %v336
  %v1226 = vunpack.c.l.b16 %v337
  %v1227 = vunpack.c.h.b16 %v337
  %v1228 = vunpack.c.l.b16 %v338
  %v1229 = vunpack.c.h.b16 %v338
  %v1230 = vpack.c.b16 %v702, %v636
  %v1231 = vpack.c.b16 %v703, %v637
  %v1232 = vpack.c.b16 %v704, %v638
  %v1233 = vpack.c.b16 %v705, %v639
  %v1234 = vpack.c.b16 %v706, %v640
  %v1235 = vpack.c.b16 %v707, %v641
  %v1236 = vpack.c.b16 %v708, %v642
  %v1237 = vpack.c.b16 %v709, %v643
  %v1238 = vpack.c.b16 %v710, %v644
  %v1239 = vpack.c.b16 %v711, %v645
  %v1240 = vpack.c.b16 %v712, %v646
  %v1241 = vpack.c.b16 %v713, %v647
  %v1242 = vpack.c.b16 %v714, %v648
  %v1243 = vpack.c.b16 %v715, %v649
  %v1244 = vpack.c.b16 %v716, %v650
  %v1245 = vpack.c.b16 %v717, %v651
  %v1246 = vpack.c.b16 %v718, %v652
  %v1247 = vpack.c.b16 %v719, %v653
  %v1248 = vpack.c.b16 %v720, %v654
  %v1249 = vpack.c.b16 %v721, %v655
  %v1250 = vpack.c.b16 %v722, %v656
  %v1251 = vpack.c.b16 %v723, %v657
  %v1252 = vpack.c.b16 %v724, %v658
  %v1253 = vpack.c.b16 %v725, %v659
  %v1254 = vpack.c.b16 %v726, %v660
  %v1255 = vpack.c.b16 %v727, %v661
  %v1256 = vpack.c.b16 %v728, %v662
  %v1257 = vpack.c.b16 %v729, %v663
  %v1258 = vpack.c.b16 %v730, %v664
  %v1259 = vpack.c.b16 %v731, %v665
  %v1260 = vpack.c.b16 %v732, %v666
  %v1261 = vpack.c.b16 %v733, %v667
  %v1262 = vpack.c.b16 %v734, %v668
  %v1263 = vpack.c.b16 %v735, %v669
  %v1264 = vpack.c.b16 %v736, %v670
  %v1265 = vpack.c.b16 %v737, %v671
  %v1266 = vpack.c.b16 %v738, %v672
  %v1267 = vpack.c.b16 %v739, %v673
  %v1268 = vpack.c.b16 %v740, %v674
  %v1269 = vpack.c.b16 %v741, %v675
  %v1270 = vpack.c.b16 %v742, %v676
  %v1271 = vpack.c.b16 %v743, %v677
  %v1272 = vpack.c.b16 %v744, %v678
  %v1273 = vpack.c.b16 %v745, %v679
  %v1274 = vpack.c.b16 %v746, %v680
  %v1275 = vpack.c.b16 %v747, %v681
  %v1276 = vpack.c.b16 %v748, %v682
  %v1277 = vpack.c.b16 %v749, %v683
  %v1278 = vpack.c.b16 %v750, %v684
  %v1279 = vpack.c.b16 %v751, %v685
  %v1280 = vpack.c.b16 %v752, %v686
  %v1281 = vpack.c.b16 %v753, %v687
  %v1282 = vpack.c.b16 %v754, %v688
  %v1283 = vpack.c.b16 %v755, %v689
  %v1284 = vpack.c.b16 %v756, %v690
  %v1285 = vpack.c.b16 %v757, %v691
  %v1286 = vpack.c.b16 %v758, %v692
  %v1287 = vpack.c.b16 %v759, %v693
  %v1288 = vpack.c.b16 %v760, %v694
  %v1289 = vpack.c.b16 %v761, %v695
  %v1290 = vpack.c.b16 %v762, %v696
  %v1291 = vpack.c.b16 %v763, %v697
  %v1292 = vpack.c.b16 %v764, %v698
  %v1293 = vpack.c.b16 %v765, %v699
  %v1294 = vpack.c.b16 %v766, %v700
  %v1295 = vpack.c.b16 %v767, %v701
  %v1296 = vpack.c.b16 %v834, %v768
  %v1297 = vpack.c.b16 %v835, %v769
  %v1298 = vpack.c.b16 %v836, %v770
  %v1299 = vpack.c.b16 %v837, %v771
  %v1300 = vpack.c.b16 %v838, %v772
  %v1301 = vpack.c.b16 %v839, %v773
  %v1302 = vpack.c.b16 %v840, %v774
  %v1303 = vpack.c.b16 %v841, %v775
  %v1304 = vpack.c.b16 %v842, %v776
  %v1305 = vpack.c.b16 %v843, %v777
  %v1306 = vpack.c.b16 %v844, %v778
  %v1307 = vpack.c.b16 %v845, %v779
  %v1308 = vpack.c.b16 %v846, %v780
  %v1309 = vpack.c.b16 %v847, %v781
  %v1310 = vpack.c.b16 %v848, %v782
  %v1311 = vpack.c.b16 %v849, %v783
  %v1312 = vpack.c.b16 %v850, %v784
  %v1313 = vpack.c.b16 %v851, %v785
  %v1314 = vpack.c.b16 %v852, %v786
  %v1315 = vpack.c.b16 %v853, %v787
  %v1316 = vpack.c.b16 %v854, %v788
  %v1317 = vpack.c.b16 %v855, %v789
  %v1318 = vpack.c.b16 %v856, %v790
  %v1319 = vpack.c.b16 %v857, %v791
  %v1320 = vpack.c.b16 %v858, %v792
  %v1321 = vpack.c.b16 %v859, %v793
  %v1322 = vpack.c.b16 %v860, %v794
  %v1323 = vpack.c.b16 %v861, %v795
  %v1324 = vpack.c.b16 %v862, %v796
  %v1325 = vpack.c.b16 %v863, %v797
  %v1326 = vpack.c.b16 %v864, %v798
  %v1327 = vpack.c.b16 %v865, %v799
  %v1328 = vpack.c.b16 %v866, %v800
  %v1329 = vpack.c.b16 %v867, %v801
  %v1330 = vpack.c.b16 %v868, %v802
  %v1331 = vpack.c.b16 %v869, %v803
  %v1332 = vpack.c.b16 %v870, %v804
  %v1333 = vpack.c.b16 %v871, %v805
  %v1334 = vpack.c.b16 %v872, %v806
  %v1335 = vpack.c.b16 %v873, %v807
  %v1336 = vpack.c.b16 %v874, %v808
  %v1337 = vpack.c.b16 %v875, %v809
  %v1338 = vpack.c.b16 %v876, %v810
  %v1339 = vpack.c.b16 %v877, %v811
  %v1340 = vpack.c.b16 %v878, %v812
  %v1341 = vpack.c.b16 %v879, %v813
  %v1342 = vpack.c.b16 %v880, %v814
  %v1343 = vpack.c.b16 %v881, %v815
  %v1344 = vpack.c.b16 %v882, %v816
  %v1345 = vpack.c.b16 %v883, %v817
  %v1346 = vpack.c.b16 %v884, %v818
  %v1347 = vpack.c.b16 %v885, %v819
  %v1348 = vpack.c.b16 %v886, %v820
  %v1349 = vpack.c.b16 %v887, %v821
  %v1350 = vpack.c.b16 %v888, %v822
  %v1351 = vpack.c.b16 %v889, %v823
  %v1352 = vpack.c.b16 %v890, %v824
  %v1353 = vpack.c.b16 %v891, %v825
  %v1354 = vpack.c.b16 %v892, %v826
  %v1355 = vpack.c.b16 %v893, %v827
  %v1356 = vpack.c.b16 %v894, %v828
  %v1357 = vpack.c.b16 %v895, %v829
  %v1358 = vpack.c.b16 %v896, %v830
  %v1359 = vpack.c.b16 %v897, %v831
  %v1360 = vpack.c.b16 %v898, %v832
  %v1361 = vpack.c.b16 %v899, %v833
  %v1362 = vpack.c.b16 %v966, %v900
  %v1363 = vpack.c.b16 %v967, %v901
  %v1364 = vpack.c.b16 %v968, %v902
  %v1365 = vpack.c.b16 %v969, %v903
  %v1366 = vpack.c.b16 %v970, %v904
  %v1367 = vpack.c.b16 %v971, %v905
  %v1368 = vpack.c.b16 %v972, %v906
  %v1369 = vpack.c.b16 %v973, %v907
  %v1370 = vpack.c.b16 %v974, %v908
  %v1371 = vpack.c.b16 %v975, %v909
  %v1372 = vpack.c.b16 %v976, %v910
  %v1373 = vpack.c.b16 %v977, %v911
  %v1374 = vpack.c.b16 %v978, %v912
  %v1375 = vpack.c.b16 %v979, %v913
  %v1376 = vpack.c.b16 %v980, %v914
  %v1377 = vpack.c.b16 %v981, %v915
  %v1378 = vpack.c.b16 %v982, %v916
  %v1379 = vpack.c.b16 %v983, %v917
  %v1380 = vpack.c.b16 %v984, %v918
  %v1381 = vpack.c.b16 %v985, %v919
  %v1382 = vpack.c.b16 %v986, %v920
  %v1383 = vpack.c.b16 %v987, %v921
  %v1384 = vpack.c.b16 %v988, %v922
  %v1385 = vpack.c.b16 %v989, %v923
  %v1386 = vpack.c.b16 %v990, %v924
  %v1387 = vpack.c.b16 %v991, %v925
  %v1388 = vpack.c.b16 %v992, %v926
  %v1389 = vpack.c.b16 %v993, %v927
  %v1390 = vpack.c.b16 %v994, %v928
  %v1391 = vpack.c.b16 %v995, %v929
  %v1392 = vpack.c.b16 %v996, %v930
  %v1393 = vpack.c.b16 %v997, %v931
  %v1394 = vpack.c.b16 %v998, %v932
  %v1395 = vpack.c.b16 %v999, %v933
  %v1396 = vpack.c.b16 %v1000, %v934
  %v1397 = vpack.c.b16 %v1001, %v935
  %v1398 = vpack.c.b16 %v1002, %v936
  %v1399 = vpack.c.b16 %v1003, %v937
  %v1400 = vpack.c.b16 %v1004, %v938
  %v1401 = vpack.c.b16 %v1005, %v939
  %v1402 = vpack.c.b16 %v1006, %v940
  %v1403 = vpack.c.b16 %v1007, %v941
  %v1404 = vpack.c.b16 %v1008, %v942
  %v1405 = vpack.c.b16 %v1009, %v943
  %v1406 = vpack.c.b16 %v1010, %v944
  %v1407 = vpack.c.b16 %v1011, %v945
  %v1408 = vpack.c.b16 %v1012, %v946
  %v1409 = vpack.c.b16 %v1013, %v947
  %v1410 = vpack.c.b16 %v1014, %v948
  %v1411 = vpack.c.b16 %v1015, %v949
  %v1412 = vpack.c.b16 %v1016, %v950
  %v1413 = vpack.c.b16 %v1017, %v951
  %v1414 = vpack.c.b16 %v1018, %v952
  %v1415 = vpack.c.b16 %v1019, %v953
  %v1416 = vpack.c.b16 %v1020, %v954
  %v1417 = vpack.c.b16 %v1021, %v955
  %v1418 = vpack.c.b16 %v1022, %v956
  %v1419 = vpack.c.b16 %v1023, %v957
  %v1420 = vpack.c.b16 %v1024, %v958
  %v1421 = vpack.c.b16 %v1025, %v959
  %v1422 = vpack.c.b16 %v1026, %v960
  %v1423 = vpack.c.b16 %v1027, %v961
  %v1424 = vpack.c.b16 %v1028, %v962
  %v1425 = vpack.c.b16 %v1029, %v963
  %v1426 = vpack.c.b16 %v1030, %v964
  %v1427 = vpack.c.b16 %v1031, %v965
  %v1428 = vpack.c.b16 %v1098, %v1032
  %v1429 = vpack.c.b16 %v1099, %v1033
  %v1430 = vpack.c.b16 %v1100, %v1034
  %v1431 = vpack.c.b16 %v1101, %v1035
  %v1432 = vpack.c.b16 %v1102, %v1036
  %v1433 = vpack.c.b16 %v1103, %v1037
  %v1434 = vpack.c.b16 %v1104, %v1038
  %v1435 = vpack.c.b16 %v1105, %v1039
  %v1436 = vpack.c.b16 %v1106, %v1040
  %v1437 = vpack.c.b16 %v1107, %v1041
  %v1438 = vpack.c.b16 %v1108, %v1042
  %v1439 = vpack.c.b16 %v1109, %v1043
  %v1440 = vpack.c.b16 %v1110, %v1044
  %v1441 = vpack.c.b16 %v1111, %v1045
  %v1442 = vpack.c.b16 %v1112, %v1046
  %v1443 = vpack.c.b16 %v1113, %v1047
  %v1444 = vpack.c.b16 %v1114, %v1048
  %v1445 = vpack.c.b16 %v1115, %v1049
  %v1446 = vpack.c.b16 %v1116, %v1050
  %v1447 = vpack.c.b16 %v1117, %v1051
  %v1448 = vpack.c.b16 %v1118, %v1052
  %v1449 = vpack.c.b16 %v1119, %v1053
  %v1450 = vpack.c.b16 %v1120, %v1054
  %v1451 = vpack.c.b16 %v1121, %v1055
  %v1452 = vpack.c.b16 %v1122, %v1056
  %v1453 = vpack.c.b16 %v1123, %v1057
  %v1454 = vpack.c.b16 %v1124, %v1058
  %v1455 = vpack.c.b16 %v1125, %v1059
  %v1456 = vpack.c.b16 %v1126, %v1060
  %v1457 = vpack.c.b16 %v1127, %v1061
  %v1458 = vpack.c.b16 %v1128, %v1062
  %v1459 = vpack.c.b16 %v1129, %v1063
  %v1460 = vpack.c.b16 %v1130, %v1064
  %v1461 = vpack.c.b16 %v1131, %v1065
  %v1462 = vpack.c.b16 %v1132, %v1066
  %v1463 = vpack.c.b16 %v1133, %v1067
  %v1464 = vpack.c.b16 %v1134, %v1068
  %v1465 = vpack.c.b16 %v1135, %v1069
  %v1466 = vpack.c.b16 %v1136, %v1070
  %v1467 = vpack.c.b16 %v1137, %v1071
  %v1468 = vpack.c.b16 %v1138, %v1072
  %v1469 = vpack.c.b16 %v1139, %v1073
  %v1470 = vpack.c.b16 %v1140, %v1074
  %v1471 = vpack.c.b16 %v1141, %v1075
  %v1472 = vpack.c.b16 %v1142, %v1076
  %v1473 = vpack.c.b16 %v1143, %v1077
  %v1474 = vpack.c.b16 %v1144, %v1078
  %v1475 = vpack.c.b16 %v1145, %v1079
  %v1476 = vpack.c.b16 %v1146, %v1080
  %v1477 = vpack.c.b16 %v1147, %v1081
  %v1478 = vpack.c.b16 %v1148, %v1082
  %v1479 = vpack.c.b16 %v1149, %v1083
  %v1480 = vpack.c.b16 %v1150, %v1084
  %v1481 = vpack.c.b16 %v1151, %v1085
  %v1482 = vpack.c.b16 %v1152, %v1086
  %v1483 = vpack.c.b16 %v1153, %v1087
  %v1484 = vpack.c.b16 %v1154, %v1088
  %v1485 = vpack.c.b16 %v1155, %v1089
  %v1486 = vpack.c.b16 %v1156, %v1090
  %v1487 = vpack.c.b16 %v1157, %v1091
  %v1488 = vpack.c.b16 %v1158, %v1092
  %v1489 = vpack.c.b16 %v1159, %v1093
  %v1490 = vpack.c.b16 %v1160, %v1094
  %v1491 = vpack.c.b16 %v1161, %v1095
  %v1492 = vpack.c.b16 %v1162, %v1096
  %v1493 = vpack.c.b16 %v1163, %v1097
  %v1494 = vpack.c.b16 %v1164, %v1164
  %v1495 = vpack.c.b16 %v1165, %v1165
  %v1496 = vpack.c.b16 %v1166, %v1166
  %v1497 = vpack.c.b16 %v1167, %v1167
  %v1498 = vpack.c.b16 %v1168, %v1168
  %v1499 = vpack.c.b16 %v1169, %v1169
  %v1500 = vpack.c.b16 %v1170, %v1170
  %v1501 = vpack.c.b16 %v1171, %v1171
  %v1502 = vpack.c.b16 %v1172, %v1172
  %v1503 = vpack.c.b16 %v1173, %v1173
  %v1504 = vpack.c.b16 %v1174, %v1174
  %v1505 = vpack.c.b16 %v1175, %v1175
  %v1506 = vpack.c.b16 %v1176, %v1176
  %v1507 = vpack.c.b16 %v1177, %v1177
  %v1508 = vpack.c.b16 %v1178, %v1178
  %v1509 = vpack.c.b16 %v1179, %v1179
  %v1510 = vpack.c.b16 %v1180, %v1180
  %v1511 = vpack.c.b16 %v1181, %v1181
  %v1512 = vpack.c.b16 %v1182, %v1182
  %v1513 = vpack.c.b16 %v1183, %v1183
  %v1514 = vpack.c.b16 %v1184, %v1184
  %v1515 = vpack.c.b16 %v1185, %v1185
  %v1516 = vpack.c.b16 %v1186, %v1186
  %v1517 = vpack.c.b16 %v1187, %v1187
  %v1518 = vpack.c.b16 %v1188, %v1188
  %v1519 = vpack.c.b16 %v1189, %v1189
  %v1520 = vpack.c.b16 %v1190, %v1190
  %v1521 = vpack.c.b16 %v1191, %v1191
  %v1522 = vpack.c.b16 %v1192, %v1192
  %v1523 = vpack.c.b16 %v1193, %v1193
  %v1524 = vpack.c.b16 %v1194, %v1194
  %v1525 = vpack.c.b16 %v1195, %v1195
  %v1526 = vpack.c.b16 %v1196, %v1196
  %v1527 = vpack.c.b16 %v1197, %v1197
  %v1528 = vpack.c.b16 %v1198, %v1198
  %v1529 = vpack.c.b16 %v1199, %v1199
  %v1530 = vpack.c.b16 %v1200, %v1200
  %v1531 = vpack.c.b16 %v1201, %v1201
  %v1532 = vpack.c.b16 %v1202, %v1202
  %v1533 = vpack.c.b16 %v1203, %v1203
  %v1534 = vpack.c.b16 %v1204, %v1204
  %v1535 = vpack.c.b16 %v1205, %v1205
  %v1536 = vpack.c.b16 %v1206, %v1206
  %v1537 = vpack.c.b16 %v1207, %v1207
  %v1538 = vpack.c.b16 %v1208, %v1208
  %v1539 = vpack.c.b16 %v1209, %v1209
  %v1540 = vpack.c.b16 %v1210, %v1210
  %v1541 = vpack.c.b16 %v1211, %v1211
  %v1542 = vpack.c.b16 %v1212, %v1212
  %v1543 = vpack.c.b16 %v1213, %v1213
  %v1544 = vpack.c.b16 %v1214, %v1214
  %v1545 = vpack.c.b16 %v1215, %v1215
  %v1546 = vpack.c.b16 %v1216, %v1216
  %v1547 = vpack.c.b16 %v1217, %v1217
  %v1548 = vpack.c.b16 %v1218, %v1218
  %v1549 = vpack.c.b16 %v1219, %v1219
  %v1550 = vpack.c.b16 %v1220, %v1220
  %v1551 = vpack.c.b16 %v1221, %v1221
  %v1552 = vpack.c.b16 %v1222, %v1222
  %v1553 = vpack.c.b16 %v1223, %v1223
  %v1554 = vpack.c.b16 %v1224, %v1224
  %v1555 = vpack.c.b16 %v1225, %v1225
  %v1556 = vpack.c.b16 %v1226, %v1226
  %v1557 = vpack.c.b16 %v1227, %v1227
  %v1558 = vpack.c.b16 %v1228, %v1228
  %v1559 = vpack.c.b16 %v1229, %v1229
  %vm1824 = vcmask 531456
  %v1826 = vsel %vm1824, %v41, 0
  %vm1828 = vcmask 1040384
  %v1829 = vsel 0, 4294967295, 65535
  %v1830 = vsel %vm1828, %v1829, 0
  %v1832 = vand.u32 %v1494, %v1830
  %v1835 = vand.u32 %v1495, %v1830
  %v1838 = vand.u32 %v1496, %v1830
  %v1841 = vand.u32 %v1497, %v1830
  %v1844 = vand.u32 %v1498, %v1830
  %v1847 = vand.u32 %v1499, %v1830
  %v1850 = vand.u32 %v1500, %v1830
  %v1853 = vand.u32 %v1501, %v1830
  %v1856 = vand.u32 %v1502, %v1830
  %v1859 = vand.u32 %v1503, %v1830
  %v1862 = vand.u32 %v1504, %v1830
  %v1865 = vand.u32 %v1505, %v1830
  %v1868 = vand.u32 %v1506, %v1830
  %v1871 = vand.u32 %v1507, %v1830
  %v1874 = vand.u32 %v1508, %v1830
  %v1877 = vand.u32 %v1509, %v1830
  %v1880 = vand.u32 %v1510, %v1830
  %v1883 = vand.u32 %v1511, %v1830
  %v1886 = vand.u32 %v1512, %v1830
  %v1889 = vand.u32 %v1513, %v1830
  %v1892 = vand.u32 %v1514, %v1830
  %v1895 = vand.u32 %v1515, %v1830
  %v1898 = vand.u32 %v1516, %v1830
  %v1901 = vand.u32 %v1517, %v1830
  %v1904 = vand.u32 %v1518, %v1830
  %v1907 = vand.u32 %v1519, %v1830
  %v1910 = vand.u32 %v1520, %v1830
  %v1913 = vand.u32 %v1521, %v1830
  %v1916 = vand.u32 %v1522, %v1830
  %v1919 = vand.u32 %v1523, %v1830
  %v1922 = vand.u32 %v1524, %v1830
  %v1925 = vand.u32 %v1525, %v1830
  %v1928 = vand.u32 %v1526, %v1830
  %v1931 = vand.u32 %v1527, %v1830
  %v1934 = vand.u32 %v1528, %v1830
  %v1937 = vand.u32 %v1529, %v1830
  %v1940 = vand.u32 %v1530, %v1830
  %v1943 = vand.u32 %v1531, %v1830
  %v1946 = vand.u32 %v1532, %v1830
  %v1949 = vand.u32 %v1533, %v1830
  %v1952 = vand.u32 %v1534, %v1830
  %v1955 = vand.u32 %v1535, %v1830
  %v1958 = vand.u32 %v1536, %v1830
  %v1961 = vand.u32 %v1537, %v1830
  %v1964 = vand.u32 %v1538, %v1830
  %v1967 = vand.u32 %v1539, %v1830
  %v1970 = vand.u32 %v1540, %v1830
  %v1973 = vand.u32 %v1541, %v1830
  %v1976 = vand.u32 %v1542, %v1830
  %v1979 = vand.u32 %v1543, %v1830
  %v1982 = vand.u32 %v1544, %v1830
  %v1985 = vand.u32 %v1545, %v1830
  %v1988 = vand.u32 %v1546, %v1830
  %v1991 = vand.u32 %v1547, %v1830
  %v1994 = vand.u32 %v1548, %v1830
  %v1997 = vand.u32 %v1549, %v1830
  %v2000 = vand.u32 %v1550, %v1830
  %v2003 = vand.u32 %v1551, %v1830
  %v2006 = vand.u32 %v1552, %v1830
  %v2009 = vand.u32 %v1553, %v1830
  %v2012 = vand.u32 %v1554, %v1830
  %v2015 = vand.u32 %v1555, %v1830
  %v2018 = vand.u32 %v1556, %v1830
  %v2021 = vand.u32 %v1557, %v1830
  %v2024 = vand.u32 %v1558, %v1830
  %v2027 = vand.u32 %v1559, %v1830
  %2029 = vmatprep.subr.bf16.mxu0 %v1231
  %2030 = vmatpush1.bf16.msra.mxu0 %v1230
  %2031 = vmatprep.subr.bf16.mxu0 %v1297
  %2032 = vmatpush1.bf16.msra.mxu0 %v1296
  %2033 = vmatprep.subr.bf16.mxu0 %v1363
  %2034 = vmatpush1.bf16.msra.mxu0 %v1362
  %2035 = vmatprep.subr.bf16.mxu0 %v1429
  %2036 = vmatpush1.bf16.msra.mxu0 %v1428
  %2037 = vmatprep.subr.bf16.mxu0 %v1835
  %2038 = vmatpush1.bf16.msra.mxu0 %v1832
  %2039 = vmatprep.subr.bf16.mxu0 0
  %2040 = vmatpush1.bf16.msra.mxu0 0
  %2041 = vmatprep.subr.bf16.mxu0 0
  %2042 = vmatpush1.bf16.msra.mxu0 0
  %2043 = vmatprep.subr.bf16.mxu0 0
  %2044 = vmatpush1.bf16.msra.mxu0 0
  %2045 = vmatprep.subr.bf16.mxu0 0
  %2046 = vmatpush1.bf16.msra.mxu0 0
  %2047 = vmatprep.subr.bf16.mxu0 0
  %2048 = vmatpush1.bf16.msra.mxu0 0
  %2049 = vmatprep.subr.bf16.mxu0 0
  %2050 = vmatpush1.bf16.msra.mxu0 0
  %2051 = vmatprep.subr.bf16.mxu0 0
  %2052 = vmatpush1.bf16.msra.mxu0 0
  %2053 = vmatprep.subr.bf16.mxu0 0
  %2054 = vmatpush1.bf16.msra.mxu0 0
  %2055 = vmatprep.subr.bf16.mxu0 0
  %2056 = vmatpush1.bf16.msra.mxu0 0
  %2057 = vmatprep.subr.bf16.mxu0 0
  %2058 = vmatpush1.bf16.msra.mxu0 0
  %2059 = vmatprep.subr.bf16.mxu0 0
  %2060 = vmatpush1.bf16.msra.mxu0 0
  %2061 = vmatprep.mubr.bf16.mxu0 0
  %2062 = vmatmul.mubr.bf16.gmra.mrb[0].mxu0 %v1826
  %v2063 = vpop.f32.mrb[0].mxu0
  %v2064 = vadd.f32 0.0, %v2063
  %v2065 = vpop.f32.mrb[0].mxu0
  %v2066 = vadd.f32 0.0, %v2065
  %v2067 = vpop.f32.mrb[0].mxu0
  %v2068 = vadd.f32 0.0, %v2067
  %v2069 = vpop.f32.mrb[0].mxu0
  %v2070 = vadd.f32 0.0, %v2069
  %2071 = vdwg.mxu0
  %2072 = vmatprep.subr.bf16.mxu0 %v1233
  %2073 = vmatpush1.bf16.msra.mxu0 %v1232
  %2074 = vmatprep.subr.bf16.mxu0 %v1299
  %2075 = vmatpush1.bf16.msra.mxu0 %v1298
  %2076 = vmatprep.subr.bf16.mxu0 %v1365
  %2077 = vmatpush1.bf16.msra.mxu0 %v1364
  %2078 = vmatprep.subr.bf16.mxu0 %v1431
  %2079 = vmatpush1.bf16.msra.mxu0 %v1430
  %2080 = vmatprep.subr.bf16.mxu0 %v1841
  %2081 = vmatpush1.bf16.msra.mxu0 %v1838
  %2082 = vmatprep.subr.bf16.mxu0 0
  %2083 = vmatpush1.bf16.msra.mxu0 0
  %2084 = vmatprep.subr.bf16.mxu0 0
  %2085 = vmatpush1.bf16.msra.mxu0 0
  %2086 = vmatprep.subr.bf16.mxu0 0
  %2087 = vmatpush1.bf16.msra.mxu0 0
  %2088 = vmatprep.subr.bf16.mxu0 0
  %2089 = vmatpush1.bf16.msra.mxu0 0
  %2090 = vmatprep.subr.bf16.mxu0 0
  %2091 = vmatpush1.bf16.msra.mxu0 0
  %2092 = vmatprep.subr.bf16.mxu0 0
  %2093 = vmatpush1.bf16.msra.mxu0 0
  %2094 = vmatprep.subr.bf16.mxu0 0
  %2095 = vmatpush1.bf16.msra.mxu0 0
  %2096 = vmatprep.subr.bf16.mxu0 0
  %2097 = vmatpush1.bf16.msra.mxu0 0
  %2098 = vmatprep.subr.bf16.mxu0 0
  %2099 = vmatpush1.bf16.msra.mxu0 0
  %2100 = vmatprep.subr.bf16.mxu0 0
  %2101 = vmatpush1.bf16.msra.mxu0 0
  %2102 = vmatprep.subr.bf16.mxu0 0
  %2103 = vmatpush1.bf16.msra.mxu0 0
  %2104 = vmatprep.mubr.bf16.mxu0 0
  %2105 = vmatmul.mubr.bf16.gmra.mrb[0].mxu0 %v1826
  %v2106 = vpop.f32.mrb[0].mxu0
  %v2107 = vadd.f32 0.0, %v2106
  %v2108 = vpop.f32.mrb[0].mxu0
  %v2109 = vadd.f32 0.0, %v2108
  %v2110 = vpop.f32.mrb[0].mxu0
  %v2111 = vadd.f32 0.0, %v2110
  %v2112 = vpop.f32.mrb[0].mxu0
  %v2113 = vadd.f32 0.0, %v2112
  %2114 = vdwg.mxu0
  %2115 = vmatprep.subr.bf16.mxu0 %v1235
  %2116 = vmatpush1.bf16.msra.mxu0 %v1234
  %2117 = vmatprep.subr.bf16.mxu0 %v1301
  %2118 = vmatpush1.bf16.msra.mxu0 %v1300
  %2119 = vmatprep.subr.bf16.mxu0 %v1367
  %2120 = vmatpush1.bf16.msra.mxu0 %v1366
  %2121 = vmatprep.subr.bf16.mxu0 %v1433
  %2122 = vmatpush1.bf16.msra.mxu0 %v1432
  %2123 = vmatprep.subr.bf16.mxu0 %v1847
  %2124 = vmatpush1.bf16.msra.mxu0 %v1844
  %2125 = vmatprep.subr.bf16.mxu0 0
  %2126 = vmatpush1.bf16.msra.mxu0 0
  %2127 = vmatprep.subr.bf16.mxu0 0
  %2128 = vmatpush1.bf16.msra.mxu0 0
  %2129 = vmatprep.subr.bf16.mxu0 0
  %2130 = vmatpush1.bf16.msra.mxu0 0
  %2131 = vmatprep.subr.bf16.mxu0 0
  %2132 = vmatpush1.bf16.msra.mxu0 0
  %2133 = vmatprep.subr.bf16.mxu0 0
  %2134 = vmatpush1.bf16.msra.mxu0 0
  %2135 = vmatprep.subr.bf16.mxu0 0
  %2136 = vmatpush1.bf16.msra.mxu0 0
  %2137 = vmatprep.subr.bf16.mxu0 0
  %2138 = vmatpush1.bf16.msra.mxu0 0
  %2139 = vmatprep.subr.bf16.mxu0 0
  %2140 = vmatpush1.bf16.msra.mxu0 0
  %2141 = vmatprep.subr.bf16.mxu0 0
  %2142 = vmatpush1.bf16.msra.mxu0 0
  %2143 = vmatprep.subr.bf16.mxu0 0
  %2144 = vmatpush1.bf16.msra.mxu0 0
  %2145 = vmatprep.subr.bf16.mxu0 0
  %2146 = vmatpush1.bf16.msra.mxu0 0
  %2147 = vmatprep.mubr.bf16.mxu0 0
  %2148 = vmatmul.mubr.bf16.gmra.mrb[0].mxu0 %v1826
  %v2149 = vpop.f32.mrb[0].mxu0
  %v2150 = vadd.f32 0.0, %v2149
  %v2151 = vpop.f32.mrb[0].mxu0
  %v2152 = vadd.f32 0.0, %v2151
  %v2153 = vpop.f32.mrb[0].mxu0
  %v2154 = vadd.f32 0.0, %v2153
  %v2155 = vpop.f32.mrb[0].mxu0
  %v2156 = vadd.f32 0.0, %v2155
  %2157 = vdwg.mxu0
  %2158 = vmatprep.subr.bf16.mxu0 %v1237
  %2159 = vmatpush1.bf16.msra.mxu0 %v1236
  %2160 = vmatprep.subr.bf16.mxu0 %v1303
  %2161 = vmatpush1.bf16.msra.mxu0 %v1302
  %2162 = vmatprep.subr.bf16.mxu0 %v1369
  %2163 = vmatpush1.bf16.msra.mxu0 %v1368
  %2164 = vmatprep.subr.bf16.mxu0 %v1435
  %2165 = vmatpush1.bf16.msra.mxu0 %v1434
  %2166 = vmatprep.subr.bf16.mxu0 %v1853
  %2167 = vmatpush1.bf16.msra.mxu0 %v1850
  %2168 = vmatprep.subr.bf16.mxu0 0
  %2169 = vmatpush1.bf16.msra.mxu0 0
  %2170 = vmatprep.subr.bf16.mxu0 0
  %2171 = vmatpush1.bf16.msra.mxu0 0
  %2172 = vmatprep.subr.bf16.mxu0 0
  %2173 = vmatpush1.bf16.msra.mxu0 0
  %2174 = vmatprep.subr.bf16.mxu0 0
  %2175 = vmatpush1.bf16.msra.mxu0 0
  %2176 = vmatprep.subr.bf16.mxu0 0
  %2177 = vmatpush1.bf16.msra.mxu0 0
  %2178 = vmatprep.subr.bf16.mxu0 0
  %2179 = vmatpush1.bf16.msra.mxu0 0
  %2180 = vmatprep.subr.bf16.mxu0 0
  %2181 = vmatpush1.bf16.msra.mxu0 0
  %2182 = vmatprep.subr.bf16.mxu0 0
  %2183 = vmatpush1.bf16.msra.mxu0 0
  %2184 = vmatprep.subr.bf16.mxu0 0
  %2185 = vmatpush1.bf16.msra.mxu0 0
  %2186 = vmatprep.subr.bf16.mxu0 0
  %2187 = vmatpush1.bf16.msra.mxu0 0
  %2188 = vmatprep.subr.bf16.mxu0 0
  %2189 = vmatpush1.bf16.msra.mxu0 0
  %2190 = vmatprep.mubr.bf16.mxu0 0
  %2191 = vmatmul.mubr.bf16.gmra.mrb[0].mxu0 %v1826
  %v2192 = vpop.f32.mrb[0].mxu0
  %v2193 = vadd.f32 0.0, %v2192
  %v2194 = vpop.f32.mrb[0].mxu0
  %v2195 = vadd.f32 0.0, %v2194
  %v2196 = vpop.f32.mrb[0].mxu0
  %v2197 = vadd.f32 0.0, %v2196
  %v2198 = vpop.f32.mrb[0].mxu0
  %v2199 = vadd.f32 0.0, %v2198
  %2200 = vdwg.mxu0
  %2201 = vmatprep.subr.bf16.mxu0 %v1239
  %2202 = vmatpush1.bf16.msra.mxu0 %v1238
  %2203 = vmatprep.subr.bf16.mxu0 %v1305
  %2204 = vmatpush1.bf16.msra.mxu0 %v1304
  %2205 = vmatprep.subr.bf16.mxu0 %v1371
  %2206 = vmatpush1.bf16.msra.mxu0 %v1370
  %2207 = vmatprep.subr.bf16.mxu0 %v1437
  %2208 = vmatpush1.bf16.msra.mxu0 %v1436
  %2209 = vmatprep.subr.bf16.mxu0 %v1859
  %2210 = vmatpush1.bf16.msra.mxu0 %v1856
  %2211 = vmatprep.subr.bf16.mxu0 0
  %2212 = vmatpush1.bf16.msra.mxu0 0
  %2213 = vmatprep.subr.bf16.mxu0 0
  %2214 = vmatpush1.bf16.msra.mxu0 0
  %2215 = vmatprep.subr.bf16.mxu0 0
  %2216 = vmatpush1.bf16.msra.mxu0 0
  %2217 = vmatprep.subr.bf16.mxu0 0
  %2218 = vmatpush1.bf16.msra.mxu0 0
  %2219 = vmatprep.subr.bf16.mxu0 0
  %2220 = vmatpush1.bf16.msra.mxu0 0
  %2221 = vmatprep.subr.bf16.mxu0 0
  %2222 = vmatpush1.bf16.msra.mxu0 0
  %2223 = vmatprep.subr.bf16.mxu0 0
  %2224 = vmatpush1.bf16.msra.mxu0 0
  %2225 = vmatprep.subr.bf16.mxu0 0
  %2226 = vmatpush1.bf16.msra.mxu0 0
  %2227 = vmatprep.subr.bf16.mxu0 0
  %2228 = vmatpush1.bf16.msra.mxu0 0
  %2229 = vmatprep.subr.bf16.mxu0 0
  %2230 = vmatpush1.bf16.msra.mxu0 0
  %2231 = vmatprep.subr.bf16.mxu0 0
  %2232 = vmatpush1.bf16.msra.mxu0 0
  %2233 = vmatprep.mubr.bf16.mxu0 0
  %2234 = vmatmul.mubr.bf16.gmra.mrb[0].mxu0 %v1826
  %v2235 = vpop.f32.mrb[0].mxu0
  %v2236 = vadd.f32 0.0, %v2235
  %v2237 = vpop.f32.mrb[0].mxu0
  %v2238 = vadd.f32 0.0, %v2237
  %v2239 = vpop.f32.mrb[0].mxu0
  %v2240 = vadd.f32 0.0, %v2239
  %v2241 = vpop.f32.mrb[0].mxu0
  %v2242 = vadd.f32 0.0, %v2241
  %2243 = vdwg.mxu0
  %2244 = vmatprep.subr.bf16.mxu0 %v1241
  %2245 = vmatpush1.bf16.msra.mxu0 %v1240
  %2246 = vmatprep.subr.bf16.mxu0 %v1307
  %2247 = vmatpush1.bf16.msra.mxu0 %v1306
  %2248 = vmatprep.subr.bf16.mxu0 %v1373
  %2249 = vmatpush1.bf16.msra.mxu0 %v1372
  %2250 = vmatprep.subr.bf16.mxu0 %v1439
  %2251 = vmatpush1.bf16.msra.mxu0 %v1438
  %2252 = vmatprep.subr.bf16.mxu0 %v1865
  %2253 = vmatpush1.bf16.msra.mxu0 %v1862
  %2254 = vmatprep.subr.bf16.mxu0 0
  %2255 = vmatpush1.bf16.msra.mxu0 0
  %2256 = vmatprep.subr.bf16.mxu0 0
  %2257 = vmatpush1.bf16.msra.mxu0 0
  %2258 = vmatprep.subr.bf16.mxu0 0
  %2259 = vmatpush1.bf16.msra.mxu0 0
  %2260 = vmatprep.subr.bf16.mxu0 0
  %2261 = vmatpush1.bf16.msra.mxu0 0
  %2262 = vmatprep.subr.bf16.mxu0 0
  %2263 = vmatpush1.bf16.msra.mxu0 0
  %2264 = vmatprep.subr.bf16.mxu0 0
  %2265 = vmatpush1.bf16.msra.mxu0 0
  %2266 = vmatprep.subr.bf16.mxu0 0
  %2267 = vmatpush1.bf16.msra.mxu0 0
  %2268 = vmatprep.subr.bf16.mxu0 0
  %2269 = vmatpush1.bf16.msra.mxu0 0
  %2270 = vmatprep.subr.bf16.mxu0 0
  %2271 = vmatpush1.bf16.msra.mxu0 0
  %2272 = vmatprep.subr.bf16.mxu0 0
  %2273 = vmatpush1.bf16.msra.mxu0 0
  %2274 = vmatprep.subr.bf16.mxu0 0
  %2275 = vmatpush1.bf16.msra.mxu0 0
  %2276 = vmatprep.mubr.bf16.mxu0 0
  %2277 = vmatmul.mubr.bf16.gmra.mrb[0].mxu0 %v1826
  %v2278 = vpop.f32.mrb[0].mxu0
  %v2279 = vadd.f32 0.0, %v2278
  %v2280 = vpop.f32.mrb[0].mxu0
  %v2281 = vadd.f32 0.0, %v2280
  %v2282 = vpop.f32.mrb[0].mxu0
  %v2283 = vadd.f32 0.0, %v2282
  %v2284 = vpop.f32.mrb[0].mxu0
  %v2285 = vadd.f32 0.0, %v2284
  %2286 = vdwg.mxu0
  %2287 = vmatprep.subr.bf16.mxu0 %v1243
  %2288 = vmatpush1.bf16.msra.mxu0 %v1242
  %2289 = vmatprep.subr.bf16.mxu0 %v1309
  %2290 = vmatpush1.bf16.msra.mxu0 %v1308
  %2291 = vmatprep.subr.bf16.mxu0 %v1375
  %2292 = vmatpush1.bf16.msra.mxu0 %v1374
  %2293 = vmatprep.subr.bf16.mxu0 %v1441
  %2294 = vmatpush1.bf16.msra.mxu0 %v1440
  %2295 = vmatprep.subr.bf16.mxu0 %v1871
  %2296 = vmatpush1.bf16.msra.mxu0 %v1868
  %2297 = vmatprep.subr.bf16.mxu0 0
  %2298 = vmatpush1.bf16.msra.mxu0 0
  %2299 = vmatprep.subr.bf16.mxu0 0
  %2300 = vmatpush1.bf16.msra.mxu0 0
  %2301 = vmatprep.subr.bf16.mxu0 0
  %2302 = vmatpush1.bf16.msra.mxu0 0
  %2303 = vmatprep.subr.bf16.mxu0 0
  %2304 = vmatpush1.bf16.msra.mxu0 0
  %2305 = vmatprep.subr.bf16.mxu0 0
  %2306 = vmatpush1.bf16.msra.mxu0 0
  %2307 = vmatprep.subr.bf16.mxu0 0
  %2308 = vmatpush1.bf16.msra.mxu0 0
  %2309 = vmatprep.subr.bf16.mxu0 0
  %2310 = vmatpush1.bf16.msra.mxu0 0
  %2311 = vmatprep.subr.bf16.mxu0 0
  %2312 = vmatpush1.bf16.msra.mxu0 0
  %2313 = vmatprep.subr.bf16.mxu0 0
  %2314 = vmatpush1.bf16.msra.mxu0 0
  %2315 = vmatprep.subr.bf16.mxu0 0
  %2316 = vmatpush1.bf16.msra.mxu0 0
  %2317 = vmatprep.subr.bf16.mxu0 0
  %2318 = vmatpush1.bf16.msra.mxu0 0
  %2319 = vmatprep.mubr.bf16.mxu0 0
  %2320 = vmatmul.mubr.bf16.gmra.mrb[0].mxu0 %v1826
  %v2321 = vpop.f32.mrb[0].mxu0
  %v2322 = vadd.f32 0.0, %v2321
  %v2323 = vpop.f32.mrb[0].mxu0
  %v2324 = vadd.f32 0.0, %v2323
  %v2325 = vpop.f32.mrb[0].mxu0
  %v2326 = vadd.f32 0.0, %v2325
  %v2327 = vpop.f32.mrb[0].mxu0
  %v2328 = vadd.f32 0.0, %v2327
  %2329 = vdwg.mxu0
  %2330 = vmatprep.subr.bf16.mxu0 %v1245
  %2331 = vmatpush1.bf16.msra.mxu0 %v1244
  %2332 = vmatprep.subr.bf16.mxu0 %v1311
  %2333 = vmatpush1.bf16.msra.mxu0 %v1310
  %2334 = vmatprep.subr.bf16.mxu0 %v1377
  %2335 = vmatpush1.bf16.msra.mxu0 %v1376
  %2336 = vmatprep.subr.bf16.mxu0 %v1443
  %2337 = vmatpush1.bf16.msra.mxu0 %v1442
  %2338 = vmatprep.subr.bf16.mxu0 %v1877
  %2339 = vmatpush1.bf16.msra.mxu0 %v1874
  %2340 = vmatprep.subr.bf16.mxu0 0
  %2341 = vmatpush1.bf16.msra.mxu0 0
  %2342 = vmatprep.subr.bf16.mxu0 0
  %2343 = vmatpush1.bf16.msra.mxu0 0
  %2344 = vmatprep.subr.bf16.mxu0 0
  %2345 = vmatpush1.bf16.msra.mxu0 0
  %2346 = vmatprep.subr.bf16.mxu0 0
  %2347 = vmatpush1.bf16.msra.mxu0 0
  %2348 = vmatprep.subr.bf16.mxu0 0
  %2349 = vmatpush1.bf16.msra.mxu0 0
  %2350 = vmatprep.subr.bf16.mxu0 0
  %2351 = vmatpush1.bf16.msra.mxu0 0
  %2352 = vmatprep.subr.bf16.mxu0 0
  %2353 = vmatpush1.bf16.msra.mxu0 0
  %2354 = vmatprep.subr.bf16.mxu0 0
  %2355 = vmatpush1.bf16.msra.mxu0 0
  %2356 = vmatprep.subr.bf16.mxu0 0
  %2357 = vmatpush1.bf16.msra.mxu0 0
  %2358 = vmatprep.subr.bf16.mxu0 0
  %2359 = vmatpush1.bf16.msra.mxu0 0
  %2360 = vmatprep.subr.bf16.mxu0 0
  %2361 = vmatpush1.bf16.msra.mxu0 0
  %2362 = vmatprep.mubr.bf16.mxu0 0
  %2363 = vmatmul.mubr.bf16.gmra.mrb[0].mxu0 %v1826
  %v2364 = vpop.f32.mrb[0].mxu0
  %v2365 = vadd.f32 0.0, %v2364
  %v2366 = vpop.f32.mrb[0].mxu0
  %v2367 = vadd.f32 0.0, %v2366
  %v2368 = vpop.f32.mrb[0].mxu0
  %v2369 = vadd.f32 0.0, %v2368
  %v2370 = vpop.f32.mrb[0].mxu0
  %v2371 = vadd.f32 0.0, %v2370
  %2372 = vdwg.mxu0
  %2373 = vmatprep.subr.bf16.mxu0 %v1247
  %2374 = vmatpush1.bf16.msra.mxu0 %v1246
  %2375 = vmatprep.subr.bf16.mxu0 %v1313
  %2376 = vmatpush1.bf16.msra.mxu0 %v1312
  %2377 = vmatprep.subr.bf16.mxu0 %v1379
  %2378 = vmatpush1.bf16.msra.mxu0 %v1378
  %2379 = vmatprep.subr.bf16.mxu0 %v1445
  %2380 = vmatpush1.bf16.msra.mxu0 %v1444
  %2381 = vmatprep.subr.bf16.mxu0 %v1883
  %2382 = vmatpush1.bf16.msra.mxu0 %v1880
  %2383 = vmatprep.subr.bf16.mxu0 0
  %2384 = vmatpush1.bf16.msra.mxu0 0
  %2385 = vmatprep.subr.bf16.mxu0 0
  %2386 = vmatpush1.bf16.msra.mxu0 0
  %2387 = vmatprep.subr.bf16.mxu0 0
  %2388 = vmatpush1.bf16.msra.mxu0 0
  %2389 = vmatprep.subr.bf16.mxu0 0
  %2390 = vmatpush1.bf16.msra.mxu0 0
  %2391 = vmatprep.subr.bf16.mxu0 0
  %2392 = vmatpush1.bf16.msra.mxu0 0
  %2393 = vmatprep.subr.bf16.mxu0 0
  %2394 = vmatpush1.bf16.msra.mxu0 0
  %2395 = vmatprep.subr.bf16.mxu0 0
  %2396 = vmatpush1.bf16.msra.mxu0 0
  %2397 = vmatprep.subr.bf16.mxu0 0
  %2398 = vmatpush1.bf16.msra.mxu0 0
  %2399 = vmatprep.subr.bf16.mxu0 0
  %2400 = vmatpush1.bf16.msra.mxu0 0
  %2401 = vmatprep.subr.bf16.mxu0 0
  %2402 = vmatpush1.bf16.msra.mxu0 0
  %2403 = vmatprep.subr.bf16.mxu0 0
  %2404 = vmatpush1.bf16.msra.mxu0 0
  %2405 = vmatprep.mubr.bf16.mxu0 0
  %2406 = vmatmul.mubr.bf16.gmra.mrb[0].mxu0 %v1826
  %v2407 = vpop.f32.mrb[0].mxu0
  %v2408 = vadd.f32 0.0, %v2407
  %v2409 = vpop.f32.mrb[0].mxu0
  %v2410 = vadd.f32 0.0, %v2409
  %v2411 = vpop.f32.mrb[0].mxu0
  %v2412 = vadd.f32 0.0, %v2411
  %v2413 = vpop.f32.mrb[0].mxu0
  %v2414 = vadd.f32 0.0, %v2413
  %2415 = vdwg.mxu0
  %2416 = vmatprep.subr.bf16.mxu0 %v1249
  %2417 = vmatpush1.bf16.msra.mxu0 %v1248
  %2418 = vmatprep.subr.bf16.mxu0 %v1315
  %2419 = vmatpush1.bf16.msra.mxu0 %v1314
  %2420 = vmatprep.subr.bf16.mxu0 %v1381
  %2421 = vmatpush1.bf16.msra.mxu0 %v1380
  %2422 = vmatprep.subr.bf16.mxu0 %v1447
  %2423 = vmatpush1.bf16.msra.mxu0 %v1446
  %2424 = vmatprep.subr.bf16.mxu0 %v1889
  %2425 = vmatpush1.bf16.msra.mxu0 %v1886
  %2426 = vmatprep.subr.bf16.mxu0 0
  %2427 = vmatpush1.bf16.msra.mxu0 0
  %2428 = vmatprep.subr.bf16.mxu0 0
  %2429 = vmatpush1.bf16.msra.mxu0 0
  %2430 = vmatprep.subr.bf16.mxu0 0
  %2431 = vmatpush1.bf16.msra.mxu0 0
  %2432 = vmatprep.subr.bf16.mxu0 0
  %2433 = vmatpush1.bf16.msra.mxu0 0
  %2434 = vmatprep.subr.bf16.mxu0 0
  %2435 = vmatpush1.bf16.msra.mxu0 0
  %2436 = vmatprep.subr.bf16.mxu0 0
  %2437 = vmatpush1.bf16.msra.mxu0 0
  %2438 = vmatprep.subr.bf16.mxu0 0
  %2439 = vmatpush1.bf16.msra.mxu0 0
  %2440 = vmatprep.subr.bf16.mxu0 0
  %2441 = vmatpush1.bf16.msra.mxu0 0
  %2442 = vmatprep.subr.bf16.mxu0 0
  %2443 = vmatpush1.bf16.msra.mxu0 0
  %2444 = vmatprep.subr.bf16.mxu0 0
  %2445 = vmatpush1.bf16.msra.mxu0 0
  %2446 = vmatprep.subr.bf16.mxu0 0
  %2447 = vmatpush1.bf16.msra.mxu0 0
  %2448 = vmatprep.mubr.bf16.mxu0 0
  %2449 = vmatmul.mubr.bf16.gmra.mrb[0].mxu0 %v1826
  %v2450 = vpop.f32.mrb[0].mxu0
  %v2451 = vadd.f32 0.0, %v2450
  %v2452 = vpop.f32.mrb[0].mxu0
  %v2453 = vadd.f32 0.0, %v2452
  %v2454 = vpop.f32.mrb[0].mxu0
  %v2455 = vadd.f32 0.0, %v2454
  %v2456 = vpop.f32.mrb[0].mxu0
  %v2457 = vadd.f32 0.0, %v2456
  %2458 = vdwg.mxu0
  %2459 = vmatprep.subr.bf16.mxu0 %v1251
  %2460 = vmatpush1.bf16.msra.mxu0 %v1250
  %2461 = vmatprep.subr.bf16.mxu0 %v1317
  %2462 = vmatpush1.bf16.msra.mxu0 %v1316
  %2463 = vmatprep.subr.bf16.mxu0 %v1383
  %2464 = vmatpush1.bf16.msra.mxu0 %v1382
  %2465 = vmatprep.subr.bf16.mxu0 %v1449
  %2466 = vmatpush1.bf16.msra.mxu0 %v1448
  %2467 = vmatprep.subr.bf16.mxu0 %v1895
  %2468 = vmatpush1.bf16.msra.mxu0 %v1892
  %2469 = vmatprep.subr.bf16.mxu0 0
  %2470 = vmatpush1.bf16.msra.mxu0 0
  %2471 = vmatprep.subr.bf16.mxu0 0
  %2472 = vmatpush1.bf16.msra.mxu0 0
  %2473 = vmatprep.subr.bf16.mxu0 0
  %2474 = vmatpush1.bf16.msra.mxu0 0
  %2475 = vmatprep.subr.bf16.mxu0 0
  %2476 = vmatpush1.bf16.msra.mxu0 0
  %2477 = vmatprep.subr.bf16.mxu0 0
  %2478 = vmatpush1.bf16.msra.mxu0 0
  %2479 = vmatprep.subr.bf16.mxu0 0
  %2480 = vmatpush1.bf16.msra.mxu0 0
  %2481 = vmatprep.subr.bf16.mxu0 0
  %2482 = vmatpush1.bf16.msra.mxu0 0
  %2483 = vmatprep.subr.bf16.mxu0 0
  %2484 = vmatpush1.bf16.msra.mxu0 0
  %2485 = vmatprep.subr.bf16.mxu0 0
  %2486 = vmatpush1.bf16.msra.mxu0 0
  %2487 = vmatprep.subr.bf16.mxu0 0
  %2488 = vmatpush1.bf16.msra.mxu0 0
  %2489 = vmatprep.subr.bf16.mxu0 0
  %2490 = vmatpush1.bf16.msra.mxu0 0
  %2491 = vmatprep.mubr.bf16.mxu0 0
  %2492 = vmatmul.mubr.bf16.gmra.mrb[0].mxu0 %v1826
  %v2493 = vpop.f32.mrb[0].mxu0
  %v2494 = vadd.f32 0.0, %v2493
  %v2495 = vpop.f32.mrb[0].mxu0
  %v2496 = vadd.f32 0.0, %v2495
  %v2497 = vpop.f32.mrb[0].mxu0
  %v2498 = vadd.f32 0.0, %v2497
  %v2499 = vpop.f32.mrb[0].mxu0
  %v2500 = vadd.f32 0.0, %v2499
  %2501 = vdwg.mxu0
  %2502 = vmatprep.subr.bf16.mxu0 %v1253
  %2503 = vmatpush1.bf16.msra.mxu0 %v1252
  %2504 = vmatprep.subr.bf16.mxu0 %v1319
  %2505 = vmatpush1.bf16.msra.mxu0 %v1318
  %2506 = vmatprep.subr.bf16.mxu0 %v1385
  %2507 = vmatpush1.bf16.msra.mxu0 %v1384
  %2508 = vmatprep.subr.bf16.mxu0 %v1451
  %2509 = vmatpush1.bf16.msra.mxu0 %v1450
  %2510 = vmatprep.subr.bf16.mxu0 %v1901
  %2511 = vmatpush1.bf16.msra.mxu0 %v1898
  %2512 = vmatprep.subr.bf16.mxu0 0
  %2513 = vmatpush1.bf16.msra.mxu0 0
  %2514 = vmatprep.subr.bf16.mxu0 0
  %2515 = vmatpush1.bf16.msra.mxu0 0
  %2516 = vmatprep.subr.bf16.mxu0 0
  %2517 = vmatpush1.bf16.msra.mxu0 0
  %2518 = vmatprep.subr.bf16.mxu0 0
  %2519 = vmatpush1.bf16.msra.mxu0 0
  %2520 = vmatprep.subr.bf16.mxu0 0
  %2521 = vmatpush1.bf16.msra.mxu0 0
  %2522 = vmatprep.subr.bf16.mxu0 0
  %2523 = vmatpush1.bf16.msra.mxu0 0
  %2524 = vmatprep.subr.bf16.mxu0 0
  %2525 = vmatpush1.bf16.msra.mxu0 0
  %2526 = vmatprep.subr.bf16.mxu0 0
  %2527 = vmatpush1.bf16.msra.mxu0 0
  %2528 = vmatprep.subr.bf16.mxu0 0
  %2529 = vmatpush1.bf16.msra.mxu0 0
  %2530 = vmatprep.subr.bf16.mxu0 0
  %2531 = vmatpush1.bf16.msra.mxu0 0
  %2532 = vmatprep.subr.bf16.mxu0 0
  %2533 = vmatpush1.bf16.msra.mxu0 0
  %2534 = vmatprep.mubr.bf16.mxu0 0
  %2535 = vmatmul.mubr.bf16.gmra.mrb[0].mxu0 %v1826
  %v2536 = vpop.f32.mrb[0].mxu0
  %v2537 = vadd.f32 0.0, %v2536
  %v2538 = vpop.f32.mrb[0].mxu0
  %v2539 = vadd.f32 0.0, %v2538
  %v2540 = vpop.f32.mrb[0].mxu0
  %v2541 = vadd.f32 0.0, %v2540
  %v2542 = vpop.f32.mrb[0].mxu0
  %v2543 = vadd.f32 0.0, %v2542
  %2544 = vdwg.mxu0
  %2545 = vmatprep.subr.bf16.mxu0 %v1255
  %2546 = vmatpush1.bf16.msra.mxu0 %v1254
  %2547 = vmatprep.subr.bf16.mxu0 %v1321
  %2548 = vmatpush1.bf16.msra.mxu0 %v1320
  %2549 = vmatprep.subr.bf16.mxu0 %v1387
  %2550 = vmatpush1.bf16.msra.mxu0 %v1386
  %2551 = vmatprep.subr.bf16.mxu0 %v1453
  %2552 = vmatpush1.bf16.msra.mxu0 %v1452
  %2553 = vmatprep.subr.bf16.mxu0 %v1907
  %2554 = vmatpush1.bf16.msra.mxu0 %v1904
  %2555 = vmatprep.subr.bf16.mxu0 0
  %2556 = vmatpush1.bf16.msra.mxu0 0
  %2557 = vmatprep.subr.bf16.mxu0 0
  %2558 = vmatpush1.bf16.msra.mxu0 0
  %2559 = vmatprep.subr.bf16.mxu0 0
  %2560 = vmatpush1.bf16.msra.mxu0 0
  %2561 = vmatprep.subr.bf16.mxu0 0
  %2562 = vmatpush1.bf16.msra.mxu0 0
  %2563 = vmatprep.subr.bf16.mxu0 0
  %2564 = vmatpush1.bf16.msra.mxu0 0
  %2565 = vmatprep.subr.bf16.mxu0 0
  %2566 = vmatpush1.bf16.msra.mxu0 0
  %2567 = vmatprep.subr.bf16.mxu0 0
  %2568 = vmatpush1.bf16.msra.mxu0 0
  %2569 = vmatprep.subr.bf16.mxu0 0
  %2570 = vmatpush1.bf16.msra.mxu0 0
  %2571 = vmatprep.subr.bf16.mxu0 0
  %2572 = vmatpush1.bf16.msra.mxu0 0
  %2573 = vmatprep.subr.bf16.mxu0 0
  %2574 = vmatpush1.bf16.msra.mxu0 0
  %2575 = vmatprep.subr.bf16.mxu0 0
  %2576 = vmatpush1.bf16.msra.mxu0 0
  %2577 = vmatprep.mubr.bf16.mxu0 0
  %2578 = vmatmul.mubr.bf16.gmra.mrb[0].mxu0 %v1826
  %v2579 = vpop.f32.mrb[0].mxu0
  %v2580 = vadd.f32 0.0, %v2579
  %v2581 = vpop.f32.mrb[0].mxu0
  %v2582 = vadd.f32 0.0, %v2581
  %v2583 = vpop.f32.mrb[0].mxu0
  %v2584 = vadd.f32 0.0, %v2583
  %v2585 = vpop.f32.mrb[0].mxu0
  %v2586 = vadd.f32 0.0, %v2585
  %2587 = vdwg.mxu0
  %2588 = vmatprep.subr.bf16.mxu0 %v1257
  %2589 = vmatpush1.bf16.msra.mxu0 %v1256
  %2590 = vmatprep.subr.bf16.mxu0 %v1323
  %2591 = vmatpush1.bf16.msra.mxu0 %v1322
  %2592 = vmatprep.subr.bf16.mxu0 %v1389
  %2593 = vmatpush1.bf16.msra.mxu0 %v1388
  %2594 = vmatprep.subr.bf16.mxu0 %v1455
  %2595 = vmatpush1.bf16.msra.mxu0 %v1454
  %2596 = vmatprep.subr.bf16.mxu0 %v1913
  %2597 = vmatpush1.bf16.msra.mxu0 %v1910
  %2598 = vmatprep.subr.bf16.mxu0 0
  %2599 = vmatpush1.bf16.msra.mxu0 0
  %2600 = vmatprep.subr.bf16.mxu0 0
  %2601 = vmatpush1.bf16.msra.mxu0 0
  %2602 = vmatprep.subr.bf16.mxu0 0
  %2603 = vmatpush1.bf16.msra.mxu0 0
  %2604 = vmatprep.subr.bf16.mxu0 0
  %2605 = vmatpush1.bf16.msra.mxu0 0
  %2606 = vmatprep.subr.bf16.mxu0 0
  %2607 = vmatpush1.bf16.msra.mxu0 0
  %2608 = vmatprep.subr.bf16.mxu0 0
  %2609 = vmatpush1.bf16.msra.mxu0 0
  %2610 = vmatprep.subr.bf16.mxu0 0
  %2611 = vmatpush1.bf16.msra.mxu0 0
  %2612 = vmatprep.subr.bf16.mxu0 0
  %2613 = vmatpush1.bf16.msra.mxu0 0
  %2614 = vmatprep.subr.bf16.mxu0 0
  %2615 = vmatpush1.bf16.msra.mxu0 0
  %2616 = vmatprep.subr.bf16.mxu0 0
  %2617 = vmatpush1.bf16.msra.mxu0 0
  %2618 = vmatprep.subr.bf16.mxu0 0
  %2619 = vmatpush1.bf16.msra.mxu0 0
  %2620 = vmatprep.mubr.bf16.mxu0 0
  %2621 = vmatmul.mubr.bf16.gmra.mrb[0].mxu0 %v1826
  %v2622 = vpop.f32.mrb[0].mxu0
  %v2623 = vadd.f32 0.0, %v2622
  %v2624 = vpop.f32.mrb[0].mxu0
  %v2625 = vadd.f32 0.0, %v2624
  %v2626 = vpop.f32.mrb[0].mxu0
  %v2627 = vadd.f32 0.0, %v2626
  %v2628 = vpop.f32.mrb[0].mxu0
  %v2629 = vadd.f32 0.0, %v2628
  %2630 = vdwg.mxu0
  %2631 = vmatprep.subr.bf16.mxu0 %v1259
  %2632 = vmatpush1.bf16.msra.mxu0 %v1258
  %2633 = vmatprep.subr.bf16.mxu0 %v1325
  %2634 = vmatpush1.bf16.msra.mxu0 %v1324
  %2635 = vmatprep.subr.bf16.mxu0 %v1391
  %2636 = vmatpush1.bf16.msra.mxu0 %v1390
  %2637 = vmatprep.subr.bf16.mxu0 %v1457
  %2638 = vmatpush1.bf16.msra.mxu0 %v1456
  %2639 = vmatprep.subr.bf16.mxu0 %v1919
  %2640 = vmatpush1.bf16.msra.mxu0 %v1916
  %2641 = vmatprep.subr.bf16.mxu0 0
  %2642 = vmatpush1.bf16.msra.mxu0 0
  %2643 = vmatprep.subr.bf16.mxu0 0
  %2644 = vmatpush1.bf16.msra.mxu0 0
  %2645 = vmatprep.subr.bf16.mxu0 0
  %2646 = vmatpush1.bf16.msra.mxu0 0
  %2647 = vmatprep.subr.bf16.mxu0 0
  %2648 = vmatpush1.bf16.msra.mxu0 0
  %2649 = vmatprep.subr.bf16.mxu0 0
  %2650 = vmatpush1.bf16.msra.mxu0 0
  %2651 = vmatprep.subr.bf16.mxu0 0
  %2652 = vmatpush1.bf16.msra.mxu0 0
  %2653 = vmatprep.subr.bf16.mxu0 0
  %2654 = vmatpush1.bf16.msra.mxu0 0
  %2655 = vmatprep.subr.bf16.mxu0 0
  %2656 = vmatpush1.bf16.msra.mxu0 0
  %2657 = vmatprep.subr.bf16.mxu0 0
  %2658 = vmatpush1.bf16.msra.mxu0 0
  %2659 = vmatprep.subr.bf16.mxu0 0
  %2660 = vmatpush1.bf16.msra.mxu0 0
  %2661 = vmatprep.subr.bf16.mxu0 0
  %2662 = vmatpush1.bf16.msra.mxu0 0
  %2663 = vmatprep.mubr.bf16.mxu0 0
  %2664 = vmatmul.mubr.bf16.gmra.mrb[0].mxu0 %v1826
  %v2665 = vpop.f32.mrb[0].mxu0
  %v2666 = vadd.f32 0.0, %v2665
  %v2667 = vpop.f32.mrb[0].mxu0
  %v2668 = vadd.f32 0.0, %v2667
  %v2669 = vpop.f32.mrb[0].mxu0
  %v2670 = vadd.f32 0.0, %v2669
  %v2671 = vpop.f32.mrb[0].mxu0
  %v2672 = vadd.f32 0.0, %v2671
  %2673 = vdwg.mxu0
  %2674 = vmatprep.subr.bf16.mxu0 %v1261
  %2675 = vmatpush1.bf16.msra.mxu0 %v1260
  %2676 = vmatprep.subr.bf16.mxu0 %v1327
  %2677 = vmatpush1.bf16.msra.mxu0 %v1326
  %2678 = vmatprep.subr.bf16.mxu0 %v1393
  %2679 = vmatpush1.bf16.msra.mxu0 %v1392
  %2680 = vmatprep.subr.bf16.mxu0 %v1459
  %2681 = vmatpush1.bf16.msra.mxu0 %v1458
  %2682 = vmatprep.subr.bf16.mxu0 %v1925
  %2683 = vmatpush1.bf16.msra.mxu0 %v1922
  %2684 = vmatprep.subr.bf16.mxu0 0
  %2685 = vmatpush1.bf16.msra.mxu0 0
  %2686 = vmatprep.subr.bf16.mxu0 0
  %2687 = vmatpush1.bf16.msra.mxu0 0
  %2688 = vmatprep.subr.bf16.mxu0 0
  %2689 = vmatpush1.bf16.msra.mxu0 0
  %2690 = vmatprep.subr.bf16.mxu0 0
  %2691 = vmatpush1.bf16.msra.mxu0 0
  %2692 = vmatprep.subr.bf16.mxu0 0
  %2693 = vmatpush1.bf16.msra.mxu0 0
  %2694 = vmatprep.subr.bf16.mxu0 0
  %2695 = vmatpush1.bf16.msra.mxu0 0
  %2696 = vmatprep.subr.bf16.mxu0 0
  %2697 = vmatpush1.bf16.msra.mxu0 0
  %2698 = vmatprep.subr.bf16.mxu0 0
  %2699 = vmatpush1.bf16.msra.mxu0 0
  %2700 = vmatprep.subr.bf16.mxu0 0
  %2701 = vmatpush1.bf16.msra.mxu0 0
  %2702 = vmatprep.subr.bf16.mxu0 0
  %2703 = vmatpush1.bf16.msra.mxu0 0
  %2704 = vmatprep.subr.bf16.mxu0 0
  %2705 = vmatpush1.bf16.msra.mxu0 0
  %2706 = vmatprep.mubr.bf16.mxu0 0
  %2707 = vmatmul.mubr.bf16.gmra.mrb[0].mxu0 %v1826
  %v2708 = vpop.f32.mrb[0].mxu0
  %v2709 = vadd.f32 0.0, %v2708
  %v2710 = vpop.f32.mrb[0].mxu0
  %v2711 = vadd.f32 0.0, %v2710
  %v2712 = vpop.f32.mrb[0].mxu0
  %v2713 = vadd.f32 0.0, %v2712
  %v2714 = vpop.f32.mrb[0].mxu0
  %v2715 = vadd.f32 0.0, %v2714
  %2716 = vdwg.mxu0
  %2717 = vmatprep.subr.bf16.mxu0 %v1263
  %2718 = vmatpush1.bf16.msra.mxu0 %v1262
  %2719 = vmatprep.subr.bf16.mxu0 %v1329
  %2720 = vmatpush1.bf16.msra.mxu0 %v1328
  %2721 = vmatprep.subr.bf16.mxu0 %v1395
  %2722 = vmatpush1.bf16.msra.mxu0 %v1394
  %2723 = vmatprep.subr.bf16.mxu0 %v1461
  %2724 = vmatpush1.bf16.msra.mxu0 %v1460
  %2725 = vmatprep.subr.bf16.mxu0 %v1931
  %2726 = vmatpush1.bf16.msra.mxu0 %v1928
  %2727 = vmatprep.subr.bf16.mxu0 0
  %2728 = vmatpush1.bf16.msra.mxu0 0
  %2729 = vmatprep.subr.bf16.mxu0 0
  %2730 = vmatpush1.bf16.msra.mxu0 0
  %2731 = vmatprep.subr.bf16.mxu0 0
  %2732 = vmatpush1.bf16.msra.mxu0 0
  %2733 = vmatprep.subr.bf16.mxu0 0
  %2734 = vmatpush1.bf16.msra.mxu0 0
  %2735 = vmatprep.subr.bf16.mxu0 0
  %2736 = vmatpush1.bf16.msra.mxu0 0
  %2737 = vmatprep.subr.bf16.mxu0 0
  %2738 = vmatpush1.bf16.msra.mxu0 0
  %2739 = vmatprep.subr.bf16.mxu0 0
  %2740 = vmatpush1.bf16.msra.mxu0 0
  %2741 = vmatprep.subr.bf16.mxu0 0
  %2742 = vmatpush1.bf16.msra.mxu0 0
  %2743 = vmatprep.subr.bf16.mxu0 0
  %2744 = vmatpush1.bf16.msra.mxu0 0
  %2745 = vmatprep.subr.bf16.mxu0 0
  %2746 = vmatpush1.bf16.msra.mxu0 0
  %2747 = vmatprep.subr.bf16.mxu0 0
  %2748 = vmatpush1.bf16.msra.mxu0 0
  %2749 = vmatprep.mubr.bf16.mxu0 0
  %2750 = vmatmul.mubr.bf16.gmra.mrb[0].mxu0 %v1826
  %v2751 = vpop.f32.mrb[0].mxu0
  %v2752 = vadd.f32 0.0, %v2751
  %v2753 = vpop.f32.mrb[0].mxu0
  %v2754 = vadd.f32 0.0, %v2753
  %v2755 = vpop.f32.mrb[0].mxu0
  %v2756 = vadd.f32 0.0, %v2755
  %v2757 = vpop.f32.mrb[0].mxu0
  %v2758 = vadd.f32 0.0, %v2757
  %2759 = vdwg.mxu0
  %2760 = vmatprep.subr.bf16.mxu0 %v1265
  %2761 = vmatpush1.bf16.msra.mxu0 %v1264
  %2762 = vmatprep.subr.bf16.mxu0 %v1331
  %2763 = vmatpush1.bf16.msra.mxu0 %v1330
  %2764 = vmatprep.subr.bf16.mxu0 %v1397
  %2765 = vmatpush1.bf16.msra.mxu0 %v1396
  %2766 = vmatprep.subr.bf16.mxu0 %v1463
  %2767 = vmatpush1.bf16.msra.mxu0 %v1462
  %2768 = vmatprep.subr.bf16.mxu0 %v1937
  %2769 = vmatpush1.bf16.msra.mxu0 %v1934
  %2770 = vmatprep.subr.bf16.mxu0 0
  %2771 = vmatpush1.bf16.msra.mxu0 0
  %2772 = vmatprep.subr.bf16.mxu0 0
  %2773 = vmatpush1.bf16.msra.mxu0 0
  %2774 = vmatprep.subr.bf16.mxu0 0
  %2775 = vmatpush1.bf16.msra.mxu0 0
  %2776 = vmatprep.subr.bf16.mxu0 0
  %2777 = vmatpush1.bf16.msra.mxu0 0
  %2778 = vmatprep.subr.bf16.mxu0 0
  %2779 = vmatpush1.bf16.msra.mxu0 0
  %2780 = vmatprep.subr.bf16.mxu0 0
  %2781 = vmatpush1.bf16.msra.mxu0 0
  %2782 = vmatprep.subr.bf16.mxu0 0
  %2783 = vmatpush1.bf16.msra.mxu0 0
  %2784 = vmatprep.subr.bf16.mxu0 0
  %2785 = vmatpush1.bf16.msra.mxu0 0
  %2786 = vmatprep.subr.bf16.mxu0 0
  %2787 = vmatpush1.bf16.msra.mxu0 0
  %2788 = vmatprep.subr.bf16.mxu0 0
  %2789 = vmatpush1.bf16.msra.mxu0 0
  %2790 = vmatprep.subr.bf16.mxu0 0
  %2791 = vmatpush1.bf16.msra.mxu0 0
  %2792 = vmatprep.mubr.bf16.mxu0 0
  %2793 = vmatmul.mubr.bf16.gmra.mrb[0].mxu0 %v1826
  %v2794 = vpop.f32.mrb[0].mxu0
  %v2795 = vadd.f32 0.0, %v2794
  %v2796 = vpop.f32.mrb[0].mxu0
  %v2797 = vadd.f32 0.0, %v2796
  %v2798 = vpop.f32.mrb[0].mxu0
  %v2799 = vadd.f32 0.0, %v2798
  %v2800 = vpop.f32.mrb[0].mxu0
  %v2801 = vadd.f32 0.0, %v2800
  %2802 = vdwg.mxu0
  %2803 = vmatprep.subr.bf16.mxu0 %v1267
  %2804 = vmatpush1.bf16.msra.mxu0 %v1266
  %2805 = vmatprep.subr.bf16.mxu0 %v1333
  %2806 = vmatpush1.bf16.msra.mxu0 %v1332
  %2807 = vmatprep.subr.bf16.mxu0 %v1399
  %2808 = vmatpush1.bf16.msra.mxu0 %v1398
  %2809 = vmatprep.subr.bf16.mxu0 %v1465
  %2810 = vmatpush1.bf16.msra.mxu0 %v1464
  %2811 = vmatprep.subr.bf16.mxu0 %v1943
  %2812 = vmatpush1.bf16.msra.mxu0 %v1940
  %2813 = vmatprep.subr.bf16.mxu0 0
  %2814 = vmatpush1.bf16.msra.mxu0 0
  %2815 = vmatprep.subr.bf16.mxu0 0
  %2816 = vmatpush1.bf16.msra.mxu0 0
  %2817 = vmatprep.subr.bf16.mxu0 0
  %2818 = vmatpush1.bf16.msra.mxu0 0
  %2819 = vmatprep.subr.bf16.mxu0 0
  %2820 = vmatpush1.bf16.msra.mxu0 0
  %2821 = vmatprep.subr.bf16.mxu0 0
  %2822 = vmatpush1.bf16.msra.mxu0 0
  %2823 = vmatprep.subr.bf16.mxu0 0
  %2824 = vmatpush1.bf16.msra.mxu0 0
  %2825 = vmatprep.subr.bf16.mxu0 0
  %2826 = vmatpush1.bf16.msra.mxu0 0
  %2827 = vmatprep.subr.bf16.mxu0 0
  %2828 = vmatpush1.bf16.msra.mxu0 0
  %2829 = vmatprep.subr.bf16.mxu0 0
  %2830 = vmatpush1.bf16.msra.mxu0 0
  %2831 = vmatprep.subr.bf16.mxu0 0
  %2832 = vmatpush1.bf16.msra.mxu0 0
  %2833 = vmatprep.subr.bf16.mxu0 0
  %2834 = vmatpush1.bf16.msra.mxu0 0
  %2835 = vmatprep.mubr.bf16.mxu0 0
  %2836 = vmatmul.mubr.bf16.gmra.mrb[0].mxu0 %v1826
  %v2837 = vpop.f32.mrb[0].mxu0
  %v2838 = vadd.f32 0.0, %v2837
  %v2839 = vpop.f32.mrb[0].mxu0
  %v2840 = vadd.f32 0.0, %v2839
  %v2841 = vpop.f32.mrb[0].mxu0
  %v2842 = vadd.f32 0.0, %v2841
  %v2843 = vpop.f32.mrb[0].mxu0
  %v2844 = vadd.f32 0.0, %v2843
  %2845 = vdwg.mxu0
  %2846 = vmatprep.subr.bf16.mxu0 %v1269
  %2847 = vmatpush1.bf16.msra.mxu0 %v1268
  %2848 = vmatprep.subr.bf16.mxu0 %v1335
  %2849 = vmatpush1.bf16.msra.mxu0 %v1334
  %2850 = vmatprep.subr.bf16.mxu0 %v1401
  %2851 = vmatpush1.bf16.msra.mxu0 %v1400
  %2852 = vmatprep.subr.bf16.mxu0 %v1467
  %2853 = vmatpush1.bf16.msra.mxu0 %v1466
  %2854 = vmatprep.subr.bf16.mxu0 %v1949
  %2855 = vmatpush1.bf16.msra.mxu0 %v1946
  %2856 = vmatprep.subr.bf16.mxu0 0
  %2857 = vmatpush1.bf16.msra.mxu0 0
  %2858 = vmatprep.subr.bf16.mxu0 0
  %2859 = vmatpush1.bf16.msra.mxu0 0
  %2860 = vmatprep.subr.bf16.mxu0 0
  %2861 = vmatpush1.bf16.msra.mxu0 0
  %2862 = vmatprep.subr.bf16.mxu0 0
  %2863 = vmatpush1.bf16.msra.mxu0 0
  %2864 = vmatprep.subr.bf16.mxu0 0
  %2865 = vmatpush1.bf16.msra.mxu0 0
  %2866 = vmatprep.subr.bf16.mxu0 0
  %2867 = vmatpush1.bf16.msra.mxu0 0
  %2868 = vmatprep.subr.bf16.mxu0 0
  %2869 = vmatpush1.bf16.msra.mxu0 0
  %2870 = vmatprep.subr.bf16.mxu0 0
  %2871 = vmatpush1.bf16.msra.mxu0 0
  %2872 = vmatprep.subr.bf16.mxu0 0
  %2873 = vmatpush1.bf16.msra.mxu0 0
  %2874 = vmatprep.subr.bf16.mxu0 0
  %2875 = vmatpush1.bf16.msra.mxu0 0
  %2876 = vmatprep.subr.bf16.mxu0 0
  %2877 = vmatpush1.bf16.msra.mxu0 0
  %2878 = vmatprep.mubr.bf16.mxu0 0
  %2879 = vmatmul.mubr.bf16.gmra.mrb[0].mxu0 %v1826
  %v2880 = vpop.f32.mrb[0].mxu0
  %v2881 = vadd.f32 0.0, %v2880
  %v2882 = vpop.f32.mrb[0].mxu0
  %v2883 = vadd.f32 0.0, %v2882
  %v2884 = vpop.f32.mrb[0].mxu0
  %v2885 = vadd.f32 0.0, %v2884
  %v2886 = vpop.f32.mrb[0].mxu0
  %v2887 = vadd.f32 0.0, %v2886
  %2888 = vdwg.mxu0
  %2889 = vmatprep.subr.bf16.mxu0 %v1271
  %2890 = vmatpush1.bf16.msra.mxu0 %v1270
  %2891 = vmatprep.subr.bf16.mxu0 %v1337
  %2892 = vmatpush1.bf16.msra.mxu0 %v1336
  %2893 = vmatprep.subr.bf16.mxu0 %v1403
  %2894 = vmatpush1.bf16.msra.mxu0 %v1402
  %2895 = vmatprep.subr.bf16.mxu0 %v1469
  %2896 = vmatpush1.bf16.msra.mxu0 %v1468
  %2897 = vmatprep.subr.bf16.mxu0 %v1955
  %2898 = vmatpush1.bf16.msra.mxu0 %v1952
  %2899 = vmatprep.subr.bf16.mxu0 0
  %2900 = vmatpush1.bf16.msra.mxu0 0
  %2901 = vmatprep.subr.bf16.mxu0 0
  %2902 = vmatpush1.bf16.msra.mxu0 0
  %2903 = vmatprep.subr.bf16.mxu0 0
  %2904 = vmatpush1.bf16.msra.mxu0 0
  %2905 = vmatprep.subr.bf16.mxu0 0
  %2906 = vmatpush1.bf16.msra.mxu0 0
  %2907 = vmatprep.subr.bf16.mxu0 0
  %2908 = vmatpush1.bf16.msra.mxu0 0
  %2909 = vmatprep.subr.bf16.mxu0 0
  %2910 = vmatpush1.bf16.msra.mxu0 0
  %2911 = vmatprep.subr.bf16.mxu0 0
  %2912 = vmatpush1.bf16.msra.mxu0 0
  %2913 = vmatprep.subr.bf16.mxu0 0
  %2914 = vmatpush1.bf16.msra.mxu0 0
  %2915 = vmatprep.subr.bf16.mxu0 0
  %2916 = vmatpush1.bf16.msra.mxu0 0
  %2917 = vmatprep.subr.bf16.mxu0 0
  %2918 = vmatpush1.bf16.msra.mxu0 0
  %2919 = vmatprep.subr.bf16.mxu0 0
  %2920 = vmatpush1.bf16.msra.mxu0 0
  %2921 = vmatprep.mubr.bf16.mxu0 0
  %2922 = vmatmul.mubr.bf16.gmra.mrb[0].mxu0 %v1826
  %v2923 = vpop.f32.mrb[0].mxu0
  %v2924 = vadd.f32 0.0, %v2923
  %v2925 = vpop.f32.mrb[0].mxu0
  %v2926 = vadd.f32 0.0, %v2925
  %v2927 = vpop.f32.mrb[0].mxu0
  %v2928 = vadd.f32 0.0, %v2927
  %v2929 = vpop.f32.mrb[0].mxu0
  %v2930 = vadd.f32 0.0, %v2929
  %2931 = vdwg.mxu0
  %2932 = vmatprep.subr.bf16.mxu0 %v1273
  %2933 = vmatpush1.bf16.msra.mxu0 %v1272
  %2934 = vmatprep.subr.bf16.mxu0 %v1339
  %2935 = vmatpush1.bf16.msra.mxu0 %v1338
  %2936 = vmatprep.subr.bf16.mxu0 %v1405
  %2937 = vmatpush1.bf16.msra.mxu0 %v1404
  %2938 = vmatprep.subr.bf16.mxu0 %v1471
  %2939 = vmatpush1.bf16.msra.mxu0 %v1470
  %2940 = vmatprep.subr.bf16.mxu0 %v1961
  %2941 = vmatpush1.bf16.msra.mxu0 %v1958
  %2942 = vmatprep.subr.bf16.mxu0 0
  %2943 = vmatpush1.bf16.msra.mxu0 0
  %2944 = vmatprep.subr.bf16.mxu0 0
  %2945 = vmatpush1.bf16.msra.mxu0 0
  %2946 = vmatprep.subr.bf16.mxu0 0
  %2947 = vmatpush1.bf16.msra.mxu0 0
  %2948 = vmatprep.subr.bf16.mxu0 0
  %2949 = vmatpush1.bf16.msra.mxu0 0
  %2950 = vmatprep.subr.bf16.mxu0 0
  %2951 = vmatpush1.bf16.msra.mxu0 0
  %2952 = vmatprep.subr.bf16.mxu0 0
  %2953 = vmatpush1.bf16.msra.mxu0 0
  %2954 = vmatprep.subr.bf16.mxu0 0
  %2955 = vmatpush1.bf16.msra.mxu0 0
  %2956 = vmatprep.subr.bf16.mxu0 0
  %2957 = vmatpush1.bf16.msra.mxu0 0
  %2958 = vmatprep.subr.bf16.mxu0 0
  %2959 = vmatpush1.bf16.msra.mxu0 0
  %2960 = vmatprep.subr.bf16.mxu0 0
  %2961 = vmatpush1.bf16.msra.mxu0 0
  %2962 = vmatprep.subr.bf16.mxu0 0
  %2963 = vmatpush1.bf16.msra.mxu0 0
  %2964 = vmatprep.mubr.bf16.mxu0 0
  %2965 = vmatmul.mubr.bf16.gmra.mrb[0].mxu0 %v1826
  %v2966 = vpop.f32.mrb[0].mxu0
  %v2967 = vadd.f32 0.0, %v2966
  %v2968 = vpop.f32.mrb[0].mxu0
  %v2969 = vadd.f32 0.0, %v2968
  %v2970 = vpop.f32.mrb[0].mxu0
  %v2971 = vadd.f32 0.0, %v2970
  %v2972 = vpop.f32.mrb[0].mxu0
  %v2973 = vadd.f32 0.0, %v2972
  %2974 = vdwg.mxu0
  %2975 = vmatprep.subr.bf16.mxu0 %v1275
  %2976 = vmatpush1.bf16.msra.mxu0 %v1274
  %2977 = vmatprep.subr.bf16.mxu0 %v1341
  %2978 = vmatpush1.bf16.msra.mxu0 %v1340
  %2979 = vmatprep.subr.bf16.mxu0 %v1407
  %2980 = vmatpush1.bf16.msra.mxu0 %v1406
  %2981 = vmatprep.subr.bf16.mxu0 %v1473
  %2982 = vmatpush1.bf16.msra.mxu0 %v1472
  %2983 = vmatprep.subr.bf16.mxu0 %v1967
  %2984 = vmatpush1.bf16.msra.mxu0 %v1964
  %2985 = vmatprep.subr.bf16.mxu0 0
  %2986 = vmatpush1.bf16.msra.mxu0 0
  %2987 = vmatprep.subr.bf16.mxu0 0
  %2988 = vmatpush1.bf16.msra.mxu0 0
  %2989 = vmatprep.subr.bf16.mxu0 0
  %2990 = vmatpush1.bf16.msra.mxu0 0
  %2991 = vmatprep.subr.bf16.mxu0 0
  %2992 = vmatpush1.bf16.msra.mxu0 0
  %2993 = vmatprep.subr.bf16.mxu0 0
  %2994 = vmatpush1.bf16.msra.mxu0 0
  %2995 = vmatprep.subr.bf16.mxu0 0
  %2996 = vmatpush1.bf16.msra.mxu0 0
  %2997 = vmatprep.subr.bf16.mxu0 0
  %2998 = vmatpush1.bf16.msra.mxu0 0
  %2999 = vmatprep.subr.bf16.mxu0 0
  %3000 = vmatpush1.bf16.msra.mxu0 0
  %3001 = vmatprep.subr.bf16.mxu0 0
  %3002 = vmatpush1.bf16.msra.mxu0 0
  %3003 = vmatprep.subr.bf16.mxu0 0
  %3004 = vmatpush1.bf16.msra.mxu0 0
  %3005 = vmatprep.subr.bf16.mxu0 0
  %3006 = vmatpush1.bf16.msra.mxu0 0
  %3007 = vmatprep.mubr.bf16.mxu0 0
  %3008 = vmatmul.mubr.bf16.gmra.mrb[0].mxu0 %v1826
  %v3009 = vpop.f32.mrb[0].mxu0
  %v3010 = vadd.f32 0.0, %v3009
  %v3011 = vpop.f32.mrb[0].mxu0
  %v3012 = vadd.f32 0.0, %v3011
  %v3013 = vpop.f32.mrb[0].mxu0
  %v3014 = vadd.f32 0.0, %v3013
  %v3015 = vpop.f32.mrb[0].mxu0
  %v3016 = vadd.f32 0.0, %v3015
  %3017 = vdwg.mxu0
  %3018 = vmatprep.subr.bf16.mxu0 %v1277
  %3019 = vmatpush1.bf16.msra.mxu0 %v1276
  %3020 = vmatprep.subr.bf16.mxu0 %v1343
  %3021 = vmatpush1.bf16.msra.mxu0 %v1342
  %3022 = vmatprep.subr.bf16.mxu0 %v1409
  %3023 = vmatpush1.bf16.msra.mxu0 %v1408
  %3024 = vmatprep.subr.bf16.mxu0 %v1475
  %3025 = vmatpush1.bf16.msra.mxu0 %v1474
  %3026 = vmatprep.subr.bf16.mxu0 %v1973
  %3027 = vmatpush1.bf16.msra.mxu0 %v1970
  %3028 = vmatprep.subr.bf16.mxu0 0
  %3029 = vmatpush1.bf16.msra.mxu0 0
  %3030 = vmatprep.subr.bf16.mxu0 0
  %3031 = vmatpush1.bf16.msra.mxu0 0
  %3032 = vmatprep.subr.bf16.mxu0 0
  %3033 = vmatpush1.bf16.msra.mxu0 0
  %3034 = vmatprep.subr.bf16.mxu0 0
  %3035 = vmatpush1.bf16.msra.mxu0 0
  %3036 = vmatprep.subr.bf16.mxu0 0
  %3037 = vmatpush1.bf16.msra.mxu0 0
  %3038 = vmatprep.subr.bf16.mxu0 0
  %3039 = vmatpush1.bf16.msra.mxu0 0
  %3040 = vmatprep.subr.bf16.mxu0 0
  %3041 = vmatpush1.bf16.msra.mxu0 0
  %3042 = vmatprep.subr.bf16.mxu0 0
  %3043 = vmatpush1.bf16.msra.mxu0 0
  %3044 = vmatprep.subr.bf16.mxu0 0
  %3045 = vmatpush1.bf16.msra.mxu0 0
  %3046 = vmatprep.subr.bf16.mxu0 0
  %3047 = vmatpush1.bf16.msra.mxu0 0
  %3048 = vmatprep.subr.bf16.mxu0 0
  %3049 = vmatpush1.bf16.msra.mxu0 0
  %3050 = vmatprep.mubr.bf16.mxu0 0
  %3051 = vmatmul.mubr.bf16.gmra.mrb[0].mxu0 %v1826
  %v3052 = vpop.f32.mrb[0].mxu0
  %v3053 = vadd.f32 0.0, %v3052
  %v3054 = vpop.f32.mrb[0].mxu0
  %v3055 = vadd.f32 0.0, %v3054
  %v3056 = vpop.f32.mrb[0].mxu0
  %v3057 = vadd.f32 0.0, %v3056
  %v3058 = vpop.f32.mrb[0].mxu0
  %v3059 = vadd.f32 0.0, %v3058
  %3060 = vdwg.mxu0
  %3061 = vmatprep.subr.bf16.mxu0 %v1279
  %3062 = vmatpush1.bf16.msra.mxu0 %v1278
  %3063 = vmatprep.subr.bf16.mxu0 %v1345
  %3064 = vmatpush1.bf16.msra.mxu0 %v1344
  %3065 = vmatprep.subr.bf16.mxu0 %v1411
  %3066 = vmatpush1.bf16.msra.mxu0 %v1410
  %3067 = vmatprep.subr.bf16.mxu0 %v1477
  %3068 = vmatpush1.bf16.msra.mxu0 %v1476
  %3069 = vmatprep.subr.bf16.mxu0 %v1979
  %3070 = vmatpush1.bf16.msra.mxu0 %v1976
  %3071 = vmatprep.subr.bf16.mxu0 0
  %3072 = vmatpush1.bf16.msra.mxu0 0
  %3073 = vmatprep.subr.bf16.mxu0 0
  %3074 = vmatpush1.bf16.msra.mxu0 0
  %3075 = vmatprep.subr.bf16.mxu0 0
  %3076 = vmatpush1.bf16.msra.mxu0 0
  %3077 = vmatprep.subr.bf16.mxu0 0
  %3078 = vmatpush1.bf16.msra.mxu0 0
  %3079 = vmatprep.subr.bf16.mxu0 0
  %3080 = vmatpush1.bf16.msra.mxu0 0
  %3081 = vmatprep.subr.bf16.mxu0 0
  %3082 = vmatpush1.bf16.msra.mxu0 0
  %3083 = vmatprep.subr.bf16.mxu0 0
  %3084 = vmatpush1.bf16.msra.mxu0 0
  %3085 = vmatprep.subr.bf16.mxu0 0
  %3086 = vmatpush1.bf16.msra.mxu0 0
  %3087 = vmatprep.subr.bf16.mxu0 0
  %3088 = vmatpush1.bf16.msra.mxu0 0
  %3089 = vmatprep.subr.bf16.mxu0 0
  %3090 = vmatpush1.bf16.msra.mxu0 0
  %3091 = vmatprep.subr.bf16.mxu0 0
  %3092 = vmatpush1.bf16.msra.mxu0 0
  %3093 = vmatprep.mubr.bf16.mxu0 0
  %3094 = vmatmul.mubr.bf16.gmra.mrb[0].mxu0 %v1826
  %v3095 = vpop.f32.mrb[0].mxu0
  %v3096 = vadd.f32 0.0, %v3095
  %v3097 = vpop.f32.mrb[0].mxu0
  %v3098 = vadd.f32 0.0, %v3097
  %v3099 = vpop.f32.mrb[0].mxu0
  %v3100 = vadd.f32 0.0, %v3099
  %v3101 = vpop.f32.mrb[0].mxu0
  %v3102 = vadd.f32 0.0, %v3101
  %3103 = vdwg.mxu0
  %3104 = vmatprep.subr.bf16.mxu0 %v1281
  %3105 = vmatpush1.bf16.msra.mxu0 %v1280
  %3106 = vmatprep.subr.bf16.mxu0 %v1347
  %3107 = vmatpush1.bf16.msra.mxu0 %v1346
  %3108 = vmatprep.subr.bf16.mxu0 %v1413
  %3109 = vmatpush1.bf16.msra.mxu0 %v1412
  %3110 = vmatprep.subr.bf16.mxu0 %v1479
  %3111 = vmatpush1.bf16.msra.mxu0 %v1478
  %3112 = vmatprep.subr.bf16.mxu0 %v1985
  %3113 = vmatpush1.bf16.msra.mxu0 %v1982
  %3114 = vmatprep.subr.bf16.mxu0 0
  %3115 = vmatpush1.bf16.msra.mxu0 0
  %3116 = vmatprep.subr.bf16.mxu0 0
  %3117 = vmatpush1.bf16.msra.mxu0 0
  %3118 = vmatprep.subr.bf16.mxu0 0
  %3119 = vmatpush1.bf16.msra.mxu0 0
  %3120 = vmatprep.subr.bf16.mxu0 0
  %3121 = vmatpush1.bf16.msra.mxu0 0
  %3122 = vmatprep.subr.bf16.mxu0 0
  %3123 = vmatpush1.bf16.msra.mxu0 0
  %3124 = vmatprep.subr.bf16.mxu0 0
  %3125 = vmatpush1.bf16.msra.mxu0 0
  %3126 = vmatprep.subr.bf16.mxu0 0
  %3127 = vmatpush1.bf16.msra.mxu0 0
  %3128 = vmatprep.subr.bf16.mxu0 0
  %3129 = vmatpush1.bf16.msra.mxu0 0
  %3130 = vmatprep.subr.bf16.mxu0 0
  %3131 = vmatpush1.bf16.msra.mxu0 0
  %3132 = vmatprep.subr.bf16.mxu0 0
  %3133 = vmatpush1.bf16.msra.mxu0 0
  %3134 = vmatprep.subr.bf16.mxu0 0
  %3135 = vmatpush1.bf16.msra.mxu0 0
  %3136 = vmatprep.mubr.bf16.mxu0 0
  %3137 = vmatmul.mubr.bf16.gmra.mrb[0].mxu0 %v1826
  %v3138 = vpop.f32.mrb[0].mxu0
  %v3139 = vadd.f32 0.0, %v3138
  %v3140 = vpop.f32.mrb[0].mxu0
  %v3141 = vadd.f32 0.0, %v3140
  %v3142 = vpop.f32.mrb[0].mxu0
  %v3143 = vadd.f32 0.0, %v3142
  %v3144 = vpop.f32.mrb[0].mxu0
  %v3145 = vadd.f32 0.0, %v3144
  %3146 = vdwg.mxu0
  %3147 = vmatprep.subr.bf16.mxu0 %v1283
  %3148 = vmatpush1.bf16.msra.mxu0 %v1282
  %3149 = vmatprep.subr.bf16.mxu0 %v1349
  %3150 = vmatpush1.bf16.msra.mxu0 %v1348
  %3151 = vmatprep.subr.bf16.mxu0 %v1415
  %3152 = vmatpush1.bf16.msra.mxu0 %v1414
  %3153 = vmatprep.subr.bf16.mxu0 %v1481
  %3154 = vmatpush1.bf16.msra.mxu0 %v1480
  %3155 = vmatprep.subr.bf16.mxu0 %v1991
  %3156 = vmatpush1.bf16.msra.mxu0 %v1988
  %3157 = vmatprep.subr.bf16.mxu0 0
  %3158 = vmatpush1.bf16.msra.mxu0 0
  %3159 = vmatprep.subr.bf16.mxu0 0
  %3160 = vmatpush1.bf16.msra.mxu0 0
  %3161 = vmatprep.subr.bf16.mxu0 0
  %3162 = vmatpush1.bf16.msra.mxu0 0
  %3163 = vmatprep.subr.bf16.mxu0 0
  %3164 = vmatpush1.bf16.msra.mxu0 0
  %3165 = vmatprep.subr.bf16.mxu0 0
  %3166 = vmatpush1.bf16.msra.mxu0 0
  %3167 = vmatprep.subr.bf16.mxu0 0
  %3168 = vmatpush1.bf16.msra.mxu0 0
  %3169 = vmatprep.subr.bf16.mxu0 0
  %3170 = vmatpush1.bf16.msra.mxu0 0
  %3171 = vmatprep.subr.bf16.mxu0 0
  %3172 = vmatpush1.bf16.msra.mxu0 0
  %3173 = vmatprep.subr.bf16.mxu0 0
  %3174 = vmatpush1.bf16.msra.mxu0 0
  %3175 = vmatprep.subr.bf16.mxu0 0
  %3176 = vmatpush1.bf16.msra.mxu0 0
  %3177 = vmatprep.subr.bf16.mxu0 0
  %3178 = vmatpush1.bf16.msra.mxu0 0
  %3179 = vmatprep.mubr.bf16.mxu0 0
  %3180 = vmatmul.mubr.bf16.gmra.mrb[0].mxu0 %v1826
  %v3181 = vpop.f32.mrb[0].mxu0
  %v3182 = vadd.f32 0.0, %v3181
  %v3183 = vpop.f32.mrb[0].mxu0
  %v3184 = vadd.f32 0.0, %v3183
  %v3185 = vpop.f32.mrb[0].mxu0
  %v3186 = vadd.f32 0.0, %v3185
  %v3187 = vpop.f32.mrb[0].mxu0
  %v3188 = vadd.f32 0.0, %v3187
  %3189 = vdwg.mxu0
  %3190 = vmatprep.subr.bf16.mxu0 %v1285
  %3191 = vmatpush1.bf16.msra.mxu0 %v1284
  %3192 = vmatprep.subr.bf16.mxu0 %v1351
  %3193 = vmatpush1.bf16.msra.mxu0 %v1350
  %3194 = vmatprep.subr.bf16.mxu0 %v1417
  %3195 = vmatpush1.bf16.msra.mxu0 %v1416
  %3196 = vmatprep.subr.bf16.mxu0 %v1483
  %3197 = vmatpush1.bf16.msra.mxu0 %v1482
  %3198 = vmatprep.subr.bf16.mxu0 %v1997
  %3199 = vmatpush1.bf16.msra.mxu0 %v1994
  %3200 = vmatprep.subr.bf16.mxu0 0
  %3201 = vmatpush1.bf16.msra.mxu0 0
  %3202 = vmatprep.subr.bf16.mxu0 0
  %3203 = vmatpush1.bf16.msra.mxu0 0
  %3204 = vmatprep.subr.bf16.mxu0 0
  %3205 = vmatpush1.bf16.msra.mxu0 0
  %3206 = vmatprep.subr.bf16.mxu0 0
  %3207 = vmatpush1.bf16.msra.mxu0 0
  %3208 = vmatprep.subr.bf16.mxu0 0
  %3209 = vmatpush1.bf16.msra.mxu0 0
  %3210 = vmatprep.subr.bf16.mxu0 0
  %3211 = vmatpush1.bf16.msra.mxu0 0
  %3212 = vmatprep.subr.bf16.mxu0 0
  %3213 = vmatpush1.bf16.msra.mxu0 0
  %3214 = vmatprep.subr.bf16.mxu0 0
  %3215 = vmatpush1.bf16.msra.mxu0 0
  %3216 = vmatprep.subr.bf16.mxu0 0
  %3217 = vmatpush1.bf16.msra.mxu0 0
  %3218 = vmatprep.subr.bf16.mxu0 0
  %3219 = vmatpush1.bf16.msra.mxu0 0
  %3220 = vmatprep.subr.bf16.mxu0 0
  %3221 = vmatpush1.bf16.msra.mxu0 0
  %3222 = vmatprep.mubr.bf16.mxu0 0
  %3223 = vmatmul.mubr.bf16.gmra.mrb[0].mxu0 %v1826
  %v3224 = vpop.f32.mrb[0].mxu0
  %v3225 = vadd.f32 0.0, %v3224
  %v3226 = vpop.f32.mrb[0].mxu0
  %v3227 = vadd.f32 0.0, %v3226
  %v3228 = vpop.f32.mrb[0].mxu0
  %v3229 = vadd.f32 0.0, %v3228
  %v3230 = vpop.f32.mrb[0].mxu0
  %v3231 = vadd.f32 0.0, %v3230
  %3232 = vdwg.mxu0
  %3233 = vmatprep.subr.bf16.mxu0 %v1287
  %3234 = vmatpush1.bf16.msra.mxu0 %v1286
  %3235 = vmatprep.subr.bf16.mxu0 %v1353
  %3236 = vmatpush1.bf16.msra.mxu0 %v1352
  %3237 = vmatprep.subr.bf16.mxu0 %v1419
  %3238 = vmatpush1.bf16.msra.mxu0 %v1418
  %3239 = vmatprep.subr.bf16.mxu0 %v1485
  %3240 = vmatpush1.bf16.msra.mxu0 %v1484
  %3241 = vmatprep.subr.bf16.mxu0 %v2003
  %3242 = vmatpush1.bf16.msra.mxu0 %v2000
  %3243 = vmatprep.subr.bf16.mxu0 0
  %3244 = vmatpush1.bf16.msra.mxu0 0
  %3245 = vmatprep.subr.bf16.mxu0 0
  %3246 = vmatpush1.bf16.msra.mxu0 0
  %3247 = vmatprep.subr.bf16.mxu0 0
  %3248 = vmatpush1.bf16.msra.mxu0 0
  %3249 = vmatprep.subr.bf16.mxu0 0
  %3250 = vmatpush1.bf16.msra.mxu0 0
  %3251 = vmatprep.subr.bf16.mxu0 0
  %3252 = vmatpush1.bf16.msra.mxu0 0
  %3253 = vmatprep.subr.bf16.mxu0 0
  %3254 = vmatpush1.bf16.msra.mxu0 0
  %3255 = vmatprep.subr.bf16.mxu0 0
  %3256 = vmatpush1.bf16.msra.mxu0 0
  %3257 = vmatprep.subr.bf16.mxu0 0
  %3258 = vmatpush1.bf16.msra.mxu0 0
  %3259 = vmatprep.subr.bf16.mxu0 0
  %3260 = vmatpush1.bf16.msra.mxu0 0
  %3261 = vmatprep.subr.bf16.mxu0 0
  %3262 = vmatpush1.bf16.msra.mxu0 0
  %3263 = vmatprep.subr.bf16.mxu0 0
  %3264 = vmatpush1.bf16.msra.mxu0 0
  %3265 = vmatprep.mubr.bf16.mxu0 0
  %3266 = vmatmul.mubr.bf16.gmra.mrb[0].mxu0 %v1826
  %v3267 = vpop.f32.mrb[0].mxu0
  %v3268 = vadd.f32 0.0, %v3267
  %v3269 = vpop.f32.mrb[0].mxu0
  %v3270 = vadd.f32 0.0, %v3269
  %v3271 = vpop.f32.mrb[0].mxu0
  %v3272 = vadd.f32 0.0, %v3271
  %v3273 = vpop.f32.mrb[0].mxu0
  %v3274 = vadd.f32 0.0, %v3273
  %3275 = vdwg.mxu0
  %3276 = vmatprep.subr.bf16.mxu0 %v1289
  %3277 = vmatpush1.bf16.msra.mxu0 %v1288
  %3278 = vmatprep.subr.bf16.mxu0 %v1355
  %3279 = vmatpush1.bf16.msra.mxu0 %v1354
  %3280 = vmatprep.subr.bf16.mxu0 %v1421
  %3281 = vmatpush1.bf16.msra.mxu0 %v1420
  %3282 = vmatprep.subr.bf16.mxu0 %v1487
  %3283 = vmatpush1.bf16.msra.mxu0 %v1486
  %3284 = vmatprep.subr.bf16.mxu0 %v2009
  %3285 = vmatpush1.bf16.msra.mxu0 %v2006
  %3286 = vmatprep.subr.bf16.mxu0 0
  %3287 = vmatpush1.bf16.msra.mxu0 0
  %3288 = vmatprep.subr.bf16.mxu0 0
  %3289 = vmatpush1.bf16.msra.mxu0 0
  %3290 = vmatprep.subr.bf16.mxu0 0
  %3291 = vmatpush1.bf16.msra.mxu0 0
  %3292 = vmatprep.subr.bf16.mxu0 0
  %3293 = vmatpush1.bf16.msra.mxu0 0
  %3294 = vmatprep.subr.bf16.mxu0 0
  %3295 = vmatpush1.bf16.msra.mxu0 0
  %3296 = vmatprep.subr.bf16.mxu0 0
  %3297 = vmatpush1.bf16.msra.mxu0 0
  %3298 = vmatprep.subr.bf16.mxu0 0
  %3299 = vmatpush1.bf16.msra.mxu0 0
  %3300 = vmatprep.subr.bf16.mxu0 0
  %3301 = vmatpush1.bf16.msra.mxu0 0
  %3302 = vmatprep.subr.bf16.mxu0 0
  %3303 = vmatpush1.bf16.msra.mxu0 0
  %3304 = vmatprep.subr.bf16.mxu0 0
  %3305 = vmatpush1.bf16.msra.mxu0 0
  %3306 = vmatprep.subr.bf16.mxu0 0
  %3307 = vmatpush1.bf16.msra.mxu0 0
  %3308 = vmatprep.mubr.bf16.mxu0 0
  %3309 = vmatmul.mubr.bf16.gmra.mrb[0].mxu0 %v1826
  %v3310 = vpop.f32.mrb[0].mxu0
  %v3311 = vadd.f32 0.0, %v3310
  %v3312 = vpop.f32.mrb[0].mxu0
  %v3313 = vadd.f32 0.0, %v3312
  %v3314 = vpop.f32.mrb[0].mxu0
  %v3315 = vadd.f32 0.0, %v3314
  %v3316 = vpop.f32.mrb[0].mxu0
  %v3317 = vadd.f32 0.0, %v3316
  %3318 = vdwg.mxu0
  %3319 = vmatprep.subr.bf16.mxu0 %v1291
  %3320 = vmatpush1.bf16.msra.mxu0 %v1290
  %3321 = vmatprep.subr.bf16.mxu0 %v1357
  %3322 = vmatpush1.bf16.msra.mxu0 %v1356
  %3323 = vmatprep.subr.bf16.mxu0 %v1423
  %3324 = vmatpush1.bf16.msra.mxu0 %v1422
  %3325 = vmatprep.subr.bf16.mxu0 %v1489
  %3326 = vmatpush1.bf16.msra.mxu0 %v1488
  %3327 = vmatprep.subr.bf16.mxu0 %v2015
  %3328 = vmatpush1.bf16.msra.mxu0 %v2012
  %3329 = vmatprep.subr.bf16.mxu0 0
  %3330 = vmatpush1.bf16.msra.mxu0 0
  %3331 = vmatprep.subr.bf16.mxu0 0
  %3332 = vmatpush1.bf16.msra.mxu0 0
  %3333 = vmatprep.subr.bf16.mxu0 0
  %3334 = vmatpush1.bf16.msra.mxu0 0
  %3335 = vmatprep.subr.bf16.mxu0 0
  %3336 = vmatpush1.bf16.msra.mxu0 0
  %3337 = vmatprep.subr.bf16.mxu0 0
  %3338 = vmatpush1.bf16.msra.mxu0 0
  %3339 = vmatprep.subr.bf16.mxu0 0
  %3340 = vmatpush1.bf16.msra.mxu0 0
  %3341 = vmatprep.subr.bf16.mxu0 0
  %3342 = vmatpush1.bf16.msra.mxu0 0
  %3343 = vmatprep.subr.bf16.mxu0 0
  %3344 = vmatpush1.bf16.msra.mxu0 0
  %3345 = vmatprep.subr.bf16.mxu0 0
  %3346 = vmatpush1.bf16.msra.mxu0 0
  %3347 = vmatprep.subr.bf16.mxu0 0
  %3348 = vmatpush1.bf16.msra.mxu0 0
  %3349 = vmatprep.subr.bf16.mxu0 0
  %3350 = vmatpush1.bf16.msra.mxu0 0
  %3351 = vmatprep.mubr.bf16.mxu0 0
  %3352 = vmatmul.mubr.bf16.gmra.mrb[0].mxu0 %v1826
  %v3353 = vpop.f32.mrb[0].mxu0
  %v3354 = vadd.f32 0.0, %v3353
  %v3355 = vpop.f32.mrb[0].mxu0
  %v3356 = vadd.f32 0.0, %v3355
  %v3357 = vpop.f32.mrb[0].mxu0
  %v3358 = vadd.f32 0.0, %v3357
  %v3359 = vpop.f32.mrb[0].mxu0
  %v3360 = vadd.f32 0.0, %v3359
  %3361 = vdwg.mxu0
  %3362 = vmatprep.subr.bf16.mxu0 %v1293
  %3363 = vmatpush1.bf16.msra.mxu0 %v1292
  %3364 = vmatprep.subr.bf16.mxu0 %v1359
  %3365 = vmatpush1.bf16.msra.mxu0 %v1358
  %3366 = vmatprep.subr.bf16.mxu0 %v1425
  %3367 = vmatpush1.bf16.msra.mxu0 %v1424
  %3368 = vmatprep.subr.bf16.mxu0 %v1491
  %3369 = vmatpush1.bf16.msra.mxu0 %v1490
  %3370 = vmatprep.subr.bf16.mxu0 %v2021
  %3371 = vmatpush1.bf16.msra.mxu0 %v2018
  %3372 = vmatprep.subr.bf16.mxu0 0
  %3373 = vmatpush1.bf16.msra.mxu0 0
  %3374 = vmatprep.subr.bf16.mxu0 0
  %3375 = vmatpush1.bf16.msra.mxu0 0
  %3376 = vmatprep.subr.bf16.mxu0 0
  %3377 = vmatpush1.bf16.msra.mxu0 0
  %3378 = vmatprep.subr.bf16.mxu0 0
  %3379 = vmatpush1.bf16.msra.mxu0 0
  %3380 = vmatprep.subr.bf16.mxu0 0
  %3381 = vmatpush1.bf16.msra.mxu0 0
  %3382 = vmatprep.subr.bf16.mxu0 0
  %3383 = vmatpush1.bf16.msra.mxu0 0
  %3384 = vmatprep.subr.bf16.mxu0 0
  %3385 = vmatpush1.bf16.msra.mxu0 0
  %3386 = vmatprep.subr.bf16.mxu0 0
  %3387 = vmatpush1.bf16.msra.mxu0 0
  %3388 = vmatprep.subr.bf16.mxu0 0
  %3389 = vmatpush1.bf16.msra.mxu0 0
  %3390 = vmatprep.subr.bf16.mxu0 0
  %3391 = vmatpush1.bf16.msra.mxu0 0
  %3392 = vmatprep.subr.bf16.mxu0 0
  %3393 = vmatpush1.bf16.msra.mxu0 0
  %3394 = vmatprep.mubr.bf16.mxu0 0
  %3395 = vmatmul.mubr.bf16.gmra.mrb[0].mxu0 %v1826
  %v3396 = vpop.f32.mrb[0].mxu0
  %v3397 = vadd.f32 0.0, %v3396
  %v3398 = vpop.f32.mrb[0].mxu0
  %v3399 = vadd.f32 0.0, %v3398
  %v3400 = vpop.f32.mrb[0].mxu0
  %v3401 = vadd.f32 0.0, %v3400
  %v3402 = vpop.f32.mrb[0].mxu0
  %v3403 = vadd.f32 0.0, %v3402
  %3404 = vdwg.mxu0
  %3405 = vmatprep.subr.bf16.mxu0 %v1295
  %3406 = vmatpush1.bf16.msra.mxu0 %v1294
  %3407 = vmatprep.subr.bf16.mxu0 %v1361
  %3408 = vmatpush1.bf16.msra.mxu0 %v1360
  %3409 = vmatprep.subr.bf16.mxu0 %v1427
  %3410 = vmatpush1.bf16.msra.mxu0 %v1426
  %3411 = vmatprep.subr.bf16.mxu0 %v1493
  %3412 = vmatpush1.bf16.msra.mxu0 %v1492
  %3413 = vmatprep.subr.bf16.mxu0 %v2027
  %3414 = vmatpush1.bf16.msra.mxu0 %v2024
  %3415 = vmatprep.subr.bf16.mxu0 0
  %3416 = vmatpush1.bf16.msra.mxu0 0
  %3417 = vmatprep.subr.bf16.mxu0 0
  %3418 = vmatpush1.bf16.msra.mxu0 0
  %3419 = vmatprep.subr.bf16.mxu0 0
  %3420 = vmatpush1.bf16.msra.mxu0 0
  %3421 = vmatprep.subr.bf16.mxu0 0
  %3422 = vmatpush1.bf16.msra.mxu0 0
  %3423 = vmatprep.subr.bf16.mxu0 0
  %3424 = vmatpush1.bf16.msra.mxu0 0
  %3425 = vmatprep.subr.bf16.mxu0 0
  %3426 = vmatpush1.bf16.msra.mxu0 0
  %3427 = vmatprep.subr.bf16.mxu0 0
  %3428 = vmatpush1.bf16.msra.mxu0 0
  %3429 = vmatprep.subr.bf16.mxu0 0
  %3430 = vmatpush1.bf16.msra.mxu0 0
  %3431 = vmatprep.subr.bf16.mxu0 0
  %3432 = vmatpush1.bf16.msra.mxu0 0
  %3433 = vmatprep.subr.bf16.mxu0 0
  %3434 = vmatpush1.bf16.msra.mxu0 0
  %3435 = vmatprep.subr.bf16.mxu0 0
  %3436 = vmatpush1.bf16.msra.mxu0 0
  %3437 = vmatprep.mubr.bf16.mxu0 0
  %3438 = vmatmul.mubr.bf16.gmra.mrb[0].mxu0 %v1826
  %v3439 = vpop.f32.mrb[0].mxu0
  %v3440 = vadd.f32 0.0, %v3439
  %v3441 = vpop.f32.mrb[0].mxu0
  %v3442 = vadd.f32 0.0, %v3441
  %v3443 = vpop.f32.mrb[0].mxu0
  %v3444 = vadd.f32 0.0, %v3443
  %v3445 = vpop.f32.mrb[0].mxu0
  %v3446 = vadd.f32 0.0, %v3445
  %3447 = vdwg.mxu0
  %v3448 = vld [vmem:[%s2] sm:$0xff]
  %v3449 = vld [vmem:[%s2 + $0x8] sm:$0xff]
  %v3450 = vld [vmem:[%s2 + $0x10] sm:$0xff]
  %v3451 = vld [vmem:[%s2 + $0x18] sm:$0xff]
  %v3452 = vld [vmem:[%s2 + $0x20] sm:$0x1]
  %v3453 = vmul.f32 %v2064, %v2064
  %v3454 = vmul.f32 %v2068, %v2068
  %v3455 = vmul.f32 %v2066, %v2066
  %v3456 = vmul.f32 %v2070, %v2070
  %v3457 = vadd.f32 %v3453, %v3455
  %v3458 = vadd.f32 %v3454, %v3456
  %v3459 = vlaneseq
  %v3460 = vshrl.u32 %v3459, 7
  %v3461 = vsub.s32 0, %v3460
  %v3462 = vrot.slane %v3448, %v3461
  %v3463 = vmul.f32 %v3462, %v3457
  %v3464 = vmul.f32 %v3462, %v3458
  %v3465 = vadd.f32 %v3463, 0.0
  %v3466 = vadd.f32 %v3464, 0.0
  %v3467 = vmul.f32 %v2107, %v2107
  %v3468 = vmul.f32 %v2111, %v2111
  %v3469 = vmul.f32 %v2109, %v2109
  %v3470 = vmul.f32 %v2113, %v2113
  %v3471 = vadd.f32 %v3467, %v3469
  %v3472 = vadd.f32 %v3468, %v3470
  %v3473 = vlaneseq
  %v3474 = vshrl.u32 %v3473, 7
  %v3475 = vsub.s32 1, %v3474
  %v3476 = vrot.slane %v3448, %v3475
  %v3477 = vmul.f32 %v3476, %v3471
  %v3478 = vmul.f32 %v3476, %v3472
  %v3479 = vadd.f32 %v3465, %v3477
  %v3480 = vadd.f32 %v3466, %v3478
  %v3481 = vmul.f32 %v2150, %v2150
  %v3482 = vmul.f32 %v2154, %v2154
  %v3483 = vmul.f32 %v2152, %v2152
  %v3484 = vmul.f32 %v2156, %v2156
  %v3485 = vadd.f32 %v3481, %v3483
  %v3486 = vadd.f32 %v3482, %v3484
  %v3487 = vlaneseq
  %v3488 = vshrl.u32 %v3487, 7
  %v3489 = vsub.s32 2, %v3488
  %v3490 = vrot.slane %v3448, %v3489
  %v3491 = vmul.f32 %v3490, %v3485
  %v3492 = vmul.f32 %v3490, %v3486
  %v3493 = vadd.f32 %v3479, %v3491
  %v3494 = vadd.f32 %v3480, %v3492
  %v3495 = vmul.f32 %v2193, %v2193
  %v3496 = vmul.f32 %v2197, %v2197
  %v3497 = vmul.f32 %v2195, %v2195
  %v3498 = vmul.f32 %v2199, %v2199
  %v3499 = vadd.f32 %v3495, %v3497
  %v3500 = vadd.f32 %v3496, %v3498
  %v3501 = vlaneseq
  %v3502 = vshrl.u32 %v3501, 7
  %v3503 = vsub.s32 3, %v3502
  %v3504 = vrot.slane %v3448, %v3503
  %v3505 = vmul.f32 %v3504, %v3499
  %v3506 = vmul.f32 %v3504, %v3500
  %v3507 = vadd.f32 %v3493, %v3505
  %v3508 = vadd.f32 %v3494, %v3506
  %v3509 = vmul.f32 %v2236, %v2236
  %v3510 = vmul.f32 %v2240, %v2240
  %v3511 = vmul.f32 %v2238, %v2238
  %v3512 = vmul.f32 %v2242, %v2242
  %v3513 = vadd.f32 %v3509, %v3511
  %v3514 = vadd.f32 %v3510, %v3512
  %v3515 = vlaneseq
  %v3516 = vshrl.u32 %v3515, 7
  %v3517 = vsub.s32 4, %v3516
  %v3518 = vrot.slane %v3448, %v3517
  %v3519 = vmul.f32 %v3518, %v3513
  %v3520 = vmul.f32 %v3518, %v3514
  %v3521 = vadd.f32 %v3507, %v3519
  %v3522 = vadd.f32 %v3508, %v3520
  %v3523 = vmul.f32 %v2279, %v2279
  %v3524 = vmul.f32 %v2283, %v2283
  %v3525 = vmul.f32 %v2281, %v2281
  %v3526 = vmul.f32 %v2285, %v2285
  %v3527 = vadd.f32 %v3523, %v3525
  %v3528 = vadd.f32 %v3524, %v3526
  %v3529 = vlaneseq
  %v3530 = vshrl.u32 %v3529, 7
  %v3531 = vsub.s32 5, %v3530
  %v3532 = vrot.slane %v3448, %v3531
  %v3533 = vmul.f32 %v3532, %v3527
  %v3534 = vmul.f32 %v3532, %v3528
  %v3535 = vadd.f32 %v3521, %v3533
  %v3536 = vadd.f32 %v3522, %v3534
  %v3537 = vmul.f32 %v2322, %v2322
  %v3538 = vmul.f32 %v2326, %v2326
  %v3539 = vmul.f32 %v2324, %v2324
  %v3540 = vmul.f32 %v2328, %v2328
  %v3541 = vadd.f32 %v3537, %v3539
  %v3542 = vadd.f32 %v3538, %v3540
  %v3543 = vlaneseq
  %v3544 = vshrl.u32 %v3543, 7
  %v3545 = vsub.s32 6, %v3544
  %v3546 = vrot.slane %v3448, %v3545
  %v3547 = vmul.f32 %v3546, %v3541
  %v3548 = vmul.f32 %v3546, %v3542
  %v3549 = vadd.f32 %v3535, %v3547
  %v3550 = vadd.f32 %v3536, %v3548
  %v3551 = vmul.f32 %v2365, %v2365
  %v3552 = vmul.f32 %v2369, %v2369
  %v3553 = vmul.f32 %v2367, %v2367
  %v3554 = vmul.f32 %v2371, %v2371
  %v3555 = vadd.f32 %v3551, %v3553
  %v3556 = vadd.f32 %v3552, %v3554
  %v3557 = vlaneseq
  %v3558 = vshrl.u32 %v3557, 7
  %v3559 = vsub.s32 7, %v3558
  %v3560 = vrot.slane %v3448, %v3559
  %v3561 = vmul.f32 %v3560, %v3555
  %v3562 = vmul.f32 %v3560, %v3556
  %v3563 = vadd.f32 %v3549, %v3561
  %v3564 = vadd.f32 %v3550, %v3562
  %v3565 = vmul.f32 %v2408, %v2408
  %v3566 = vmul.f32 %v2412, %v2412
  %v3567 = vmul.f32 %v2410, %v2410
  %v3568 = vmul.f32 %v2414, %v2414
  %v3569 = vadd.f32 %v3565, %v3567
  %v3570 = vadd.f32 %v3566, %v3568
  %v3571 = vlaneseq
  %v3572 = vshrl.u32 %v3571, 7
  %v3573 = vsub.s32 0, %v3572
  %v3574 = vrot.slane %v3449, %v3573
  %v3575 = vmul.f32 %v3574, %v3569
  %v3576 = vmul.f32 %v3574, %v3570
  %v3577 = vadd.f32 %v3563, %v3575
  %v3578 = vadd.f32 %v3564, %v3576
  %v3579 = vmul.f32 %v2451, %v2451
  %v3580 = vmul.f32 %v2455, %v2455
  %v3581 = vmul.f32 %v2453, %v2453
  %v3582 = vmul.f32 %v2457, %v2457
  %v3583 = vadd.f32 %v3579, %v3581
  %v3584 = vadd.f32 %v3580, %v3582
  %v3585 = vlaneseq
  %v3586 = vshrl.u32 %v3585, 7
  %v3587 = vsub.s32 1, %v3586
  %v3588 = vrot.slane %v3449, %v3587
  %v3589 = vmul.f32 %v3588, %v3583
  %v3590 = vmul.f32 %v3588, %v3584
  %v3591 = vadd.f32 %v3577, %v3589
  %v3592 = vadd.f32 %v3578, %v3590
  %v3593 = vmul.f32 %v2494, %v2494
  %v3594 = vmul.f32 %v2498, %v2498
  %v3595 = vmul.f32 %v2496, %v2496
  %v3596 = vmul.f32 %v2500, %v2500
  %v3597 = vadd.f32 %v3593, %v3595
  %v3598 = vadd.f32 %v3594, %v3596
  %v3599 = vlaneseq
  %v3600 = vshrl.u32 %v3599, 7
  %v3601 = vsub.s32 2, %v3600
  %v3602 = vrot.slane %v3449, %v3601
  %v3603 = vmul.f32 %v3602, %v3597
  %v3604 = vmul.f32 %v3602, %v3598
  %v3605 = vadd.f32 %v3591, %v3603
  %v3606 = vadd.f32 %v3592, %v3604
  %v3607 = vmul.f32 %v2537, %v2537
  %v3608 = vmul.f32 %v2541, %v2541
  %v3609 = vmul.f32 %v2539, %v2539
  %v3610 = vmul.f32 %v2543, %v2543
  %v3611 = vadd.f32 %v3607, %v3609
  %v3612 = vadd.f32 %v3608, %v3610
  %v3613 = vlaneseq
  %v3614 = vshrl.u32 %v3613, 7
  %v3615 = vsub.s32 3, %v3614
  %v3616 = vrot.slane %v3449, %v3615
  %v3617 = vmul.f32 %v3616, %v3611
  %v3618 = vmul.f32 %v3616, %v3612
  %v3619 = vadd.f32 %v3605, %v3617
  %v3620 = vadd.f32 %v3606, %v3618
  %v3621 = vmul.f32 %v2580, %v2580
  %v3622 = vmul.f32 %v2584, %v2584
  %v3623 = vmul.f32 %v2582, %v2582
  %v3624 = vmul.f32 %v2586, %v2586
  %v3625 = vadd.f32 %v3621, %v3623
  %v3626 = vadd.f32 %v3622, %v3624
  %v3627 = vlaneseq
  %v3628 = vshrl.u32 %v3627, 7
  %v3629 = vsub.s32 4, %v3628
  %v3630 = vrot.slane %v3449, %v3629
  %v3631 = vmul.f32 %v3630, %v3625
  %v3632 = vmul.f32 %v3630, %v3626
  %v3633 = vadd.f32 %v3619, %v3631
  %v3634 = vadd.f32 %v3620, %v3632
  %v3635 = vmul.f32 %v2623, %v2623
  %v3636 = vmul.f32 %v2627, %v2627
  %v3637 = vmul.f32 %v2625, %v2625
  %v3638 = vmul.f32 %v2629, %v2629
  %v3639 = vadd.f32 %v3635, %v3637
  %v3640 = vadd.f32 %v3636, %v3638
  %v3641 = vlaneseq
  %v3642 = vshrl.u32 %v3641, 7
  %v3643 = vsub.s32 5, %v3642
  %v3644 = vrot.slane %v3449, %v3643
  %v3645 = vmul.f32 %v3644, %v3639
  %v3646 = vmul.f32 %v3644, %v3640
  %v3647 = vadd.f32 %v3633, %v3645
  %v3648 = vadd.f32 %v3634, %v3646
  %v3649 = vmul.f32 %v2666, %v2666
  %v3650 = vmul.f32 %v2670, %v2670
  %v3651 = vmul.f32 %v2668, %v2668
  %v3652 = vmul.f32 %v2672, %v2672
  %v3653 = vadd.f32 %v3649, %v3651
  %v3654 = vadd.f32 %v3650, %v3652
  %v3655 = vlaneseq
  %v3656 = vshrl.u32 %v3655, 7
  %v3657 = vsub.s32 6, %v3656
  %v3658 = vrot.slane %v3449, %v3657
  %v3659 = vmul.f32 %v3658, %v3653
  %v3660 = vmul.f32 %v3658, %v3654
  %v3661 = vadd.f32 %v3647, %v3659
  %v3662 = vadd.f32 %v3648, %v3660
  %v3663 = vmul.f32 %v2709, %v2709
  %v3664 = vmul.f32 %v2713, %v2713
  %v3665 = vmul.f32 %v2711, %v2711
  %v3666 = vmul.f32 %v2715, %v2715
  %v3667 = vadd.f32 %v3663, %v3665
  %v3668 = vadd.f32 %v3664, %v3666
  %v3669 = vlaneseq
  %v3670 = vshrl.u32 %v3669, 7
  %v3671 = vsub.s32 7, %v3670
  %v3672 = vrot.slane %v3449, %v3671
  %v3673 = vmul.f32 %v3672, %v3667
  %v3674 = vmul.f32 %v3672, %v3668
  %v3675 = vadd.f32 %v3661, %v3673
  %v3676 = vadd.f32 %v3662, %v3674
  %v3677 = vmul.f32 %v2752, %v2752
  %v3678 = vmul.f32 %v2756, %v2756
  %v3679 = vmul.f32 %v2754, %v2754
  %v3680 = vmul.f32 %v2758, %v2758
  %v3681 = vadd.f32 %v3677, %v3679
  %v3682 = vadd.f32 %v3678, %v3680
  %v3683 = vlaneseq
  %v3684 = vshrl.u32 %v3683, 7
  %v3685 = vsub.s32 0, %v3684
  %v3686 = vrot.slane %v3450, %v3685
  %v3687 = vmul.f32 %v3686, %v3681
  %v3688 = vmul.f32 %v3686, %v3682
  %v3689 = vadd.f32 %v3675, %v3687
  %v3690 = vadd.f32 %v3676, %v3688
  %v3691 = vmul.f32 %v2795, %v2795
  %v3692 = vmul.f32 %v2799, %v2799
  %v3693 = vmul.f32 %v2797, %v2797
  %v3694 = vmul.f32 %v2801, %v2801
  %v3695 = vadd.f32 %v3691, %v3693
  %v3696 = vadd.f32 %v3692, %v3694
  %v3697 = vlaneseq
  %v3698 = vshrl.u32 %v3697, 7
  %v3699 = vsub.s32 1, %v3698
  %v3700 = vrot.slane %v3450, %v3699
  %v3701 = vmul.f32 %v3700, %v3695
  %v3702 = vmul.f32 %v3700, %v3696
  %v3703 = vadd.f32 %v3689, %v3701
  %v3704 = vadd.f32 %v3690, %v3702
  %v3705 = vmul.f32 %v2838, %v2838
  %v3706 = vmul.f32 %v2842, %v2842
  %v3707 = vmul.f32 %v2840, %v2840
  %v3708 = vmul.f32 %v2844, %v2844
  %v3709 = vadd.f32 %v3705, %v3707
  %v3710 = vadd.f32 %v3706, %v3708
  %v3711 = vlaneseq
  %v3712 = vshrl.u32 %v3711, 7
  %v3713 = vsub.s32 2, %v3712
  %v3714 = vrot.slane %v3450, %v3713
  %v3715 = vmul.f32 %v3714, %v3709
  %v3716 = vmul.f32 %v3714, %v3710
  %v3717 = vadd.f32 %v3703, %v3715
  %v3718 = vadd.f32 %v3704, %v3716
  %v3719 = vmul.f32 %v2881, %v2881
  %v3720 = vmul.f32 %v2885, %v2885
  %v3721 = vmul.f32 %v2883, %v2883
  %v3722 = vmul.f32 %v2887, %v2887
  %v3723 = vadd.f32 %v3719, %v3721
  %v3724 = vadd.f32 %v3720, %v3722
  %v3725 = vlaneseq
  %v3726 = vshrl.u32 %v3725, 7
  %v3727 = vsub.s32 3, %v3726
  %v3728 = vrot.slane %v3450, %v3727
  %v3729 = vmul.f32 %v3728, %v3723
  %v3730 = vmul.f32 %v3728, %v3724
  %v3731 = vadd.f32 %v3717, %v3729
  %v3732 = vadd.f32 %v3718, %v3730
  %v3733 = vmul.f32 %v2924, %v2924
  %v3734 = vmul.f32 %v2928, %v2928
  %v3735 = vmul.f32 %v2926, %v2926
  %v3736 = vmul.f32 %v2930, %v2930
  %v3737 = vadd.f32 %v3733, %v3735
  %v3738 = vadd.f32 %v3734, %v3736
  %v3739 = vlaneseq
  %v3740 = vshrl.u32 %v3739, 7
  %v3741 = vsub.s32 4, %v3740
  %v3742 = vrot.slane %v3450, %v3741
  %v3743 = vmul.f32 %v3742, %v3737
  %v3744 = vmul.f32 %v3742, %v3738
  %v3745 = vadd.f32 %v3731, %v3743
  %v3746 = vadd.f32 %v3732, %v3744
  %v3747 = vmul.f32 %v2967, %v2967
  %v3748 = vmul.f32 %v2971, %v2971
  %v3749 = vmul.f32 %v2969, %v2969
  %v3750 = vmul.f32 %v2973, %v2973
  %v3751 = vadd.f32 %v3747, %v3749
  %v3752 = vadd.f32 %v3748, %v3750
  %v3753 = vlaneseq
  %v3754 = vshrl.u32 %v3753, 7
  %v3755 = vsub.s32 5, %v3754
  %v3756 = vrot.slane %v3450, %v3755
  %v3757 = vmul.f32 %v3756, %v3751
  %v3758 = vmul.f32 %v3756, %v3752
  %v3759 = vadd.f32 %v3745, %v3757
  %v3760 = vadd.f32 %v3746, %v3758
  %v3761 = vmul.f32 %v3010, %v3010
  %v3762 = vmul.f32 %v3014, %v3014
  %v3763 = vmul.f32 %v3012, %v3012
  %v3764 = vmul.f32 %v3016, %v3016
  %v3765 = vadd.f32 %v3761, %v3763
  %v3766 = vadd.f32 %v3762, %v3764
  %v3767 = vlaneseq
  %v3768 = vshrl.u32 %v3767, 7
  %v3769 = vsub.s32 6, %v3768
  %v3770 = vrot.slane %v3450, %v3769
  %v3771 = vmul.f32 %v3770, %v3765
  %v3772 = vmul.f32 %v3770, %v3766
  %v3773 = vadd.f32 %v3759, %v3771
  %v3774 = vadd.f32 %v3760, %v3772
  %v3775 = vmul.f32 %v3053, %v3053
  %v3776 = vmul.f32 %v3057, %v3057
  %v3777 = vmul.f32 %v3055, %v3055
  %v3778 = vmul.f32 %v3059, %v3059
  %v3779 = vadd.f32 %v3775, %v3777
  %v3780 = vadd.f32 %v3776, %v3778
  %v3781 = vlaneseq
  %v3782 = vshrl.u32 %v3781, 7
  %v3783 = vsub.s32 7, %v3782
  %v3784 = vrot.slane %v3450, %v3783
  %v3785 = vmul.f32 %v3784, %v3779
  %v3786 = vmul.f32 %v3784, %v3780
  %v3787 = vadd.f32 %v3773, %v3785
  %v3788 = vadd.f32 %v3774, %v3786
  %v3789 = vmul.f32 %v3096, %v3096
  %v3790 = vmul.f32 %v3100, %v3100
  %v3791 = vmul.f32 %v3098, %v3098
  %v3792 = vmul.f32 %v3102, %v3102
  %v3793 = vadd.f32 %v3789, %v3791
  %v3794 = vadd.f32 %v3790, %v3792
  %v3795 = vlaneseq
  %v3796 = vshrl.u32 %v3795, 7
  %v3797 = vsub.s32 0, %v3796
  %v3798 = vrot.slane %v3451, %v3797
  %v3799 = vmul.f32 %v3798, %v3793
  %v3800 = vmul.f32 %v3798, %v3794
  %v3801 = vadd.f32 %v3787, %v3799
  %v3802 = vadd.f32 %v3788, %v3800
  %v3803 = vmul.f32 %v3139, %v3139
  %v3804 = vmul.f32 %v3143, %v3143
  %v3805 = vmul.f32 %v3141, %v3141
  %v3806 = vmul.f32 %v3145, %v3145
  %v3807 = vadd.f32 %v3803, %v3805
  %v3808 = vadd.f32 %v3804, %v3806
  %v3809 = vlaneseq
  %v3810 = vshrl.u32 %v3809, 7
  %v3811 = vsub.s32 1, %v3810
  %v3812 = vrot.slane %v3451, %v3811
  %v3813 = vmul.f32 %v3812, %v3807
  %v3814 = vmul.f32 %v3812, %v3808
  %v3815 = vadd.f32 %v3801, %v3813
  %v3816 = vadd.f32 %v3802, %v3814
  %v3817 = vmul.f32 %v3182, %v3182
  %v3818 = vmul.f32 %v3186, %v3186
  %v3819 = vmul.f32 %v3184, %v3184
  %v3820 = vmul.f32 %v3188, %v3188
  %v3821 = vadd.f32 %v3817, %v3819
  %v3822 = vadd.f32 %v3818, %v3820
  %v3823 = vlaneseq
  %v3824 = vshrl.u32 %v3823, 7
  %v3825 = vsub.s32 2, %v3824
  %v3826 = vrot.slane %v3451, %v3825
  %v3827 = vmul.f32 %v3826, %v3821
  %v3828 = vmul.f32 %v3826, %v3822
  %v3829 = vadd.f32 %v3815, %v3827
  %v3830 = vadd.f32 %v3816, %v3828
  %v3831 = vmul.f32 %v3225, %v3225
  %v3832 = vmul.f32 %v3229, %v3229
  %v3833 = vmul.f32 %v3227, %v3227
  %v3834 = vmul.f32 %v3231, %v3231
  %v3835 = vadd.f32 %v3831, %v3833
  %v3836 = vadd.f32 %v3832, %v3834
  %v3837 = vlaneseq
  %v3838 = vshrl.u32 %v3837, 7
  %v3839 = vsub.s32 3, %v3838
  %v3840 = vrot.slane %v3451, %v3839
  %v3841 = vmul.f32 %v3840, %v3835
  %v3842 = vmul.f32 %v3840, %v3836
  %v3843 = vadd.f32 %v3829, %v3841
  %v3844 = vadd.f32 %v3830, %v3842
  %v3845 = vmul.f32 %v3268, %v3268
  %v3846 = vmul.f32 %v3272, %v3272
  %v3847 = vmul.f32 %v3270, %v3270
  %v3848 = vmul.f32 %v3274, %v3274
  %v3849 = vadd.f32 %v3845, %v3847
  %v3850 = vadd.f32 %v3846, %v3848
  %v3851 = vlaneseq
  %v3852 = vshrl.u32 %v3851, 7
  %v3853 = vsub.s32 4, %v3852
  %v3854 = vrot.slane %v3451, %v3853
  %v3855 = vmul.f32 %v3854, %v3849
  %v3856 = vmul.f32 %v3854, %v3850
  %v3857 = vadd.f32 %v3843, %v3855
  %v3858 = vadd.f32 %v3844, %v3856
  %v3859 = vmul.f32 %v3311, %v3311
  %v3860 = vmul.f32 %v3315, %v3315
  %v3861 = vmul.f32 %v3313, %v3313
  %v3862 = vmul.f32 %v3317, %v3317
  %v3863 = vadd.f32 %v3859, %v3861
  %v3864 = vadd.f32 %v3860, %v3862
  %v3865 = vlaneseq
  %v3866 = vshrl.u32 %v3865, 7
  %v3867 = vsub.s32 5, %v3866
  %v3868 = vrot.slane %v3451, %v3867
  %v3869 = vmul.f32 %v3868, %v3863
  %v3870 = vmul.f32 %v3868, %v3864
  %v3871 = vadd.f32 %v3857, %v3869
  %v3872 = vadd.f32 %v3858, %v3870
  %v3873 = vmul.f32 %v3354, %v3354
  %v3874 = vmul.f32 %v3358, %v3358
  %v3875 = vmul.f32 %v3356, %v3356
  %v3876 = vmul.f32 %v3360, %v3360
  %v3877 = vadd.f32 %v3873, %v3875
  %v3878 = vadd.f32 %v3874, %v3876
  %v3879 = vlaneseq
  %v3880 = vshrl.u32 %v3879, 7
  %v3881 = vsub.s32 6, %v3880
  %v3882 = vrot.slane %v3451, %v3881
  %v3883 = vmul.f32 %v3882, %v3877
  %v3884 = vmul.f32 %v3882, %v3878
  %v3885 = vadd.f32 %v3871, %v3883
  %v3886 = vadd.f32 %v3872, %v3884
  %v3887 = vmul.f32 %v3397, %v3397
  %v3888 = vmul.f32 %v3401, %v3401
  %v3889 = vmul.f32 %v3399, %v3399
  %v3890 = vmul.f32 %v3403, %v3403
  %v3891 = vadd.f32 %v3887, %v3889
  %v3892 = vadd.f32 %v3888, %v3890
  %v3893 = vlaneseq
  %v3894 = vshrl.u32 %v3893, 7
  %v3895 = vsub.s32 7, %v3894
  %v3896 = vrot.slane %v3451, %v3895
  %v3897 = vmul.f32 %v3896, %v3891
  %v3898 = vmul.f32 %v3896, %v3892
  %v3899 = vadd.f32 %v3885, %v3897
  %v3900 = vadd.f32 %v3886, %v3898
  %v3901 = vmul.f32 %v3440, %v3440
  %v3902 = vmul.f32 %v3444, %v3444
  %v3903 = vmul.f32 %v3442, %v3442
  %v3904 = vmul.f32 %v3446, %v3446
  %v3905 = vadd.f32 %v3901, %v3903
  %v3906 = vadd.f32 %v3902, %v3904
  %v3907 = vlaneseq
  %v3908 = vshrl.u32 %v3907, 7
  %v3909 = vsub.s32 0, %v3908
  %v3910 = vrot.slane %v3452, %v3909
  %v3911 = vmul.f32 %v3910, %v3905
  %v3912 = vmul.f32 %v3910, %v3906
  %v3913 = vadd.f32 %v3899, %v3911
  %v3914 = vadd.f32 %v3900, %v3912
  %v3915 = vmax.f32 %v3913, 1e-05
  %v3916 = vmax.f32 %v3914, 1e-05
  %v3917 = vld [vmem:[%s3] sm:$0x1]
  %v3918 = vld [vmem:[%s4] sm:$0x1]
  %v3919 = vld [vmem:[%s6] sm:$0x1]
  %v3920 = vld [vmem:[%s5] sm:$0x1]
  %v3921 = vrcp.pop %v3920
  %v3922 = vmul.f32 1.0, %v3921
  %v3923 = vsub.f32 1.0, %v3919
  %v3924 = vmul.f32 %v3923, %v3915
  %v3927 = vunpack.c.l.s4 1966171168
  %v3928 = vunpack.c.0.s8 %v3927
  %v3929 = vlaneseq
  %v3930 = vshrl.u32 %v3929, 7
  %v3931 = vsub.s32 %v3928, %v3930
  %v3932 = vrot.slane %v3915, %v3931
  %v3933 = vcombine.high %v3932, %v3932
  %v3935 = vunpack.c.l.s4 1966171168
  %v3936 = vunpack.c.0.s8 %v3935
  %v3937 = vlaneseq
  %v3938 = vshrl.u32 %v3937, 7
  %v3939 = vsub.s32 %v3936, %v3938
  %v3940 = vrot.slane %v3932, %v3939
  %v3942 = vunpack.c.l.s4 1966171168
  %v3943 = vunpack.c.0.s8 %v3942
  %v3944 = vlaneseq
  %v3945 = vshrl.u32 %v3944, 7
  %v3946 = vsub.s32 %v3943, %v3945
  %v3947 = vrot.slane %v3933, %v3946
  %v3949 = vmul.f32 %v3919, %v3947
  %v3950 = vadd.f32 %v3924, %v3949
  %v3951 = vmul.f32 %v3923, %v3950
  %v3952 = vcombine.high %v3940, %v3940
  %v3954 = vmul.f32 %v3919, %v3952
  %v3955 = vadd.f32 %v3951, %v3954
  %v3956 = vmul.f32 %v3923, %v3955
  %v3957 = vcombine.high %v3947, %v3947
  %v3959 = vmul.f32 %v3919, %v3957
  %v3960 = vadd.f32 %v3956, %v3959
  %v3961 = vmul.f32 %v3923, %v3960
  %v3962 = vcombine.high %v3915, %v3915
  %v3964 = vunpack.c.l.s4 1966171168
  %v3965 = vunpack.c.0.s8 %v3964
  %v3966 = vlaneseq
  %v3967 = vshrl.u32 %v3966, 7
  %v3968 = vsub.s32 %v3965, %v3967
  %v3969 = vrot.slane %v3962, %v3968
  %v3971 = vunpack.c.l.s4 1966171168
  %v3972 = vunpack.c.0.s8 %v3971
  %v3973 = vlaneseq
  %v3974 = vshrl.u32 %v3973, 7
  %v3975 = vsub.s32 %v3972, %v3974
  %v3976 = vrot.slane %v3969, %v3975
  %v3978 = vmul.f32 %v3919, %v3976
  %v3979 = vadd.f32 %v3961, %v3978
  %v3980 = vmul.f32 %v3923, %v3979
  %v3981 = vcombine.high %v3969, %v3969
  %v3983 = vunpack.c.l.s4 1966171168
  %v3984 = vunpack.c.0.s8 %v3983
  %v3985 = vlaneseq
  %v3986 = vshrl.u32 %v3985, 7
  %v3987 = vsub.s32 %v3984, %v3986
  %v3988 = vrot.slane %v3981, %v3987
  %v3990 = vmul.f32 %v3919, %v3988
  %v3991 = vadd.f32 %v3980, %v3990
  %v3992 = vmul.f32 %v3923, %v3991
  %v3993 = vcombine.high %v3976, %v3976
  %v3995 = vmul.f32 %v3919, %v3993
  %v3996 = vadd.f32 %v3992, %v3995
  %v3997 = vmul.f32 %v3923, %v3996
  %v3998 = vcombine.high %v3988, %v3988
  %v4000 = vmul.f32 %v3919, %v3998
  %v4001 = vadd.f32 %v3997, %v4000
  %v4002 = vmul.f32 %v3923, %v3916
  %v4005 = vunpack.c.l.s4 1966171168
  %v4006 = vunpack.c.0.s8 %v4005
  %v4007 = vlaneseq
  %v4008 = vshrl.u32 %v4007, 7
  %v4009 = vsub.s32 %v4006, %v4008
  %v4010 = vrot.slane %v3916, %v4009
  %v4011 = vcombine.high %v4010, %v4010
  %v4013 = vunpack.c.l.s4 1966171168
  %v4014 = vunpack.c.0.s8 %v4013
  %v4015 = vlaneseq
  %v4016 = vshrl.u32 %v4015, 7
  %v4017 = vsub.s32 %v4014, %v4016
  %v4018 = vrot.slane %v4010, %v4017
  %v4020 = vunpack.c.l.s4 1966171168
  %v4021 = vunpack.c.0.s8 %v4020
  %v4022 = vlaneseq
  %v4023 = vshrl.u32 %v4022, 7
  %v4024 = vsub.s32 %v4021, %v4023
  %v4025 = vrot.slane %v4011, %v4024
  %v4027 = vmul.f32 %v3919, %v4025
  %v4028 = vadd.f32 %v4002, %v4027
  %v4029 = vmul.f32 %v3923, %v4028
  %v4030 = vcombine.high %v4018, %v4018
  %v4032 = vmul.f32 %v3919, %v4030
  %v4033 = vadd.f32 %v4029, %v4032
  %v4034 = vmul.f32 %v3923, %v4033
  %v4035 = vcombine.high %v4025, %v4025
  %v4037 = vmul.f32 %v3919, %v4035
  %v4038 = vadd.f32 %v4034, %v4037
  %v4039 = vmul.f32 %v3923, %v4038
  %v4040 = vcombine.high %v3916, %v3916
  %v4042 = vunpack.c.l.s4 1966171168
  %v4043 = vunpack.c.0.s8 %v4042
  %v4044 = vlaneseq
  %v4045 = vshrl.u32 %v4044, 7
  %v4046 = vsub.s32 %v4043, %v4045
  %v4047 = vrot.slane %v4040, %v4046
  %v4049 = vunpack.c.l.s4 1966171168
  %v4050 = vunpack.c.0.s8 %v4049
  %v4051 = vlaneseq
  %v4052 = vshrl.u32 %v4051, 7
  %v4053 = vsub.s32 %v4050, %v4052
  %v4054 = vrot.slane %v4047, %v4053
  %v4056 = vmul.f32 %v3919, %v4054
  %v4057 = vadd.f32 %v4039, %v4056
  %v4058 = vmul.f32 %v3923, %v4057
  %v4059 = vcombine.high %v4047, %v4047
  %v4061 = vunpack.c.l.s4 1966171168
  %v4062 = vunpack.c.0.s8 %v4061
  %v4063 = vlaneseq
  %v4064 = vshrl.u32 %v4063, 7
  %v4065 = vsub.s32 %v4062, %v4064
  %v4066 = vrot.slane %v4059, %v4065
  %v4068 = vmul.f32 %v3919, %v4066
  %v4069 = vadd.f32 %v4058, %v4068
  %v4070 = vmul.f32 %v3923, %v4069
  %v4071 = vcombine.high %v4054, %v4054
  %v4073 = vmul.f32 %v3919, %v4071
  %v4074 = vadd.f32 %v4070, %v4073
  %v4075 = vmul.f32 %v3923, %v4074
  %v4076 = vcombine.high %v4066, %v4066
  %v4078 = vmul.f32 %v3919, %v4076
  %v4079 = vadd.f32 %v4075, %v4078
  %v4081 = vlaneseq
  %v4082 = vshrl.u32 %v4081, 7
  %v4083 = vsub.s32 0, %v4082
  %v4084 = vrot.slane %v3950, %v4083
  %v4087 = vlaneseq
  %v4088 = vshrl.u32 %v4087, 7
  %v4089 = vsub.s32 0, %v4088
  %v4090 = vrot.slane %v3955, %v4089
  %v4093 = vlaneseq
  %v4094 = vshrl.u32 %v4093, 7
  %v4095 = vsub.s32 0, %v4094
  %v4096 = vrot.slane %v3960, %v4095
  %v4099 = vlaneseq
  %v4100 = vshrl.u32 %v4099, 7
  %v4101 = vsub.s32 0, %v4100
  %v4102 = vrot.slane %v3979, %v4101
  %v4105 = vlaneseq
  %v4106 = vshrl.u32 %v4105, 7
  %v4107 = vsub.s32 0, %v4106
  %v4108 = vrot.slane %v3991, %v4107
  %v4111 = vlaneseq
  %v4112 = vshrl.u32 %v4111, 7
  %v4113 = vsub.s32 0, %v4112
  %v4114 = vrot.slane %v3996, %v4113
  %v4117 = vlaneseq
  %v4118 = vshrl.u32 %v4117, 7
  %v4119 = vsub.s32 0, %v4118
  %v4120 = vrot.slane %v4001, %v4119
  %v4123 = vlaneseq
  %v4124 = vshrl.u32 %v4123, 7
  %v4125 = vsub.s32 0, %v4124
  %v4126 = vrot.slane %v4028, %v4125
  %v4129 = vlaneseq
  %v4130 = vshrl.u32 %v4129, 7
  %v4131 = vsub.s32 0, %v4130
  %v4132 = vrot.slane %v4033, %v4131
  %v4135 = vlaneseq
  %v4136 = vshrl.u32 %v4135, 7
  %v4137 = vsub.s32 0, %v4136
  %v4138 = vrot.slane %v4038, %v4137
  %v4141 = vlaneseq
  %v4142 = vshrl.u32 %v4141, 7
  %v4143 = vsub.s32 0, %v4142
  %v4144 = vrot.slane %v4057, %v4143
  %v4147 = vlaneseq
  %v4148 = vshrl.u32 %v4147, 7
  %v4149 = vsub.s32 0, %v4148
  %v4150 = vrot.slane %v4069, %v4149
  %v4153 = vlaneseq
  %v4154 = vshrl.u32 %v4153, 7
  %v4155 = vsub.s32 0, %v4154
  %v4156 = vrot.slane %v4074, %v4155
  %v4159 = vlaneseq
  %v4160 = vshrl.u32 %v4159, 7
  %v4161 = vsub.s32 0, %v4160
  %v4162 = vrot.slane %v4079, %v4161
  %v4164 = vsel %vm1828, %v3915, %v4084
  %vm4165 = vcmask 1041408
  %v4166 = vsel %vm4165, %v4164, %v4090
  %vm4167 = vcmask 1042432
  %v4168 = vsel %vm4167, %v4166, %v4096
  %vm4169 = vcmask 1043456
  %v4170 = vsel %vm4169, %v4168, %v4102
  %vm4171 = vcmask 1044480
  %v4172 = vsel %vm4171, %v4170, %v4108
  %vm4173 = vcmask 1045504
  %v4174 = vsel %vm4173, %v4172, %v4114
  %vm4175 = vcmask 1046528
  %v4176 = vsel %vm4175, %v4174, %v4120
  %v4177 = vsel %vm1828, %v3916, %v4126
  %v4178 = vsel %vm4165, %v4177, %v4132
  %v4179 = vsel %vm4167, %v4178, %v4138
  %v4180 = vsel %vm4169, %v4179, %v4144
  %v4181 = vsel %vm4171, %v4180, %v4150
  %v4182 = vsel %vm4173, %v4181, %v4156
  %v4183 = vsel %vm4175, %v4182, %v4162
  %v4184 = vlog2.pop %v3918
  %v4185 = vmul.f32 %v4184, 0.6931472
  %v4186 = vmul.f32 %v3922, %v4185
  %v4187 = vmul.f32 %v4186, 1.442695
  %v4188 = vpow.pop %v4187
  %v4189 = vadd.f32 %v4176, 1e-06
  %v4190 = vadd.f32 %v4183, 1e-06
  %v4191 = vlog2.pop %v4189
  %v4192 = vmul.f32 %v4191, 0.6931472
  %v4193 = vlog2.pop %v4190
  %v4194 = vmul.f32 %v4193, 0.6931472
  %v4196 = vlaneseq
  %v4197 = vshrl.u32 %v4196, 7
  %v4198 = vsub.s32 0, %v4197
  %v4199 = vrot.slane %v3917, %v4198
  %v4201 = vmul.f32 %v4199, %v4192
  %v4202 = vmul.f32 %v4199, %v4194
  %v4203 = vmul.f32 %v4201, 1.442695
  %v4204 = vpow.pop %v4203
  %v4205 = vmul.f32 %v4202, 1.442695
  %v4206 = vpow.pop %v4205
  %v4207 = vrcp.pop %v4204
  %v4208 = vmul.f32 %v3915, %v4207
  %v4209 = vrcp.pop %v4206
  %v4210 = vmul.f32 %v3916, %v4209
  %v4212 = vlaneseq
  %v4213 = vshrl.u32 %v4212, 7
  %v4214 = vsub.s32 0, %v4213
  %v4215 = vrot.slane %v3918, %v4214
  %v4217 = vadd.f32 %v4208, %v4215
  %v4218 = vadd.f32 %v4210, %v4215
  %v4219 = vlog2.pop %v4217
  %v4220 = vmul.f32 %v4219, 0.6931472
  %v4221 = vlog2.pop %v4218
  %v4222 = vmul.f32 %v4221, 0.6931472
  %v4224 = vlaneseq
  %v4225 = vshrl.u32 %v4224, 7
  %v4226 = vsub.s32 0, %v4225
  %v4227 = vrot.slane %v3922, %v4226
  %v4229 = vmul.f32 %v4227, %v4220
  %v4230 = vmul.f32 %v4227, %v4222
  %v4231 = vmul.f32 %v4229, 1.442695
  %v4232 = vpow.pop %v4231
  %v4233 = vmul.f32 %v4230, 1.442695
  %v4234 = vpow.pop %v4233
  %v4236 = vlaneseq
  %v4237 = vshrl.u32 %v4236, 7
  %v4238 = vsub.s32 0, %v4237
  %v4239 = vrot.slane %v4188, %v4238
  %v4241 = vsub.f32 %v4232, %v4239
  %v4242 = vsub.f32 %v4234, %v4239
  %v4244 = vrot.slane %v4241, 1
  %v4247 = vrot.slane %v4242, 1
  %v4248 = vrot.slane %v4247, 1
  %v4251 = vsel %vm4175, %v4241, %v4247
  %v4252 = vsel %vm4175, %v4244, %v4248
  %v4253 = vpack.c.bf16 %v4247, %v4251
  %v4254 = vpack.c.bf16 %v4248, %v4252
  %v4255 = vld [vmem:[%s7] sm:$0xff]
  %v4256 = vld [vmem:[%s7 + $0x8] sm:$0xff]
  %v4257 = vld [vmem:[%s7 + $0x10] sm:$0xff]
  %v4258 = vld [vmem:[%s7 + $0x18] sm:$0xff]
  %v4259 = vld [vmem:[%s7 + $0x20] sm:$0xff]
  %v4260 = vld [vmem:[%s7 + $0x28] sm:$0xff]
  %v4261 = vld [vmem:[%s7 + $0x30] sm:$0xff]
  %v4262 = vld [vmem:[%s7 + $0x38] sm:$0xff]
  %v4263 = vld [vmem:[%s7 + $0x40] sm:$0xff]
  %v4264 = vld [vmem:[%s7 + $0x48] sm:$0xff]
  %v4265 = vld [vmem:[%s7 + $0x50] sm:$0xff]
  %v4266 = vld [vmem:[%s7 + $0x58] sm:$0xff]
  %v4267 = vld [vmem:[%s7 + $0x60] sm:$0xff]
  %v4268 = vld [vmem:[%s7 + $0x68] sm:$0xff]
  %v4269 = vld [vmem:[%s7 + $0x70] sm:$0xff]
  %v4270 = vld [vmem:[%s7 + $0x78] sm:$0xff]
  %v4271 = vld [vmem:[%s7 + $0x80] sm:$0xff]
  %v4272 = vld [vmem:[%s7 + $0x88] sm:$0xff]
  %v4273 = vld [vmem:[%s7 + $0x90] sm:$0xff]
  %v4274 = vld [vmem:[%s7 + $0x98] sm:$0xff]
  %v4275 = vld [vmem:[%s7 + $0xa0] sm:$0xff]
  %v4276 = vld [vmem:[%s7 + $0xa8] sm:$0xff]
  %v4277 = vld [vmem:[%s7 + $0xb0] sm:$0xff]
  %v4278 = vld [vmem:[%s7 + $0xb8] sm:$0xff]
  %v4279 = vld [vmem:[%s7 + $0xc0] sm:$0xff]
  %v4280 = vld [vmem:[%s7 + $0xc8] sm:$0xff]
  %v4281 = vld [vmem:[%s7 + $0xd0] sm:$0xff]
  %v4282 = vld [vmem:[%s7 + $0xd8] sm:$0xff]
  %v4283 = vld [vmem:[%s7 + $0xe0] sm:$0xff]
  %v4284 = vld [vmem:[%s7 + $0xe8] sm:$0xff]
  %v4285 = vld [vmem:[%s7 + $0xf0] sm:$0xff]
  %v4286 = vld [vmem:[%s7 + $0xf8] sm:$0xff]
  %v4287 = vld [vmem:[%s8] sm:$0x3]
  %v4289 = vlaneseq
  %v4290 = vshrl.u32 %v4289, 7
  %v4291 = vsub.s32 0, %v4290
  %v4292 = vrot.slane %v4287, %v4291
  %v4293 = vlaneseq
  %v4294 = vshrl.u32 %v4293, 7
  %v4295 = vsub.s32 1, %v4294
  %v4296 = vrot.slane %v4287, %v4295
  %v4331 = vunpack.c.l.b16 %v4255
  %v4332 = vunpack.c.h.b16 %v4255
  %v4333 = vunpack.c.l.b16 %v4256
  %v4334 = vunpack.c.h.b16 %v4256
  %v4335 = vunpack.c.l.b16 %v4257
  %v4336 = vunpack.c.h.b16 %v4257
  %v4337 = vunpack.c.l.b16 %v4258
  %v4338 = vunpack.c.h.b16 %v4258
  %v4339 = vunpack.c.l.b16 %v4259
  %v4340 = vunpack.c.h.b16 %v4259
  %v4341 = vunpack.c.l.b16 %v4260
  %v4342 = vunpack.c.h.b16 %v4260
  %v4343 = vunpack.c.l.b16 %v4261
  %v4344 = vunpack.c.h.b16 %v4261
  %v4345 = vunpack.c.l.b16 %v4262
  %v4346 = vunpack.c.h.b16 %v4262
  %v4347 = vunpack.c.l.b16 %v4263
  %v4348 = vunpack.c.h.b16 %v4263
  %v4349 = vunpack.c.l.b16 %v4264
  %v4350 = vunpack.c.h.b16 %v4264
  %v4351 = vunpack.c.l.b16 %v4265
  %v4352 = vunpack.c.h.b16 %v4265
  %v4353 = vunpack.c.l.b16 %v4266
  %v4354 = vunpack.c.h.b16 %v4266
  %v4355 = vunpack.c.l.b16 %v4267
  %v4356 = vunpack.c.h.b16 %v4267
  %v4357 = vunpack.c.l.b16 %v4268
  %v4358 = vunpack.c.h.b16 %v4268
  %v4359 = vunpack.c.l.b16 %v4269
  %v4360 = vunpack.c.h.b16 %v4269
  %v4361 = vunpack.c.l.b16 %v4270
  %v4362 = vunpack.c.h.b16 %v4270
  %v4363 = vunpack.c.l.b16 %v4271
  %v4364 = vunpack.c.h.b16 %v4271
  %v4365 = vunpack.c.l.b16 %v4272
  %v4366 = vunpack.c.h.b16 %v4272
  %v4367 = vunpack.c.l.b16 %v4273
  %v4368 = vunpack.c.h.b16 %v4273
  %v4369 = vunpack.c.l.b16 %v4274
  %v4370 = vunpack.c.h.b16 %v4274
  %v4371 = vunpack.c.l.b16 %v4275
  %v4372 = vunpack.c.h.b16 %v4275
  %v4373 = vunpack.c.l.b16 %v4276
  %v4374 = vunpack.c.h.b16 %v4276
  %v4375 = vunpack.c.l.b16 %v4277
  %v4376 = vunpack.c.h.b16 %v4277
  %v4377 = vunpack.c.l.b16 %v4278
  %v4378 = vunpack.c.h.b16 %v4278
  %v4379 = vunpack.c.l.b16 %v4279
  %v4380 = vunpack.c.h.b16 %v4279
  %v4381 = vunpack.c.l.b16 %v4280
  %v4382 = vunpack.c.h.b16 %v4280
  %v4383 = vunpack.c.l.b16 %v4281
  %v4384 = vunpack.c.h.b16 %v4281
  %v4385 = vunpack.c.l.b16 %v4282
  %v4386 = vunpack.c.h.b16 %v4282
  %v4387 = vunpack.c.l.b16 %v4283
  %v4388 = vunpack.c.h.b16 %v4283
  %v4389 = vunpack.c.l.b16 %v4284
  %v4390 = vunpack.c.h.b16 %v4284
  %v4391 = vunpack.c.l.b16 %v4285
  %v4392 = vunpack.c.h.b16 %v4285
  %v4393 = vunpack.c.l.b16 %v4286
  %v4394 = vunpack.c.h.b16 %v4286
  %v4395 = vpack.c.b16 %v4333, %v4331
  %v4396 = vpack.c.b16 %v4334, %v4332
  %v4397 = vpack.c.b16 %v4337, %v4335
  %v4398 = vpack.c.b16 %v4338, %v4336
  %v4399 = vpack.c.b16 %v4341, %v4339
  %v4400 = vpack.c.b16 %v4342, %v4340
  %v4401 = vpack.c.b16 %v4345, %v4343
  %v4402 = vpack.c.b16 %v4346, %v4344
  %v4403 = vpack.c.b16 %v4349, %v4347
  %v4404 = vpack.c.b16 %v4350, %v4348
  %v4405 = vpack.c.b16 %v4353, %v4351
  %v4406 = vpack.c.b16 %v4354, %v4352
  %v4407 = vpack.c.b16 %v4357, %v4355
  %v4408 = vpack.c.b16 %v4358, %v4356
  %v4409 = vpack.c.b16 %v4361, %v4359
  %v4410 = vpack.c.b16 %v4362, %v4360
  %v4411 = vpack.c.b16 %v4365, %v4363
  %v4412 = vpack.c.b16 %v4366, %v4364
  %v4413 = vpack.c.b16 %v4369, %v4367
  %v4414 = vpack.c.b16 %v4370, %v4368
  %v4415 = vpack.c.b16 %v4373, %v4371
  %v4416 = vpack.c.b16 %v4374, %v4372
  %v4417 = vpack.c.b16 %v4377, %v4375
  %v4418 = vpack.c.b16 %v4378, %v4376
  %v4419 = vpack.c.b16 %v4381, %v4379
  %v4420 = vpack.c.b16 %v4382, %v4380
  %v4421 = vpack.c.b16 %v4385, %v4383
  %v4422 = vpack.c.b16 %v4386, %v4384
  %v4423 = vpack.c.b16 %v4389, %v4387
  %v4424 = vpack.c.b16 %v4390, %v4388
  %v4425 = vpack.c.b16 %v4393, %v4391
  %v4426 = vpack.c.b16 %v4394, %v4392
  %4459 = vmatprep.subr.bf16.mxu0 %v4396
  %4460 = vmatpush1.bf16.msra.mxu0 %v4395
  %4461 = vmatprep.subr.bf16.mxu0 %v4398
  %4462 = vmatpush1.bf16.msra.mxu0 %v4397
  %4463 = vmatprep.subr.bf16.mxu0 %v4400
  %4464 = vmatpush1.bf16.msra.mxu0 %v4399
  %4465 = vmatprep.subr.bf16.mxu0 %v4402
  %4466 = vmatpush1.bf16.msra.mxu0 %v4401
  %4467 = vmatprep.subr.bf16.mxu0 %v4404
  %4468 = vmatpush1.bf16.msra.mxu0 %v4403
  %4469 = vmatprep.subr.bf16.mxu0 %v4406
  %4470 = vmatpush1.bf16.msra.mxu0 %v4405
  %4471 = vmatprep.subr.bf16.mxu0 %v4408
  %4472 = vmatpush1.bf16.msra.mxu0 %v4407
  %4473 = vmatprep.subr.bf16.mxu0 %v4410
  %4474 = vmatpush1.bf16.msra.mxu0 %v4409
  %4475 = vmatprep.subr.bf16.mxu0 %v4412
  %4476 = vmatpush1.bf16.msra.mxu0 %v4411
  %4477 = vmatprep.subr.bf16.mxu0 %v4414
  %4478 = vmatpush1.bf16.msra.mxu0 %v4413
  %4479 = vmatprep.subr.bf16.mxu0 %v4416
  %4480 = vmatpush1.bf16.msra.mxu0 %v4415
  %4481 = vmatprep.subr.bf16.mxu0 %v4418
  %4482 = vmatpush1.bf16.msra.mxu0 %v4417
  %4483 = vmatprep.subr.bf16.mxu0 %v4420
  %4484 = vmatpush1.bf16.msra.mxu0 %v4419
  %4485 = vmatprep.subr.bf16.mxu0 %v4422
  %4486 = vmatpush1.bf16.msra.mxu0 %v4421
  %4487 = vmatprep.subr.bf16.mxu0 %v4424
  %4488 = vmatpush1.bf16.msra.mxu0 %v4423
  %4489 = vmatprep.subr.bf16.mxu0 %v4426
  %4490 = vmatpush1.bf16.msra.mxu0 %v4425
  %4491 = vmatprep.mubr.bf16.mxu0 %v4254
  %4492 = vmatmul.mubr.bf16.gmra.mrb[0].mxu0 %v4253
  %v4493 = vpop.f32.mrb[0].mxu0
  %v4494 = vadd.f32 %v4292, %v4493
  %v4495 = vpop.f32.mrb[0].mxu0
  %v4496 = vadd.f32 %v4296, %v4495
  %v4497 = vpop.f32.mrb[0].mxu0
  %v4498 = vadd.f32 %v4292, %v4497
  %v4499 = vpop.f32.mrb[0].mxu0
  %v4500 = vadd.f32 %v4296, %v4499
  %4501 = vdwg.mxu0
  %v4502 = vld [vmem:[%s10] sm:$0xff]
  %v4503 = vld [vmem:[%s10 + $0x8] sm:$0xff]
  %v4504 = vld [vmem:[%s10 + $0x10] sm:$0x1]
  %v4505 = vld [vmem:[%s10 + $0x18] sm:$0x1]
  %v4506 = vld [vmem:[%s9] sm:$0xf]
  %v4509 = vcombine.low %v4502, %v4503
  %v4511 = vunpack.c.l.s4 1983009808
  %v4512 = vunpack.c.0.s8 %v4511
  %v4513 = vlaneseq
  %v4514 = vshrl.u32 %v4513, 7
  %v4515 = vsub.s32 %v4512, %v4514
  %v4516 = vrot.slane %v4509, %v4515
  %v4518 = vadd.f32 %v4506, %v4516
  %v4521 = vrot.slane %v4502, 2
  %v4522 = vrot.slane %v4504, 2
  %v4523 = vsel %vm4173, %v4521, %v4522
  %v4524 = vrot.slane %v4503, 2
  %v4525 = vrot.slane %v4505, 2
  %v4526 = vsel %vm4173, %v4524, %v4525
  %v4529 = vadd.f32 %v4494, %v4523
  %v4530 = vadd.f32 %v4496, %v4526
  %v4531 = vrot.slane %v4502, 3
  %v4532 = vrot.slane %v4503, 3
  %v4533 = vrot.slane %v4504, 3
  %v4534 = vsel %vm4171, %v4531, %v4533
  %v4535 = vrot.slane %v4505, 3
  %v4536 = vsel %vm4171, %v4532, %v4535
  %v4541 = vadd.f32 %v4494, %v4531
  %v4542 = vadd.f32 %v4496, %v4532
  %v4543 = vadd.f32 %v4498, %v4534
  %v4544 = vadd.f32 %v4500, %v4536
  %v4547 = vunpack.c.l.s4 1983009808
  %v4548 = vunpack.c.0.s8 %v4547
  %v4549 = vlaneseq
  %v4550 = vshrl.u32 %v4549, 7
  %v4551 = vsub.s32 %v4548, %v4550
  %v4552 = vrot.slane %v4518, %v4551
  %v4553 = vcombine.high %v4552, %v4552
  %v4558 = vrot.slane %v4529, 6
  %v4559 = vrot.slane %v4530, 6
  %v4562 = vrot.slane %v4552, 7
  %v4563 = vrot.slane %v4553, 7
  %v4570 = vrot.slane %v4541, 4
  %v4571 = vrot.slane %v4543, 4
  %v4572 = vsel %vm4169, %v4570, %v4571
  %v4573 = vrot.slane %v4542, 4
  %v4574 = vrot.slane %v4544, 4
  %v4575 = vsel %vm4169, %v4573, %v4574
  %v4580 = vsel %vm4165, %v4552, %v4558
  %v4581 = vsel %vm4165, %v4553, %v4559
  %v4582 = vsel %vm1828, %v4558, %v4562
  %v4583 = vsel %vm1828, %v4559, %v4563
  %v4584 = vsel %vm4167, %v4582, %v4572
  %v4585 = vsel %vm4167, %v4583, %v4575
  %4586 = vst [vmem:[%s11] sm:$0xff] %v4580
  %vm4587 = vcmask 523264
  %4588 = vst.msk [vmem:[%s11 + $0x8] sm:$0xff] %vm4587, %v4581
  %4589 = vst [vmem:[%s11 + $0x10] sm:$0xff] %v4584
  %4590 = vst.msk [vmem:[%s11 + $0x18] sm:$0xff] %vm4587, %v4585
  %4591 = vst [vmem:[%s11 + $0x20] sm:$0x3] %v4571
  %vm4592 = vcmask 517120
  %4593 = vst.msk [vmem:[%s11 + $0x28] sm:$0x3] %vm4592, %v4574
  // Predicated region
  $region46: #{emonet_ssast_forward.2} parent=0 // pred_check
    _
  $region47: #{emonet_ssast_forward.2} parent=0 // pred_check_branch
    %4595 = sbr.rel (0) target = $region49
  $region48: #{emonet_ssast_forward.2} parent=0 // pred_region
    _
  $region49: #{emonet_ssast_forward.2} parent=0 // pred_fallthru
    _
  // Predicated region
  $region50: #{emonet_ssast_forward.2} parent=0 // pred_check
    _
  $region51: #{emonet_ssast_forward.2} parent=0 // pred_check_branch
    %4597 = sbr.rel (0) target = $region53
  $region52: #{emonet_ssast_forward.2} parent=0 // pred_region
    _
  $region53: #{emonet_ssast_forward.2} parent=0 // pred_fallthru
    _

// kernel: emonet_ssast_forward.3
$region0: #{emonet_ssast_forward.3}
  #allocation0 [shape = 'u32[]', space=smem, size = 0x4, offset = 0x4, fixed_abs, tag = 'smem constant byte address 0x4 - core index']
  #allocation1 [shape = 'u32[144,128]{1,0:T(1,128)}', space=vmem, size = 0x12000, scoped, tag = 'internal scratch']
  #allocation2 [shape = 'f32[18,192]{1,0:T(8,128)}', space=vmem, size = 0x6000, scoped, tag = 'scratch operand']
  %s0 = inlined_call_operand.vmem [shape: f32[18,192], index: 0, kind: input, shape index: {}]
  %s1 = inlined_call_operand.vmem [shape: f32[12,1,192], index: 1, kind: input, shape index: {}]
  %s2 = inlined_call_operand.vmem [shape: f32[12,1,192], index: 2, kind: input, shape index: {}]
  %s3 = inlined_call_operand.vmem [shape: bf16[12,192,1152], index: 3, kind: input, shape index: {}]
  %s4 = inlined_call_operand.vmem [shape: f32[12,1,1152], index: 4, kind: input, shape index: {}]
  %s5 = inlined_call_operand.vmem [shape: bf16[12,384,192], index: 5, kind: input, shape index: {}]
  %s6 = inlined_call_operand.vmem [shape: f32[12,1,192], index: 6, kind: input, shape index: {}]
  %s7 = inlined_call_operand.vmem [shape: f32[12,1,192], index: 7, kind: input, shape index: {}]
  %s8 = inlined_call_operand.vmem [shape: f32[12,1,192], index: 8, kind: input, shape index: {}]
  %s9 = inlined_call_operand.vmem [shape: bf16[12,192,768], index: 9, kind: input, shape index: {}]
  %s10 = inlined_call_operand.vmem [shape: f32[12,1,768], index: 10, kind: input, shape index: {}]
  %s11 = inlined_call_operand.vmem [shape: bf16[12,768,192], index: 11, kind: input, shape index: {}]
  %s12 = inlined_call_operand.vmem [shape: f32[12,1,192], index: 12, kind: input, shape index: {}]
  %s13 = inlined_call_operand.vmem [shape: f32[1,192], index: 13, kind: input, shape index: {}]
  %s14 = inlined_call_operand.vmem [shape: f32[1,192], index: 14, kind: input, shape index: {}]
  %s15 = inlined_call_operand.vmem [shape: f32[1,192], index: 15, kind: input, shape index: {}]
  %s16 = inlined_call_operand.vmem [shape: f32[1,192], index: 16, kind: input, shape index: {}]
  %s17 = inlined_call_operand.vmem [shape: f32[192,4], index: 17, kind: input, shape index: {}]
  %s18 = inlined_call_operand.vmem [shape: f32[1,4], index: 18, kind: input, shape index: {}]
  %s19 = inlined_call_operand.hbm [shape: f32[2,4], index: 19, kind: output, shape index: {}]
  %s20 = sld [smem:[#allocation0]]
  $region117: #{emonet_ssast_forward.3} parent=0
    _
  %s22 = ssub.s32 1, %s20
  %s23 = scalar_select 0, %s22, %s20
  $region1: #{emonet_ssast_forward.3} parent=0
    #allocation3 [shape = 'u8[1024]{0}', space=vmem, size = 0x400, scoped, tag = 'output window, operand 0, single buffered']
    #allocation4 [shape = 's32[2]{0}', space=sflag, size = 0x8, scoped, tag = 'scoped memory for emonet_ssast_forward.3']
    %24 = vsyncpa [#allocation4], 0
    loop: start=0, step=1, limit=14
    $region2: #{emonet_ssast_forward.3} parent=1 // loop_pre_header
      _
    $region3: #{emonet_ssast_forward.3} parent=1 // loop_header
      %s26 = sphi 0, %s30
      %p27 = scmp.ge.s32.totalorder %s26, 14
      %s34 = sphi 0, %s34
      %s36 = sphi 0, %s34
      %s37 = sphi 0, %s36
      %s51 = sphi 0, %s37
      %s57 = sphi 0, %s59
      %s60 = sphi 0, %s57
      %s61 = sphi 0, %s60
      %s77 = sphi 0, %s61
      %s83 = sphi 0, %s85
      %s86 = sphi 0, %s83
      %s87 = sphi 0, %s86
      %s103 = sphi 0, %s87
      %s109 = sphi 0, %s111
      %s112 = sphi 0, %s109
      %s113 = sphi 0, %s112
      %s129 = sphi 0, %s113
      %s135 = sphi 0, %s137
      %s138 = sphi 0, %s135
      %s139 = sphi 0, %s138
      %s155 = sphi 0, %s139
      %s161 = sphi 0, %s163
      %s164 = sphi 0, %s161
      %s165 = sphi 0, %s164
      %s181 = sphi 0, %s165
      %s187 = sphi 0, %s189
      %s190 = sphi 0, %s187
      %s191 = sphi 0, %s190
      %s207 = sphi 0, %s191
      %s213 = sphi 0, %s215
      %s216 = sphi 0, %s213
      %s217 = sphi 0, %s216
      %s233 = sphi 0, %s217
      %s239 = sphi 0, %s241
      %s242 = sphi 0, %s239
      %s243 = sphi 0, %s242
      %s259 = sphi 0, %s243
      %s265 = sphi 0, %s267
      %s268 = sphi 0, %s265
      %s269 = sphi 0, %s268
      %s285 = sphi 0, %s269
      %s291 = sphi 0, %s293
      %s294 = sphi 0, %s291
      %s295 = sphi 0, %s294
      %s311 = sphi 0, %s295
      %s317 = sphi 0, %s319
      %s320 = sphi 0, %s317
      %s321 = sphi 0, %s320
      %s337 = sphi 0, %s321
      %s343 = sphi 0, %s345
      %s346 = sphi 0, %s343
      %s347 = sphi 0, %s346
      %s363 = sphi 0, %s347
      %s367 = sphi 0, %s367
      %s369 = sphi 0, %s367
      %s370 = sphi 0, %s369
      %s384 = sphi 0, %s370
      %s388 = sphi 0, %s388
      %s390 = sphi 0, %s388
      %s391 = sphi 0, %s390
      %s405 = sphi 0, %s391
      %s409 = sphi 0, %s409
      %s411 = sphi 0, %s409
      %s412 = sphi 0, %s411
      %s426 = sphi 0, %s412
      %s430 = sphi 0, %s430
      %s432 = sphi 0, %s430
      %s433 = sphi 0, %s432
      %s447 = sphi 0, %s433
      %s451 = sphi 0, %s451
      %s453 = sphi 0, %s451
      %s454 = sphi 0, %s453
      %s468 = sphi 0, %s454
      %s472 = sphi 0, %s472
      %s474 = sphi 0, %s472
      %s475 = sphi 0, %s474
      %s489 = sphi 0, %s475
      %s493 = sphi 0, %s493
      %s495 = sphi 0, %s493
      %s496 = sphi 0, %s495
      %s510 = sphi 0, %s496
    $region4: #{emonet_ssast_forward.3} parent=1 // loop_header_branch
      %29 = sbr.rel (%p27) target = $region8
    $region5: #{emonet_ssast_forward.3} parent=1 // loop_body
      %s31 = ssub.s32 %s26, 1
      %s32 = ssub.s32 %s26, 2
      %s33 = sadd.s32 %s26, 1
      %s35 = sadd.s32 %s34, 1
      %p38 = scmp.eq.s32.totalorder %s26, 11
      %p39 = scmp.ne.s32.totalorder %s34, %s36
      %p40 = scmp.eq.s32.totalorder %s26, 0
      %p41 = por %p39, %p40
      %p42 = scmp.ne.s32.totalorder %s34, %s36
      %p43 = scmp.eq.s32.totalorder %s31, 11
      %p44 = por %p42, %p43
      %p45 = scmp.ne.s32.totalorder %s36, %s37
      %p46 = scmp.eq.s32.totalorder %s31, 0
      %p47 = por %p45, %p46
      %p48 = scmp.ne.s32.totalorder %s36, %s37
      %p49 = scmp.eq.s32.totalorder %s32, 11
      %p50 = por %p48, %p49
      %p52 = scmp.ne.s32.totalorder %s37, %s51
      %p53 = scmp.eq.s32.totalorder %s32, 0
      %p54 = por %p52, %p53
      %s55 = ssub.s32 %s26, %s33
      %p56 = scmp.eq.s32.totalorder %s55, 0
      %s58 = sadd.s32 %s57, 1
      %s59 = scalar_select %p56, %s57, %s58
      %p62 = pneg %p56
      %p63 = scmp.eq.s32.totalorder %s26, 11
      %p64 = por %p62, %p63
      %p65 = scmp.ne.s32.totalorder %s57, %s60
      %p66 = scmp.eq.s32.totalorder %s26, 0
      %p67 = por %p65, %p66
      %p68 = scmp.ne.s32.totalorder %s57, %s60
      %p69 = scmp.eq.s32.totalorder %s31, 11
      %p70 = por %p68, %p69
      %p71 = scmp.ne.s32.totalorder %s60, %s61
      %p72 = scmp.eq.s32.totalorder %s31, 0
      %p73 = por %p71, %p72
      %p74 = scmp.ne.s32.totalorder %s60, %s61
      %p75 = scmp.eq.s32.totalorder %s32, 11
      %p76 = por %p74, %p75
      %p78 = scmp.ne.s32.totalorder %s61, %s77
      %p79 = scmp.eq.s32.totalorder %s32, 0
      %p80 = por %p78, %p79
      %s81 = ssub.s32 %s26, %s33
      %p82 = scmp.eq.s32.totalorder %s81, 0
      %s84 = sadd.s32 %s83, 1
      %s85 = scalar_select %p82, %s83, %s84
      %p88 = pneg %p82
      %p89 = scmp.eq.s32.totalorder %s26, 11
      %p90 = por %p88, %p89
      %p91 = scmp.ne.s32.totalorder %s83, %s86
      %p92 = scmp.eq.s32.totalorder %s26, 0
      %p93 = por %p91, %p92
      %p94 = scmp.ne.s32.totalorder %s83, %s86
      %p95 = scmp.eq.s32.totalorder %s31, 11
      %p96 = por %p94, %p95
      %p97 = scmp.ne.s32.totalorder %s86, %s87
      %p98 = scmp.eq.s32.totalorder %s31, 0
      %p99 = por %p97, %p98
      %p100 = scmp.ne.s32.totalorder %s86, %s87
      %p101 = scmp.eq.s32.totalorder %s32, 11
      %p102 = por %p100, %p101
      %p104 = scmp.ne.s32.totalorder %s87, %s103
      %p105 = scmp.eq.s32.totalorder %s32, 0
      %p106 = por %p104, %p105
      %s107 = ssub.s32 %s26, %s33
      %p108 = scmp.eq.s32.totalorder %s107, 0
      %s110 = sadd.s32 %s109, 1
      %s111 = scalar_select %p108, %s109, %s110
      %p114 = pneg %p108
      %p115 = scmp.eq.s32.totalorder %s26, 11
      %p116 = por %p114, %p115
      %p117 = scmp.ne.s32.totalorder %s109, %s112
      %p118 = scmp.eq.s32.totalorder %s26, 0
      %p119 = por %p117, %p118
      %p120 = scmp.ne.s32.totalorder %s109, %s112
      %p121 = scmp.eq.s32.totalorder %s31, 11
      %p122 = por %p120, %p121
      %p123 = scmp.ne.s32.totalorder %s112, %s113
      %p124 = scmp.eq.s32.totalorder %s31, 0
      %p125 = por %p123, %p124
      %p126 = scmp.ne.s32.totalorder %s112, %s113
      %p127 = scmp.eq.s32.totalorder %s32, 11
      %p128 = por %p126, %p127
      %p130 = scmp.ne.s32.totalorder %s113, %s129
      %p131 = scmp.eq.s32.totalorder %s32, 0
      %p132 = por %p130, %p131
      %s133 = ssub.s32 %s26, %s33
      %p134 = scmp.eq.s32.totalorder %s133, 0
      %s136 = sadd.s32 %s135, 1
      %s137 = scalar_select %p134, %s135, %s136
      %p140 = pneg %p134
      %p141 = scmp.eq.s32.totalorder %s26, 11
      %p142 = por %p140, %p141
      %p143 = scmp.ne.s32.totalorder %s135, %s138
      %p144 = scmp.eq.s32.totalorder %s26, 0
      %p145 = por %p143, %p144
      %p146 = scmp.ne.s32.totalorder %s135, %s138
      %p147 = scmp.eq.s32.totalorder %s31, 11
      %p148 = por %p146, %p147
      %p149 = scmp.ne.s32.totalorder %s138, %s139
      %p150 = scmp.eq.s32.totalorder %s31, 0
      %p151 = por %p149, %p150
      %p152 = scmp.ne.s32.totalorder %s138, %s139
      %p153 = scmp.eq.s32.totalorder %s32, 11
      %p154 = por %p152, %p153
      %p156 = scmp.ne.s32.totalorder %s139, %s155
      %p157 = scmp.eq.s32.totalorder %s32, 0
      %p158 = por %p156, %p157
      %s159 = ssub.s32 %s26, %s33
      %p160 = scmp.eq.s32.totalorder %s159, 0
      %s162 = sadd.s32 %s161, 1
      %s163 = scalar_select %p160, %s161, %s162
      %p166 = pneg %p160
      %p167 = scmp.eq.s32.totalorder %s26, 11
      %p168 = por %p166, %p167
      %p169 = scmp.ne.s32.totalorder %s161, %s164
      %p170 = scmp.eq.s32.totalorder %s26, 0
      %p171 = por %p169, %p170
      %p172 = scmp.ne.s32.totalorder %s161, %s164
      %p173 = scmp.eq.s32.totalorder %s31, 11
      %p174 = por %p172, %p173
      %p175 = scmp.ne.s32.totalorder %s164, %s165
      %p176 = scmp.eq.s32.totalorder %s31, 0
      %p177 = por %p175, %p176
      %p178 = scmp.ne.s32.totalorder %s164, %s165
      %p179 = scmp.eq.s32.totalorder %s32, 11
      %p180 = por %p178, %p179
      %p182 = scmp.ne.s32.totalorder %s165, %s181
      %p183 = scmp.eq.s32.totalorder %s32, 0
      %p184 = por %p182, %p183
      %s185 = ssub.s32 %s26, %s33
      %p186 = scmp.eq.s32.totalorder %s185, 0
      %s188 = sadd.s32 %s187, 1
      %s189 = scalar_select %p186, %s187, %s188
      %p192 = pneg %p186
      %p193 = scmp.eq.s32.totalorder %s26, 11
      %p194 = por %p192, %p193
      %p195 = scmp.ne.s32.totalorder %s187, %s190
      %p196 = scmp.eq.s32.totalorder %s26, 0
      %p197 = por %p195, %p196
      %p198 = scmp.ne.s32.totalorder %s187, %s190
      %p199 = scmp.eq.s32.totalorder %s31, 11
      %p200 = por %p198, %p199
      %p201 = scmp.ne.s32.totalorder %s190, %s191
      %p202 = scmp.eq.s32.totalorder %s31, 0
      %p203 = por %p201, %p202
      %p204 = scmp.ne.s32.totalorder %s190, %s191
      %p205 = scmp.eq.s32.totalorder %s32, 11
      %p206 = por %p204, %p205
      %p208 = scmp.ne.s32.totalorder %s191, %s207
      %p209 = scmp.eq.s32.totalorder %s32, 0
      %p210 = por %p208, %p209
      %s211 = ssub.s32 %s26, %s33
      %p212 = scmp.eq.s32.totalorder %s211, 0
      %s214 = sadd.s32 %s213, 1
      %s215 = scalar_select %p212, %s213, %s214
      %p218 = pneg %p212
      %p219 = scmp.eq.s32.totalorder %s26, 11
      %p220 = por %p218, %p219
      %p221 = scmp.ne.s32.totalorder %s213, %s216
      %p222 = scmp.eq.s32.totalorder %s26, 0
      %p223 = por %p221, %p222
      %p224 = scmp.ne.s32.totalorder %s213, %s216
      %p225 = scmp.eq.s32.totalorder %s31, 11
      %p226 = por %p224, %p225
      %p227 = scmp.ne.s32.totalorder %s216, %s217
      %p228 = scmp.eq.s32.totalorder %s31, 0
      %p229 = por %p227, %p228
      %p230 = scmp.ne.s32.totalorder %s216, %s217
      %p231 = scmp.eq.s32.totalorder %s32, 11
      %p232 = por %p230, %p231
      %p234 = scmp.ne.s32.totalorder %s217, %s233
      %p235 = scmp.eq.s32.totalorder %s32, 0
      %p236 = por %p234, %p235
      %s237 = ssub.s32 %s26, %s33
      %p238 = scmp.eq.s32.totalorder %s237, 0
      %s240 = sadd.s32 %s239, 1
      %s241 = scalar_select %p238, %s239, %s240
      %p244 = pneg %p238
      %p245 = scmp.eq.s32.totalorder %s26, 11
      %p246 = por %p244, %p245
      %p247 = scmp.ne.s32.totalorder %s239, %s242
      %p248 = scmp.eq.s32.totalorder %s26, 0
      %p249 = por %p247, %p248
      %p250 = scmp.ne.s32.totalorder %s239, %s242
      %p251 = scmp.eq.s32.totalorder %s31, 11
      %p252 = por %p250, %p251
      %p253 = scmp.ne.s32.totalorder %s242, %s243
      %p254 = scmp.eq.s32.totalorder %s31, 0
      %p255 = por %p253, %p254
      %p256 = scmp.ne.s32.totalorder %s242, %s243
      %p257 = scmp.eq.s32.totalorder %s32, 11
      %p258 = por %p256, %p257
      %p260 = scmp.ne.s32.totalorder %s243, %s259
      %p261 = scmp.eq.s32.totalorder %s32, 0
      %p262 = por %p260, %p261
      %s263 = ssub.s32 %s26, %s33
      %p264 = scmp.eq.s32.totalorder %s263, 0
      %s266 = sadd.s32 %s265, 1
      %s267 = scalar_select %p264, %s265, %s266
      %p270 = pneg %p264
      %p271 = scmp.eq.s32.totalorder %s26, 11
      %p272 = por %p270, %p271
      %p273 = scmp.ne.s32.totalorder %s265, %s268
      %p274 = scmp.eq.s32.totalorder %s26, 0
      %p275 = por %p273, %p274
      %p276 = scmp.ne.s32.totalorder %s265, %s268
      %p277 = scmp.eq.s32.totalorder %s31, 11
      %p278 = por %p276, %p277
      %p279 = scmp.ne.s32.totalorder %s268, %s269
      %p280 = scmp.eq.s32.totalorder %s31, 0
      %p281 = por %p279, %p280
      %p282 = scmp.ne.s32.totalorder %s268, %s269
      %p283 = scmp.eq.s32.totalorder %s32, 11
      %p284 = por %p282, %p283
      %p286 = scmp.ne.s32.totalorder %s269, %s285
      %p287 = scmp.eq.s32.totalorder %s32, 0
      %p288 = por %p286, %p287
      %s289 = ssub.s32 %s26, %s33
      %p290 = scmp.eq.s32.totalorder %s289, 0
      %s292 = sadd.s32 %s291, 1
      %s293 = scalar_select %p290, %s291, %s292
      %p296 = pneg %p290
      %p297 = scmp.eq.s32.totalorder %s26, 11
      %p298 = por %p296, %p297
      %p299 = scmp.ne.s32.totalorder %s291, %s294
      %p300 = scmp.eq.s32.totalorder %s26, 0
      %p301 = por %p299, %p300
      %p302 = scmp.ne.s32.totalorder %s291, %s294
      %p303 = scmp.eq.s32.totalorder %s31, 11
      %p304 = por %p302, %p303
      %p305 = scmp.ne.s32.totalorder %s294, %s295
      %p306 = scmp.eq.s32.totalorder %s31, 0
      %p307 = por %p305, %p306
      %p308 = scmp.ne.s32.totalorder %s294, %s295
      %p309 = scmp.eq.s32.totalorder %s32, 11
      %p310 = por %p308, %p309
      %p312 = scmp.ne.s32.totalorder %s295, %s311
      %p313 = scmp.eq.s32.totalorder %s32, 0
      %p314 = por %p312, %p313
      %s315 = ssub.s32 %s26, %s33
      %p316 = scmp.eq.s32.totalorder %s315, 0
      %s318 = sadd.s32 %s317, 1
      %s319 = scalar_select %p316, %s317, %s318
      %p322 = pneg %p316
      %p323 = scmp.eq.s32.totalorder %s26, 11
      %p324 = por %p322, %p323
      %p325 = scmp.ne.s32.totalorder %s317, %s320
      %p326 = scmp.eq.s32.totalorder %s26, 0
      %p327 = por %p325, %p326
      %p328 = scmp.ne.s32.totalorder %s317, %s320
      %p329 = scmp.eq.s32.totalorder %s31, 11
      %p330 = por %p328, %p329
      %p331 = scmp.ne.s32.totalorder %s320, %s321
      %p332 = scmp.eq.s32.totalorder %s31, 0
      %p333 = por %p331, %p332
      %p334 = scmp.ne.s32.totalorder %s320, %s321
      %p335 = scmp.eq.s32.totalorder %s32, 11
      %p336 = por %p334, %p335
      %p338 = scmp.ne.s32.totalorder %s321, %s337
      %p339 = scmp.eq.s32.totalorder %s32, 0
      %p340 = por %p338, %p339
      %s341 = ssub.s32 %s26, %s33
      %p342 = scmp.eq.s32.totalorder %s341, 0
      %s344 = sadd.s32 %s343, 1
      %s345 = scalar_select %p342, %s343, %s344
      %p348 = pneg %p342
      %p349 = scmp.eq.s32.totalorder %s26, 11
      %p350 = por %p348, %p349
      %p351 = scmp.ne.s32.totalorder %s343, %s346
      %p352 = scmp.eq.s32.totalorder %s26, 0
      %p353 = por %p351, %p352
      %p354 = scmp.ne.s32.totalorder %s343, %s346
      %p355 = scmp.eq.s32.totalorder %s31, 11
      %p356 = por %p354, %p355
      %p357 = scmp.ne.s32.totalorder %s346, %s347
      %p358 = scmp.eq.s32.totalorder %s31, 0
      %p359 = por %p357, %p358
      %p360 = scmp.ne.s32.totalorder %s346, %s347
      %p361 = scmp.eq.s32.totalorder %s32, 11
      %p362 = por %p360, %p361
      %p364 = scmp.ne.s32.totalorder %s347, %s363
      %p365 = scmp.eq.s32.totalorder %s32, 0
      %p366 = por %p364, %p365
      %s368 = sadd.s32 %s367, 1
      %p371 = scmp.eq.s32.totalorder %s26, 11
      %p372 = scmp.ne.s32.totalorder %s367, %s369
      %p373 = scmp.eq.s32.totalorder %s26, 0
      %p374 = por %p372, %p373
      %p375 = scmp.ne.s32.totalorder %s367, %s369
      %p376 = scmp.eq.s32.totalorder %s31, 11
      %p377 = por %p375, %p376
      %p378 = scmp.ne.s32.totalorder %s369, %s370
      %p379 = scmp.eq.s32.totalorder %s31, 0
      %p380 = por %p378, %p379
      %p381 = scmp.ne.s32.totalorder %s369, %s370
      %p382 = scmp.eq.s32.totalorder %s32, 11
      %p383 = por %p381, %p382
      %p385 = scmp.ne.s32.totalorder %s370, %s384
      %p386 = scmp.eq.s32.totalorder %s32, 0
      %p387 = por %p385, %p386
      %s389 = sadd.s32 %s388, 1
      %p392 = scmp.eq.s32.totalorder %s26, 11
      %p393 = scmp.ne.s32.totalorder %s388, %s390
      %p394 = scmp.eq.s32.totalorder %s26, 0
      %p395 = por %p393, %p394
      %p396 = scmp.ne.s32.totalorder %s388, %s390
      %p397 = scmp.eq.s32.totalorder %s31, 11
      %p398 = por %p396, %p397
      %p399 = scmp.ne.s32.totalorder %s390, %s391
      %p400 = scmp.eq.s32.totalorder %s31, 0
      %p401 = por %p399, %p400
      %p402 = scmp.ne.s32.totalorder %s390, %s391
      %p403 = scmp.eq.s32.totalorder %s32, 11
      %p404 = por %p402, %p403
      %p406 = scmp.ne.s32.totalorder %s391, %s405
      %p407 = scmp.eq.s32.totalorder %s32, 0
      %p408 = por %p406, %p407
      %s410 = sadd.s32 %s409, 1
      %p413 = scmp.eq.s32.totalorder %s26, 11
      %p414 = scmp.ne.s32.totalorder %s409, %s411
      %p415 = scmp.eq.s32.totalorder %s26, 0
      %p416 = por %p414, %p415
      %p417 = scmp.ne.s32.totalorder %s409, %s411
      %p418 = scmp.eq.s32.totalorder %s31, 11
      %p419 = por %p417, %p418
      %p420 = scmp.ne.s32.totalorder %s411, %s412
      %p421 = scmp.eq.s32.totalorder %s31, 0
      %p422 = por %p420, %p421
      %p423 = scmp.ne.s32.totalorder %s411, %s412
      %p424 = scmp.eq.s32.totalorder %s32, 11
      %p425 = por %p423, %p424
      %p427 = scmp.ne.s32.totalorder %s412, %s426
      %p428 = scmp.eq.s32.totalorder %s32, 0
      %p429 = por %p427, %p428
      %s431 = sadd.s32 %s430, 1
      %p434 = scmp.eq.s32.totalorder %s26, 11
      %p435 = scmp.ne.s32.totalorder %s430, %s432
      %p436 = scmp.eq.s32.totalorder %s26, 0
      %p437 = por %p435, %p436
      %p438 = scmp.ne.s32.totalorder %s430, %s432
      %p439 = scmp.eq.s32.totalorder %s31, 11
      %p440 = por %p438, %p439
      %p441 = scmp.ne.s32.totalorder %s432, %s433
      %p442 = scmp.eq.s32.totalorder %s31, 0
      %p443 = por %p441, %p442
      %p444 = scmp.ne.s32.totalorder %s432, %s433
      %p445 = scmp.eq.s32.totalorder %s32, 11
      %p446 = por %p444, %p445
      %p448 = scmp.ne.s32.totalorder %s433, %s447
      %p449 = scmp.eq.s32.totalorder %s32, 0
      %p450 = por %p448, %p449
      %s452 = sadd.s32 %s451, 1
      %p455 = scmp.eq.s32.totalorder %s26, 11
      %p456 = scmp.ne.s32.totalorder %s451, %s453
      %p457 = scmp.eq.s32.totalorder %s26, 0
      %p458 = por %p456, %p457
      %p459 = scmp.ne.s32.totalorder %s451, %s453
      %p460 = scmp.eq.s32.totalorder %s31, 11
      %p461 = por %p459, %p460
      %p462 = scmp.ne.s32.totalorder %s453, %s454
      %p463 = scmp.eq.s32.totalorder %s31, 0
      %p464 = por %p462, %p463
      %p465 = scmp.ne.s32.totalorder %s453, %s454
      %p466 = scmp.eq.s32.totalorder %s32, 11
      %p467 = por %p465, %p466
      %p469 = scmp.ne.s32.totalorder %s454, %s468
      %p470 = scmp.eq.s32.totalorder %s32, 0
      %p471 = por %p469, %p470
      %s473 = sadd.s32 %s472, 1
      %p476 = scmp.eq.s32.totalorder %s26, 11
      %p477 = scmp.ne.s32.totalorder %s472, %s474
      %p478 = scmp.eq.s32.totalorder %s26, 0
      %p479 = por %p477, %p478
      %p480 = scmp.ne.s32.totalorder %s472, %s474
      %p481 = scmp.eq.s32.totalorder %s31, 11
      %p482 = por %p480, %p481
      %p483 = scmp.ne.s32.totalorder %s474, %s475
      %p484 = scmp.eq.s32.totalorder %s31, 0
      %p485 = por %p483, %p484
      %p486 = scmp.ne.s32.totalorder %s474, %s475
      %p487 = scmp.eq.s32.totalorder %s32, 11
      %p488 = por %p486, %p487
      %p490 = scmp.ne.s32.totalorder %s475, %s489
      %p491 = scmp.eq.s32.totalorder %s32, 0
      %p492 = por %p490, %p491
      %s494 = sadd.s32 %s493, 1
      %p497 = scmp.eq.s32.totalorder %s26, 11
      %p498 = scmp.ne.s32.totalorder %s493, %s495
      %p499 = scmp.eq.s32.totalorder %s26, 0
      %p500 = por %p498, %p499
      %p501 = scmp.ne.s32.totalorder %s493, %s495
      %p502 = scmp.eq.s32.totalorder %s31, 11
      %p503 = por %p501, %p502
      %p504 = scmp.ne.s32.totalorder %s495, %s496
      %p505 = scmp.eq.s32.totalorder %s31, 0
      %p506 = por %p504, %p505
      %p507 = scmp.ne.s32.totalorder %s495, %s496
      %p508 = scmp.eq.s32.totalorder %s32, 11
      %p509 = por %p507, %p508
      %p511 = scmp.ne.s32.totalorder %s496, %s510
      %p512 = scmp.eq.s32.totalorder %s32, 0
      %p513 = por %p511, %p512
      %p514 = scmp.le.s32.totalorder 1, %s26
      %p515 = scmp.lt.s32.totalorder %s26, 13
      %p516 = pnand %p514, %p515
      %p517 = pneg %p516
      // Predicated region
      $region9: #{emonet_ssast_forward.3} parent=5 // pred_check
        _
      $region10: #{emonet_ssast_forward.3} parent=5 // pred_check_branch
        %519 = sbr.rel (%p516) target = $region12
      $region11: #{emonet_ssast_forward.3} parent=5 // pred_region
        %s520 = ssub.s32 %s26, 1
        // Predicated region
        $region13: #{emonet_ssast_forward.3} parent=11 // pred_check
          %p521 = pneg %p47
        $region14: #{emonet_ssast_forward.3} parent=11 // pred_check_branch
          %523 = sbr.rel (%p521) target = $region16
        $region15: #{emonet_ssast_forward.3} parent=11 // pred_region
          _
        $region16: #{emonet_ssast_forward.3} parent=11 // pred_fallthru
          _
        // Predicated region
        $region17: #{emonet_ssast_forward.3} parent=11 // pred_check
          %p524 = pneg %p380
        $region18: #{emonet_ssast_forward.3} parent=11 // pred_check_branch
          %526 = sbr.rel (%p524) target = $region20
        $region19: #{emonet_ssast_forward.3} parent=11 // pred_region
          _
        $region20: #{emonet_ssast_forward.3} parent=11 // pred_fallthru
          _
        // Predicated region
        $region21: #{emonet_ssast_forward.3} parent=11 // pred_check
          %p527 = pneg %p401
        $region22: #{emonet_ssast_forward.3} parent=11 // pred_check_branch
          %529 = sbr.rel (%p527) target = $region24
        $region23: #{emonet_ssast_forward.3} parent=11 // pred_region
          _
        $region24: #{emonet_ssast_forward.3} parent=11 // pred_fallthru
          _
        // Predicated region
        $region25: #{emonet_ssast_forward.3} parent=11 // pred_check
          %p530 = pneg %p422
        $region26: #{emonet_ssast_forward.3} parent=11 // pred_check_branch
          %532 = sbr.rel (%p530) target = $region28
        $region27: #{emonet_ssast_forward.3} parent=11 // pred_region
          _
        $region28: #{emonet_ssast_forward.3} parent=11 // pred_fallthru
          _
        // Predicated region
        $region29: #{emonet_ssast_forward.3} parent=11 // pred_check
          %p533 = pneg %p443
        $region30: #{emonet_ssast_forward.3} parent=11 // pred_check_branch
          %535 = sbr.rel (%p533) target = $region32
        $region31: #{emonet_ssast_forward.3} parent=11 // pred_region
          _
        $region32: #{emonet_ssast_forward.3} parent=11 // pred_fallthru
          _
        // Predicated region
        $region33: #{emonet_ssast_forward.3} parent=11 // pred_check
          %p536 = pneg %p464
        $region34: #{emonet_ssast_forward.3} parent=11 // pred_check_branch
          %538 = sbr.rel (%p536) target = $region36
        $region35: #{emonet_ssast_forward.3} parent=11 // pred_region
          _
        $region36: #{emonet_ssast_forward.3} parent=11 // pred_fallthru
          _
        // Predicated region
        $region37: #{emonet_ssast_forward.3} parent=11 // pred_check
          %p539 = pneg %p485
        $region38: #{emonet_ssast_forward.3} parent=11 // pred_check_branch
          %541 = sbr.rel (%p539) target = $region40
        $region39: #{emonet_ssast_forward.3} parent=11 // pred_region
          _
        $region40: #{emonet_ssast_forward.3} parent=11 // pred_fallthru
          _
      $region12: #{emonet_ssast_forward.3} parent=5 // pred_fallthru
        _
      %p542 = scmp.lt.s32.totalorder %s26, 12
      // Predicated region
      $region41: #{emonet_ssast_forward.3} parent=5 // pred_check
        %p543 = pneg %p542
      $region42: #{emonet_ssast_forward.3} parent=5 // pred_check_branch
        %545 = sbr.rel (%p543) target = $region44
      $region43: #{emonet_ssast_forward.3} parent=5 // pred_region
        // Predicated region
        $region45: #{emonet_ssast_forward.3} parent=43 // pred_check
          %p546 = pneg %p67
        $region46: #{emonet_ssast_forward.3} parent=43 // pred_check_branch
          %548 = sbr.rel (%p546) target = $region48
        $region47: #{emonet_ssast_forward.3} parent=43 // pred_region
          %p549 = scmp.lt.s32.totalorder %s26, 11
          %s550 = scalar_select %p549, %s26, 11
          %s551 = smul.addr %s550, 2
          %s552 = scalar_lea.vmem %s1, %s551
        $region48: #{emonet_ssast_forward.3} parent=43 // pred_fallthru
          _
        // Predicated region
        $region49: #{emonet_ssast_forward.3} parent=43 // pred_check
          %p553 = pneg %p93
        $region50: #{emonet_ssast_forward.3} parent=43 // pred_check_branch
          %555 = sbr.rel (%p553) target = $region52
        $region51: #{emonet_ssast_forward.3} parent=43 // pred_region
          %p556 = scmp.lt.s32.totalorder %s26, 11
          %s557 = scalar_select %p556, %s26, 11
          %s558 = smul.addr %s557, 2
          %s559 = scalar_lea.vmem %s2, %s558
        $region52: #{emonet_ssast_forward.3} parent=43 // pred_fallthru
          _
        // Predicated region
        $region53: #{emonet_ssast_forward.3} parent=43 // pred_check
          %p560 = pneg %p119
        $region54: #{emonet_ssast_forward.3} parent=43 // pred_check_branch
          %562 = sbr.rel (%p560) target = $region56
        $region55: #{emonet_ssast_forward.3} parent=43 // pred_region
          %p563 = scmp.lt.s32.totalorder %s26, 11
          %s564 = scalar_select %p563, %s26, 11
          %s565 = smul.addr %s564, 216
          %s566 = smul.addr %s565, 4
          %s567 = scalar_lea.vmem %s3, %s566
        $region56: #{emonet_ssast_forward.3} parent=43 // pred_fallthru
          _
        // Predicated region
        $region57: #{emonet_ssast_forward.3} parent=43 // pred_check
          %p568 = pneg %p145
        $region58: #{emonet_ssast_forward.3} parent=43 // pred_check_branch
          %570 = sbr.rel (%p568) target = $region60
        $region59: #{emonet_ssast_forward.3} parent=43 // pred_region
          %p571 = scmp.lt.s32.totalorder %s26, 11
          %s572 = scalar_select %p571, %s26, 11
          %s573 = smul.addr %s572, 9
          %s574 = scalar_lea.vmem %s4, %s573
        $region60: #{emonet_ssast_forward.3} parent=43 // pred_fallthru
          _
        // Predicated region
        $region61: #{emonet_ssast_forward.3} parent=43 // pred_check
          %p575 = pneg %p171
        $region62: #{emonet_ssast_forward.3} parent=43 // pred_check_branch
          %577 = sbr.rel (%p575) target = $region64
        $region63: #{emonet_ssast_forward.3} parent=43 // pred_region
          %p578 = scmp.lt.s32.totalorder %s26, 11
          %s579 = scalar_select %p578, %s26, 11
          %s580 = smul.addr %s579, 96
          %s581 = smul.addr %s580, 4
          %s582 = scalar_lea.vmem %s5, %s581
        $region64: #{emonet_ssast_forward.3} parent=43 // pred_fallthru
          _
        // Predicated region
        $region65: #{emonet_ssast_forward.3} parent=43 // pred_check
          %p583 = pneg %p197
        $region66: #{emonet_ssast_forward.3} parent=43 // pred_check_branch
          %585 = sbr.rel (%p583) target = $region68
        $region67: #{emonet_ssast_forward.3} parent=43 // pred_region
          %p586 = scmp.lt.s32.totalorder %s26, 11
          %s587 = scalar_select %p586, %s26, 11
          %s588 = smul.addr %s587, 2
          %s589 = scalar_lea.vmem %s6, %s588
        $region68: #{emonet_ssast_forward.3} parent=43 // pred_fallthru
          _
        // Predicated region
        $region69: #{emonet_ssast_forward.3} parent=43 // pred_check
          %p590 = pneg %p223
        $region70: #{emonet_ssast_forward.3} parent=43 // pred_check_branch
          %592 = sbr.rel (%p590) target = $region72
        $region71: #{emonet_ssast_forward.3} parent=43 // pred_region
          %p593 = scmp.lt.s32.totalorder %s26, 11
          %s594 = scalar_select %p593, %s26, 11
          %s595 = smul.addr %s594, 2
          %s596 = scalar_lea.vmem %s7, %s595
        $region72: #{emonet_ssast_forward.3} parent=43 // pred_fallthru
          _
        // Predicated region
        $region73: #{emonet_ssast_forward.3} parent=43 // pred_check
          %p597 = pneg %p249
        $region74: #{emonet_ssast_forward.3} parent=43 // pred_check_branch
          %599 = sbr.rel (%p597) target = $region76
        $region75: #{emonet_ssast_forward.3} parent=43 // pred_region
          %p600 = scmp.lt.s32.totalorder %s26, 11
          %s601 = scalar_select %p600, %s26, 11
          %s602 = smul.addr %s601, 2
          %s603 = scalar_lea.vmem %s8, %s602
        $region76: #{emonet_ssast_forward.3} parent=43 // pred_fallthru
          _
        // Predicated region
        $region77: #{emonet_ssast_forward.3} parent=43 // pred_check
          %p604 = pneg %p275
        $region78: #{emonet_ssast_forward.3} parent=43 // pred_check_branch
          %606 = sbr.rel (%p604) target = $region80
        $region79: #{emonet_ssast_forward.3} parent=43 // pred_region
          %p607 = scmp.lt.s32.totalorder %s26, 11
          %s608 = scalar_select %p607, %s26, 11
          %s609 = smul.addr %s608, 144
          %s610 = smul.addr %s609, 4
          %s611 = scalar_lea.vmem %s9, %s610
        $region80: #{emonet_ssast_forward.3} parent=43 // pred_fallthru
          _
        // Predicated region
        $region81: #{emonet_ssast_forward.3} parent=43 // pred_check
          %p612 = pneg %p301
        $region82: #{emonet_ssast_forward.3} parent=43 // pred_check_branch
          %614 = sbr.rel (%p612) target = $region84
        $region83: #{emonet_ssast_forward.3} parent=43 // pred_region
          %p615 = scmp.lt.s32.totalorder %s26, 11
          %s616 = scalar_select %p615, %s26, 11
          %s617 = smul.addr %s616, 6
          %s618 = scalar_lea.vmem %s10, %s617
        $region84: #{emonet_ssast_forward.3} parent=43 // pred_fallthru
          _
        // Predicated region
        $region85: #{emonet_ssast_forward.3} parent=43 // pred_check
          %p619 = pneg %p327
        $region86: #{emonet_ssast_forward.3} parent=43 // pred_check_branch
          %621 = sbr.rel (%p619) target = $region88
        $region87: #{emonet_ssast_forward.3} parent=43 // pred_region
          %p622 = scmp.lt.s32.totalorder %s26, 11
          %s623 = scalar_select %p622, %s26, 11
          %s624 = smul.addr %s623, 192
          %s625 = smul.addr %s624, 4
          %s626 = scalar_lea.vmem %s11, %s625
        $region88: #{emonet_ssast_forward.3} parent=43 // pred_fallthru
          _
        // Predicated region
        $region89: #{emonet_ssast_forward.3} parent=43 // pred_check
          %p627 = pneg %p353
        $region90: #{emonet_ssast_forward.3} parent=43 // pred_check_branch
          %629 = sbr.rel (%p627) target = $region92
        $region91: #{emonet_ssast_forward.3} parent=43 // pred_region
          %p630 = scmp.lt.s32.totalorder %s26, 11
          %s631 = scalar_select %p630, %s26, 11
          %s632 = smul.addr %s631, 2
          %s633 = scalar_lea.vmem %s12, %s632
        $region92: #{emonet_ssast_forward.3} parent=43 // pred_fallthru
          _
      $region44: #{emonet_ssast_forward.3} parent=5 // pred_fallthru
        _
      %p634 = scmp.le.s32.totalorder 1, %s26
      %p635 = scmp.lt.s32.totalorder %s26, 13
      %p636 = pnand %p634, %p635
      %p637 = pneg %p636
      // Predicated region
      $region93: #{emonet_ssast_forward.3} parent=5 // pred_check
        _
      $region94: #{emonet_ssast_forward.3} parent=5 // pred_check_branch
        %639 = sbr.rel (%p636) target = $region96
      $region95: #{emonet_ssast_forward.3} parent=5 // pred_region
        %s640 = ssub.s32 %s26, 1
        %p641 = pneg %p47
        %p642 = pneg %p44
        %p643 = scmp.lt.s32.totalorder %s31, 11
        %s644 = scalar_select %p643, %s31, 11
        %s645 = smul.addr %s644, 2
        %s646 = scalar_lea.vmem %s1, %s645
        %p647 = pneg %p73
        %p648 = pneg %p70
        %p649 = scmp.lt.s32.totalorder %s31, 11
        %s650 = scalar_select %p649, %s31, 11
        %s651 = smul.addr %s650, 2
        %s652 = scalar_lea.vmem %s2, %s651
        %p653 = pneg %p99
        %p654 = pneg %p96
        %p655 = scmp.lt.s32.totalorder %s31, 11
        %s656 = scalar_select %p655, %s31, 11
        %s657 = smul.addr %s656, 216
        %s658 = smul.addr %s657, 4
        %s659 = scalar_lea.vmem %s3, %s658
        %p660 = pneg %p125
        %p661 = pneg %p122
        %p662 = scmp.lt.s32.totalorder %s31, 11
        %s663 = scalar_select %p662, %s31, 11
        %s664 = smul.addr %s663, 9
        %s665 = scalar_lea.vmem %s4, %s664
        %p666 = pneg %p151
        %p667 = pneg %p148
        %p668 = scmp.lt.s32.totalorder %s31, 11
        %s669 = scalar_select %p668, %s31, 11
        %s670 = smul.addr %s669, 96
        %s671 = smul.addr %s670, 4
        %s672 = scalar_lea.vmem %s5, %s671
        %p673 = pneg %p177
        %p674 = pneg %p174
        %p675 = scmp.lt.s32.totalorder %s31, 11
        %s676 = scalar_select %p675, %s31, 11
        %s677 = smul.addr %s676, 2
        %s678 = scalar_lea.vmem %s6, %s677
        %p679 = pneg %p203
        %p680 = pneg %p200
        %p681 = scmp.lt.s32.totalorder %s31, 11
        %s682 = scalar_select %p681, %s31, 11
        %s683 = smul.addr %s682, 2
        %s684 = scalar_lea.vmem %s7, %s683
        %p685 = pneg %p229
        %p686 = pneg %p226
        %p687 = scmp.lt.s32.totalorder %s31, 11
        %s688 = scalar_select %p687, %s31, 11
        %s689 = smul.addr %s688, 2
        %s690 = scalar_lea.vmem %s8, %s689
        %p691 = pneg %p255
        %p692 = pneg %p252
        %p693 = scmp.lt.s32.totalorder %s31, 11
        %s694 = scalar_select %p693, %s31, 11
        %s695 = smul.addr %s694, 144
        %s696 = smul.addr %s695, 4
        %s697 = scalar_lea.vmem %s9, %s696
        %p698 = pneg %p281
        %p699 = pneg %p278
        %p700 = scmp.lt.s32.totalorder %s31, 11
        %s701 = scalar_select %p700, %s31, 11
        %s702 = smul.addr %s701, 6
        %s703 = scalar_lea.vmem %s10, %s702
        %p704 = pneg %p307
        %p705 = pneg %p304
        %p706 = scmp.lt.s32.totalorder %s31, 11
        %s707 = scalar_select %p706, %s31, 11
        %s708 = smul.addr %s707, 192
        %s709 = smul.addr %s708, 4
        %s710 = scalar_lea.vmem %s11, %s709
        %p711 = pneg %p333
        %p712 = pneg %p330
        %p713 = scmp.lt.s32.totalorder %s31, 11
        %s714 = scalar_select %p713, %s31, 11
        %s715 = smul.addr %s714, 2
        %s716 = scalar_lea.vmem %s12, %s715
        %p717 = pneg %p359
        %p718 = pneg %p356
        %p719 = pneg %p380
        %p720 = pneg %p377
        %p721 = pneg %p401
        %p722 = pneg %p398
        %p723 = pneg %p422
        %p724 = pneg %p419
        %p725 = pneg %p443
        %p726 = pneg %p440
        %p727 = pneg %p464
        %p728 = pneg %p461
        %p729 = pneg %p485
        %p730 = pneg %p482
        %p731 = pneg %p506
        %p732 = pneg %p503
        %p733 = scmp.lt.s32.totalorder %s31, 11
        %s734 = scalar_select %p733, %s31, 11
        %s735 = smul.addr %s734, 2
        %s736 = scalar_lea.vmem %s1, %s735
        %p737 = scmp.lt.s32.totalorder %s31, 11
        %s738 = scalar_select %p737, %s31, 11
        %s739 = smul.addr %s738, 2
        %s740 = scalar_lea.vmem %s2, %s739
        %p741 = scmp.lt.s32.totalorder %s31, 11
        %s742 = scalar_select %p741, %s31, 11
        %s743 = smul.addr %s742, 216
        %s744 = smul.addr %s743, 4
        %s745 = scalar_lea.vmem %s3, %s744
        %p746 = scmp.lt.s32.totalorder %s31, 11
        %s747 = scalar_select %p746, %s31, 11
        %s748 = smul.addr %s747, 9
        %s749 = scalar_lea.vmem %s4, %s748
        %p750 = scmp.lt.s32.totalorder %s31, 11
        %s751 = scalar_select %p750, %s31, 11
        %s752 = smul.addr %s751, 96
        %s753 = smul.addr %s752, 4
        %s754 = scalar_lea.vmem %s5, %s753
        %p755 = scmp.lt.s32.totalorder %s31, 11
        %s756 = scalar_select %p755, %s31, 11
        %s757 = smul.addr %s756, 2
        %s758 = scalar_lea.vmem %s6, %s757
        %p759 = scmp.lt.s32.totalorder %s31, 11
        %s760 = scalar_select %p759, %s31, 11
        %s761 = smul.addr %s760, 2
        %s762 = scalar_lea.vmem %s7, %s761
        %p763 = scmp.lt.s32.totalorder %s31, 11
        %s764 = scalar_select %p763, %s31, 11
        %s765 = smul.addr %s764, 2
        %s766 = scalar_lea.vmem %s8, %s765
        %p767 = scmp.lt.s32.totalorder %s31, 11
        %s768 = scalar_select %p767, %s31, 11
        %s769 = smul.addr %s768, 144
        %s770 = smul.addr %s769, 4
        %s771 = scalar_lea.vmem %s9, %s770
        %p772 = scmp.lt.s32.totalorder %s31, 11
        %s773 = scalar_select %p772, %s31, 11
        %s774 = smul.addr %s773, 6
        %s775 = scalar_lea.vmem %s10, %s774
        %p776 = scmp.lt.s32.totalorder %s31, 11
        %s777 = scalar_select %p776, %s31, 11
        %s778 = smul.addr %s777, 192
        %s779 = smul.addr %s778, 4
        %s780 = scalar_lea.vmem %s11, %s779
        %p781 = scmp.lt.s32.totalorder %s31, 11
        %s782 = scalar_select %p781, %s31, 11
        %s783 = smul.addr %s782, 2
        %s784 = scalar_lea.vmem %s12, %s783
        %p786 = scmp.eq.s32.totalorder %s31, 0
        // Predicated region
        $region97: #{emonet_ssast_forward.3} parent=95 // pred_check
          %p787 = pneg %p786
        $region98: #{emonet_ssast_forward.3} parent=95 // pred_check_branch
          %789 = sbr.rel (%p787) target = $region100
        $region99: #{emonet_ssast_forward.3} parent=95 // pred_region
          %v790 = vld [vmem:[%s0] sm:$0xff]
          %v791 = vld [vmem:[%s0 + $0x8] sm:$0xff]
          %v792 = vld [vmem:[%s0 + $0x10] sm:$0xff]
          %v793 = vld [vmem:[%s0 + $0x18] sm:$0xff]
          %v794 = vld [vmem:[%s0 + $0x20] sm:$0x3]
          %v795 = vld [vmem:[%s0 + $0x28] sm:$0x3]
          %796 = vst [vmem:[#allocation2] sm:$0xff] %v790
          %vm797 = vcmask 523264
          %798 = vst.msk [vmem:[#allocation2 + $0x8] sm:$0xff] %vm797, %v791
          %799 = vst [vmem:[#allocation2 + $0x10] sm:$0xff] %v792
          %800 = vst.msk [vmem:[#allocation2 + $0x18] sm:$0xff] %vm797, %v793
          %801 = vst [vmem:[#allocation2 + $0x20] sm:$0x3] %v794
          %vm802 = vcmask 517120
          %803 = vst.msk [vmem:[#allocation2 + $0x28] sm:$0x3] %vm802, %v795
        $region100: #{emonet_ssast_forward.3} parent=95 // pred_fallthru
          _
        %v804 = vld [vmem:[#allocation2] sm:$0xff]
        %v805 = vld [vmem:[#allocation2 + $0x8] sm:$0xff]
        %v806 = vld [vmem:[#allocation2 + $0x10] sm:$0xff]
        %v807 = vld [vmem:[#allocation2 + $0x18] sm:$0xff]
        %v808 = vld [vmem:[#allocation2 + $0x20] sm:$0x3]
        %v809 = vld [vmem:[#allocation2 + $0x28] sm:$0x3]
        %v810 = vld [vmem:[%s736] sm:$0x3]
        %v811 = vld [vmem:[%s740] sm:$0x3]
        %vm812 = vcmask 523264
        %v813 = vsel %vm812, %v805, 0.0
        %v814 = vadd.f32 %v804, %v813
        %815 = vadd.xlane.f32.xlu0 %v814
        %v816 = vpop.xlane.xlu0 %815
        %v817 = vsel %vm812, %v807, 0.0
        %v818 = vadd.f32 %v806, %v817
        %819 = vadd.xlane.f32.xlu0 %v818
        %v820 = vpop.xlane.xlu0 %819
        %vm821 = vcmask 1041408
        %v822 = vsel %vm821, %v808, 0.0
        %vm823 = vcmask 517120
        %v824 = vsel %vm823, %v809, 0.0
        %v825 = vadd.f32 %v822, %v824
        %826 = vadd.xlane.f32.xlu0 %v825
        %v827 = vpop.xlane.xlu0 %826
        %v828 = vrcp.pop 192.0
        %v829 = vmul.f32 %v816, %v828
        %v830 = vmul.f32 %v820, %v828
        %v831 = vmul.f32 %v827, %v828
        %v832 = vsub.f32 %v804, %v829
        %v833 = vsub.f32 %v805, %v829
        %v834 = vsub.f32 %v806, %v830
        %v835 = vsub.f32 %v807, %v830
        %v836 = vsub.f32 %v808, %v831
        %v837 = vsub.f32 %v809, %v831
        %v838 = vmul.f32 %v832, %v832
        %v839 = vmul.f32 %v833, %v833
        %v840 = vmul.f32 %v834, %v834
        %v841 = vmul.f32 %v835, %v835
        %v842 = vmul.f32 %v836, %v836
        %v843 = vmul.f32 %v837, %v837
        %v844 = vsel %vm812, %v839, 0.0
        %v845 = vadd.f32 %v838, %v844
        %846 = vadd.xlane.f32.xlu0 %v845
        %v847 = vpop.xlane.xlu0 %846
        %v848 = vsel %vm812, %v841, 0.0
        %v849 = vadd.f32 %v840, %v848
        %850 = vadd.xlane.f32.xlu0 %v849
        %v851 = vpop.xlane.xlu0 %850
        %v852 = vsel %vm821, %v842, 0.0
        %v853 = vsel %vm823, %v843, 0.0
        %v854 = vadd.f32 %v852, %v853
        %855 = vadd.xlane.f32.xlu0 %v854
        %v856 = vpop.xlane.xlu0 %855
        %v857 = vmul.f32 %v847, %v828
        %v858 = vmul.f32 %v851, %v828
        %v859 = vmul.f32 %v856, %v828
        %v860 = vadd.f32 %v857, 1e-06
        %v861 = vadd.f32 %v858, 1e-06
        %v862 = vadd.f32 %v859, 1e-06
        %v863 = vrsqrt.pop %v860
        %v864 = vrsqrt.pop %v861
        %v865 = vrsqrt.pop %v862
        %v866 = vmul.f32 %v832, %v863
        %v867 = vmul.f32 %v833, %v863
        %v868 = vmul.f32 %v834, %v864
        %v869 = vmul.f32 %v835, %v864
        %v870 = vmul.f32 %v836, %v865
        %v871 = vmul.f32 %v837, %v865
        %v873 = vlaneseq
        %v874 = vshrl.u32 %v873, 7
        %v875 = vsub.s32 0, %v874
        %v876 = vrot.slane %v810, %v875
        %v877 = vlaneseq
        %v878 = vshrl.u32 %v877, 7
        %v879 = vsub.s32 1, %v878
        %v880 = vrot.slane %v810, %v879
        %v883 = vmul.f32 %v866, %v876
        %v884 = vmul.f32 %v867, %v880
        %v885 = vmul.f32 %v868, %v876
        %v886 = vmul.f32 %v869, %v880
        %v887 = vmul.f32 %v870, %v876
        %v888 = vmul.f32 %v871, %v880
        %v890 = vlaneseq
        %v891 = vshrl.u32 %v890, 7
        %v892 = vsub.s32 0, %v891
        %v893 = vrot.slane %v811, %v892
        %v894 = vlaneseq
        %v895 = vshrl.u32 %v894, 7
        %v896 = vsub.s32 1, %v895
        %v897 = vrot.slane %v811, %v896
        %v900 = vadd.f32 %v883, %v893
        %v901 = vadd.f32 %v884, %v897
        %v902 = vadd.f32 %v885, %v893
        %v903 = vadd.f32 %v886, %v897
        %v904 = vadd.f32 %v887, %v893
        %v905 = vadd.f32 %v888, %v897
        %v906 = vpack.c.bf16 %v902, %v900
        %v907 = vpack.c.bf16 %v903, %v901
        %v908 = vpack.c.bf16 %v904, %v904
        %v909 = vpack.c.bf16 %v905, %v905
        %v910 = vld [vmem:[%s745] sm:$0xff]
        %v911 = vld [vmem:[%s745 + $0x8] sm:$0xff]
        %v912 = vld [vmem:[%s745 + $0x10] sm:$0xff]
        %v913 = vld [vmem:[%s745 + $0x18] sm:$0xff]
        %v914 = vld [vmem:[%s745 + $0x20] sm:$0xf]
        %v915 = vld [vmem:[%s745 + $0x24] sm:$0xff]
        %v916 = vld [vmem:[%s745 + $0x2c] sm:$0xff]
        %v917 = vld [vmem:[%s745 + $0x34] sm:$0xff]
        %v918 = vld [vmem:[%s745 + $0x3c] sm:$0xff]
        %v919 = vld [vmem:[%s745 + $0x44] sm:$0xf]
        %v920 = vld [vmem:[%s745 + $0x48] sm:$0xff]
        %v921 = vld [vmem:[%s745 + $0x50] sm:$0xff]
        %v922 = vld [vmem:[%s745 + $0x58] sm:$0xff]
        %v923 = vld [vmem:[%s745 + $0x60] sm:$0xff]
        %v924 = vld [vmem:[%s745 + $0x68] sm:$0xf]
        %v925 = vld [vmem:[%s745 + $0x6c] sm:$0xff]
        %v926 = vld [vmem:[%s745 + $0x74] sm:$0xff]
        %v927 = vld [vmem:[%s745 + $0x7c] sm:$0xff]
        %v928 = vld [vmem:[%s745 + $0x84] sm:$0xff]
        %v929 = vld [vmem:[%s745 + $0x8c] sm:$0xf]
        %v930 = vld [vmem:[%s745 + $0x90] sm:$0xff]
        %v931 = vld [vmem:[%s745 + $0x98] sm:$0xff]
        %v932 = vld [vmem:[%s745 + $0xa0] sm:$0xff]
        %v933 = vld [vmem:[%s745 + $0xa8] sm:$0xff]
        %v934 = vld [vmem:[%s745 + $0xb0] sm:$0xf]
        %v935 = vld [vmem:[%s745 + $0xb4] sm:$0xff]
        %v936 = vld [vmem:[%s745 + $0xbc] sm:$0xff]
        %v937 = vld [vmem:[%s745 + $0xc4] sm:$0xff]
        %v938 = vld [vmem:[%s745 + $0xcc] sm:$0xff]
        %v939 = vld [vmem:[%s745 + $0xd4] sm:$0xf]
        %v940 = vld [vmem:[%s745 + $0xd8] sm:$0xff]
        %v941 = vld [vmem:[%s745 + $0xe0] sm:$0xff]
        %v942 = vld [vmem:[%s745 + $0xe8] sm:$0xff]
        %v943 = vld [vmem:[%s745 + $0xf0] sm:$0xff]
        %v944 = vld [vmem:[%s745 + $0xf8] sm:$0xf]
        %v945 = vld [vmem:[%s745 + $0xfc] sm:$0xff]
        %v946 = vld [vmem:[%s745 + $0x104] sm:$0xff]
        %v947 = vld [vmem:[%s745 + $0x10c] sm:$0xff]
        %v948 = vld [vmem:[%s745 + $0x114] sm:$0xff]
        %v949 = vld [vmem:[%s745 + $0x11c] sm:$0xf]
        %v950 = vld [vmem:[%s745 + $0x120] sm:$0xff]
        %v951 = vld [vmem:[%s745 + $0x128] sm:$0xff]
        %v952 = vld [vmem:[%s745 + $0x130] sm:$0xff]
        %v953 = vld [vmem:[%s745 + $0x138] sm:$0xff]
        %v954 = vld [vmem:[%s745 + $0x140] sm:$0xf]
        %v955 = vld [vmem:[%s745 + $0x144] sm:$0xff]
        %v956 = vld [vmem:[%s745 + $0x14c] sm:$0xff]
        %v957 = vld [vmem:[%s745 + $0x154] sm:$0xff]
        %v958 = vld [vmem:[%s745 + $0x15c] sm:$0xff]
        %v959 = vld [vmem:[%s745 + $0x164] sm:$0xf]
        %v960 = vld [vmem:[%s745 + $0x168] sm:$0xff]
        %v961 = vld [vmem:[%s745 + $0x170] sm:$0xff]
        %v962 = vld [vmem:[%s745 + $0x178] sm:$0xff]
        %v963 = vld [vmem:[%s745 + $0x180] sm:$0xff]
        %v964 = vld [vmem:[%s745 + $0x188] sm:$0xf]
        %v965 = vld [vmem:[%s745 + $0x18c] sm:$0xff]
        %v966 = vld [vmem:[%s745 + $0x194] sm:$0xff]
        %v967 = vld [vmem:[%s745 + $0x19c] sm:$0xff]
        %v968 = vld [vmem:[%s745 + $0x1a4] sm:$0xff]
        %v969 = vld [vmem:[%s745 + $0x1ac] sm:$0xf]
        %v970 = vld [vmem:[%s745 + $0x1b0] sm:$0xff]
        %v971 = vld [vmem:[%s745 + $0x1b8] sm:$0xff]
        %v972 = vld [vmem:[%s745 + $0x1c0] sm:$0xff]
        %v973 = vld [vmem:[%s745 + $0x1c8] sm:$0xff]
        %v974 = vld [vmem:[%s745 + $0x1d0] sm:$0xf]
        %v975 = vld [vmem:[%s745 + $0x1d4] sm:$0xff]
        %v976 = vld [vmem:[%s745 + $0x1dc] sm:$0xff]
        %v977 = vld [vmem:[%s745 + $0x1e4] sm:$0xff]
        %v978 = vld [vmem:[%s745 + $0x1ec] sm:$0xff]
        %v979 = vld [vmem:[%s745 + $0x1f4] sm:$0xf]
        %v980 = vld [vmem:[%s745 + $0x1f8] sm:$0xff]
        %v981 = vld [vmem:[%s745 + $0x200] sm:$0xff]
        %v982 = vld [vmem:[%s745 + $0x208] sm:$0xff]
        %v983 = vld [vmem:[%s745 + $0x210] sm:$0xff]
        %v984 = vld [vmem:[%s745 + $0x218] sm:$0xf]
        %v985 = vld [vmem:[%s745 + $0x21c] sm:$0xff]
        %v986 = vld [vmem:[%s745 + $0x224] sm:$0xff]
        %v987 = vld [vmem:[%s745 + $0x22c] sm:$0xff]
        %v988 = vld [vmem:[%s745 + $0x234] sm:$0xff]
        %v989 = vld [vmem:[%s745 + $0x23c] sm:$0xf]
        %v990 = vld [vmem:[%s745 + $0x240] sm:$0xff]
        %v991 = vld [vmem:[%s745 + $0x248] sm:$0xff]
        %v992 = vld [vmem:[%s745 + $0x250] sm:$0xff]
        %v993 = vld [vmem:[%s745 + $0x258] sm:$0xff]
        %v994 = vld [vmem:[%s745 + $0x260] sm:$0xf]
        %v995 = vld [vmem:[%s745 + $0x264] sm:$0xff]
        %v996 = vld [vmem:[%s745 + $0x26c] sm:$0xff]
        %v997 = vld [vmem:[%s745 + $0x274] sm:$0xff]
        %v998 = vld [vmem:[%s745 + $0x27c] sm:$0xff]
        %v999 = vld [vmem:[%s745 + $0x284] sm:$0xf]
        %v1000 = vld [vmem:[%s745 + $0x288] sm:$0xff]
        %v1001 = vld [vmem:[%s745 + $0x290] sm:$0xff]
        %v1002 = vld [vmem:[%s745 + $0x298] sm:$0xff]
        %v1003 = vld [vmem:[%s745 + $0x2a0] sm:$0xff]
        %v1004 = vld [vmem:[%s745 + $0x2a8] sm:$0xf]
        %v1005 = vld [vmem:[%s745 + $0x2ac] sm:$0xff]
        %v1006 = vld [vmem:[%s745 + $0x2b4] sm:$0xff]
        %v1007 = vld [vmem:[%s745 + $0x2bc] sm:$0xff]
        %v1008 = vld [vmem:[%s745 + $0x2c4] sm:$0xff]
        %v1009 = vld [vmem:[%s745 + $0x2cc] sm:$0xf]
        %v1010 = vld [vmem:[%s745 + $0x2d0] sm:$0xff]
        %v1011 = vld [vmem:[%s745 + $0x2d8] sm:$0xff]
        %v1012 = vld [vmem:[%s745 + $0x2e0] sm:$0xff]
        %v1013 = vld [vmem:[%s745 + $0x2e8] sm:$0xff]
        %v1014 = vld [vmem:[%s745 + $0x2f0] sm:$0xf]
        %v1015 = vld [vmem:[%s745 + $0x2f4] sm:$0xff]
        %v1016 = vld [vmem:[%s745 + $0x2fc] sm:$0xff]
        %v1017 = vld [vmem:[%s745 + $0x304] sm:$0xff]
        %v1018 = vld [vmem:[%s745 + $0x30c] sm:$0xff]
        %v1019 = vld [vmem:[%s745 + $0x314] sm:$0xf]
        %v1020 = vld [vmem:[%s745 + $0x318] sm:$0xff]
        %v1021 = vld [vmem:[%s745 + $0x320] sm:$0xff]
        %v1022 = vld [vmem:[%s745 + $0x328] sm:$0xff]
        %v1023 = vld [vmem:[%s745 + $0x330] sm:$0xff]
        %v1024 = vld [vmem:[%s745 + $0x338] sm:$0xf]
        %v1025 = vld [vmem:[%s745 + $0x33c] sm:$0xff]
        %v1026 = vld [vmem:[%s745 + $0x344] sm:$0xff]
        %v1027 = vld [vmem:[%s745 + $0x34c] sm:$0xff]
        %v1028 = vld [vmem:[%s745 + $0x354] sm:$0xff]
        %v1029 = vld [vmem:[%s745 + $0x35c] sm:$0xf]
        %v1030 = vld [vmem:[%s749] sm:$0xff]
        %v1031 = vld [vmem:[%s749 + $0x8] sm:$0x1]
        %v1034 = vlaneseq
        %v1035 = vshrl.u32 %v1034, 7
        %v1036 = vsub.s32 0, %v1035
        %v1037 = vrot.slane %v1030, %v1036
        %v1038 = vlaneseq
        %v1039 = vshrl.u32 %v1038, 7
        %v1040 = vsub.s32 1, %v1039
        %v1041 = vrot.slane %v1030, %v1040
        %v1042 = vlaneseq
        %v1043 = vshrl.u32 %v1042, 7
        %v1044 = vsub.s32 2, %v1043
        %v1045 = vrot.slane %v1030, %v1044
        %v1046 = vlaneseq
        %v1047 = vshrl.u32 %v1046, 7
        %v1048 = vsub.s32 3, %v1047
        %v1049 = vrot.slane %v1030, %v1048
        %v1050 = vlaneseq
        %v1051 = vshrl.u32 %v1050, 7
        %v1052 = vsub.s32 4, %v1051
        %v1053 = vrot.slane %v1030, %v1052
        %v1054 = vlaneseq
        %v1055 = vshrl.u32 %v1054, 7
        %v1056 = vsub.s32 5, %v1055
        %v1057 = vrot.slane %v1030, %v1056
        %v1058 = vlaneseq
        %v1059 = vshrl.u32 %v1058, 7
        %v1060 = vsub.s32 6, %v1059
        %v1061 = vrot.slane %v1030, %v1060
        %v1062 = vlaneseq
        %v1063 = vshrl.u32 %v1062, 7
        %v1064 = vsub.s32 7, %v1063
        %v1065 = vrot.slane %v1030, %v1064
        %v1066 = vlaneseq
        %v1067 = vshrl.u32 %v1066, 7
        %v1068 = vsub.s32 0, %v1067
        %v1069 = vrot.slane %v1031, %v1068
        %v1199 = vunpack.c.l.b16 %v910
        %v1200 = vunpack.c.h.b16 %v910
        %v1201 = vunpack.c.l.b16 %v911
        %v1202 = vunpack.c.h.b16 %v911
        %v1203 = vunpack.c.l.b16 %v912
        %v1204 = vunpack.c.h.b16 %v912
        %v1205 = vunpack.c.l.b16 %v913
        %v1206 = vunpack.c.h.b16 %v913
        %v1207 = vunpack.c.l.b16 %v914
        %v1208 = vunpack.c.l.b16 %v915
        %v1209 = vunpack.c.h.b16 %v915
        %v1210 = vunpack.c.l.b16 %v916
        %v1211 = vunpack.c.h.b16 %v916
        %v1212 = vunpack.c.l.b16 %v917
        %v1213 = vunpack.c.h.b16 %v917
        %v1214 = vunpack.c.l.b16 %v918
        %v1215 = vunpack.c.h.b16 %v918
        %v1216 = vunpack.c.l.b16 %v919
        %v1217 = vunpack.c.l.b16 %v920
        %v1218 = vunpack.c.h.b16 %v920
        %v1219 = vunpack.c.l.b16 %v921
        %v1220 = vunpack.c.h.b16 %v921
        %v1221 = vunpack.c.l.b16 %v922
        %v1222 = vunpack.c.h.b16 %v922
        %v1223 = vunpack.c.l.b16 %v923
        %v1224 = vunpack.c.h.b16 %v923
        %v1225 = vunpack.c.l.b16 %v924
        %v1226 = vunpack.c.l.b16 %v925
        %v1227 = vunpack.c.h.b16 %v925
        %v1228 = vunpack.c.l.b16 %v926
        %v1229 = vunpack.c.h.b16 %v926
        %v1230 = vunpack.c.l.b16 %v927
        %v1231 = vunpack.c.h.b16 %v927
        %v1232 = vunpack.c.l.b16 %v928
        %v1233 = vunpack.c.h.b16 %v928
        %v1234 = vunpack.c.l.b16 %v929
        %v1235 = vunpack.c.l.b16 %v930
        %v1236 = vunpack.c.h.b16 %v930
        %v1237 = vunpack.c.l.b16 %v931
        %v1238 = vunpack.c.h.b16 %v931
        %v1239 = vunpack.c.l.b16 %v932
        %v1240 = vunpack.c.h.b16 %v932
        %v1241 = vunpack.c.l.b16 %v933
        %v1242 = vunpack.c.h.b16 %v933
        %v1243 = vunpack.c.l.b16 %v934
        %v1244 = vunpack.c.l.b16 %v935
        %v1245 = vunpack.c.h.b16 %v935
        %v1246 = vunpack.c.l.b16 %v936
        %v1247 = vunpack.c.h.b16 %v936
        %v1248 = vunpack.c.l.b16 %v937
        %v1249 = vunpack.c.h.b16 %v937
        %v1250 = vunpack.c.l.b16 %v938
        %v1251 = vunpack.c.h.b16 %v938
        %v1252 = vunpack.c.l.b16 %v939
        %v1253 = vunpack.c.l.b16 %v940
        %v1254 = vunpack.c.h.b16 %v940
        %v1255 = vunpack.c.l.b16 %v941
        %v1256 = vunpack.c.h.b16 %v941
        %v1257 = vunpack.c.l.b16 %v942
        %v1258 = vunpack.c.h.b16 %v942
        %v1259 = vunpack.c.l.b16 %v943
        %v1260 = vunpack.c.h.b16 %v943
        %v1261 = vunpack.c.l.b16 %v944
        %v1262 = vunpack.c.l.b16 %v945
        %v1263 = vunpack.c.h.b16 %v945
        %v1264 = vunpack.c.l.b16 %v946
        %v1265 = vunpack.c.h.b16 %v946
        %v1266 = vunpack.c.l.b16 %v947
        %v1267 = vunpack.c.h.b16 %v947
        %v1268 = vunpack.c.l.b16 %v948
        %v1269 = vunpack.c.h.b16 %v948
        %v1270 = vunpack.c.l.b16 %v949
        %v1271 = vunpack.c.l.b16 %v950
        %v1272 = vunpack.c.h.b16 %v950
        %v1273 = vunpack.c.l.b16 %v951
        %v1274 = vunpack.c.h.b16 %v951
        %v1275 = vunpack.c.l.b16 %v952
        %v1276 = vunpack.c.h.b16 %v952
        %v1277 = vunpack.c.l.b16 %v953
        %v1278 = vunpack.c.h.b16 %v953
        %v1279 = vunpack.c.l.b16 %v954
        %v1280 = vunpack.c.l.b16 %v955
        %v1281 = vunpack.c.h.b16 %v955
        %v1282 = vunpack.c.l.b16 %v956
        %v1283 = vunpack.c.h.b16 %v956
        %v1284 = vunpack.c.l.b16 %v957
        %v1285 = vunpack.c.h.b16 %v957
        %v1286 = vunpack.c.l.b16 %v958
        %v1287 = vunpack.c.h.b16 %v958
        %v1288 = vunpack.c.l.b16 %v959
        %v1289 = vunpack.c.l.b16 %v960
        %v1290 = vunpack.c.h.b16 %v960
        %v1291 = vunpack.c.l.b16 %v961
        %v1292 = vunpack.c.h.b16 %v961
        %v1293 = vunpack.c.l.b16 %v962
        %v1294 = vunpack.c.h.b16 %v962
        %v1295 = vunpack.c.l.b16 %v963
        %v1296 = vunpack.c.h.b16 %v963
        %v1297 = vunpack.c.l.b16 %v964
        %v1298 = vunpack.c.l.b16 %v965
        %v1299 = vunpack.c.h.b16 %v965
        %v1300 = vunpack.c.l.b16 %v966
        %v1301 = vunpack.c.h.b16 %v966
        %v1302 = vunpack.c.l.b16 %v967
        %v1303 = vunpack.c.h.b16 %v967
        %v1304 = vunpack.c.l.b16 %v968
        %v1305 = vunpack.c.h.b16 %v968
        %v1306 = vunpack.c.l.b16 %v969
        %v1307 = vunpack.c.l.b16 %v970
        %v1308 = vunpack.c.h.b16 %v970
        %v1309 = vunpack.c.l.b16 %v971
        %v1310 = vunpack.c.h.b16 %v971
        %v1311 = vunpack.c.l.b16 %v972
        %v1312 = vunpack.c.h.b16 %v972
        %v1313 = vunpack.c.l.b16 %v973
        %v1314 = vunpack.c.h.b16 %v973
        %v1315 = vunpack.c.l.b16 %v974
        %v1316 = vunpack.c.l.b16 %v975
        %v1317 = vunpack.c.h.b16 %v975
        %v1318 = vunpack.c.l.b16 %v976
        %v1319 = vunpack.c.h.b16 %v976
        %v1320 = vunpack.c.l.b16 %v977
        %v1321 = vunpack.c.h.b16 %v977
        %v1322 = vunpack.c.l.b16 %v978
        %v1323 = vunpack.c.h.b16 %v978
        %v1324 = vunpack.c.l.b16 %v979
        %v1325 = vunpack.c.l.b16 %v980
        %v1326 = vunpack.c.h.b16 %v980
        %v1327 = vunpack.c.l.b16 %v981
        %v1328 = vunpack.c.h.b16 %v981
        %v1329 = vunpack.c.l.b16 %v982
        %v1330 = vunpack.c.h.b16 %v982
        %v1331 = vunpack.c.l.b16 %v983
        %v1332 = vunpack.c.h.b16 %v983
        %v1333 = vunpack.c.l.b16 %v984
        %v1334 = vunpack.c.l.b16 %v985
        %v1335 = vunpack.c.h.b16 %v985
        %v1336 = vunpack.c.l.b16 %v986
        %v1337 = vunpack.c.h.b16 %v986
        %v1338 = vunpack.c.l.b16 %v987
        %v1339 = vunpack.c.h.b16 %v987
        %v1340 = vunpack.c.l.b16 %v988
        %v1341 = vunpack.c.h.b16 %v988
        %v1342 = vunpack.c.l.b16 %v989
        %v1343 = vunpack.c.l.b16 %v990
        %v1344 = vunpack.c.h.b16 %v990
        %v1345 = vunpack.c.l.b16 %v991
        %v1346 = vunpack.c.h.b16 %v991
        %v1347 = vunpack.c.l.b16 %v992
        %v1348 = vunpack.c.h.b16 %v992
        %v1349 = vunpack.c.l.b16 %v993
        %v1350 = vunpack.c.h.b16 %v993
        %v1351 = vunpack.c.l.b16 %v994
        %v1352 = vunpack.c.l.b16 %v995
        %v1353 = vunpack.c.h.b16 %v995
        %v1354 = vunpack.c.l.b16 %v996
        %v1355 = vunpack.c.h.b16 %v996
        %v1356 = vunpack.c.l.b16 %v997
        %v1357 = vunpack.c.h.b16 %v997
        %v1358 = vunpack.c.l.b16 %v998
        %v1359 = vunpack.c.h.b16 %v998
        %v1360 = vunpack.c.l.b16 %v999
        %v1361 = vunpack.c.l.b16 %v1000
        %v1362 = vunpack.c.h.b16 %v1000
        %v1363 = vunpack.c.l.b16 %v1001
        %v1364 = vunpack.c.h.b16 %v1001
        %v1365 = vunpack.c.l.b16 %v1002
        %v1366 = vunpack.c.h.b16 %v1002
        %v1367 = vunpack.c.l.b16 %v1003
        %v1368 = vunpack.c.h.b16 %v1003
        %v1369 = vunpack.c.l.b16 %v1004
        %v1370 = vunpack.c.l.b16 %v1005
        %v1371 = vunpack.c.h.b16 %v1005
        %v1372 = vunpack.c.l.b16 %v1006
        %v1373 = vunpack.c.h.b16 %v1006
        %v1374 = vunpack.c.l.b16 %v1007
        %v1375 = vunpack.c.h.b16 %v1007
        %v1376 = vunpack.c.l.b16 %v1008
        %v1377 = vunpack.c.h.b16 %v1008
        %v1378 = vunpack.c.l.b16 %v1009
        %v1379 = vunpack.c.l.b16 %v1010
        %v1380 = vunpack.c.h.b16 %v1010
        %v1381 = vunpack.c.l.b16 %v1011
        %v1382 = vunpack.c.h.b16 %v1011
        %v1383 = vunpack.c.l.b16 %v1012
        %v1384 = vunpack.c.h.b16 %v1012
        %v1385 = vunpack.c.l.b16 %v1013
        %v1386 = vunpack.c.h.b16 %v1013
        %v1387 = vunpack.c.l.b16 %v1014
        %v1388 = vunpack.c.l.b16 %v1015
        %v1389 = vunpack.c.h.b16 %v1015
        %v1390 = vunpack.c.l.b16 %v1016
        %v1391 = vunpack.c.h.b16 %v1016
        %v1392 = vunpack.c.l.b16 %v1017
        %v1393 = vunpack.c.h.b16 %v1017
        %v1394 = vunpack.c.l.b16 %v1018
        %v1395 = vunpack.c.h.b16 %v1018
        %v1396 = vunpack.c.l.b16 %v1019
        %v1397 = vunpack.c.l.b16 %v1020
        %v1398 = vunpack.c.h.b16 %v1020
        %v1399 = vunpack.c.l.b16 %v1021
        %v1400 = vunpack.c.h.b16 %v1021
        %v1401 = vunpack.c.l.b16 %v1022
        %v1402 = vunpack.c.h.b16 %v1022
        %v1403 = vunpack.c.l.b16 %v1023
        %v1404 = vunpack.c.h.b16 %v1023
        %v1405 = vunpack.c.l.b16 %v1024
        %v1406 = vunpack.c.l.b16 %v1025
        %v1407 = vunpack.c.h.b16 %v1025
        %v1408 = vunpack.c.l.b16 %v1026
        %v1409 = vunpack.c.h.b16 %v1026
        %v1410 = vunpack.c.l.b16 %v1027
        %v1411 = vunpack.c.h.b16 %v1027
        %v1412 = vunpack.c.l.b16 %v1028
        %v1413 = vunpack.c.h.b16 %v1028
        %v1414 = vunpack.c.l.b16 %v1029
        %v1415 = vpack.c.b16 %v1208, %v1199
        %v1416 = vpack.c.b16 %v1209, %v1200
        %v1417 = vpack.c.b16 %v1210, %v1201
        %v1418 = vpack.c.b16 %v1211, %v1202
        %v1419 = vpack.c.b16 %v1212, %v1203
        %v1420 = vpack.c.b16 %v1213, %v1204
        %v1421 = vpack.c.b16 %v1214, %v1205
        %v1422 = vpack.c.b16 %v1215, %v1206
        %v1423 = vpack.c.b16 %v1216, %v1207
        %v1424 = vpack.c.b16 %v1226, %v1217
        %v1425 = vpack.c.b16 %v1227, %v1218
        %v1426 = vpack.c.b16 %v1228, %v1219
        %v1427 = vpack.c.b16 %v1229, %v1220
        %v1428 = vpack.c.b16 %v1230, %v1221
        %v1429 = vpack.c.b16 %v1231, %v1222
        %v1430 = vpack.c.b16 %v1232, %v1223
        %v1431 = vpack.c.b16 %v1233, %v1224
        %v1432 = vpack.c.b16 %v1234, %v1225
        %v1433 = vpack.c.b16 %v1244, %v1235
        %v1434 = vpack.c.b16 %v1245, %v1236
        %v1435 = vpack.c.b16 %v1246, %v1237
        %v1436 = vpack.c.b16 %v1247, %v1238
        %v1437 = vpack.c.b16 %v1248, %v1239
        %v1438 = vpack.c.b16 %v1249, %v1240
        %v1439 = vpack.c.b16 %v1250, %v1241
        %v1440 = vpack.c.b16 %v1251, %v1242
        %v1441 = vpack.c.b16 %v1252, %v1243
        %v1442 = vpack.c.b16 %v1262, %v1253
        %v1443 = vpack.c.b16 %v1263, %v1254
        %v1444 = vpack.c.b16 %v1264, %v1255
        %v1445 = vpack.c.b16 %v1265, %v1256
        %v1446 = vpack.c.b16 %v1266, %v1257
        %v1447 = vpack.c.b16 %v1267, %v1258
        %v1448 = vpack.c.b16 %v1268, %v1259
        %v1449 = vpack.c.b16 %v1269, %v1260
        %v1450 = vpack.c.b16 %v1270, %v1261
        %v1451 = vpack.c.b16 %v1280, %v1271
        %v1452 = vpack.c.b16 %v1281, %v1272
        %v1453 = vpack.c.b16 %v1282, %v1273
        %v1454 = vpack.c.b16 %v1283, %v1274
        %v1455 = vpack.c.b16 %v1284, %v1275
        %v1456 = vpack.c.b16 %v1285, %v1276
        %v1457 = vpack.c.b16 %v1286, %v1277
        %v1458 = vpack.c.b16 %v1287, %v1278
        %v1459 = vpack.c.b16 %v1288, %v1279
        %v1460 = vpack.c.b16 %v1298, %v1289
        %v1461 = vpack.c.b16 %v1299, %v1290
        %v1462 = vpack.c.b16 %v1300, %v1291
        %v1463 = vpack.c.b16 %v1301, %v1292
        %v1464 = vpack.c.b16 %v1302, %v1293
        %v1465 = vpack.c.b16 %v1303, %v1294
        %v1466 = vpack.c.b16 %v1304, %v1295
        %v1467 = vpack.c.b16 %v1305, %v1296
        %v1468 = vpack.c.b16 %v1306, %v1297
        %v1469 = vpack.c.b16 %v1316, %v1307
        %v1470 = vpack.c.b16 %v1317, %v1308
        %v1471 = vpack.c.b16 %v1318, %v1309
        %v1472 = vpack.c.b16 %v1319, %v1310
        %v1473 = vpack.c.b16 %v1320, %v1311
        %v1474 = vpack.c.b16 %v1321, %v1312
        %v1475 = vpack.c.b16 %v1322, %v1313
        %v1476 = vpack.c.b16 %v1323, %v1314
        %v1477 = vpack.c.b16 %v1324, %v1315
        %v1478 = vpack.c.b16 %v1334, %v1325
        %v1479 = vpack.c.b16 %v1335, %v1326
        %v1480 = vpack.c.b16 %v1336, %v1327
        %v1481 = vpack.c.b16 %v1337, %v1328
        %v1482 = vpack.c.b16 %v1338, %v1329
        %v1483 = vpack.c.b16 %v1339, %v1330
        %v1484 = vpack.c.b16 %v1340, %v1331
        %v1485 = vpack.c.b16 %v1341, %v1332
        %v1486 = vpack.c.b16 %v1342, %v1333
        %v1487 = vpack.c.b16 %v1352, %v1343
        %v1488 = vpack.c.b16 %v1353, %v1344
        %v1489 = vpack.c.b16 %v1354, %v1345
        %v1490 = vpack.c.b16 %v1355, %v1346
        %v1491 = vpack.c.b16 %v1356, %v1347
        %v1492 = vpack.c.b16 %v1357, %v1348
        %v1493 = vpack.c.b16 %v1358, %v1349
        %v1494 = vpack.c.b16 %v1359, %v1350
        %v1495 = vpack.c.b16 %v1360, %v1351
        %v1496 = vpack.c.b16 %v1370, %v1361
        %v1497 = vpack.c.b16 %v1371, %v1362
        %v1498 = vpack.c.b16 %v1372, %v1363
        %v1499 = vpack.c.b16 %v1373, %v1364
        %v1500 = vpack.c.b16 %v1374, %v1365
        %v1501 = vpack.c.b16 %v1375, %v1366
        %v1502 = vpack.c.b16 %v1376, %v1367
        %v1503 = vpack.c.b16 %v1377, %v1368
        %v1504 = vpack.c.b16 %v1378, %v1369
        %v1505 = vpack.c.b16 %v1388, %v1379
        %v1506 = vpack.c.b16 %v1389, %v1380
        %v1507 = vpack.c.b16 %v1390, %v1381
        %v1508 = vpack.c.b16 %v1391, %v1382
        %v1509 = vpack.c.b16 %v1392, %v1383
        %v1510 = vpack.c.b16 %v1393, %v1384
        %v1511 = vpack.c.b16 %v1394, %v1385
        %v1512 = vpack.c.b16 %v1395, %v1386
        %v1513 = vpack.c.b16 %v1396, %v1387
        %v1514 = vpack.c.b16 %v1406, %v1397
        %v1515 = vpack.c.b16 %v1407, %v1398
        %v1516 = vpack.c.b16 %v1408, %v1399
        %v1517 = vpack.c.b16 %v1409, %v1400
        %v1518 = vpack.c.b16 %v1410, %v1401
        %v1519 = vpack.c.b16 %v1411, %v1402
        %v1520 = vpack.c.b16 %v1412, %v1403
        %v1521 = vpack.c.b16 %v1413, %v1404
        %v1522 = vpack.c.b16 %v1414, %v1405
        %v1632 = vsel %vm812, %v907, 0
        %v1635 = vsel %vm812, %v909, 0
        %1637 = vmatprep.subr.bf16.mxu0 %v1416
        %1638 = vmatpush1.bf16.msra.mxu0 %v1415
        %1639 = vmatprep.subr.bf16.mxu0 %v1425
        %1640 = vmatpush1.bf16.msra.mxu0 %v1424
        %1641 = vmatprep.subr.bf16.mxu0 %v1434
        %1642 = vmatpush1.bf16.msra.mxu0 %v1433
        %1643 = vmatprep.subr.bf16.mxu0 %v1443
        %1644 = vmatpush1.bf16.msra.mxu0 %v1442
        %1645 = vmatprep.subr.bf16.mxu0 %v1452
        %1646 = vmatpush1.bf16.msra.mxu0 %v1451
        %1647 = vmatprep.subr.bf16.mxu0 %v1461
        %1648 = vmatpush1.bf16.msra.mxu0 %v1460
        %1649 = vmatprep.subr.bf16.mxu0 %v1470
        %1650 = vmatpush1.bf16.msra.mxu0 %v1469
        %1651 = vmatprep.subr.bf16.mxu0 %v1479
        %1652 = vmatpush1.bf16.msra.mxu0 %v1478
        %1653 = vmatprep.subr.bf16.mxu0 %v1488
        %1654 = vmatpush1.bf16.msra.mxu0 %v1487
        %1655 = vmatprep.subr.bf16.mxu0 %v1497
        %1656 = vmatpush1.bf16.msra.mxu0 %v1496
        %1657 = vmatprep.subr.bf16.mxu0 %v1506
        %1658 = vmatpush1.bf16.msra.mxu0 %v1505
        %1659 = vmatprep.subr.bf16.mxu0 %v1515
        %1660 = vmatpush1.bf16.msra.mxu0 %v1514
        %1661 = vmatprep.subr.bf16.mxu0 0
        %1662 = vmatpush1.bf16.msra.mxu0 0
        %1663 = vmatprep.subr.bf16.mxu0 0
        %1664 = vmatpush1.bf16.msra.mxu0 0
        %1665 = vmatprep.subr.bf16.mxu0 0
        %1666 = vmatpush1.bf16.msra.mxu0 0
        %1667 = vmatprep.subr.bf16.mxu0 0
        %1668 = vmatpush1.bf16.msra.mxu0 0
        %1669 = vmatprep.mubr.bf16.mxu0 %v1632
        %1670 = vmatmul.mubr.bf16.gmra.mrb[0].mxu0 %v906
        %v1671 = vpop.f32.mrb[0].mxu0
        %v1672 = vadd.f32 %v1037, %v1671
        %v1673 = vpop.f32.mrb[0].mxu0
        %v1674 = vadd.f32 %v1041, %v1673
        %v1675 = vpop.f32.mrb[0].mxu0
        %v1676 = vadd.f32 %v1037, %v1675
        %v1677 = vpop.f32.mrb[0].mxu0
        %v1678 = vadd.f32 %v1041, %v1677
        %1679 = vmatprep.mubr.bf16.mxu0 %v1635
        %1680 = vmatmul.mubr.bf16.gmra.mrb[0].mxu0 %v908
        %v1681 = vpop.f32.mrb[0].mxu0
        %v1682 = vadd.f32 %v1037, %v1681
        %v1683 = vpop.f32.mrb[0].mxu0
        %v1684 = vadd.f32 %v1041, %v1683
        %v1685 = vpop.f32.mrb[0].mxu0
        %v1686 = vpop.f32.mrb[0].mxu0
        %1687 = vdwg.mxu0
        %1688 = vmatprep.subr.bf16.mxu0 %v1418
        %1689 = vmatpush1.bf16.msra.mxu0 %v1417
        %1690 = vmatprep.subr.bf16.mxu0 %v1427
        %1691 = vmatpush1.bf16.msra.mxu0 %v1426
        %1692 = vmatprep.subr.bf16.mxu0 %v1436
        %1693 = vmatpush1.bf16.msra.mxu0 %v1435
        %1694 = vmatprep.subr.bf16.mxu0 %v1445
        %1695 = vmatpush1.bf16.msra.mxu0 %v1444
        %1696 = vmatprep.subr.bf16.mxu0 %v1454
        %1697 = vmatpush1.bf16.msra.mxu0 %v1453
        %1698 = vmatprep.subr.bf16.mxu0 %v1463
        %1699 = vmatpush1.bf16.msra.mxu0 %v1462
        %1700 = vmatprep.subr.bf16.mxu0 %v1472
        %1701 = vmatpush1.bf16.msra.mxu0 %v1471
        %1702 = vmatprep.subr.bf16.mxu0 %v1481
        %1703 = vmatpush1.bf16.msra.mxu0 %v1480
        %1704 = vmatprep.subr.bf16.mxu0 %v1490
        %1705 = vmatpush1.bf16.msra.mxu0 %v1489
        %1706 = vmatprep.subr.bf16.mxu0 %v1499
        %1707 = vmatpush1.bf16.msra.mxu0 %v1498
        %1708 = vmatprep.subr.bf16.mxu0 %v1508
        %1709 = vmatpush1.bf16.msra.mxu0 %v1507
        %1710 = vmatprep.subr.bf16.mxu0 %v1517
        %1711 = vmatpush1.bf16.msra.mxu0 %v1516
        %1712 = vmatprep.subr.bf16.mxu0 0
        %1713 = vmatpush1.bf16.msra.mxu0 0
        %1714 = vmatprep.subr.bf16.mxu0 0
        %1715 = vmatpush1.bf16.msra.mxu0 0
        %1716 = vmatprep.subr.bf16.mxu0 0
        %1717 = vmatpush1.bf16.msra.mxu0 0
        %1718 = vmatprep.subr.bf16.mxu0 0
        %1719 = vmatpush1.bf16.msra.mxu0 0
        %1720 = vmatprep.mubr.bf16.mxu0 %v1632
        %1721 = vmatmul.mubr.bf16.gmra.mrb[0].mxu0 %v906
        %v1722 = vpop.f32.mrb[0].mxu0
        %v1723 = vadd.f32 %v1045, %v1722
        %v1724 = vpop.f32.mrb[0].mxu0
        %v1725 = vadd.f32 %v1049, %v1724
        %v1726 = vpop.f32.mrb[0].mxu0
        %v1727 = vadd.f32 %v1045, %v1726
        %v1728 = vpop.f32.mrb[0].mxu0
        %v1729 = vadd.f32 %v1049, %v1728
        %1730 = vmatprep.mubr.bf16.mxu0 %v1635
        %1731 = vmatmul.mubr.bf16.gmra.mrb[0].mxu0 %v908
        %v1732 = vpop.f32.mrb[0].mxu0
        %v1733 = vadd.f32 %v1045, %v1732
        %v1734 = vpop.f32.mrb[0].mxu0
        %v1735 = vadd.f32 %v1049, %v1734
        %v1736 = vpop.f32.mrb[0].mxu0
        %v1737 = vpop.f32.mrb[0].mxu0
        %1738 = vdwg.mxu0
        %1739 = vmatprep.subr.bf16.mxu0 %v1420
        %1740 = vmatpush1.bf16.msra.mxu0 %v1419
        %1741 = vmatprep.subr.bf16.mxu0 %v1429
        %1742 = vmatpush1.bf16.msra.mxu0 %v1428
        %1743 = vmatprep.subr.bf16.mxu0 %v1438
        %1744 = vmatpush1.bf16.msra.mxu0 %v1437
        %1745 = vmatprep.subr.bf16.mxu0 %v1447
        %1746 = vmatpush1.bf16.msra.mxu0 %v1446
        %1747 = vmatprep.subr.bf16.mxu0 %v1456
        %1748 = vmatpush1.bf16.msra.mxu0 %v1455
        %1749 = vmatprep.subr.bf16.mxu0 %v1465
        %1750 = vmatpush1.bf16.msra.mxu0 %v1464
        %1751 = vmatprep.subr.bf16.mxu0 %v1474
        %1752 = vmatpush1.bf16.msra.mxu0 %v1473
        %1753 = vmatprep.subr.bf16.mxu0 %v1483
        %1754 = vmatpush1.bf16.msra.mxu0 %v1482
        %1755 = vmatprep.subr.bf16.mxu0 %v1492
        %1756 = vmatpush1.bf16.msra.mxu0 %v1491
        %1757 = vmatprep.subr.bf16.mxu0 %v1501
        %1758 = vmatpush1.bf16.msra.mxu0 %v1500
        %1759 = vmatprep.subr.bf16.mxu0 %v1510
        %1760 = vmatpush1.bf16.msra.mxu0 %v1509
        %1761 = vmatprep.subr.bf16.mxu0 %v1519
        %1762 = vmatpush1.bf16.msra.mxu0 %v1518
        %1763 = vmatprep.subr.bf16.mxu0 0
        %1764 = vmatpush1.bf16.msra.mxu0 0
        %1765 = vmatprep.subr.bf16.mxu0 0
        %1766 = vmatpush1.bf16.msra.mxu0 0
        %1767 = vmatprep.subr.bf16.mxu0 0
        %1768 = vmatpush1.bf16.msra.mxu0 0
        %1769 = vmatprep.subr.bf16.mxu0 0
        %1770 = vmatpush1.bf16.msra.mxu0 0
        %1771 = vmatprep.mubr.bf16.mxu0 %v1632
        %1772 = vmatmul.mubr.bf16.gmra.mrb[0].mxu0 %v906
        %v1773 = vpop.f32.mrb[0].mxu0
        %v1774 = vadd.f32 %v1053, %v1773
        %v1775 = vpop.f32.mrb[0].mxu0
        %v1776 = vadd.f32 %v1057, %v1775
        %v1777 = vpop.f32.mrb[0].mxu0
        %v1778 = vadd.f32 %v1053, %v1777
        %v1779 = vpop.f32.mrb[0].mxu0
        %v1780 = vadd.f32 %v1057, %v1779
        %1781 = vmatprep.mubr.bf16.mxu0 %v1635
        %1782 = vmatmul.mubr.bf16.gmra.mrb[0].mxu0 %v908
        %v1783 = vpop.f32.mrb[0].mxu0
        %v1784 = vadd.f32 %v1053, %v1783
        %v1785 = vpop.f32.mrb[0].mxu0
        %v1786 = vadd.f32 %v1057, %v1785
        %v1787 = vpop.f32.mrb[0].mxu0
        %v1788 = vpop.f32.mrb[0].mxu0
        %1789 = vdwg.mxu0
        %1790 = vmatprep.subr.bf16.mxu0 %v1422
        %1791 = vmatpush1.bf16.msra.mxu0 %v1421
        %1792 = vmatprep.subr.bf16.mxu0 %v1431
        %1793 = vmatpush1.bf16.msra.mxu0 %v1430
        %1794 = vmatprep.subr.bf16.mxu0 %v1440
        %1795 = vmatpush1.bf16.msra.mxu0 %v1439
        %1796 = vmatprep.subr.bf16.mxu0 %v1449
        %1797 = vmatpush1.bf16.msra.mxu0 %v1448
        %1798 = vmatprep.subr.bf16.mxu0 %v1458
        %1799 = vmatpush1.bf16.msra.mxu0 %v1457
        %1800 = vmatprep.subr.bf16.mxu0 %v1467
        %1801 = vmatpush1.bf16.msra.mxu0 %v1466
        %1802 = vmatprep.subr.bf16.mxu0 %v1476
        %1803 = vmatpush1.bf16.msra.mxu0 %v1475
        %1804 = vmatprep.subr.bf16.mxu0 %v1485
        %1805 = vmatpush1.bf16.msra.mxu0 %v1484
        %1806 = vmatprep.subr.bf16.mxu0 %v1494
        %1807 = vmatpush1.bf16.msra.mxu0 %v1493
        %1808 = vmatprep.subr.bf16.mxu0 %v1503
        %1809 = vmatpush1.bf16.msra.mxu0 %v1502
        %1810 = vmatprep.subr.bf16.mxu0 %v1512
        %1811 = vmatpush1.bf16.msra.mxu0 %v1511
        %1812 = vmatprep.subr.bf16.mxu0 %v1521
        %1813 = vmatpush1.bf16.msra.mxu0 %v1520
        %1814 = vmatprep.subr.bf16.mxu0 0
        %1815 = vmatpush1.bf16.msra.mxu0 0
        %1816 = vmatprep.subr.bf16.mxu0 0
        %1817 = vmatpush1.bf16.msra.mxu0 0
        %1818 = vmatprep.subr.bf16.mxu0 0
        %1819 = vmatpush1.bf16.msra.mxu0 0
        %1820 = vmatprep.subr.bf16.mxu0 0
        %1821 = vmatpush1.bf16.msra.mxu0 0
        %1822 = vmatprep.mubr.bf16.mxu0 %v1632
        %1823 = vmatmul.mubr.bf16.gmra.mrb[0].mxu0 %v906
        %v1824 = vpop.f32.mrb[0].mxu0
        %v1825 = vadd.f32 %v1061, %v1824
        %v1826 = vpop.f32.mrb[0].mxu0
        %v1827 = vadd.f32 %v1065, %v1826
        %v1828 = vpop.f32.mrb[0].mxu0
        %v1829 = vadd.f32 %v1061, %v1828
        %v1830 = vpop.f32.mrb[0].mxu0
        %v1831 = vadd.f32 %v1065, %v1830
        %1832 = vmatprep.mubr.bf16.mxu0 %v1635
        %1833 = vmatmul.mubr.bf16.gmra.mrb[0].mxu0 %v908
        %v1834 = vpop.f32.mrb[0].mxu0
        %v1835 = vadd.f32 %v1061, %v1834
        %v1836 = vpop.f32.mrb[0].mxu0
        %v1837 = vadd.f32 %v1065, %v1836
        %v1838 = vpop.f32.mrb[0].mxu0
        %v1839 = vpop.f32.mrb[0].mxu0
        %1840 = vdwg.mxu0
        %1841 = vmatprep.subr.bf16.mxu0 0
        %1842 = vmatpush1.bf16.msra.mxu0 %v1423
        %1843 = vmatprep.subr.bf16.mxu0 0
        %1844 = vmatpush1.bf16.msra.mxu0 %v1432
        %1845 = vmatprep.subr.bf16.mxu0 0
        %1846 = vmatpush1.bf16.msra.mxu0 %v1441
        %1847 = vmatprep.subr.bf16.mxu0 0
        %1848 = vmatpush1.bf16.msra.mxu0 %v1450
        %1849 = vmatprep.subr.bf16.mxu0 0
        %1850 = vmatpush1.bf16.msra.mxu0 %v1459
        %1851 = vmatprep.subr.bf16.mxu0 0
        %1852 = vmatpush1.bf16.msra.mxu0 %v1468
        %1853 = vmatprep.subr.bf16.mxu0 0
        %1854 = vmatpush1.bf16.msra.mxu0 %v1477
        %1855 = vmatprep.subr.bf16.mxu0 0
        %1856 = vmatpush1.bf16.msra.mxu0 %v1486
        %1857 = vmatprep.subr.bf16.mxu0 0
        %1858 = vmatpush1.bf16.msra.mxu0 %v1495
        %1859 = vmatprep.subr.bf16.mxu0 0
        %1860 = vmatpush1.bf16.msra.mxu0 %v1504
        %1861 = vmatprep.subr.bf16.mxu0 0
        %1862 = vmatpush1.bf16.msra.mxu0 %v1513
        %1863 = vmatprep.subr.bf16.mxu0 0
        %1864 = vmatpush1.bf16.msra.mxu0 %v1522
        %1865 = vmatprep.subr.bf16.mxu0 0
        %1866 = vmatpush1.bf16.msra.mxu0 0
        %1867 = vmatprep.subr.bf16.mxu0 0
        %1868 = vmatpush1.bf16.msra.mxu0 0
        %1869 = vmatprep.subr.bf16.mxu0 0
        %1870 = vmatpush1.bf16.msra.mxu0 0
        %1871 = vmatprep.subr.bf16.mxu0 0
        %1872 = vmatpush1.bf16.msra.mxu0 0
        %1873 = vmatprep.mubr.bf16.mxu0 %v1632
        %1874 = vmatmul.mubr.bf16.gmra.mrb[0].mxu0 %v906
        %v1875 = vpop.f32.mrb[0].mxu0
        %v1876 = vadd.f32 %v1069, %v1875
        %v1877 = vpop.f32.mrb[0].mxu0
        %v1878 = vpop.f32.mrb[0].mxu0
        %v1879 = vadd.f32 %v1069, %v1878
        %v1880 = vpop.f32.mrb[0].mxu0
        %1881 = vmatprep.mubr.bf16.mxu0 %v1635
        %1882 = vmatmul.mubr.bf16.gmra.mrb[0].mxu0 %v908
        %v1883 = vpop.f32.mrb[0].mxu0
        %v1884 = vadd.f32 %v1069, %v1883
        %v1885 = vpop.f32.mrb[0].mxu0
        %v1886 = vpop.f32.mrb[0].mxu0
        %v1887 = vpop.f32.mrb[0].mxu0
        %1888 = vdwg.mxu0
        %1889 = vmatprep.subr.mxu0 0.0
        %1890 = vmatpush1.xpose.msra.mxu0 %v1725
        %1891 = vmatprep.subr.mxu0 0.0
        %1892 = vmatpush1.xpose.msra.mxu0 %v1729
        %1893 = vmatprep.subr.mxu0 0.0
        %1894 = vmatpush1.xpose.msra.mxu0 0.0
        %1895 = vmatprep.subr.mxu0 0.0
        %1896 = vmatpush1.xpose.msra.mxu0 0.0
        %1897 = vmatprep.subr.mxu0 0.0
        %1898 = vmatpush1.xpose.msra.mxu0 0.0
        %1899 = vmatprep.subr.mxu0 0.0
        %1900 = vmatpush1.xpose.msra.mxu0 0.0
        %1901 = vmatprep.subr.mxu0 0.0
        %1902 = vmatpush1.xpose.msra.mxu0 0.0
        %1903 = vmatprep.subr.mxu0 0.0
        %1904 = vmatpush1.xpose.msra.mxu0 0.0
        %1905 = vmatprep.subr.mxu0 0.0
        %1906 = vmatpush1.xpose.msra.mxu0 0.0
        %1907 = vmatprep.subr.mxu0 0.0
        %1908 = vmatpush1.xpose.msra.mxu0 0.0
        %1909 = vmatprep.subr.mxu0 0.0
        %1910 = vmatpush1.xpose.msra.mxu0 0.0
        %1911 = vmatprep.subr.mxu0 0.0
        %1912 = vmatpush1.xpose.msra.mxu0 0.0
        %1913 = vmatprep.subr.mxu0 0.0
        %1914 = vmatpush1.xpose.msra.mxu0 0.0
        %1915 = vmatprep.subr.mxu0 0.0
        %1916 = vmatpush1.xpose.msra.mxu0 0.0
        %1917 = vmatprep.subr.mxu0 0.0
        %1918 = vmatpush1.xpose.msra.mxu0 0.0
        %1919 = vmatprep.subr.mxu0 0.0
        %1920 = vmatpush1.xpose.msra.mxu0 0.0
        %1921 = vmatprep.subr.mxu0 0.0
        %1922 = vmatpush1.xpose.msra.mxu0 0.0
        %1923 = vmatprep.subr.mxu0 0.0
        %1924 = vmatpush1.xpose.msra.mxu0 0.0
        %1925 = vmatprep.subr.mxu0 0.0
        %1926 = vmatpush1.xpose.msra.mxu0 0.0
        %1927 = vmatprep.subr.mxu0 0.0
        %1928 = vmatpush1.xpose.msra.mxu0 0.0
        %1929 = vmatprep.subr.mxu0 0.0
        %1930 = vmatpush1.xpose.msra.mxu0 0.0
        %1931 = vmatprep.subr.mxu0 0.0
        %1932 = vmatpush1.xpose.msra.mxu0 0.0
        %1933 = vmatprep.subr.mxu0 0.0
        %1934 = vmatpush1.xpose.msra.mxu0 0.0
        %1935 = vmatprep.subr.mxu0 0.0
        %1936 = vmatpush1.xpose.msra.mxu0 0.0
        %1937 = vmatprep.subr.mxu0 0.0
        %1938 = vmatpush1.xpose.msra.mxu0 0.0
        %1939 = vmatprep.subr.mxu0 0.0
        %1940 = vmatpush1.xpose.msra.mxu0 0.0
        %1941 = vmatprep.subr.mxu0 0.0
        %1942 = vmatpush1.xpose.msra.mxu0 0.0
        %1943 = vmatprep.subr.mxu0 0.0
        %1944 = vmatpush1.xpose.msra.mxu0 0.0
        %1945 = vmatprep.subr.mxu0 0.0
        %1946 = vmatpush1.xpose.msra.mxu0 0.0
        %1947 = vmatprep.subr.mxu0 0.0
        %1948 = vmatpush1.xpose.msra.mxu0 0.0
        %1949 = vmatprep.subr.mxu0 0.0
        %1950 = vmatpush1.xpose.msra.mxu0 0.0
        %1951 = vmatprep.subr.mxu0 0.0
        %1952 = vmatpush1.xpose.msra.mxu0 0.0
        %1953 = vmatprep.mubr.f32.mxu0 0.0
        %1954 = vmatmul.mubr.f32.gmra.mrb[0].mxu0 %v1672
        %v1955 = vpop.f32.mrb[0].mxu0
        %v1956 = vadd.f32 0.0, %v1955
        %v1957 = vpop.f32.mrb[0].mxu0
        %1958 = vmatprep.mubr.f32.mxu0 0.0
        %1959 = vmatmul.mubr.f32.gmra.mrb[0].mxu0 %v1676
        %v1960 = vpop.f32.mrb[0].mxu0
        %v1961 = vadd.f32 0.0, %v1960
        %v1962 = vpop.f32.mrb[0].mxu0
        %1963 = vdwg.mxu0
        %v1964 = vmul.f32 %v1956, 0.125
        %v1965 = vmul.f32 %v1961, 0.125
        %vm1966 = vcmask 72704
        %v1967 = vsel %vm1966, %v1964, -inf
        %1968 = vmax.xlane.f32.xlu0 %v1967
        %v1969 = vpop.xlane.xlu0 %1968
        %vm1970 = vcmask 65536
        %v1971 = vsel %vm1970, %v1965, -inf
        %1972 = vmax.xlane.f32.xlu0 %v1971
        %v1973 = vpop.xlane.xlu0 %1972
        %v1974 = vsub.f32 %v1964, %v1969
        %v1975 = vsub.f32 %v1965, %v1973
        %v1976 = vmul.f32 %v1974, 1.442695
        %v1977 = vpow.pop %v1976
        %v1978 = vmul.f32 %v1975, 1.442695
        %v1979 = vpow.pop %v1978
        %v1980 = vsel %vm1966, %v1977, 0.0
        %1981 = vadd.xlane.f32.xlu0 %v1980
        %v1982 = vpop.xlane.xlu0 %1981
        %v1983 = vsel %vm1970, %v1979, 0.0
        %1984 = vadd.xlane.f32.xlu0 %v1983
        %v1985 = vpop.xlane.xlu0 %1984
        %v1986 = vrcp.pop %v1982
        %v1987 = vmul.f32 %v1977, %v1986
        %v1988 = vrcp.pop %v1985
        %v1989 = vmul.f32 %v1979, %v1988
        %v1991 = vsel %vm1966, %v1987, 0
        %v1994 = vsel %vm1966, %v1989, 0
        %vm1996 = vcmask 1040384
        %v1998 = vsel %vm1996, %v1829, 0
        %2000 = vmatprep.subr.mxu0 0.0
        %2001 = vmatpush1.msra.mxu0 %v1825
        %2002 = vmatprep.subr.mxu0 0.0
        %2003 = vmatpush1.msra.mxu0 %v1998
        %2004 = vmatprep.subr.mxu0 0.0
        %2005 = vmatpush1.msra.mxu0 0.0
        %2006 = vmatprep.subr.mxu0 0.0
        %2007 = vmatpush1.msra.mxu0 0.0
        %2008 = vmatprep.subr.mxu0 0.0
        %2009 = vmatpush1.msra.mxu0 0.0
        %2010 = vmatprep.subr.mxu0 0.0
        %2011 = vmatpush1.msra.mxu0 0.0
        %2012 = vmatprep.subr.mxu0 0.0
        %2013 = vmatpush1.msra.mxu0 0.0
        %2014 = vmatprep.subr.mxu0 0.0
        %2015 = vmatpush1.msra.mxu0 0.0
        %2016 = vmatprep.subr.mxu0 0.0
        %2017 = vmatpush1.msra.mxu0 0.0
        %2018 = vmatprep.subr.mxu0 0.0
        %2019 = vmatpush1.msra.mxu0 0.0
        %2020 = vmatprep.subr.mxu0 0.0
        %2021 = vmatpush1.msra.mxu0 0.0
        %2022 = vmatprep.subr.mxu0 0.0
        %2023 = vmatpush1.msra.mxu0 0.0
        %2024 = vmatprep.subr.mxu0 0.0
        %2025 = vmatpush1.msra.mxu0 0.0
        %2026 = vmatprep.subr.mxu0 0.0
        %2027 = vmatpush1.msra.mxu0 0.0
        %2028 = vmatprep.subr.mxu0 0.0
        %2029 = vmatpush1.msra.mxu0 0.0
        %2030 = vmatprep.subr.mxu0 0.0
        %2031 = vmatpush1.msra.mxu0 0.0
        %2032 = vmatprep.subr.mxu0 0.0
        %2033 = vmatpush1.msra.mxu0 0.0
        %2034 = vmatprep.subr.mxu0 0.0
        %2035 = vmatpush1.msra.mxu0 0.0
        %2036 = vmatprep.subr.mxu0 0.0
        %2037 = vmatpush1.msra.mxu0 0.0
        %2038 = vmatprep.subr.mxu0 0.0
        %2039 = vmatpush1.msra.mxu0 0.0
        %2040 = vmatprep.subr.mxu0 0.0
        %2041 = vmatpush1.msra.mxu0 0.0
        %2042 = vmatprep.subr.mxu0 0.0
        %2043 = vmatpush1.msra.mxu0 0.0
        %2044 = vmatprep.subr.mxu0 0.0
        %2045 = vmatpush1.msra.mxu0 0.0
        %2046 = vmatprep.subr.mxu0 0.0
        %2047 = vmatpush1.msra.mxu0 0.0
        %2048 = vmatprep.subr.mxu0 0.0
        %2049 = vmatpush1.msra.mxu0 0.0
        %2050 = vmatprep.subr.mxu0 0.0
        %2051 = vmatpush1.msra.mxu0 0.0
        %2052 = vmatprep.subr.mxu0 0.0
        %2053 = vmatpush1.msra.mxu0 0.0
        %2054 = vmatprep.subr.mxu0 0.0
        %2055 = vmatpush1.msra.mxu0 0.0
        %2056 = vmatprep.subr.mxu0 0.0
        %2057 = vmatpush1.msra.mxu0 0.0
        %2058 = vmatprep.subr.mxu0 0.0
        %2059 = vmatpush1.msra.mxu0 0.0
        %2060 = vmatprep.subr.mxu0 0.0
        %2061 = vmatpush1.msra.mxu0 0.0
        %2062 = vmatprep.subr.mxu0 0.0
        %2063 = vmatpush1.msra.mxu0 0.0
        %2064 = vmatprep.mubr.f32.mxu0 0.0
        %2065 = vmatmul.mubr.f32.gmra.mrb[0].mxu0 %v1991
        %v2066 = vpop.f32.mrb[0].mxu0
        %v2067 = vadd.f32 0.0, %v2066
        %v2068 = vpop.f32.mrb[0].mxu0
        %2069 = vmatprep.mubr.f32.mxu0 0.0
        %2070 = vmatmul.mubr.f32.gmra.mrb[0].mxu0 %v1994
        %v2071 = vpop.f32.mrb[0].mxu0
        %v2072 = vadd.f32 0.0, %v2071
        %v2073 = vpop.f32.mrb[0].mxu0
        %2074 = vdwg.mxu0
        %2075 = vmatprep.subr.mxu0 0.0
        %2076 = vmatpush1.xpose.msra.mxu0 %v1774
        %2077 = vmatprep.subr.mxu0 0.0
        %2078 = vmatpush1.xpose.msra.mxu0 %v1778
        %2079 = vmatprep.subr.mxu0 0.0
        %2080 = vmatpush1.xpose.msra.mxu0 0.0
        %2081 = vmatprep.subr.mxu0 0.0
        %2082 = vmatpush1.xpose.msra.mxu0 0.0
        %2083 = vmatprep.subr.mxu0 0.0
        %2084 = vmatpush1.xpose.msra.mxu0 0.0
        %2085 = vmatprep.subr.mxu0 0.0
        %2086 = vmatpush1.xpose.msra.mxu0 0.0
        %2087 = vmatprep.subr.mxu0 0.0
        %2088 = vmatpush1.xpose.msra.mxu0 0.0
        %2089 = vmatprep.subr.mxu0 0.0
        %2090 = vmatpush1.xpose.msra.mxu0 0.0
        %2091 = vmatprep.subr.mxu0 0.0
        %2092 = vmatpush1.xpose.msra.mxu0 0.0
        %2093 = vmatprep.subr.mxu0 0.0
        %2094 = vmatpush1.xpose.msra.mxu0 0.0
        %2095 = vmatprep.subr.mxu0 0.0
        %2096 = vmatpush1.xpose.msra.mxu0 0.0
        %2097 = vmatprep.subr.mxu0 0.0
        %2098 = vmatpush1.xpose.msra.mxu0 0.0
        %2099 = vmatprep.subr.mxu0 0.0
        %2100 = vmatpush1.xpose.msra.mxu0 0.0
        %2101 = vmatprep.subr.mxu0 0.0
        %2102 = vmatpush1.xpose.msra.mxu0 0.0
        %2103 = vmatprep.subr.mxu0 0.0
        %2104 = vmatpush1.xpose.msra.mxu0 0.0
        %2105 = vmatprep.subr.mxu0 0.0
        %2106 = vmatpush1.xpose.msra.mxu0 0.0
        %2107 = vmatprep.subr.mxu0 0.0
        %2108 = vmatpush1.xpose.msra.mxu0 0.0
        %2109 = vmatprep.subr.mxu0 0.0
        %2110 = vmatpush1.xpose.msra.mxu0 0.0
        %2111 = vmatprep.subr.mxu0 0.0
        %2112 = vmatpush1.xpose.msra.mxu0 0.0
        %2113 = vmatprep.subr.mxu0 0.0
        %2114 = vmatpush1.xpose.msra.mxu0 0.0
        %2115 = vmatprep.subr.mxu0 0.0
        %2116 = vmatpush1.xpose.msra.mxu0 0.0
        %2117 = vmatprep.subr.mxu0 0.0
        %2118 = vmatpush1.xpose.msra.mxu0 0.0
        %2119 = vmatprep.subr.mxu0 0.0
        %2120 = vmatpush1.xpose.msra.mxu0 0.0
        %2121 = vmatprep.subr.mxu0 0.0
        %2122 = vmatpush1.xpose.msra.mxu0 0.0
        %2123 = vmatprep.subr.mxu0 0.0
        %2124 = vmatpush1.xpose.msra.mxu0 0.0
        %2125 = vmatprep.subr.mxu0 0.0
        %2126 = vmatpush1.xpose.msra.mxu0 0.0
        %2127 = vmatprep.subr.mxu0 0.0
        %2128 = vmatpush1.xpose.msra.mxu0 0.0
        %2129 = vmatprep.subr.mxu0 0.0
        %2130 = vmatpush1.xpose.msra.mxu0 0.0
        %2131 = vmatprep.subr.mxu0 0.0
        %2132 = vmatpush1.xpose.msra.mxu0 0.0
        %2133 = vmatprep.subr.mxu0 0.0
        %2134 = vmatpush1.xpose.msra.mxu0 0.0
        %2135 = vmatprep.subr.mxu0 0.0
        %2136 = vmatpush1.xpose.msra.mxu0 0.0
        %2137 = vmatprep.subr.mxu0 0.0
        %2138 = vmatpush1.xpose.msra.mxu0 0.0
        %2139 = vmatprep.mubr.f32.mxu0 0.0
        %2140 = vmatmul.mubr.f32.gmra.mrb[0].mxu0 %v1674
        %v2141 = vpop.f32.mrb[0].mxu0
        %v2142 = vadd.f32 0.0, %v2141
        %v2143 = vpop.f32.mrb[0].mxu0
        %2144 = vmatprep.mubr.f32.mxu0 0.0
        %2145 = vmatmul.mubr.f32.gmra.mrb[0].mxu0 %v1678
        %v2146 = vpop.f32.mrb[0].mxu0
        %v2147 = vadd.f32 0.0, %v2146
        %v2148 = vpop.f32.mrb[0].mxu0
        %2149 = vdwg.mxu0
        %v2150 = vmul.f32 %v2142, 0.125
        %v2151 = vmul.f32 %v2147, 0.125
        %v2152 = vsel %vm1966, %v2150, -inf
        %2153 = vmax.xlane.f32.xlu0 %v2152
        %v2154 = vpop.xlane.xlu0 %2153
        %v2155 = vsel %vm1970, %v2151, -inf
        %2156 = vmax.xlane.f32.xlu0 %v2155
        %v2157 = vpop.xlane.xlu0 %2156
        %v2158 = vsub.f32 %v2150, %v2154
        %v2159 = vsub.f32 %v2151, %v2157
        %v2160 = vmul.f32 %v2158, 1.442695
        %v2161 = vpow.pop %v2160
        %v2162 = vmul.f32 %v2159, 1.442695
        %v2163 = vpow.pop %v2162
        %v2164 = vsel %vm1966, %v2161, 0.0
        %2165 = vadd.xlane.f32.xlu0 %v2164
        %v2166 = vpop.xlane.xlu0 %2165
        %v2167 = vsel %vm1970, %v2163, 0.0
        %2168 = vadd.xlane.f32.xlu0 %v2167
        %v2169 = vpop.xlane.xlu0 %2168
        %v2170 = vrcp.pop %v2166
        %v2171 = vmul.f32 %v2161, %v2170
        %v2172 = vrcp.pop %v2169
        %v2173 = vmul.f32 %v2163, %v2172
        %v2175 = vsel %vm1966, %v2171, 0
        %v2178 = vsel %vm1966, %v2173, 0
        %v2181 = vsel %vm1996, %v1831, 0
        %2183 = vmatprep.subr.mxu0 0.0
        %2184 = vmatpush1.msra.mxu0 %v1827
        %2185 = vmatprep.subr.mxu0 0.0
        %2186 = vmatpush1.msra.mxu0 %v2181
        %2187 = vmatprep.subr.mxu0 0.0
        %2188 = vmatpush1.msra.mxu0 0.0
        %2189 = vmatprep.subr.mxu0 0.0
        %2190 = vmatpush1.msra.mxu0 0.0
        %2191 = vmatprep.subr.mxu0 0.0
        %2192 = vmatpush1.msra.mxu0 0.0
        %2193 = vmatprep.subr.mxu0 0.0
        %2194 = vmatpush1.msra.mxu0 0.0
        %2195 = vmatprep.subr.mxu0 0.0
        %2196 = vmatpush1.msra.mxu0 0.0
        %2197 = vmatprep.subr.mxu0 0.0
        %2198 = vmatpush1.msra.mxu0 0.0
        %2199 = vmatprep.subr.mxu0 0.0
        %2200 = vmatpush1.msra.mxu0 0.0
        %2201 = vmatprep.subr.mxu0 0.0
        %2202 = vmatpush1.msra.mxu0 0.0
        %2203 = vmatprep.subr.mxu0 0.0
        %2204 = vmatpush1.msra.mxu0 0.0
        %2205 = vmatprep.subr.mxu0 0.0
        %2206 = vmatpush1.msra.mxu0 0.0
        %2207 = vmatprep.subr.mxu0 0.0
        %2208 = vmatpush1.msra.mxu0 0.0
        %2209 = vmatprep.subr.mxu0 0.0
        %2210 = vmatpush1.msra.mxu0 0.0
        %2211 = vmatprep.subr.mxu0 0.0
        %2212 = vmatpush1.msra.mxu0 0.0
        %2213 = vmatprep.subr.mxu0 0.0
        %2214 = vmatpush1.msra.mxu0 0.0
        %2215 = vmatprep.subr.mxu0 0.0
        %2216 = vmatpush1.msra.mxu0 0.0
        %2217 = vmatprep.subr.mxu0 0.0
        %2218 = vmatpush1.msra.mxu0 0.0
        %2219 = vmatprep.subr.mxu0 0.0
        %2220 = vmatpush1.msra.mxu0 0.0
        %2221 = vmatprep.subr.mxu0 0.0
        %2222 = vmatpush1.msra.mxu0 0.0
        %2223 = vmatprep.subr.mxu0 0.0
        %2224 = vmatpush1.msra.mxu0 0.0
        %2225 = vmatprep.subr.mxu0 0.0
        %2226 = vmatpush1.msra.mxu0 0.0
        %2227 = vmatprep.subr.mxu0 0.0
        %2228 = vmatpush1.msra.mxu0 0.0
        %2229 = vmatprep.subr.mxu0 0.0
        %2230 = vmatpush1.msra.mxu0 0.0
        %2231 = vmatprep.subr.mxu0 0.0
        %2232 = vmatpush1.msra.mxu0 0.0
        %2233 = vmatprep.subr.mxu0 0.0
        %2234 = vmatpush1.msra.mxu0 0.0
        %2235 = vmatprep.subr.mxu0 0.0
        %2236 = vmatpush1.msra.mxu0 0.0
        %2237 = vmatprep.subr.mxu0 0.0
        %2238 = vmatpush1.msra.mxu0 0.0
        %2239 = vmatprep.subr.mxu0 0.0
        %2240 = vmatpush1.msra.mxu0 0.0
        %2241 = vmatprep.subr.mxu0 0.0
        %2242 = vmatpush1.msra.mxu0 0.0
        %2243 = vmatprep.subr.mxu0 0.0
        %2244 = vmatpush1.msra.mxu0 0.0
        %2245 = vmatprep.subr.mxu0 0.0
        %2246 = vmatpush1.msra.mxu0 0.0
        %2247 = vmatprep.mubr.f32.mxu0 0.0
        %2248 = vmatmul.mubr.f32.gmra.mrb[0].mxu0 %v2175
        %v2249 = vpop.f32.mrb[0].mxu0
        %v2250 = vadd.f32 0.0, %v2249
        %v2251 = vpop.f32.mrb[0].mxu0
        %2252 = vmatprep.mubr.f32.mxu0 0.0
        %2253 = vmatmul.mubr.f32.gmra.mrb[0].mxu0 %v2178
        %v2254 = vpop.f32.mrb[0].mxu0
        %v2255 = vadd.f32 0.0, %v2254
        %v2256 = vpop.f32.mrb[0].mxu0
        %2257 = vdwg.mxu0
        %2258 = vmatprep.subr.mxu0 0.0
        %2259 = vmatpush1.xpose.msra.mxu0 %v1776
        %2260 = vmatprep.subr.mxu0 0.0
        %2261 = vmatpush1.xpose.msra.mxu0 %v1780
        %2262 = vmatprep.subr.mxu0 0.0
        %2263 = vmatpush1.xpose.msra.mxu0 0.0
        %2264 = vmatprep.subr.mxu0 0.0
        %2265 = vmatpush1.xpose.msra.mxu0 0.0
        %2266 = vmatprep.subr.mxu0 0.0
        %2267 = vmatpush1.xpose.msra.mxu0 0.0
        %2268 = vmatprep.subr.mxu0 0.0
        %2269 = vmatpush1.xpose.msra.mxu0 0.0
        %2270 = vmatprep.subr.mxu0 0.0
        %2271 = vmatpush1.xpose.msra.mxu0 0.0
        %2272 = vmatprep.subr.mxu0 0.0
        %2273 = vmatpush1.xpose.msra.mxu0 0.0
        %2274 = vmatprep.subr.mxu0 0.0
        %2275 = vmatpush1.xpose.msra.mxu0 0.0
        %2276 = vmatprep.subr.mxu0 0.0
        %2277 = vmatpush1.xpose.msra.mxu0 0.0
        %2278 = vmatprep.subr.mxu0 0.0
        %2279 = vmatpush1.xpose.msra.mxu0 0.0
        %2280 = vmatprep.subr.mxu0 0.0
        %2281 = vmatpush1.xpose.msra.mxu0 0.0
        %2282 = vmatprep.subr.mxu0 0.0
        %2283 = vmatpush1.xpose.msra.mxu0 0.0
        %2284 = vmatprep.subr.mxu0 0.0
        %2285 = vmatpush1.xpose.msra.mxu0 0.0
        %2286 = vmatprep.subr.mxu0 0.0
        %2287 = vmatpush1.xpose.msra.mxu0 0.0
        %2288 = vmatprep.subr.mxu0 0.0
        %2289 = vmatpush1.xpose.msra.mxu0 0.0
        %2290 = vmatprep.subr.mxu0 0.0
        %2291 = vmatpush1.xpose.msra.mxu0 0.0
        %2292 = vmatprep.subr.mxu0 0.0
        %2293 = vmatpush1.xpose.msra.mxu0 0.0
        %2294 = vmatprep.subr.mxu0 0.0
        %2295 = vmatpush1.xpose.msra.mxu0 0.0
        %2296 = vmatprep.subr.mxu0 0.0
        %2297 = vmatpush1.xpose.msra.mxu0 0.0
        %2298 = vmatprep.subr.mxu0 0.0
        %2299 = vmatpush1.xpose.msra.mxu0 0.0
        %2300 = vmatprep.subr.mxu0 0.0
        %2301 = vmatpush1.xpose.msra.mxu0 0.0
        %2302 = vmatprep.subr.mxu0 0.0
        %2303 = vmatpush1.xpose.msra.mxu0 0.0
        %2304 = vmatprep.subr.mxu0 0.0
        %2305 = vmatpush1.xpose.msra.mxu0 0.0
        %2306 = vmatprep.subr.mxu0 0.0
        %2307 = vmatpush1.xpose.msra.mxu0 0.0
        %2308 = vmatprep.subr.mxu0 0.0
        %2309 = vmatpush1.xpose.msra.mxu0 0.0
        %2310 = vmatprep.subr.mxu0 0.0
        %2311 = vmatpush1.xpose.msra.mxu0 0.0
        %2312 = vmatprep.subr.mxu0 0.0
        %2313 = vmatpush1.xpose.msra.mxu0 0.0
        %2314 = vmatprep.subr.mxu0 0.0
        %2315 = vmatpush1.xpose.msra.mxu0 0.0
        %2316 = vmatprep.subr.mxu0 0.0
        %2317 = vmatpush1.xpose.msra.mxu0 0.0
        %2318 = vmatprep.subr.mxu0 0.0
        %2319 = vmatpush1.xpose.msra.mxu0 0.0
        %2320 = vmatprep.subr.mxu0 0.0
        %2321 = vmatpush1.xpose.msra.mxu0 0.0
        %2322 = vmatprep.mubr.f32.mxu0 0.0
        %2323 = vmatmul.mubr.f32.gmra.mrb[0].mxu0 %v1723
        %v2324 = vpop.f32.mrb[0].mxu0
        %v2325 = vadd.f32 0.0, %v2324
        %v2326 = vpop.f32.mrb[0].mxu0
        %2327 = vmatprep.mubr.f32.mxu0 0.0
        %2328 = vmatmul.mubr.f32.gmra.mrb[0].mxu0 %v1727
        %v2329 = vpop.f32.mrb[0].mxu0
        %v2330 = vadd.f32 0.0, %v2329
        %v2331 = vpop.f32.mrb[0].mxu0
        %2332 = vdwg.mxu0
        %v2333 = vmul.f32 %v2325, 0.125
        %v2334 = vmul.f32 %v2330, 0.125
        %v2335 = vsel %vm1966, %v2333, -inf
        %2336 = vmax.xlane.f32.xlu0 %v2335
        %v2337 = vpop.xlane.xlu0 %2336
        %v2338 = vsel %vm1970, %v2334, -inf
        %2339 = vmax.xlane.f32.xlu0 %v2338
        %v2340 = vpop.xlane.xlu0 %2339
        %v2341 = vsub.f32 %v2333, %v2337
        %v2342 = vsub.f32 %v2334, %v2340
        %v2343 = vmul.f32 %v2341, 1.442695
        %v2344 = vpow.pop %v2343
        %v2345 = vmul.f32 %v2342, 1.442695
        %v2346 = vpow.pop %v2345
        %v2347 = vsel %vm1966, %v2344, 0.0
        %2348 = vadd.xlane.f32.xlu0 %v2347
        %v2349 = vpop.xlane.xlu0 %2348
        %v2350 = vsel %vm1970, %v2346, 0.0
        %2351 = vadd.xlane.f32.xlu0 %v2350
        %v2352 = vpop.xlane.xlu0 %2351
        %v2353 = vrcp.pop %v2349
        %v2354 = vmul.f32 %v2344, %v2353
        %v2355 = vrcp.pop %v2352
        %v2356 = vmul.f32 %v2346, %v2355
        %v2358 = vsel %vm1966, %v2354, 0
        %v2361 = vsel %vm1966, %v2356, 0
        %v2364 = vsel %vm1996, %v1879, 0
        %2366 = vmatprep.subr.mxu0 0.0
        %2367 = vmatpush1.msra.mxu0 %v1876
        %2368 = vmatprep.subr.mxu0 0.0
        %2369 = vmatpush1.msra.mxu0 %v2364
        %2370 = vmatprep.subr.mxu0 0.0
        %2371 = vmatpush1.msra.mxu0 0.0
        %2372 = vmatprep.subr.mxu0 0.0
        %2373 = vmatpush1.msra.mxu0 0.0
        %2374 = vmatprep.subr.mxu0 0.0
        %2375 = vmatpush1.msra.mxu0 0.0
        %2376 = vmatprep.subr.mxu0 0.0
        %2377 = vmatpush1.msra.mxu0 0.0
        %2378 = vmatprep.subr.mxu0 0.0
        %2379 = vmatpush1.msra.mxu0 0.0
        %2380 = vmatprep.subr.mxu0 0.0
        %2381 = vmatpush1.msra.mxu0 0.0
        %2382 = vmatprep.subr.mxu0 0.0
        %2383 = vmatpush1.msra.mxu0 0.0
        %2384 = vmatprep.subr.mxu0 0.0
        %2385 = vmatpush1.msra.mxu0 0.0
        %2386 = vmatprep.subr.mxu0 0.0
        %2387 = vmatpush1.msra.mxu0 0.0
        %2388 = vmatprep.subr.mxu0 0.0
        %2389 = vmatpush1.msra.mxu0 0.0
        %2390 = vmatprep.subr.mxu0 0.0
        %2391 = vmatpush1.msra.mxu0 0.0
        %2392 = vmatprep.subr.mxu0 0.0
        %2393 = vmatpush1.msra.mxu0 0.0
        %2394 = vmatprep.subr.mxu0 0.0
        %2395 = vmatpush1.msra.mxu0 0.0
        %2396 = vmatprep.subr.mxu0 0.0
        %2397 = vmatpush1.msra.mxu0 0.0
        %2398 = vmatprep.subr.mxu0 0.0
        %2399 = vmatpush1.msra.mxu0 0.0
        %2400 = vmatprep.subr.mxu0 0.0
        %2401 = vmatpush1.msra.mxu0 0.0
        %2402 = vmatprep.subr.mxu0 0.0
        %2403 = vmatpush1.msra.mxu0 0.0
        %2404 = vmatprep.subr.mxu0 0.0
        %2405 = vmatpush1.msra.mxu0 0.0
        %2406 = vmatprep.subr.mxu0 0.0
        %2407 = vmatpush1.msra.mxu0 0.0
        %2408 = vmatprep.subr.mxu0 0.0
        %2409 = vmatpush1.msra.mxu0 0.0
        %2410 = vmatprep.subr.mxu0 0.0
        %2411 = vmatpush1.msra.mxu0 0.0
        %2412 = vmatprep.subr.mxu0 0.0
        %2413 = vmatpush1.msra.mxu0 0.0
        %2414 = vmatprep.subr.mxu0 0.0
        %2415 = vmatpush1.msra.mxu0 0.0
        %2416 = vmatprep.subr.mxu0 0.0
        %2417 = vmatpush1.msra.mxu0 0.0
        %2418 = vmatprep.subr.mxu0 0.0
        %2419 = vmatpush1.msra.mxu0 0.0
        %2420 = vmatprep.subr.mxu0 0.0
        %2421 = vmatpush1.msra.mxu0 0.0
        %2422 = vmatprep.subr.mxu0 0.0
        %2423 = vmatpush1.msra.mxu0 0.0
        %2424 = vmatprep.subr.mxu0 0.0
        %2425 = vmatpush1.msra.mxu0 0.0
        %2426 = vmatprep.subr.mxu0 0.0
        %2427 = vmatpush1.msra.mxu0 0.0
        %2428 = vmatprep.subr.mxu0 0.0
        %2429 = vmatpush1.msra.mxu0 0.0
        %2430 = vmatprep.mubr.f32.mxu0 0.0
        %2431 = vmatmul.mubr.f32.gmra.mrb[0].mxu0 %v2358
        %v2432 = vpop.f32.mrb[0].mxu0
        %v2433 = vadd.f32 0.0, %v2432
        %v2434 = vpop.f32.mrb[0].mxu0
        %2435 = vmatprep.mubr.f32.mxu0 0.0
        %2436 = vmatmul.mubr.f32.gmra.mrb[0].mxu0 %v2361
        %v2437 = vpop.f32.mrb[0].mxu0
        %v2438 = vadd.f32 0.0, %v2437
        %v2439 = vpop.f32.mrb[0].mxu0
        %2440 = vdwg.mxu0
        %vm2443 = vcmask 1046528
        %v2444 = vrot.slane %v1676, 1
        %v2445 = vrot.slane %v1682, 1
        %v2446 = vsel %vm2443, %v2444, %v2445
        %v2451 = vrot.slane %v1729, 1
        %v2452 = vrot.slane %v1735, 1
        %v2453 = vsel %vm2443, %v2451, %v2452
        %2456 = vmatprep.subr.mxu0 0.0
        %2457 = vmatpush1.xpose.msra.mxu0 %v2453
        %2458 = vmatprep.subr.mxu0 0.0
        %2459 = vmatpush1.xpose.msra.mxu0 %v2452
        %2460 = vmatprep.subr.mxu0 0.0
        %2461 = vmatpush1.xpose.msra.mxu0 0.0
        %2462 = vmatprep.subr.mxu0 0.0
        %2463 = vmatpush1.xpose.msra.mxu0 0.0
        %2464 = vmatprep.subr.mxu0 0.0
        %2465 = vmatpush1.xpose.msra.mxu0 0.0
        %2466 = vmatprep.subr.mxu0 0.0
        %2467 = vmatpush1.xpose.msra.mxu0 0.0
        %2468 = vmatprep.subr.mxu0 0.0
        %2469 = vmatpush1.xpose.msra.mxu0 0.0
        %2470 = vmatprep.subr.mxu0 0.0
        %2471 = vmatpush1.xpose.msra.mxu0 0.0
        %2472 = vmatprep.subr.mxu0 0.0
        %2473 = vmatpush1.xpose.msra.mxu0 0.0
        %2474 = vmatprep.subr.mxu0 0.0
        %2475 = vmatpush1.xpose.msra.mxu0 0.0
        %2476 = vmatprep.subr.mxu0 0.0
        %2477 = vmatpush1.xpose.msra.mxu0 0.0
        %2478 = vmatprep.subr.mxu0 0.0
        %2479 = vmatpush1.xpose.msra.mxu0 0.0
        %2480 = vmatprep.subr.mxu0 0.0
        %2481 = vmatpush1.xpose.msra.mxu0 0.0
        %2482 = vmatprep.subr.mxu0 0.0
        %2483 = vmatpush1.xpose.msra.mxu0 0.0
        %2484 = vmatprep.subr.mxu0 0.0
        %2485 = vmatpush1.xpose.msra.mxu0 0.0
        %2486 = vmatprep.subr.mxu0 0.0
        %2487 = vmatpush1.xpose.msra.mxu0 0.0
        %2488 = vmatprep.subr.mxu0 0.0
        %2489 = vmatpush1.xpose.msra.mxu0 0.0
        %2490 = vmatprep.subr.mxu0 0.0
        %2491 = vmatpush1.xpose.msra.mxu0 0.0
        %2492 = vmatprep.subr.mxu0 0.0
        %2493 = vmatpush1.xpose.msra.mxu0 0.0
        %2494 = vmatprep.subr.mxu0 0.0
        %2495 = vmatpush1.xpose.msra.mxu0 0.0
        %2496 = vmatprep.subr.mxu0 0.0
        %2497 = vmatpush1.xpose.msra.mxu0 0.0
        %2498 = vmatprep.subr.mxu0 0.0
        %2499 = vmatpush1.xpose.msra.mxu0 0.0
        %2500 = vmatprep.subr.mxu0 0.0
        %2501 = vmatpush1.xpose.msra.mxu0 0.0
        %2502 = vmatprep.subr.mxu0 0.0
        %2503 = vmatpush1.xpose.msra.mxu0 0.0
        %2504 = vmatprep.subr.mxu0 0.0
        %2505 = vmatpush1.xpose.msra.mxu0 0.0
        %2506 = vmatprep.subr.mxu0 0.0
        %2507 = vmatpush1.xpose.msra.mxu0 0.0
        %2508 = vmatprep.subr.mxu0 0.0
        %2509 = vmatpush1.xpose.msra.mxu0 0.0
        %2510 = vmatprep.subr.mxu0 0.0
        %2511 = vmatpush1.xpose.msra.mxu0 0.0
        %2512 = vmatprep.subr.mxu0 0.0
        %2513 = vmatpush1.xpose.msra.mxu0 0.0
        %2514 = vmatprep.subr.mxu0 0.0
        %2515 = vmatpush1.xpose.msra.mxu0 0.0
        %2516 = vmatprep.subr.mxu0 0.0
        %2517 = vmatpush1.xpose.msra.mxu0 0.0
        %2518 = vmatprep.subr.mxu0 0.0
        %2519 = vmatpush1.xpose.msra.mxu0 0.0
        %2520 = vmatprep.mubr.f32.mxu0 0.0
        %2521 = vmatmul.mubr.f32.gmra.mrb[0].mxu0 %v2446
        %v2522 = vpop.f32.mrb[0].mxu0
        %v2523 = vadd.f32 0.0, %v2522
        %v2524 = vpop.f32.mrb[0].mxu0
        %2525 = vmatprep.mubr.f32.mxu0 0.0
        %2526 = vmatmul.mubr.f32.gmra.mrb[0].mxu0 %v2445
        %v2527 = vpop.f32.mrb[0].mxu0
        %v2528 = vadd.f32 0.0, %v2527
        %v2529 = vpop.f32.mrb[0].mxu0
        %2530 = vdwg.mxu0
        %v2531 = vmul.f32 %v2523, 0.125
        %v2532 = vmul.f32 %v2528, 0.125
        %v2533 = vsel %vm1966, %v2531, -inf
        %2534 = vmax.xlane.f32.xlu0 %v2533
        %v2535 = vpop.xlane.xlu0 %2534
        %v2536 = vsel %vm1970, %v2532, -inf
        %2537 = vmax.xlane.f32.xlu0 %v2536
        %v2538 = vpop.xlane.xlu0 %2537
        %v2539 = vsub.f32 %v2531, %v2535
        %v2540 = vsub.f32 %v2532, %v2538
        %v2541 = vmul.f32 %v2539, 1.442695
        %v2542 = vpow.pop %v2541
        %v2543 = vmul.f32 %v2540, 1.442695
        %v2544 = vpow.pop %v2543
        %v2545 = vsel %vm1966, %v2542, 0.0
        %2546 = vadd.xlane.f32.xlu0 %v2545
        %v2547 = vpop.xlane.xlu0 %2546
        %v2548 = vsel %vm1970, %v2544, 0.0
        %2549 = vadd.xlane.f32.xlu0 %v2548
        %v2550 = vpop.xlane.xlu0 %2549
        %v2551 = vrcp.pop %v2547
        %v2552 = vmul.f32 %v2542, %v2551
        %v2553 = vrcp.pop %v2550
        %v2554 = vmul.f32 %v2544, %v2553
        %v2556 = vrot.slane %v1829, 1
        %v2557 = vrot.slane %v1835, 1
        %v2558 = vsel %vm2443, %v2556, %v2557
        %v2561 = vsel %vm1966, %v2552, 0
        %v2564 = vsel %vm1966, %v2554, 0
        %v2566 = vsel %vm1996, %v2557, 0
        %2568 = vmatprep.subr.mxu0 0.0
        %2569 = vmatpush1.msra.mxu0 %v2558
        %2570 = vmatprep.subr.mxu0 0.0
        %2571 = vmatpush1.msra.mxu0 %v2566
        %2572 = vmatprep.subr.mxu0 0.0
        %2573 = vmatpush1.msra.mxu0 0.0
        %2574 = vmatprep.subr.mxu0 0.0
        %2575 = vmatpush1.msra.mxu0 0.0
        %2576 = vmatprep.subr.mxu0 0.0
        %2577 = vmatpush1.msra.mxu0 0.0
        %2578 = vmatprep.subr.mxu0 0.0
        %2579 = vmatpush1.msra.mxu0 0.0
        %2580 = vmatprep.subr.mxu0 0.0
        %2581 = vmatpush1.msra.mxu0 0.0
        %2582 = vmatprep.subr.mxu0 0.0
        %2583 = vmatpush1.msra.mxu0 0.0
        %2584 = vmatprep.subr.mxu0 0.0
        %2585 = vmatpush1.msra.mxu0 0.0
        %2586 = vmatprep.subr.mxu0 0.0
        %2587 = vmatpush1.msra.mxu0 0.0
        %2588 = vmatprep.subr.mxu0 0.0
        %2589 = vmatpush1.msra.mxu0 0.0
        %2590 = vmatprep.subr.mxu0 0.0
        %2591 = vmatpush1.msra.mxu0 0.0
        %2592 = vmatprep.subr.mxu0 0.0
        %2593 = vmatpush1.msra.mxu0 0.0
        %2594 = vmatprep.subr.mxu0 0.0
        %2595 = vmatpush1.msra.mxu0 0.0
        %2596 = vmatprep.subr.mxu0 0.0
        %2597 = vmatpush1.msra.mxu0 0.0
        %2598 = vmatprep.subr.mxu0 0.0
        %2599 = vmatpush1.msra.mxu0 0.0
        %2600 = vmatprep.subr.mxu0 0.0
        %2601 = vmatpush1.msra.mxu0 0.0
        %2602 = vmatprep.subr.mxu0 0.0
        %2603 = vmatpush1.msra.mxu0 0.0
        %2604 = vmatprep.subr.mxu0 0.0
        %2605 = vmatpush1.msra.mxu0 0.0
        %2606 = vmatprep.subr.mxu0 0.0
        %2607 = vmatpush1.msra.mxu0 0.0
        %2608 = vmatprep.subr.mxu0 0.0
        %2609 = vmatpush1.msra.mxu0 0.0
        %2610 = vmatprep.subr.mxu0 0.0
        %2611 = vmatpush1.msra.mxu0 0.0
        %2612 = vmatprep.subr.mxu0 0.0
        %2613 = vmatpush1.msra.mxu0 0.0
        %2614 = vmatprep.subr.mxu0 0.0
        %2615 = vmatpush1.msra.mxu0 0.0
        %2616 = vmatprep.subr.mxu0 0.0
        %2617 = vmatpush1.msra.mxu0 0.0
        %2618 = vmatprep.subr.mxu0 0.0
        %2619 = vmatpush1.msra.mxu0 0.0
        %2620 = vmatprep.subr.mxu0 0.0
        %2621 = vmatpush1.msra.mxu0 0.0
        %2622 = vmatprep.subr.mxu0 0.0
        %2623 = vmatpush1.msra.mxu0 0.0
        %2624 = vmatprep.subr.mxu0 0.0
        %2625 = vmatpush1.msra.mxu0 0.0
        %2626 = vmatprep.subr.mxu0 0.0
        %2627 = vmatpush1.msra.mxu0 0.0
        %2628 = vmatprep.subr.mxu0 0.0
        %2629 = vmatpush1.msra.mxu0 0.0
        %2630 = vmatprep.subr.mxu0 0.0
        %2631 = vmatpush1.msra.mxu0 0.0
        %2632 = vmatprep.mubr.f32.mxu0 0.0
        %2633 = vmatmul.mubr.f32.gmra.mrb[0].mxu0 %v2561
        %v2634 = vpop.f32.mrb[0].mxu0
        %v2635 = vadd.f32 0.0, %v2634
        %v2636 = vpop.f32.mrb[0].mxu0
        %2637 = vmatprep.mubr.f32.mxu0 0.0
        %2638 = vmatmul.mubr.f32.gmra.mrb[0].mxu0 %v2564
        %v2639 = vpop.f32.mrb[0].mxu0
        %v2640 = vadd.f32 0.0, %v2639
        %v2641 = vpop.f32.mrb[0].mxu0
        %2642 = vdwg.mxu0
        %v2645 = vrot.slane %v1678, 1
        %v2646 = vrot.slane %v1684, 1
        %v2647 = vsel %vm2443, %v2645, %v2646
        %v2652 = vrot.slane %v1778, 1
        %v2653 = vrot.slane %v1784, 1
        %v2654 = vsel %vm2443, %v2652, %v2653
        %2657 = vmatprep.subr.mxu0 0.0
        %2658 = vmatpush1.xpose.msra.mxu0 %v2654
        %2659 = vmatprep.subr.mxu0 0.0
        %2660 = vmatpush1.xpose.msra.mxu0 %v2653
        %2661 = vmatprep.subr.mxu0 0.0
        %2662 = vmatpush1.xpose.msra.mxu0 0.0
        %2663 = vmatprep.subr.mxu0 0.0
        %2664 = vmatpush1.xpose.msra.mxu0 0.0
        %2665 = vmatprep.subr.mxu0 0.0
        %2666 = vmatpush1.xpose.msra.mxu0 0.0
        %2667 = vmatprep.subr.mxu0 0.0
        %2668 = vmatpush1.xpose.msra.mxu0 0.0
        %2669 = vmatprep.subr.mxu0 0.0
        %2670 = vmatpush1.xpose.msra.mxu0 0.0
        %2671 = vmatprep.subr.mxu0 0.0
        %2672 = vmatpush1.xpose.msra.mxu0 0.0
        %2673 = vmatprep.subr.mxu0 0.0
        %2674 = vmatpush1.xpose.msra.mxu0 0.0
        %2675 = vmatprep.subr.mxu0 0.0
        %2676 = vmatpush1.xpose.msra.mxu0 0.0
        %2677 = vmatprep.subr.mxu0 0.0
        %2678 = vmatpush1.xpose.msra.mxu0 0.0
        %2679 = vmatprep.subr.mxu0 0.0
        %2680 = vmatpush1.xpose.msra.mxu0 0.0
        %2681 = vmatprep.subr.mxu0 0.0
        %2682 = vmatpush1.xpose.msra.mxu0 0.0
        %2683 = vmatprep.subr.mxu0 0.0
        %2684 = vmatpush1.xpose.msra.mxu0 0.0
        %2685 = vmatprep.subr.mxu0 0.0
        %2686 = vmatpush1.xpose.msra.mxu0 0.0
        %2687 = vmatprep.subr.mxu0 0.0
        %2688 = vmatpush1.xpose.msra.mxu0 0.0
        %2689 = vmatprep.subr.mxu0 0.0
        %2690 = vmatpush1.xpose.msra.mxu0 0.0
        %2691 = vmatprep.subr.mxu0 0.0
        %2692 = vmatpush1.xpose.msra.mxu0 0.0
        %2693 = vmatprep.subr.mxu0 0.0
        %2694 = vmatpush1.xpose.msra.mxu0 0.0
        %2695 = vmatprep.subr.mxu0 0.0
        %2696 = vmatpush1.xpose.msra.mxu0 0.0
        %2697 = vmatprep.subr.mxu0 0.0
        %2698 = vmatpush1.xpose.msra.mxu0 0.0
        %2699 = vmatprep.subr.mxu0 0.0
        %2700 = vmatpush1.xpose.msra.mxu0 0.0
        %2701 = vmatprep.subr.mxu0 0.0
        %2702 = vmatpush1.xpose.msra.mxu0 0.0
        %2703 = vmatprep.subr.mxu0 0.0
        %2704 = vmatpush1.xpose.msra.mxu0 0.0
        %2705 = vmatprep.subr.mxu0 0.0
        %2706 = vmatpush1.xpose.msra.mxu0 0.0
        %2707 = vmatprep.subr.mxu0 0.0
        %2708 = vmatpush1.xpose.msra.mxu0 0.0
        %2709 = vmatprep.subr.mxu0 0.0
        %2710 = vmatpush1.xpose.msra.mxu0 0.0
        %2711 = vmatprep.subr.mxu0 0.0
        %2712 = vmatpush1.xpose.msra.mxu0 0.0
        %2713 = vmatprep.subr.mxu0 0.0
        %2714 = vmatpush1.xpose.msra.mxu0 0.0
        %2715 = vmatprep.subr.mxu0 0.0
        %2716 = vmatpush1.xpose.msra.mxu0 0.0
        %2717 = vmatprep.subr.mxu0 0.0
        %2718 = vmatpush1.xpose.msra.mxu0 0.0
        %2719 = vmatprep.subr.mxu0 0.0
        %2720 = vmatpush1.xpose.msra.mxu0 0.0
        %2721 = vmatprep.mubr.f32.mxu0 0.0
        %2722 = vmatmul.mubr.f32.gmra.mrb[0].mxu0 %v2647
        %v2723 = vpop.f32.mrb[0].mxu0
        %v2724 = vadd.f32 0.0, %v2723
        %v2725 = vpop.f32.mrb[0].mxu0
        %2726 = vmatprep.mubr.f32.mxu0 0.0
        %2727 = vmatmul.mubr.f32.gmra.mrb[0].mxu0 %v2646
        %v2728 = vpop.f32.mrb[0].mxu0
        %v2729 = vadd.f32 0.0, %v2728
        %v2730 = vpop.f32.mrb[0].mxu0
        %2731 = vdwg.mxu0
        %v2732 = vmul.f32 %v2724, 0.125
        %v2733 = vmul.f32 %v2729, 0.125
        %v2734 = vsel %vm1966, %v2732, -inf
        %2735 = vmax.xlane.f32.xlu0 %v2734
        %v2736 = vpop.xlane.xlu0 %2735
        %v2737 = vsel %vm1970, %v2733, -inf
        %2738 = vmax.xlane.f32.xlu0 %v2737
        %v2739 = vpop.xlane.xlu0 %2738
        %v2740 = vsub.f32 %v2732, %v2736
        %v2741 = vsub.f32 %v2733, %v2739
        %v2742 = vmul.f32 %v2740, 1.442695
        %v2743 = vpow.pop %v2742
        %v2744 = vmul.f32 %v2741, 1.442695
        %v2745 = vpow.pop %v2744
        %v2746 = vsel %vm1966, %v2743, 0.0
        %2747 = vadd.xlane.f32.xlu0 %v2746
        %v2748 = vpop.xlane.xlu0 %2747
        %v2749 = vsel %vm1970, %v2745, 0.0
        %2750 = vadd.xlane.f32.xlu0 %v2749
        %v2751 = vpop.xlane.xlu0 %2750
        %v2752 = vrcp.pop %v2748
        %v2753 = vmul.f32 %v2743, %v2752
        %v2754 = vrcp.pop %v2751
        %v2755 = vmul.f32 %v2745, %v2754
        %v2757 = vrot.slane %v1831, 1
        %v2758 = vrot.slane %v1837, 1
        %v2759 = vsel %vm2443, %v2757, %v2758
        %v2762 = vsel %vm1966, %v2753, 0
        %v2765 = vsel %vm1966, %v2755, 0
        %v2767 = vsel %vm1996, %v2758, 0
        %2769 = vmatprep.subr.mxu0 0.0
        %2770 = vmatpush1.msra.mxu0 %v2759
        %2771 = vmatprep.subr.mxu0 0.0
        %2772 = vmatpush1.msra.mxu0 %v2767
        %2773 = vmatprep.subr.mxu0 0.0
        %2774 = vmatpush1.msra.mxu0 0.0
        %2775 = vmatprep.subr.mxu0 0.0
        %2776 = vmatpush1.msra.mxu0 0.0
        %2777 = vmatprep.subr.mxu0 0.0
        %2778 = vmatpush1.msra.mxu0 0.0
        %2779 = vmatprep.subr.mxu0 0.0
        %2780 = vmatpush1.msra.mxu0 0.0
        %2781 = vmatprep.subr.mxu0 0.0
        %2782 = vmatpush1.msra.mxu0 0.0
        %2783 = vmatprep.subr.mxu0 0.0
        %2784 = vmatpush1.msra.mxu0 0.0
        %2785 = vmatprep.subr.mxu0 0.0
        %2786 = vmatpush1.msra.mxu0 0.0
        %2787 = vmatprep.subr.mxu0 0.0
        %2788 = vmatpush1.msra.mxu0 0.0
        %2789 = vmatprep.subr.mxu0 0.0
        %2790 = vmatpush1.msra.mxu0 0.0
        %2791 = vmatprep.subr.mxu0 0.0
        %2792 = vmatpush1.msra.mxu0 0.0
        %2793 = vmatprep.subr.mxu0 0.0
        %2794 = vmatpush1.msra.mxu0 0.0
        %2795 = vmatprep.subr.mxu0 0.0
        %2796 = vmatpush1.msra.mxu0 0.0
        %2797 = vmatprep.subr.mxu0 0.0
        %2798 = vmatpush1.msra.mxu0 0.0
        %2799 = vmatprep.subr.mxu0 0.0
        %2800 = vmatpush1.msra.mxu0 0.0
        %2801 = vmatprep.subr.mxu0 0.0
        %2802 = vmatpush1.msra.mxu0 0.0
        %2803 = vmatprep.subr.mxu0 0.0
        %2804 = vmatpush1.msra.mxu0 0.0
        %2805 = vmatprep.subr.mxu0 0.0
        %2806 = vmatpush1.msra.mxu0 0.0
        %2807 = vmatprep.subr.mxu0 0.0
        %2808 = vmatpush1.msra.mxu0 0.0
        %2809 = vmatprep.subr.mxu0 0.0
        %2810 = vmatpush1.msra.mxu0 0.0
        %2811 = vmatprep.subr.mxu0 0.0
        %2812 = vmatpush1.msra.mxu0 0.0
        %2813 = vmatprep.subr.mxu0 0.0
        %2814 = vmatpush1.msra.mxu0 0.0
        %2815 = vmatprep.subr.mxu0 0.0
        %2816 = vmatpush1.msra.mxu0 0.0
        %2817 = vmatprep.subr.mxu0 0.0
        %2818 = vmatpush1.msra.mxu0 0.0
        %2819 = vmatprep.subr.mxu0 0.0
        %2820 = vmatpush1.msra.mxu0 0.0
        %2821 = vmatprep.subr.mxu0 0.0
        %2822 = vmatpush1.msra.mxu0 0.0
        %2823 = vmatprep.subr.mxu0 0.0
        %2824 = vmatpush1.msra.mxu0 0.0
        %2825 = vmatprep.subr.mxu0 0.0
        %2826 = vmatpush1.msra.mxu0 0.0
        %2827 = vmatprep.subr.mxu0 0.0
        %2828 = vmatpush1.msra.mxu0 0.0
        %2829 = vmatprep.subr.mxu0 0.0
        %2830 = vmatpush1.msra.mxu0 0.0
        %2831 = vmatprep.subr.mxu0 0.0
        %2832 = vmatpush1.msra.mxu0 0.0
        %2833 = vmatprep.mubr.f32.mxu0 0.0
        %2834 = vmatmul.mubr.f32.gmra.mrb[0].mxu0 %v2762
        %v2835 = vpop.f32.mrb[0].mxu0
        %v2836 = vadd.f32 0.0, %v2835
        %v2837 = vpop.f32.mrb[0].mxu0
        %2838 = vmatprep.mubr.f32.mxu0 0.0
        %2839 = vmatmul.mubr.f32.gmra.mrb[0].mxu0 %v2765
        %v2840 = vpop.f32.mrb[0].mxu0
        %v2841 = vadd.f32 0.0, %v2840
        %v2842 = vpop.f32.mrb[0].mxu0
        %2843 = vdwg.mxu0
        %v2846 = vrot.slane %v1727, 1
        %v2847 = vrot.slane %v1733, 1
        %v2848 = vsel %vm2443, %v2846, %v2847
        %v2853 = vrot.slane %v1780, 1
        %v2854 = vrot.slane %v1786, 1
        %v2855 = vsel %vm2443, %v2853, %v2854
        %2858 = vmatprep.subr.mxu0 0.0
        %2859 = vmatpush1.xpose.msra.mxu0 %v2855
        %2860 = vmatprep.subr.mxu0 0.0
        %2861 = vmatpush1.xpose.msra.mxu0 %v2854
        %2862 = vmatprep.subr.mxu0 0.0
        %2863 = vmatpush1.xpose.msra.mxu0 0.0
        %2864 = vmatprep.subr.mxu0 0.0
        %2865 = vmatpush1.xpose.msra.mxu0 0.0
        %2866 = vmatprep.subr.mxu0 0.0
        %2867 = vmatpush1.xpose.msra.mxu0 0.0
        %2868 = vmatprep.subr.mxu0 0.0
        %2869 = vmatpush1.xpose.msra.mxu0 0.0
        %2870 = vmatprep.subr.mxu0 0.0
        %2871 = vmatpush1.xpose.msra.mxu0 0.0
        %2872 = vmatprep.subr.mxu0 0.0
        %2873 = vmatpush1.xpose.msra.mxu0 0.0
        %2874 = vmatprep.subr.mxu0 0.0
        %2875 = vmatpush1.xpose.msra.mxu0 0.0
        %2876 = vmatprep.subr.mxu0 0.0
        %2877 = vmatpush1.xpose.msra.mxu0 0.0
        %2878 = vmatprep.subr.mxu0 0.0
        %2879 = vmatpush1.xpose.msra.mxu0 0.0
        %2880 = vmatprep.subr.mxu0 0.0
        %2881 = vmatpush1.xpose.msra.mxu0 0.0
        %2882 = vmatprep.subr.mxu0 0.0
        %2883 = vmatpush1.xpose.msra.mxu0 0.0
        %2884 = vmatprep.subr.mxu0 0.0
        %2885 = vmatpush1.xpose.msra.mxu0 0.0
        %2886 = vmatprep.subr.mxu0 0.0
        %2887 = vmatpush1.xpose.msra.mxu0 0.0
        %2888 = vmatprep.subr.mxu0 0.0
        %2889 = vmatpush1.xpose.msra.mxu0 0.0
        %2890 = vmatprep.subr.mxu0 0.0
        %2891 = vmatpush1.xpose.msra.mxu0 0.0
        %2892 = vmatprep.subr.mxu0 0.0
        %2893 = vmatpush1.xpose.msra.mxu0 0.0
        %2894 = vmatprep.subr.mxu0 0.0
        %2895 = vmatpush1.xpose.msra.mxu0 0.0
        %2896 = vmatprep.subr.mxu0 0.0
        %2897 = vmatpush1.xpose.msra.mxu0 0.0
        %2898 = vmatprep.subr.mxu0 0.0
        %2899 = vmatpush1.xpose.msra.mxu0 0.0
        %2900 = vmatprep.subr.mxu0 0.0
        %2901 = vmatpush1.xpose.msra.mxu0 0.0
        %2902 = vmatprep.subr.mxu0 0.0
        %2903 = vmatpush1.xpose.msra.mxu0 0.0
        %2904 = vmatprep.subr.mxu0 0.0
        %2905 = vmatpush1.xpose.msra.mxu0 0.0
        %2906 = vmatprep.subr.mxu0 0.0
        %2907 = vmatpush1.xpose.msra.mxu0 0.0
        %2908 = vmatprep.subr.mxu0 0.0
        %2909 = vmatpush1.xpose.msra.mxu0 0.0
        %2910 = vmatprep.subr.mxu0 0.0
        %2911 = vmatpush1.xpose.msra.mxu0 0.0
        %2912 = vmatprep.subr.mxu0 0.0
        %2913 = vmatpush1.xpose.msra.mxu0 0.0
        %2914 = vmatprep.subr.mxu0 0.0
        %2915 = vmatpush1.xpose.msra.mxu0 0.0
        %2916 = vmatprep.subr.mxu0 0.0
        %2917 = vmatpush1.xpose.msra.mxu0 0.0
        %2918 = vmatprep.subr.mxu0 0.0
        %2919 = vmatpush1.xpose.msra.mxu0 0.0
        %2920 = vmatprep.subr.mxu0 0.0
        %2921 = vmatpush1.xpose.msra.mxu0 0.0
        %2922 = vmatprep.mubr.f32.mxu0 0.0
        %2923 = vmatmul.mubr.f32.gmra.mrb[0].mxu0 %v2848
        %v2924 = vpop.f32.mrb[0].mxu0
        %v2925 = vadd.f32 0.0, %v2924
        %v2926 = vpop.f32.mrb[0].mxu0
        %2927 = vmatprep.mubr.f32.mxu0 0.0
        %2928 = vmatmul.mubr.f32.gmra.mrb[0].mxu0 %v2847
        %v2929 = vpop.f32.mrb[0].mxu0
        %v2930 = vadd.f32 0.0, %v2929
        %v2931 = vpop.f32.mrb[0].mxu0
        %2932 = vdwg.mxu0
        %v2933 = vmul.f32 %v2925, 0.125
        %v2934 = vmul.f32 %v2930, 0.125
        %v2935 = vsel %vm1966, %v2933, -inf
        %2936 = vmax.xlane.f32.xlu0 %v2935
        %v2937 = vpop.xlane.xlu0 %2936
        %v2938 = vsel %vm1970, %v2934, -inf
        %2939 = vmax.xlane.f32.xlu0 %v2938
        %v2940 = vpop.xlane.xlu0 %2939
        %v2941 = vsub.f32 %v2933, %v2937
        %v2942 = vsub.f32 %v2934, %v2940
        %v2943 = vmul.f32 %v2941, 1.442695
        %v2944 = vpow.pop %v2943
        %v2945 = vmul.f32 %v2942, 1.442695
        %v2946 = vpow.pop %v2945
        %v2947 = vsel %vm1966, %v2944, 0.0
        %2948 = vadd.xlane.f32.xlu0 %v2947
        %v2949 = vpop.xlane.xlu0 %2948
        %v2950 = vsel %vm1970, %v2946, 0.0
        %2951 = vadd.xlane.f32.xlu0 %v2950
        %v2952 = vpop.xlane.xlu0 %2951
        %v2953 = vrcp.pop %v2949
        %v2954 = vmul.f32 %v2944, %v2953
        %v2955 = vrcp.pop %v2952
        %v2956 = vmul.f32 %v2946, %v2955
        %v2958 = vrot.slane %v1879, 1
        %v2959 = vrot.slane %v1884, 1
        %v2960 = vsel %vm2443, %v2958, %v2959
        %v2963 = vsel %vm1966, %v2954, 0
        %v2966 = vsel %vm1966, %v2956, 0
        %v2968 = vsel %vm1996, %v2959, 0
        %2970 = vmatprep.subr.mxu0 0.0
        %2971 = vmatpush1.msra.mxu0 %v2960
        %2972 = vmatprep.subr.mxu0 0.0
        %2973 = vmatpush1.msra.mxu0 %v2968
        %2974 = vmatprep.subr.mxu0 0.0
        %2975 = vmatpush1.msra.mxu0 0.0
        %2976 = vmatprep.subr.mxu0 0.0
        %2977 = vmatpush1.msra.mxu0 0.0
        %2978 = vmatprep.subr.mxu0 0.0
        %2979 = vmatpush1.msra.mxu0 0.0
        %2980 = vmatprep.subr.mxu0 0.0
        %2981 = vmatpush1.msra.mxu0 0.0
        %2982 = vmatprep.subr.mxu0 0.0
        %2983 = vmatpush1.msra.mxu0 0.0
        %2984 = vmatprep.subr.mxu0 0.0
        %2985 = vmatpush1.msra.mxu0 0.0
        %2986 = vmatprep.subr.mxu0 0.0
        %2987 = vmatpush1.msra.mxu0 0.0
        %2988 = vmatprep.subr.mxu0 0.0
        %2989 = vmatpush1.msra.mxu0 0.0
        %2990 = vmatprep.subr.mxu0 0.0
        %2991 = vmatpush1.msra.mxu0 0.0
        %2992 = vmatprep.subr.mxu0 0.0
        %2993 = vmatpush1.msra.mxu0 0.0
        %2994 = vmatprep.subr.mxu0 0.0
        %2995 = vmatpush1.msra.mxu0 0.0
        %2996 = vmatprep.subr.mxu0 0.0
        %2997 = vmatpush1.msra.mxu0 0.0
        %2998 = vmatprep.subr.mxu0 0.0
        %2999 = vmatpush1.msra.mxu0 0.0
        %3000 = vmatprep.subr.mxu0 0.0
        %3001 = vmatpush1.msra.mxu0 0.0
        %3002 = vmatprep.subr.mxu0 0.0
        %3003 = vmatpush1.msra.mxu0 0.0
        %3004 = vmatprep.subr.mxu0 0.0
        %3005 = vmatpush1.msra.mxu0 0.0
        %3006 = vmatprep.subr.mxu0 0.0
        %3007 = vmatpush1.msra.mxu0 0.0
        %3008 = vmatprep.subr.mxu0 0.0
        %3009 = vmatpush1.msra.mxu0 0.0
        %3010 = vmatprep.subr.mxu0 0.0
        %3011 = vmatpush1.msra.mxu0 0.0
        %3012 = vmatprep.subr.mxu0 0.0
        %3013 = vmatpush1.msra.mxu0 0.0
        %3014 = vmatprep.subr.mxu0 0.0
        %3015 = vmatpush1.msra.mxu0 0.0
        %3016 = vmatprep.subr.mxu0 0.0
        %3017 = vmatpush1.msra.mxu0 0.0
        %3018 = vmatprep.subr.mxu0 0.0
        %3019 = vmatpush1.msra.mxu0 0.0
        %3020 = vmatprep.subr.mxu0 0.0
        %3021 = vmatpush1.msra.mxu0 0.0
        %3022 = vmatprep.subr.mxu0 0.0
        %3023 = vmatpush1.msra.mxu0 0.0
        %3024 = vmatprep.subr.mxu0 0.0
        %3025 = vmatpush1.msra.mxu0 0.0
        %3026 = vmatprep.subr.mxu0 0.0
        %3027 = vmatpush1.msra.mxu0 0.0
        %3028 = vmatprep.subr.mxu0 0.0
        %3029 = vmatpush1.msra.mxu0 0.0
        %3030 = vmatprep.subr.mxu0 0.0
        %3031 = vmatpush1.msra.mxu0 0.0
        %3032 = vmatprep.subr.mxu0 0.0
        %3033 = vmatpush1.msra.mxu0 0.0
        %3034 = vmatprep.mubr.f32.mxu0 0.0
        %3035 = vmatmul.mubr.f32.gmra.mrb[0].mxu0 %v2963
        %v3036 = vpop.f32.mrb[0].mxu0
        %v3037 = vadd.f32 0.0, %v3036
        %v3038 = vpop.f32.mrb[0].mxu0
        %3039 = vmatprep.mubr.f32.mxu0 0.0
        %3040 = vmatmul.mubr.f32.gmra.mrb[0].mxu0 %v2966
        %v3041 = vpop.f32.mrb[0].mxu0
        %v3042 = vadd.f32 0.0, %v3041
        %v3043 = vpop.f32.mrb[0].mxu0
        %3044 = vdwg.mxu0
        %v3051 = vrot.slane %v2635, 7
        %v3052 = vrot.slane %v2836, 7
        %v3053 = vrot.slane %v3037, 7
        %v3054 = vrot.slane %v2640, 7
        %v3055 = vsel %vm1996, %v3051, %v3054
        %v3056 = vrot.slane %v2841, 7
        %v3057 = vsel %vm1996, %v3052, %v3056
        %v3058 = vrot.slane %v3042, 7
        %v3059 = vsel %vm1996, %v3053, %v3058
        %v3066 = vsel %vm1996, %v2072, %v3051
        %v3067 = vsel %vm1996, %v2255, %v3052
        %v3068 = vsel %vm1996, %v2438, %v3053
        %v3069 = vpack.c.bf16 %v3066, %v2067
        %v3070 = vpack.c.bf16 %v3067, %v2250
        %v3071 = vpack.c.bf16 %v3068, %v2433
        %v3072 = vpack.c.bf16 %v3055, %v3055
        %v3073 = vpack.c.bf16 %v3057, %v3057
        %v3074 = vpack.c.bf16 %v3059, %v3059
        %v3075 = vld [vmem:[%s754] sm:$0xff]
        %v3076 = vld [vmem:[%s754 + $0x8] sm:$0xff]
        %v3077 = vld [vmem:[%s754 + $0x10] sm:$0xff]
        %v3078 = vld [vmem:[%s754 + $0x18] sm:$0xff]
        %v3079 = vld [vmem:[%s754 + $0x20] sm:$0xff]
        %v3080 = vld [vmem:[%s754 + $0x28] sm:$0xff]
        %v3081 = vld [vmem:[%s754 + $0x30] sm:$0xff]
        %v3082 = vld [vmem:[%s754 + $0x38] sm:$0xff]
        %v3083 = vld [vmem:[%s754 + $0x40] sm:$0xff]
        %v3084 = vld [vmem:[%s754 + $0x48] sm:$0xff]
        %v3085 = vld [vmem:[%s754 + $0x50] sm:$0xff]
        %v3086 = vld [vmem:[%s754 + $0x58] sm:$0xff]
        %v3087 = vld [vmem:[%s754 + $0x60] sm:$0xff]
        %v3088 = vld [vmem:[%s754 + $0x68] sm:$0xff]
        %v3089 = vld [vmem:[%s754 + $0x70] sm:$0xff]
        %v3090 = vld [vmem:[%s754 + $0x78] sm:$0xff]
        %v3091 = vld [vmem:[%s754 + $0x80] sm:$0xff]
        %v3092 = vld [vmem:[%s754 + $0x88] sm:$0xff]
        %v3093 = vld [vmem:[%s754 + $0x90] sm:$0xff]
        %v3094 = vld [vmem:[%s754 + $0x98] sm:$0xff]
        %v3095 = vld [vmem:[%s754 + $0xa0] sm:$0xff]
        %v3096 = vld [vmem:[%s754 + $0xa8] sm:$0xff]
        %v3097 = vld [vmem:[%s754 + $0xb0] sm:$0xff]
        %v3098 = vld [vmem:[%s754 + $0xb8] sm:$0xff]
        %v3099 = vld [vmem:[%s754 + $0xc0] sm:$0xff]
        %v3100 = vld [vmem:[%s754 + $0xc8] sm:$0xff]
        %v3101 = vld [vmem:[%s754 + $0xd0] sm:$0xff]
        %v3102 = vld [vmem:[%s754 + $0xd8] sm:$0xff]
        %v3103 = vld [vmem:[%s754 + $0xe0] sm:$0xff]
        %v3104 = vld [vmem:[%s754 + $0xe8] sm:$0xff]
        %v3105 = vld [vmem:[%s754 + $0xf0] sm:$0xff]
        %v3106 = vld [vmem:[%s754 + $0xf8] sm:$0xff]
        %v3107 = vld [vmem:[%s754 + $0x100] sm:$0xff]
        %v3108 = vld [vmem:[%s754 + $0x108] sm:$0xff]
        %v3109 = vld [vmem:[%s754 + $0x110] sm:$0xff]
        %v3110 = vld [vmem:[%s754 + $0x118] sm:$0xff]
        %v3111 = vld [vmem:[%s754 + $0x120] sm:$0xff]
        %v3112 = vld [vmem:[%s754 + $0x128] sm:$0xff]
        %v3113 = vld [vmem:[%s754 + $0x130] sm:$0xff]
        %v3114 = vld [vmem:[%s754 + $0x138] sm:$0xff]
        %v3115 = vld [vmem:[%s754 + $0x140] sm:$0xff]
        %v3116 = vld [vmem:[%s754 + $0x148] sm:$0xff]
        %v3117 = vld [vmem:[%s754 + $0x150] sm:$0xff]
        %v3118 = vld [vmem:[%s754 + $0x158] sm:$0xff]
        %v3119 = vld [vmem:[%s754 + $0x160] sm:$0xff]
        %v3120 = vld [vmem:[%s754 + $0x168] sm:$0xff]
        %v3121 = vld [vmem:[%s754 + $0x170] sm:$0xff]
        %v3122 = vld [vmem:[%s754 + $0x178] sm:$0xff]
        %v3171 = vunpack.c.l.b16 %v3075
        %v3172 = vunpack.c.h.b16 %v3075
        %v3173 = vunpack.c.l.b16 %v3076
        %v3174 = vunpack.c.h.b16 %v3076
        %v3175 = vunpack.c.l.b16 %v3077
        %v3176 = vunpack.c.h.b16 %v3077
        %v3177 = vunpack.c.l.b16 %v3078
        %v3178 = vunpack.c.h.b16 %v3078
        %v3179 = vunpack.c.l.b16 %v3079
        %v3180 = vunpack.c.h.b16 %v3079
        %v3181 = vunpack.c.l.b16 %v3080
        %v3182 = vunpack.c.h.b16 %v3080
        %v3183 = vunpack.c.l.b16 %v3081
        %v3184 = vunpack.c.h.b16 %v3081
        %v3185 = vunpack.c.l.b16 %v3082
        %v3186 = vunpack.c.h.b16 %v3082
        %v3187 = vunpack.c.l.b16 %v3083
        %v3188 = vunpack.c.h.b16 %v3083
        %v3189 = vunpack.c.l.b16 %v3084
        %v3190 = vunpack.c.h.b16 %v3084
        %v3191 = vunpack.c.l.b16 %v3085
        %v3192 = vunpack.c.h.b16 %v3085
        %v3193 = vunpack.c.l.b16 %v3086
        %v3194 = vunpack.c.h.b16 %v3086
        %v3195 = vunpack.c.l.b16 %v3087
        %v3196 = vunpack.c.h.b16 %v3087
        %v3197 = vunpack.c.l.b16 %v3088
        %v3198 = vunpack.c.h.b16 %v3088
        %v3199 = vunpack.c.l.b16 %v3089
        %v3200 = vunpack.c.h.b16 %v3089
        %v3201 = vunpack.c.l.b16 %v3090
        %v3202 = vunpack.c.h.b16 %v3090
        %v3203 = vunpack.c.l.b16 %v3091
        %v3204 = vunpack.c.h.b16 %v3091
        %v3205 = vunpack.c.l.b16 %v3092
        %v3206 = vunpack.c.h.b16 %v3092
        %v3207 = vunpack.c.l.b16 %v3093
        %v3208 = vunpack.c.h.b16 %v3093
        %v3209 = vunpack.c.l.b16 %v3094
        %v3210 = vunpack.c.h.b16 %v3094
        %v3211 = vunpack.c.l.b16 %v3095
        %v3212 = vunpack.c.h.b16 %v3095
        %v3213 = vunpack.c.l.b16 %v3096
        %v3214 = vunpack.c.h.b16 %v3096
        %v3215 = vunpack.c.l.b16 %v3097
        %v3216 = vunpack.c.h.b16 %v3097
        %v3217 = vunpack.c.l.b16 %v3098
        %v3218 = vunpack.c.h.b16 %v3098
        %v3219 = vunpack.c.l.b16 %v3099
        %v3220 = vunpack.c.h.b16 %v3099
        %v3221 = vunpack.c.l.b16 %v3100
        %v3222 = vunpack.c.h.b16 %v3100
        %v3223 = vunpack.c.l.b16 %v3101
        %v3224 = vunpack.c.h.b16 %v3101
        %v3225 = vunpack.c.l.b16 %v3102
        %v3226 = vunpack.c.h.b16 %v3102
        %v3227 = vunpack.c.l.b16 %v3103
        %v3228 = vunpack.c.h.b16 %v3103
        %v3229 = vunpack.c.l.b16 %v3104
        %v3230 = vunpack.c.h.b16 %v3104
        %v3231 = vunpack.c.l.b16 %v3105
        %v3232 = vunpack.c.h.b16 %v3105
        %v3233 = vunpack.c.l.b16 %v3106
        %v3234 = vunpack.c.h.b16 %v3106
        %v3235 = vunpack.c.l.b16 %v3107
        %v3236 = vunpack.c.h.b16 %v3107
        %v3237 = vunpack.c.l.b16 %v3108
        %v3238 = vunpack.c.h.b16 %v3108
        %v3239 = vunpack.c.l.b16 %v3109
        %v3240 = vunpack.c.h.b16 %v3109
        %v3241 = vunpack.c.l.b16 %v3110
        %v3242 = vunpack.c.h.b16 %v3110
        %v3243 = vunpack.c.l.b16 %v3111
        %v3244 = vunpack.c.h.b16 %v3111
        %v3245 = vunpack.c.l.b16 %v3112
        %v3246 = vunpack.c.h.b16 %v3112
        %v3247 = vunpack.c.l.b16 %v3113
        %v3248 = vunpack.c.h.b16 %v3113
        %v3249 = vunpack.c.l.b16 %v3114
        %v3250 = vunpack.c.h.b16 %v3114
        %v3251 = vunpack.c.l.b16 %v3115
        %v3252 = vunpack.c.h.b16 %v3115
        %v3253 = vunpack.c.l.b16 %v3116
        %v3254 = vunpack.c.h.b16 %v3116
        %v3255 = vunpack.c.l.b16 %v3117
        %v3256 = vunpack.c.h.b16 %v3117
        %v3257 = vunpack.c.l.b16 %v3118
        %v3258 = vunpack.c.h.b16 %v3118
        %v3259 = vunpack.c.l.b16 %v3119
        %v3260 = vunpack.c.h.b16 %v3119
        %v3261 = vunpack.c.l.b16 %v3120
        %v3262 = vunpack.c.h.b16 %v3120
        %v3263 = vunpack.c.l.b16 %v3121
        %v3264 = vunpack.c.h.b16 %v3121
        %v3265 = vunpack.c.l.b16 %v3122
        %v3266 = vunpack.c.h.b16 %v3122
        %v3267 = vpack.c.b16 %v3173, %v3171
        %v3268 = vpack.c.b16 %v3174, %v3172
        %v3269 = vpack.c.b16 %v3177, %v3175
        %v3270 = vpack.c.b16 %v3178, %v3176
        %v3271 = vpack.c.b16 %v3181, %v3179
        %v3272 = vpack.c.b16 %v3182, %v3180
        %v3273 = vpack.c.b16 %v3185, %v3183
        %v3274 = vpack.c.b16 %v3186, %v3184
        %v3275 = vpack.c.b16 %v3189, %v3187
        %v3276 = vpack.c.b16 %v3190, %v3188
        %v3277 = vpack.c.b16 %v3193, %v3191
        %v3278 = vpack.c.b16 %v3194, %v3192
        %v3279 = vpack.c.b16 %v3197, %v3195
        %v3280 = vpack.c.b16 %v3198, %v3196
        %v3281 = vpack.c.b16 %v3201, %v3199
        %v3282 = vpack.c.b16 %v3202, %v3200
        %v3283 = vpack.c.b16 %v3205, %v3203
        %v3284 = vpack.c.b16 %v3206, %v3204
        %v3285 = vpack.c.b16 %v3209, %v3207
        %v3286 = vpack.c.b16 %v3210, %v3208
        %v3287 = vpack.c.b16 %v3213, %v3211
        %v3288 = vpack.c.b16 %v3214, %v3212
        %v3289 = vpack.c.b16 %v3217, %v3215
        %v3290 = vpack.c.b16 %v3218, %v3216
        %v3291 = vpack.c.b16 %v3221, %v3219
        %v3292 = vpack.c.b16 %v3222, %v3220
        %v3293 = vpack.c.b16 %v3225, %v3223
        %v3294 = vpack.c.b16 %v3226, %v3224
        %v3295 = vpack.c.b16 %v3229, %v3227
        %v3296 = vpack.c.b16 %v3230, %v3228
        %v3297 = vpack.c.b16 %v3233, %v3231
        %v3298 = vpack.c.b16 %v3234, %v3232
        %v3299 = vpack.c.b16 %v3237, %v3235
        %v3300 = vpack.c.b16 %v3238, %v3236
        %v3301 = vpack.c.b16 %v3241, %v3239
        %v3302 = vpack.c.b16 %v3242, %v3240
        %v3303 = vpack.c.b16 %v3245, %v3243
        %v3304 = vpack.c.b16 %v3246, %v3244
        %v3305 = vpack.c.b16 %v3249, %v3247
        %v3306 = vpack.c.b16 %v3250, %v3248
        %v3307 = vpack.c.b16 %v3253, %v3251
        %v3308 = vpack.c.b16 %v3254, %v3252
        %v3309 = vpack.c.b16 %v3257, %v3255
        %v3310 = vpack.c.b16 %v3258, %v3256
        %v3311 = vpack.c.b16 %v3261, %v3259
        %v3312 = vpack.c.b16 %v3262, %v3260
        %v3313 = vpack.c.b16 %v3265, %v3263
        %v3314 = vpack.c.b16 %v3266, %v3264
        %3363 = vmatprep.subr.bf16.mxu0 %v3268
        %3364 = vmatpush1.bf16.msra.mxu0 %v3267
        %3365 = vmatprep.subr.bf16.mxu0 %v3270
        %3366 = vmatpush1.bf16.msra.mxu0 %v3269
        %3367 = vmatprep.subr.bf16.mxu0 %v3272
        %3368 = vmatpush1.bf16.msra.mxu0 %v3271
        %3369 = vmatprep.subr.bf16.mxu0 %v3274
        %3370 = vmatpush1.bf16.msra.mxu0 %v3273
        %3371 = vmatprep.subr.bf16.mxu0 %v3276
        %3372 = vmatpush1.bf16.msra.mxu0 %v3275
        %3373 = vmatprep.subr.bf16.mxu0 %v3278
        %3374 = vmatpush1.bf16.msra.mxu0 %v3277
        %3375 = vmatprep.subr.bf16.mxu0 %v3280
        %3376 = vmatpush1.bf16.msra.mxu0 %v3279
        %3377 = vmatprep.subr.bf16.mxu0 %v3282
        %3378 = vmatpush1.bf16.msra.mxu0 %v3281
        %3379 = vmatprep.subr.bf16.mxu0 %v3284
        %3380 = vmatpush1.bf16.msra.mxu0 %v3283
        %3381 = vmatprep.subr.bf16.mxu0 %v3286
        %3382 = vmatpush1.bf16.msra.mxu0 %v3285
        %3383 = vmatprep.subr.bf16.mxu0 %v3288
        %3384 = vmatpush1.bf16.msra.mxu0 %v3287
        %3385 = vmatprep.subr.bf16.mxu0 %v3290
        %3386 = vmatpush1.bf16.msra.mxu0 %v3289
        %3387 = vmatprep.subr.bf16.mxu0 %v3292
        %3388 = vmatpush1.bf16.msra.mxu0 %v3291
        %3389 = vmatprep.subr.bf16.mxu0 %v3294
        %3390 = vmatpush1.bf16.msra.mxu0 %v3293
        %3391 = vmatprep.subr.bf16.mxu0 %v3296
        %3392 = vmatpush1.bf16.msra.mxu0 %v3295
        %3393 = vmatprep.subr.bf16.mxu0 %v3298
        %3394 = vmatpush1.bf16.msra.mxu0 %v3297
        %3395 = vmatprep.mubr.bf16.mxu0 %v3070
        %3396 = vmatmul.mubr.bf16.gmra.mrb[0].mxu0 %v3069
        %v3397 = vpop.f32.mrb[0].mxu0
        %v3398 = vadd.f32 0.0, %v3397
        %v3399 = vpop.f32.mrb[0].mxu0
        %v3400 = vadd.f32 0.0, %v3399
        %v3401 = vpop.f32.mrb[0].mxu0
        %v3402 = vadd.f32 0.0, %v3401
        %v3403 = vpop.f32.mrb[0].mxu0
        %v3404 = vadd.f32 0.0, %v3403
        %3405 = vmatprep.mubr.bf16.mxu0 %v3073
        %3406 = vmatmul.mubr.bf16.gmra.mrb[0].mxu0 %v3072
        %v3407 = vpop.f32.mrb[0].mxu0
        %v3408 = vadd.f32 0.0, %v3407
        %v3409 = vpop.f32.mrb[0].mxu0
        %v3410 = vadd.f32 0.0, %v3409
        %v3411 = vpop.f32.mrb[0].mxu0
        %v3412 = vpop.f32.mrb[0].mxu0
        %3413 = vdwg.mxu0
        %3414 = vmatprep.subr.bf16.mxu0 %v3300
        %3415 = vmatpush1.bf16.msra.mxu0 %v3299
        %3416 = vmatprep.subr.bf16.mxu0 %v3302
        %3417 = vmatpush1.bf16.msra.mxu0 %v3301
        %3418 = vmatprep.subr.bf16.mxu0 %v3304
        %3419 = vmatpush1.bf16.msra.mxu0 %v3303
        %3420 = vmatprep.subr.bf16.mxu0 %v3306
        %3421 = vmatpush1.bf16.msra.mxu0 %v3305
        %3422 = vmatprep.subr.bf16.mxu0 %v3308
        %3423 = vmatpush1.bf16.msra.mxu0 %v3307
        %3424 = vmatprep.subr.bf16.mxu0 %v3310
        %3425 = vmatpush1.bf16.msra.mxu0 %v3309
        %3426 = vmatprep.subr.bf16.mxu0 %v3312
        %3427 = vmatpush1.bf16.msra.mxu0 %v3311
        %3428 = vmatprep.subr.bf16.mxu0 %v3314
        %3429 = vmatpush1.bf16.msra.mxu0 %v3313
        %3430 = vmatprep.subr.bf16.mxu0 0
        %3431 = vmatpush1.bf16.msra.mxu0 0
        %3432 = vmatprep.subr.bf16.mxu0 0
        %3433 = vmatpush1.bf16.msra.mxu0 0
        %3434 = vmatprep.subr.bf16.mxu0 0
        %3435 = vmatpush1.bf16.msra.mxu0 0
        %3436 = vmatprep.subr.bf16.mxu0 0
        %3437 = vmatpush1.bf16.msra.mxu0 0
        %3438 = vmatprep.subr.bf16.mxu0 0
        %3439 = vmatpush1.bf16.msra.mxu0 0
        %3440 = vmatprep.subr.bf16.mxu0 0
        %3441 = vmatpush1.bf16.msra.mxu0 0
        %3442 = vmatprep.subr.bf16.mxu0 0
        %3443 = vmatpush1.bf16.msra.mxu0 0
        %3444 = vmatprep.subr.bf16.mxu0 0
        %3445 = vmatpush1.bf16.msra.mxu0 0
        %3446 = vmatprep.mubr.bf16.mxu0 0
        %3447 = vmatmul.mubr.bf16.gmra.mrb[0].mxu0 %v3071
        %v3448 = vpop.f32.mrb[0].mxu0
        %v3449 = vadd.f32 %v3398, %v3448
        %v3450 = vpop.f32.mrb[0].mxu0
        %v3451 = vadd.f32 %v3400, %v3450
        %v3452 = vpop.f32.mrb[0].mxu0
        %v3453 = vadd.f32 %v3402, %v3452
        %v3454 = vpop.f32.mrb[0].mxu0
        %v3455 = vadd.f32 %v3404, %v3454
        %3456 = vmatprep.mubr.bf16.mxu0 0
        %3457 = vmatmul.mubr.bf16.gmra.mrb[0].mxu0 %v3074
        %v3458 = vpop.f32.mrb[0].mxu0
        %v3459 = vadd.f32 %v3408, %v3458
        %v3460 = vpop.f32.mrb[0].mxu0
        %v3461 = vadd.f32 %v3410, %v3460
        %v3462 = vpop.f32.mrb[0].mxu0
        %v3463 = vpop.f32.mrb[0].mxu0
        %3464 = vdwg.mxu0
        %v3465 = vadd.f32 %v804, %v3449
        %v3466 = vadd.f32 %v805, %v3451
        %v3467 = vadd.f32 %v806, %v3453
        %v3468 = vadd.f32 %v807, %v3455
        %v3469 = vadd.f32 %v808, %v3459
        %v3470 = vadd.f32 %v809, %v3461
        %v3471 = vld [vmem:[%s758] sm:$0x3]
        %v3473 = vlaneseq
        %v3474 = vshrl.u32 %v3473, 7
        %v3475 = vsub.s32 0, %v3474
        %v3476 = vrot.slane %v3471, %v3475
        %v3477 = vlaneseq
        %v3478 = vshrl.u32 %v3477, 7
        %v3479 = vsub.s32 1, %v3478
        %v3480 = vrot.slane %v3471, %v3479
        %v3483 = vadd.f32 %v3465, %v3476
        %v3484 = vadd.f32 %v3466, %v3480
        %v3485 = vadd.f32 %v3467, %v3476
        %v3486 = vadd.f32 %v3468, %v3480
        %v3487 = vadd.f32 %v3469, %v3476
        %v3488 = vadd.f32 %v3470, %v3480
        %v3489 = vld [vmem:[%s762] sm:$0x3]
        %v3490 = vld [vmem:[%s766] sm:$0x3]
        %v3491 = vsel %vm812, %v3484, 0.0
        %v3492 = vadd.f32 %v3483, %v3491
        %3493 = vadd.xlane.f32.xlu0 %v3492
        %v3494 = vpop.xlane.xlu0 %3493
        %v3495 = vsel %vm812, %v3486, 0.0
        %v3496 = vadd.f32 %v3485, %v3495
        %3497 = vadd.xlane.f32.xlu0 %v3496
        %v3498 = vpop.xlane.xlu0 %3497
        %v3499 = vsel %vm821, %v3487, 0.0
        %v3500 = vsel %vm823, %v3488, 0.0
        %v3501 = vadd.f32 %v3499, %v3500
        %3502 = vadd.xlane.f32.xlu0 %v3501
        %v3503 = vpop.xlane.xlu0 %3502
        %v3504 = vmul.f32 %v3494, %v828
        %v3505 = vmul.f32 %v3498, %v828
        %v3506 = vmul.f32 %v3503, %v828
        %v3507 = vsub.f32 %v3483, %v3504
        %v3508 = vsub.f32 %v3484, %v3504
        %v3509 = vsub.f32 %v3485, %v3505
        %v3510 = vsub.f32 %v3486, %v3505
        %v3511 = vsub.f32 %v3487, %v3506
        %v3512 = vsub.f32 %v3488, %v3506
        %v3513 = vmul.f32 %v3507, %v3507
        %v3514 = vmul.f32 %v3508, %v3508
        %v3515 = vmul.f32 %v3509, %v3509
        %v3516 = vmul.f32 %v3510, %v3510
        %v3517 = vmul.f32 %v3511, %v3511
        %v3518 = vmul.f32 %v3512, %v3512
        %v3519 = vsel %vm812, %v3514, 0.0
        %v3520 = vadd.f32 %v3513, %v3519
        %3521 = vadd.xlane.f32.xlu0 %v3520
        %v3522 = vpop.xlane.xlu0 %3521
        %v3523 = vsel %vm812, %v3516, 0.0
        %v3524 = vadd.f32 %v3515, %v3523
        %3525 = vadd.xlane.f32.xlu0 %v3524
        %v3526 = vpop.xlane.xlu0 %3525
        %v3527 = vsel %vm821, %v3517, 0.0
        %v3528 = vsel %vm823, %v3518, 0.0
        %v3529 = vadd.f32 %v3527, %v3528
        %3530 = vadd.xlane.f32.xlu0 %v3529
        %v3531 = vpop.xlane.xlu0 %3530
        %v3532 = vmul.f32 %v3522, %v828
        %v3533 = vmul.f32 %v3526, %v828
        %v3534 = vmul.f32 %v3531, %v828
        %v3535 = vadd.f32 %v3532, 1e-06
        %v3536 = vadd.f32 %v3533, 1e-06
        %v3537 = vadd.f32 %v3534, 1e-06
        %v3538 = vrsqrt.pop %v3535
        %v3539 = vrsqrt.pop %v3536
        %v3540 = vrsqrt.pop %v3537
        %v3541 = vmul.f32 %v3507, %v3538
        %v3542 = vmul.f32 %v3508, %v3538
        %v3543 = vmul.f32 %v3509, %v3539
        %v3544 = vmul.f32 %v3510, %v3539
        %v3545 = vmul.f32 %v3511, %v3540
        %v3546 = vmul.f32 %v3512, %v3540
        %v3548 = vlaneseq
        %v3549 = vshrl.u32 %v3548, 7
        %v3550 = vsub.s32 0, %v3549
        %v3551 = vrot.slane %v3489, %v3550
        %v3552 = vlaneseq
        %v3553 = vshrl.u32 %v3552, 7
        %v3554 = vsub.s32 1, %v3553
        %v3555 = vrot.slane %v3489, %v3554
        %v3558 = vmul.f32 %v3541, %v3551
        %v3559 = vmul.f32 %v3542, %v3555
        %v3560 = vmul.f32 %v3543, %v3551
        %v3561 = vmul.f32 %v3544, %v3555
        %v3562 = vmul.f32 %v3545, %v3551
        %v3563 = vmul.f32 %v3546, %v3555
        %v3565 = vlaneseq
        %v3566 = vshrl.u32 %v3565, 7
        %v3567 = vsub.s32 0, %v3566
        %v3568 = vrot.slane %v3490, %v3567
        %v3569 = vlaneseq
        %v3570 = vshrl.u32 %v3569, 7
        %v3571 = vsub.s32 1, %v3570
        %v3572 = vrot.slane %v3490, %v3571
        %v3575 = vadd.f32 %v3558, %v3568
        %v3576 = vadd.f32 %v3559, %v3572
        %v3577 = vadd.f32 %v3560, %v3568
        %v3578 = vadd.f32 %v3561, %v3572
        %v3579 = vadd.f32 %v3562, %v3568
        %v3580 = vadd.f32 %v3563, %v3572
        %v3581 = vpack.c.bf16 %v3577, %v3575
        %v3582 = vpack.c.bf16 %v3578, %v3576
        %v3583 = vpack.c.bf16 %v3579, %v3579
        %v3584 = vpack.c.bf16 %v3580, %v3580
        %v3585 = vld [vmem:[%s771] sm:$0xff]
        %v3586 = vld [vmem:[%s771 + $0x8] sm:$0xff]
        %v3587 = vld [vmem:[%s771 + $0x10] sm:$0xff]
        %v3588 = vld [vmem:[%s771 + $0x18] sm:$0xff]
        %v3589 = vld [vmem:[%s771 + $0x20] sm:$0xff]
        %v3590 = vld [vmem:[%s771 + $0x28] sm:$0xff]
        %v3591 = vld [vmem:[%s771 + $0x30] sm:$0xff]
        %v3592 = vld [vmem:[%s771 + $0x38] sm:$0xff]
        %v3593 = vld [vmem:[%s771 + $0x40] sm:$0xff]
        %v3594 = vld [vmem:[%s771 + $0x48] sm:$0xff]
        %v3595 = vld [vmem:[%s771 + $0x50] sm:$0xff]
        %v3596 = vld [vmem:[%s771 + $0x58] sm:$0xff]
        %v3597 = vld [vmem:[%s771 + $0x60] sm:$0xff]
        %v3598 = vld [vmem:[%s771 + $0x68] sm:$0xff]
        %v3599 = vld [vmem:[%s771 + $0x70] sm:$0xff]
        %v3600 = vld [vmem:[%s771 + $0x78] sm:$0xff]
        %v3601 = vld [vmem:[%s771 + $0x80] sm:$0xff]
        %v3602 = vld [vmem:[%s771 + $0x88] sm:$0xff]
        %v3603 = vld [vmem:[%s771 + $0x90] sm:$0xff]
        %v3604 = vld [vmem:[%s771 + $0x98] sm:$0xff]
        %v3605 = vld [vmem:[%s771 + $0xa0] sm:$0xff]
        %v3606 = vld [vmem:[%s771 + $0xa8] sm:$0xff]
        %v3607 = vld [vmem:[%s771 + $0xb0] sm:$0xff]
        %v3608 = vld [vmem:[%s771 + $0xb8] sm:$0xff]
        %v3609 = vld [vmem:[%s771 + $0xc0] sm:$0xff]
        %v3610 = vld [vmem:[%s771 + $0xc8] sm:$0xff]
        %v3611 = vld [vmem:[%s771 + $0xd0] sm:$0xff]
        %v3612 = vld [vmem:[%s771 + $0xd8] sm:$0xff]
        %v3613 = vld [vmem:[%s771 + $0xe0] sm:$0xff]
        %v3614 = vld [vmem:[%s771 + $0xe8] sm:$0xff]
        %v3615 = vld [vmem:[%s771 + $0xf0] sm:$0xff]
        %v3616 = vld [vmem:[%s771 + $0xf8] sm:$0xff]
        %v3617 = vld [vmem:[%s771 + $0x100] sm:$0xff]
        %v3618 = vld [vmem:[%s771 + $0x108] sm:$0xff]
        %v3619 = vld [vmem:[%s771 + $0x110] sm:$0xff]
        %v3620 = vld [vmem:[%s771 + $0x118] sm:$0xff]
        %v3621 = vld [vmem:[%s771 + $0x120] sm:$0xff]
        %v3622 = vld [vmem:[%s771 + $0x128] sm:$0xff]
        %v3623 = vld [vmem:[%s771 + $0x130] sm:$0xff]
        %v3624 = vld [vmem:[%s771 + $0x138] sm:$0xff]
        %v3625 = vld [vmem:[%s771 + $0x140] sm:$0xff]
        %v3626 = vld [vmem:[%s771 + $0x148] sm:$0xff]
        %v3627 = vld [vmem:[%s771 + $0x150] sm:$0xff]
        %v3628 = vld [vmem:[%s771 + $0x158] sm:$0xff]
        %v3629 = vld [vmem:[%s771 + $0x160] sm:$0xff]
        %v3630 = vld [vmem:[%s771 + $0x168] sm:$0xff]
        %v3631 = vld [vmem:[%s771 + $0x170] sm:$0xff]
        %v3632 = vld [vmem:[%s771 + $0x178] sm:$0xff]
        %v3633 = vld [vmem:[%s771 + $0x180] sm:$0xff]
        %v3634 = vld [vmem:[%s771 + $0x188] sm:$0xff]
        %v3635 = vld [vmem:[%s771 + $0x190] sm:$0xff]
        %v3636 = vld [vmem:[%s771 + $0x198] sm:$0xff]
        %v3637 = vld [vmem:[%s771 + $0x1a0] sm:$0xff]
        %v3638 = vld [vmem:[%s771 + $0x1a8] sm:$0xff]
        %v3639 = vld [vmem:[%s771 + $0x1b0] sm:$0xff]
        %v3640 = vld [vmem:[%s771 + $0x1b8] sm:$0xff]
        %v3641 = vld [vmem:[%s771 + $0x1c0] sm:$0xff]
        %v3642 = vld [vmem:[%s771 + $0x1c8] sm:$0xff]
        %v3643 = vld [vmem:[%s771 + $0x1d0] sm:$0xff]
        %v3644 = vld [vmem:[%s771 + $0x1d8] sm:$0xff]
        %v3645 = vld [vmem:[%s771 + $0x1e0] sm:$0xff]
        %v3646 = vld [vmem:[%s771 + $0x1e8] sm:$0xff]
        %v3647 = vld [vmem:[%s771 + $0x1f0] sm:$0xff]
        %v3648 = vld [vmem:[%s771 + $0x1f8] sm:$0xff]
        %v3649 = vld [vmem:[%s771 + $0x200] sm:$0xff]
        %v3650 = vld [vmem:[%s771 + $0x208] sm:$0xff]
        %v3651 = vld [vmem:[%s771 + $0x210] sm:$0xff]
        %v3652 = vld [vmem:[%s771 + $0x218] sm:$0xff]
        %v3653 = vld [vmem:[%s771 + $0x220] sm:$0xff]
        %v3654 = vld [vmem:[%s771 + $0x228] sm:$0xff]
        %v3655 = vld [vmem:[%s771 + $0x230] sm:$0xff]
        %v3656 = vld [vmem:[%s771 + $0x238] sm:$0xff]
        %v3657 = vld [vmem:[%s775] sm:$0x3f]
        %v3659 = vlaneseq
        %v3660 = vshrl.u32 %v3659, 7
        %v3661 = vsub.s32 0, %v3660
        %v3662 = vrot.slane %v3657, %v3661
        %v3663 = vlaneseq
        %v3664 = vshrl.u32 %v3663, 7
        %v3665 = vsub.s32 1, %v3664
        %v3666 = vrot.slane %v3657, %v3665
        %v3667 = vlaneseq
        %v3668 = vshrl.u32 %v3667, 7
        %v3669 = vsub.s32 2, %v3668
        %v3670 = vrot.slane %v3657, %v3669
        %v3671 = vlaneseq
        %v3672 = vshrl.u32 %v3671, 7
        %v3673 = vsub.s32 3, %v3672
        %v3674 = vrot.slane %v3657, %v3673
        %v3675 = vlaneseq
        %v3676 = vshrl.u32 %v3675, 7
        %v3677 = vsub.s32 4, %v3676
        %v3678 = vrot.slane %v3657, %v3677
        %v3679 = vlaneseq
        %v3680 = vshrl.u32 %v3679, 7
        %v3681 = vsub.s32 5, %v3680
        %v3682 = vrot.slane %v3657, %v3681
        %v3761 = vunpack.c.l.b16 %v3585
        %v3762 = vunpack.c.h.b16 %v3585
        %v3763 = vunpack.c.l.b16 %v3586
        %v3764 = vunpack.c.h.b16 %v3586
        %v3765 = vunpack.c.l.b16 %v3587
        %v3766 = vunpack.c.h.b16 %v3587
        %v3767 = vunpack.c.l.b16 %v3588
        %v3768 = vunpack.c.h.b16 %v3588
        %v3769 = vunpack.c.l.b16 %v3589
        %v3770 = vunpack.c.h.b16 %v3589
        %v3771 = vunpack.c.l.b16 %v3590
        %v3772 = vunpack.c.h.b16 %v3590
        %v3773 = vunpack.c.l.b16 %v3591
        %v3774 = vunpack.c.h.b16 %v3591
        %v3775 = vunpack.c.l.b16 %v3592
        %v3776 = vunpack.c.h.b16 %v3592
        %v3777 = vunpack.c.l.b16 %v3593
        %v3778 = vunpack.c.h.b16 %v3593
        %v3779 = vunpack.c.l.b16 %v3594
        %v3780 = vunpack.c.h.b16 %v3594
        %v3781 = vunpack.c.l.b16 %v3595
        %v3782 = vunpack.c.h.b16 %v3595
        %v3783 = vunpack.c.l.b16 %v3596
        %v3784 = vunpack.c.h.b16 %v3596
        %v3785 = vunpack.c.l.b16 %v3597
        %v3786 = vunpack.c.h.b16 %v3597
        %v3787 = vunpack.c.l.b16 %v3598
        %v3788 = vunpack.c.h.b16 %v3598
        %v3789 = vunpack.c.l.b16 %v3599
        %v3790 = vunpack.c.h.b16 %v3599
        %v3791 = vunpack.c.l.b16 %v3600
        %v3792 = vunpack.c.h.b16 %v3600
        %v3793 = vunpack.c.l.b16 %v3601
        %v3794 = vunpack.c.h.b16 %v3601
        %v3795 = vunpack.c.l.b16 %v3602
        %v3796 = vunpack.c.h.b16 %v3602
        %v3797 = vunpack.c.l.b16 %v3603
        %v3798 = vunpack.c.h.b16 %v3603
        %v3799 = vunpack.c.l.b16 %v3604
        %v3800 = vunpack.c.h.b16 %v3604
        %v3801 = vunpack.c.l.b16 %v3605
        %v3802 = vunpack.c.h.b16 %v3605
        %v3803 = vunpack.c.l.b16 %v3606
        %v3804 = vunpack.c.h.b16 %v3606
        %v3805 = vunpack.c.l.b16 %v3607
        %v3806 = vunpack.c.h.b16 %v3607
        %v3807 = vunpack.c.l.b16 %v3608
        %v3808 = vunpack.c.h.b16 %v3608
        %v3809 = vunpack.c.l.b16 %v3609
        %v3810 = vunpack.c.h.b16 %v3609
        %v3811 = vunpack.c.l.b16 %v3610
        %v3812 = vunpack.c.h.b16 %v3610
        %v3813 = vunpack.c.l.b16 %v3611
        %v3814 = vunpack.c.h.b16 %v3611
        %v3815 = vunpack.c.l.b16 %v3612
        %v3816 = vunpack.c.h.b16 %v3612
        %v3817 = vunpack.c.l.b16 %v3613
        %v3818 = vunpack.c.h.b16 %v3613
        %v3819 = vunpack.c.l.b16 %v3614
        %v3820 = vunpack.c.h.b16 %v3614
        %v3821 = vunpack.c.l.b16 %v3615
        %v3822 = vunpack.c.h.b16 %v3615
        %v3823 = vunpack.c.l.b16 %v3616
        %v3824 = vunpack.c.h.b16 %v3616
        %v3825 = vunpack.c.l.b16 %v3617
        %v3826 = vunpack.c.h.b16 %v3617
        %v3827 = vunpack.c.l.b16 %v3618
        %v3828 = vunpack.c.h.b16 %v3618
        %v3829 = vunpack.c.l.b16 %v3619
        %v3830 = vunpack.c.h.b16 %v3619
        %v3831 = vunpack.c.l.b16 %v3620
        %v3832 = vunpack.c.h.b16 %v3620
        %v3833 = vunpack.c.l.b16 %v3621
        %v3834 = vunpack.c.h.b16 %v3621
        %v3835 = vunpack.c.l.b16 %v3622
        %v3836 = vunpack.c.h.b16 %v3622
        %v3837 = vunpack.c.l.b16 %v3623
        %v3838 = vunpack.c.h.b16 %v3623
        %v3839 = vunpack.c.l.b16 %v3624
        %v3840 = vunpack.c.h.b16 %v3624
        %v3841 = vunpack.c.l.b16 %v3625
        %v3842 = vunpack.c.h.b16 %v3625
        %v3843 = vunpack.c.l.b16 %v3626
        %v3844 = vunpack.c.h.b16 %v3626
        %v3845 = vunpack.c.l.b16 %v3627
        %v3846 = vunpack.c.h.b16 %v3627
        %v3847 = vunpack.c.l.b16 %v3628
        %v3848 = vunpack.c.h.b16 %v3628
        %v3849 = vunpack.c.l.b16 %v3629
        %v3850 = vunpack.c.h.b16 %v3629
        %v3851 = vunpack.c.l.b16 %v3630
        %v3852 = vunpack.c.h.b16 %v3630
        %v3853 = vunpack.c.l.b16 %v3631
        %v3854 = vunpack.c.h.b16 %v3631
        %v3855 = vunpack.c.l.b16 %v3632
        %v3856 = vunpack.c.h.b16 %v3632
        %v3857 = vunpack.c.l.b16 %v3633
        %v3858 = vunpack.c.h.b16 %v3633
        %v3859 = vunpack.c.l.b16 %v3634
        %v3860 = vunpack.c.h.b16 %v3634
        %v3861 = vunpack.c.l.b16 %v3635
        %v3862 = vunpack.c.h.b16 %v3635
        %v3863 = vunpack.c.l.b16 %v3636
        %v3864 = vunpack.c.h.b16 %v3636
        %v3865 = vunpack.c.l.b16 %v3637
        %v3866 = vunpack.c.h.b16 %v3637
        %v3867 = vunpack.c.l.b16 %v3638
        %v3868 = vunpack.c.h.b16 %v3638
        %v3869 = vunpack.c.l.b16 %v3639
        %v3870 = vunpack.c.h.b16 %v3639
        %v3871 = vunpack.c.l.b16 %v3640
        %v3872 = vunpack.c.h.b16 %v3640
        %v3873 = vunpack.c.l.b16 %v3641
        %v3874 = vunpack.c.h.b16 %v3641
        %v3875 = vunpack.c.l.b16 %v3642
        %v3876 = vunpack.c.h.b16 %v3642
        %v3877 = vunpack.c.l.b16 %v3643
        %v3878 = vunpack.c.h.b16 %v3643
        %v3879 = vunpack.c.l.b16 %v3644
        %v3880 = vunpack.c.h.b16 %v3644
        %v3881 = vunpack.c.l.b16 %v3645
        %v3882 = vunpack.c.h.b16 %v3645
        %v3883 = vunpack.c.l.b16 %v3646
        %v3884 = vunpack.c.h.b16 %v3646
        %v3885 = vunpack.c.l.b16 %v3647
        %v3886 = vunpack.c.h.b16 %v3647
        %v3887 = vunpack.c.l.b16 %v3648
        %v3888 = vunpack.c.h.b16 %v3648
        %v3889 = vunpack.c.l.b16 %v3649
        %v3890 = vunpack.c.h.b16 %v3649
        %v3891 = vunpack.c.l.b16 %v3650
        %v3892 = vunpack.c.h.b16 %v3650
        %v3893 = vunpack.c.l.b16 %v3651
        %v3894 = vunpack.c.h.b16 %v3651
        %v3895 = vunpack.c.l.b16 %v3652
        %v3896 = vunpack.c.h.b16 %v3652
        %v3897 = vunpack.c.l.b16 %v3653
        %v3898 = vunpack.c.h.b16 %v3653
        %v3899 = vunpack.c.l.b16 %v3654
        %v3900 = vunpack.c.h.b16 %v3654
        %v3901 = vunpack.c.l.b16 %v3655
        %v3902 = vunpack.c.h.b16 %v3655
        %v3903 = vunpack.c.l.b16 %v3656
        %v3904 = vunpack.c.h.b16 %v3656
        %v3905 = vpack.c.b16 %v3767, %v3761
        %v3906 = vpack.c.b16 %v3768, %v3762
        %v3907 = vpack.c.b16 %v3769, %v3763
        %v3908 = vpack.c.b16 %v3770, %v3764
        %v3909 = vpack.c.b16 %v3771, %v3765
        %v3910 = vpack.c.b16 %v3772, %v3766
        %v3911 = vpack.c.b16 %v3779, %v3773
        %v3912 = vpack.c.b16 %v3780, %v3774
        %v3913 = vpack.c.b16 %v3781, %v3775
        %v3914 = vpack.c.b16 %v3782, %v3776
        %v3915 = vpack.c.b16 %v3783, %v3777
        %v3916 = vpack.c.b16 %v3784, %v3778
        %v3917 = vpack.c.b16 %v3791, %v3785
        %v3918 = vpack.c.b16 %v3792, %v3786
        %v3919 = vpack.c.b16 %v3793, %v3787
        %v3920 = vpack.c.b16 %v3794, %v3788
        %v3921 = vpack.c.b16 %v3795, %v3789
        %v3922 = vpack.c.b16 %v3796, %v3790
        %v3923 = vpack.c.b16 %v3803, %v3797
        %v3924 = vpack.c.b16 %v3804, %v3798
        %v3925 = vpack.c.b16 %v3805, %v3799
        %v3926 = vpack.c.b16 %v3806, %v3800
        %v3927 = vpack.c.b16 %v3807, %v3801
        %v3928 = vpack.c.b16 %v3808, %v3802
        %v3929 = vpack.c.b16 %v3815, %v3809
        %v3930 = vpack.c.b16 %v3816, %v3810
        %v3931 = vpack.c.b16 %v3817, %v3811
        %v3932 = vpack.c.b16 %v3818, %v3812
        %v3933 = vpack.c.b16 %v3819, %v3813
        %v3934 = vpack.c.b16 %v3820, %v3814
        %v3935 = vpack.c.b16 %v3827, %v3821
        %v3936 = vpack.c.b16 %v3828, %v3822
        %v3937 = vpack.c.b16 %v3829, %v3823
        %v3938 = vpack.c.b16 %v3830, %v3824
        %v3939 = vpack.c.b16 %v3831, %v3825
        %v3940 = vpack.c.b16 %v3832, %v3826
        %v3941 = vpack.c.b16 %v3839, %v3833
        %v3942 = vpack.c.b16 %v3840, %v3834
        %v3943 = vpack.c.b16 %v3841, %v3835
        %v3944 = vpack.c.b16 %v3842, %v3836
        %v3945 = vpack.c.b16 %v3843, %v3837
        %v3946 = vpack.c.b16 %v3844, %v3838
        %v3947 = vpack.c.b16 %v3851, %v3845
        %v3948 = vpack.c.b16 %v3852, %v3846
        %v3949 = vpack.c.b16 %v3853, %v3847
        %v3950 = vpack.c.b16 %v3854, %v3848
        %v3951 = vpack.c.b16 %v3855, %v3849
        %v3952 = vpack.c.b16 %v3856, %v3850
        %v3953 = vpack.c.b16 %v3863, %v3857
        %v3954 = vpack.c.b16 %v3864, %v3858
        %v3955 = vpack.c.b16 %v3865, %v3859
        %v3956 = vpack.c.b16 %v3866, %v3860
        %v3957 = vpack.c.b16 %v3867, %v3861
        %v3958 = vpack.c.b16 %v3868, %v3862
        %v3959 = vpack.c.b16 %v3875, %v3869
        %v3960 = vpack.c.b16 %v3876, %v3870
        %v3961 = vpack.c.b16 %v3877, %v3871
        %v3962 = vpack.c.b16 %v3878, %v3872
        %v3963 = vpack.c.b16 %v3879, %v3873
        %v3964 = vpack.c.b16 %v3880, %v3874
        %v3965 = vpack.c.b16 %v3887, %v3881
        %v3966 = vpack.c.b16 %v3888, %v3882
        %v3967 = vpack.c.b16 %v3889, %v3883
        %v3968 = vpack.c.b16 %v3890, %v3884
        %v3969 = vpack.c.b16 %v3891, %v3885
        %v3970 = vpack.c.b16 %v3892, %v3886
        %v3971 = vpack.c.b16 %v3899, %v3893
        %v3972 = vpack.c.b16 %v3900, %v3894
        %v3973 = vpack.c.b16 %v3901, %v3895
        %v3974 = vpack.c.b16 %v3902, %v3896
        %v3975 = vpack.c.b16 %v3903, %v3897
        %v3976 = vpack.c.b16 %v3904, %v3898
        %v4050 = vsel %vm812, %v3582, 0
        %v4053 = vsel %vm812, %v3584, 0
        %4055 = vmatprep.subr.bf16.mxu0 %v3906
        %4056 = vmatpush1.bf16.msra.mxu0 %v3905
        %4057 = vmatprep.subr.bf16.mxu0 %v3912
        %4058 = vmatpush1.bf16.msra.mxu0 %v3911
        %4059 = vmatprep.subr.bf16.mxu0 %v3918
        %4060 = vmatpush1.bf16.msra.mxu0 %v3917
        %4061 = vmatprep.subr.bf16.mxu0 %v3924
        %4062 = vmatpush1.bf16.msra.mxu0 %v3923
        %4063 = vmatprep.subr.bf16.mxu0 %v3930
        %4064 = vmatpush1.bf16.msra.mxu0 %v3929
        %4065 = vmatprep.subr.bf16.mxu0 %v3936
        %4066 = vmatpush1.bf16.msra.mxu0 %v3935
        %4067 = vmatprep.subr.bf16.mxu0 %v3942
        %4068 = vmatpush1.bf16.msra.mxu0 %v3941
        %4069 = vmatprep.subr.bf16.mxu0 %v3948
        %4070 = vmatpush1.bf16.msra.mxu0 %v3947
        %4071 = vmatprep.subr.bf16.mxu0 %v3954
        %4072 = vmatpush1.bf16.msra.mxu0 %v3953
        %4073 = vmatprep.subr.bf16.mxu0 %v3960
        %4074 = vmatpush1.bf16.msra.mxu0 %v3959
        %4075 = vmatprep.subr.bf16.mxu0 %v3966
        %4076 = vmatpush1.bf16.msra.mxu0 %v3965
        %4077 = vmatprep.subr.bf16.mxu0 %v3972
        %4078 = vmatpush1.bf16.msra.mxu0 %v3971
        %4079 = vmatprep.subr.bf16.mxu0 0
        %4080 = vmatpush1.bf16.msra.mxu0 0
        %4081 = vmatprep.subr.bf16.mxu0 0
        %4082 = vmatpush1.bf16.msra.mxu0 0
        %4083 = vmatprep.subr.bf16.mxu0 0
        %4084 = vmatpush1.bf16.msra.mxu0 0
        %4085 = vmatprep.subr.bf16.mxu0 0
        %4086 = vmatpush1.bf16.msra.mxu0 0
        %4087 = vmatprep.mubr.bf16.mxu0 %v4050
        %4088 = vmatmul.mubr.bf16.gmra.mrb[0].mxu0 %v3581
        %v4089 = vpop.f32.mrb[0].mxu0
        %v4090 = vadd.f32 %v3662, %v4089
        %v4091 = vpop.f32.mrb[0].mxu0
        %v4092 = vadd.f32 %v3666, %v4091
        %v4093 = vpop.f32.mrb[0].mxu0
        %v4094 = vadd.f32 %v3662, %v4093
        %v4095 = vpop.f32.mrb[0].mxu0
        %v4096 = vadd.f32 %v3666, %v4095
        %4097 = vmatprep.mubr.bf16.mxu0 %v4053
        %4098 = vmatmul.mubr.bf16.gmra.mrb[0].mxu0 %v3583
        %v4099 = vpop.f32.mrb[0].mxu0
        %v4100 = vadd.f32 %v3662, %v4099
        %v4101 = vpop.f32.mrb[0].mxu0
        %v4102 = vadd.f32 %v3666, %v4101
        %v4103 = vpop.f32.mrb[0].mxu0
        %v4104 = vpop.f32.mrb[0].mxu0
        %4105 = vdwg.mxu0
        %4106 = vmatprep.subr.bf16.mxu0 %v3908
        %4107 = vmatpush1.bf16.msra.mxu0 %v3907
        %4108 = vmatprep.subr.bf16.mxu0 %v3914
        %4109 = vmatpush1.bf16.msra.mxu0 %v3913
        %4110 = vmatprep.subr.bf16.mxu0 %v3920
        %4111 = vmatpush1.bf16.msra.mxu0 %v3919
        %4112 = vmatprep.subr.bf16.mxu0 %v3926
        %4113 = vmatpush1.bf16.msra.mxu0 %v3925
        %4114 = vmatprep.subr.bf16.mxu0 %v3932
        %4115 = vmatpush1.bf16.msra.mxu0 %v3931
        %4116 = vmatprep.subr.bf16.mxu0 %v3938
        %4117 = vmatpush1.bf16.msra.mxu0 %v3937
        %4118 = vmatprep.subr.bf16.mxu0 %v3944
        %4119 = vmatpush1.bf16.msra.mxu0 %v3943
        %4120 = vmatprep.subr.bf16.mxu0 %v3950
        %4121 = vmatpush1.bf16.msra.mxu0 %v3949
        %4122 = vmatprep.subr.bf16.mxu0 %v3956
        %4123 = vmatpush1.bf16.msra.mxu0 %v3955
        %4124 = vmatprep.subr.bf16.mxu0 %v3962
        %4125 = vmatpush1.bf16.msra.mxu0 %v3961
        %4126 = vmatprep.subr.bf16.mxu0 %v3968
        %4127 = vmatpush1.bf16.msra.mxu0 %v3967
        %4128 = vmatprep.subr.bf16.mxu0 %v3974
        %4129 = vmatpush1.bf16.msra.mxu0 %v3973
        %4130 = vmatprep.subr.bf16.mxu0 0
        %4131 = vmatpush1.bf16.msra.mxu0 0
        %4132 = vmatprep.subr.bf16.mxu0 0
        %4133 = vmatpush1.bf16.msra.mxu0 0
        %4134 = vmatprep.subr.bf16.mxu0 0
        %4135 = vmatpush1.bf16.msra.mxu0 0
        %4136 = vmatprep.subr.bf16.mxu0 0
        %4137 = vmatpush1.bf16.msra.mxu0 0
        %4138 = vmatprep.mubr.bf16.mxu0 %v4050
        %4139 = vmatmul.mubr.bf16.gmra.mrb[0].mxu0 %v3581
        %v4140 = vpop.f32.mrb[0].mxu0
        %v4141 = vadd.f32 %v3670, %v4140
        %v4142 = vpop.f32.mrb[0].mxu0
        %v4143 = vadd.f32 %v3674, %v4142
        %v4144 = vpop.f32.mrb[0].mxu0
        %v4145 = vadd.f32 %v3670, %v4144
        %v4146 = vpop.f32.mrb[0].mxu0
        %v4147 = vadd.f32 %v3674, %v4146
        %4148 = vmatprep.mubr.bf16.mxu0 %v4053
        %4149 = vmatmul.mubr.bf16.gmra.mrb[0].mxu0 %v3583
        %v4150 = vpop.f32.mrb[0].mxu0
        %v4151 = vadd.f32 %v3670, %v4150
        %v4152 = vpop.f32.mrb[0].mxu0
        %v4153 = vadd.f32 %v3674, %v4152
        %v4154 = vpop.f32.mrb[0].mxu0
        %v4155 = vpop.f32.mrb[0].mxu0
        %4156 = vdwg.mxu0
        %4157 = vmatprep.subr.bf16.mxu0 %v3910
        %4158 = vmatpush1.bf16.msra.mxu0 %v3909
        %4159 = vmatprep.subr.bf16.mxu0 %v3916
        %4160 = vmatpush1.bf16.msra.mxu0 %v3915
        %4161 = vmatprep.subr.bf16.mxu0 %v3922
        %4162 = vmatpush1.bf16.msra.mxu0 %v3921
        %4163 = vmatprep.subr.bf16.mxu0 %v3928
        %4164 = vmatpush1.bf16.msra.mxu0 %v3927
        %4165 = vmatprep.subr.bf16.mxu0 %v3934
        %4166 = vmatpush1.bf16.msra.mxu0 %v3933
        %4167 = vmatprep.subr.bf16.mxu0 %v3940
        %4168 = vmatpush1.bf16.msra.mxu0 %v3939
        %4169 = vmatprep.subr.bf16.mxu0 %v3946
        %4170 = vmatpush1.bf16.msra.mxu0 %v3945
        %4171 = vmatprep.subr.bf16.mxu0 %v3952
        %4172 = vmatpush1.bf16.msra.mxu0 %v3951
        %4173 = vmatprep.subr.bf16.mxu0 %v3958
        %4174 = vmatpush1.bf16.msra.mxu0 %v3957
        %4175 = vmatprep.subr.bf16.mxu0 %v3964
        %4176 = vmatpush1.bf16.msra.mxu0 %v3963
        %4177 = vmatprep.subr.bf16.mxu0 %v3970
        %4178 = vmatpush1.bf16.msra.mxu0 %v3969
        %4179 = vmatprep.subr.bf16.mxu0 %v3976
        %4180 = vmatpush1.bf16.msra.mxu0 %v3975
        %4181 = vmatprep.subr.bf16.mxu0 0
        %4182 = vmatpush1.bf16.msra.mxu0 0
        %4183 = vmatprep.subr.bf16.mxu0 0
        %4184 = vmatpush1.bf16.msra.mxu0 0
        %4185 = vmatprep.subr.bf16.mxu0 0
        %4186 = vmatpush1.bf16.msra.mxu0 0
        %4187 = vmatprep.subr.bf16.mxu0 0
        %4188 = vmatpush1.bf16.msra.mxu0 0
        %4189 = vmatprep.mubr.bf16.mxu0 %v4050
        %4190 = vmatmul.mubr.bf16.gmra.mrb[0].mxu0 %v3581
        %v4191 = vpop.f32.mrb[0].mxu0
        %v4192 = vadd.f32 %v3678, %v4191
        %v4193 = vpop.f32.mrb[0].mxu0
        %v4194 = vadd.f32 %v3682, %v4193
        %v4195 = vpop.f32.mrb[0].mxu0
        %v4196 = vadd.f32 %v3678, %v4195
        %v4197 = vpop.f32.mrb[0].mxu0
        %v4198 = vadd.f32 %v3682, %v4197
        %4199 = vmatprep.mubr.bf16.mxu0 %v4053
        %4200 = vmatmul.mubr.bf16.gmra.mrb[0].mxu0 %v3583
        %v4201 = vpop.f32.mrb[0].mxu0
        %v4202 = vadd.f32 %v3678, %v4201
        %v4203 = vpop.f32.mrb[0].mxu0
        %v4204 = vadd.f32 %v3682, %v4203
        %v4205 = vpop.f32.mrb[0].mxu0
        %v4206 = vpop.f32.mrb[0].mxu0
        %4207 = vdwg.mxu0
        %v4208 = vmul.f32 %v4090, %v4090
        %v4209 = vmul.f32 %v4092, %v4092
        %v4210 = vmul.f32 %v4141, %v4141
        %v4211 = vmul.f32 %v4143, %v4143
        %v4212 = vmul.f32 %v4192, %v4192
        %v4213 = vmul.f32 %v4194, %v4194
        %v4214 = vmul.f32 %v4094, %v4094
        %v4215 = vmul.f32 %v4096, %v4096
        %v4216 = vmul.f32 %v4145, %v4145
        %v4217 = vmul.f32 %v4147, %v4147
        %v4218 = vmul.f32 %v4196, %v4196
        %v4219 = vmul.f32 %v4198, %v4198
        %v4220 = vmul.f32 %v4100, %v4100
        %v4221 = vmul.f32 %v4102, %v4102
        %v4222 = vmul.f32 %v4151, %v4151
        %v4223 = vmul.f32 %v4153, %v4153
        %v4224 = vmul.f32 %v4202, %v4202
        %v4225 = vmul.f32 %v4204, %v4204
        %v4226 = vmul.f32 %v4090, %v4208
        %v4227 = vmul.f32 %v4092, %v4209
        %v4228 = vmul.f32 %v4141, %v4210
        %v4229 = vmul.f32 %v4143, %v4211
        %v4230 = vmul.f32 %v4192, %v4212
        %v4231 = vmul.f32 %v4194, %v4213
        %v4232 = vmul.f32 %v4094, %v4214
        %v4233 = vmul.f32 %v4096, %v4215
        %v4234 = vmul.f32 %v4145, %v4216
        %v4235 = vmul.f32 %v4147, %v4217
        %v4236 = vmul.f32 %v4196, %v4218
        %v4237 = vmul.f32 %v4198, %v4219
        %v4238 = vmul.f32 %v4100, %v4220
        %v4239 = vmul.f32 %v4102, %v4221
        %v4240 = vmul.f32 %v4151, %v4222
        %v4241 = vmul.f32 %v4153, %v4223
        %v4242 = vmul.f32 %v4202, %v4224
        %v4243 = vmul.f32 %v4204, %v4225
        %v4244 = vmul.f32 %v4226, 0.044715
        %v4245 = vmul.f32 %v4227, 0.044715
        %v4246 = vmul.f32 %v4228, 0.044715
        %v4247 = vmul.f32 %v4229, 0.044715
        %v4248 = vmul.f32 %v4230, 0.044715
        %v4249 = vmul.f32 %v4231, 0.044715
        %v4250 = vmul.f32 %v4232, 0.044715
        %v4251 = vmul.f32 %v4233, 0.044715
        %v4252 = vmul.f32 %v4234, 0.044715
        %v4253 = vmul.f32 %v4235, 0.044715
        %v4254 = vmul.f32 %v4236, 0.044715
        %v4255 = vmul.f32 %v4237, 0.044715
        %v4256 = vmul.f32 %v4238, 0.044715
        %v4257 = vmul.f32 %v4239, 0.044715
        %v4258 = vmul.f32 %v4240, 0.044715
        %v4259 = vmul.f32 %v4241, 0.044715
        %v4260 = vmul.f32 %v4242, 0.044715
        %v4261 = vmul.f32 %v4243, 0.044715
        %v4262 = vadd.f32 %v4090, %v4244
        %v4263 = vadd.f32 %v4092, %v4245
        %v4264 = vadd.f32 %v4141, %v4246
        %v4265 = vadd.f32 %v4143, %v4247
        %v4266 = vadd.f32 %v4192, %v4248
        %v4267 = vadd.f32 %v4194, %v4249
        %v4268 = vadd.f32 %v4094, %v4250
        %v4269 = vadd.f32 %v4096, %v4251
        %v4270 = vadd.f32 %v4145, %v4252
        %v4271 = vadd.f32 %v4147, %v4253
        %v4272 = vadd.f32 %v4196, %v4254
        %v4273 = vadd.f32 %v4198, %v4255
        %v4274 = vadd.f32 %v4100, %v4256
        %v4275 = vadd.f32 %v4102, %v4257
        %v4276 = vadd.f32 %v4151, %v4258
        %v4277 = vadd.f32 %v4153, %v4259
        %v4278 = vadd.f32 %v4202, %v4260
        %v4279 = vadd.f32 %v4204, %v4261
        %v4280 = vmul.f32 %v4262, 0.7978846
        %v4281 = vmul.f32 %v4263, 0.7978846
        %v4282 = vmul.f32 %v4264, 0.7978846
        %v4283 = vmul.f32 %v4265, 0.7978846
        %v4284 = vmul.f32 %v4266, 0.7978846
        %v4285 = vmul.f32 %v4267, 0.7978846
        %v4286 = vmul.f32 %v4268, 0.7978846
        %v4287 = vmul.f32 %v4269, 0.7978846
        %v4288 = vmul.f32 %v4270, 0.7978846
        %v4289 = vmul.f32 %v4271, 0.7978846
        %v4290 = vmul.f32 %v4272, 0.7978846
        %v4291 = vmul.f32 %v4273, 0.7978846
        %v4292 = vmul.f32 %v4274, 0.7978846
        %v4293 = vmul.f32 %v4275, 0.7978846
        %v4294 = vmul.f32 %v4276, 0.7978846
        %v4295 = vmul.f32 %v4277, 0.7978846
        %v4296 = vmul.f32 %v4278, 0.7978846
        %v4297 = vmul.f32 %v4279, 0.7978846
        %v4298 = vtanh.pop %v4280
        %v4299 = vtanh.pop %v4281
        %v4300 = vtanh.pop %v4282
        %v4301 = vtanh.pop %v4283
        %v4302 = vtanh.pop %v4284
        %v4303 = vtanh.pop %v4285
        %v4304 = vtanh.pop %v4286
        %v4305 = vtanh.pop %v4287
        %v4306 = vtanh.pop %v4288
        %v4307 = vtanh.pop %v4289
        %v4308 = vtanh.pop %v4290
        %v4309 = vtanh.pop %v4291
        %v4310 = vtanh.pop %v4292
        %v4311 = vtanh.pop %v4293
        %v4312 = vtanh.pop %v4294
        %v4313 = vtanh.pop %v4295
        %v4314 = vtanh.pop %v4296
        %v4315 = vtanh.pop %v4297
        %v4316 = vadd.f32 %v4298, 1.0
        %v4317 = vadd.f32 %v4299, 1.0
        %v4318 = vadd.f32 %v4300, 1.0
        %v4319 = vadd.f32 %v4301, 1.0
        %v4320 = vadd.f32 %v4302, 1.0
        %v4321 = vadd.f32 %v4303, 1.0
        %v4322 = vadd.f32 %v4304, 1.0
        %v4323 = vadd.f32 %v4305, 1.0
        %v4324 = vadd.f32 %v4306, 1.0
        %v4325 = vadd.f32 %v4307, 1.0
        %v4326 = vadd.f32 %v4308, 1.0
        %v4327 = vadd.f32 %v4309, 1.0
        %v4328 = vadd.f32 %v4310, 1.0
        %v4329 = vadd.f32 %v4311, 1.0
        %v4330 = vadd.f32 %v4312, 1.0
        %v4331 = vadd.f32 %v4313, 1.0
        %v4332 = vadd.f32 %v4314, 1.0
        %v4333 = vadd.f32 %v4315, 1.0
        %v4334 = vmul.f32 %v4316, 0.5
        %v4335 = vmul.f32 %v4317, 0.5
        %v4336 = vmul.f32 %v4318, 0.5
        %v4337 = vmul.f32 %v4319, 0.5
        %v4338 = vmul.f32 %v4320, 0.5
        %v4339 = vmul.f32 %v4321, 0.5
        %v4340 = vmul.f32 %v4322, 0.5
        %v4341 = vmul.f32 %v4323, 0.5
        %v4342 = vmul.f32 %v4324, 0.5
        %v4343 = vmul.f32 %v4325, 0.5
        %v4344 = vmul.f32 %v4326, 0.5
        %v4345 = vmul.f32 %v4327, 0.5
        %v4346 = vmul.f32 %v4328, 0.5
        %v4347 = vmul.f32 %v4329, 0.5
        %v4348 = vmul.f32 %v4330, 0.5
        %v4349 = vmul.f32 %v4331, 0.5
        %v4350 = vmul.f32 %v4332, 0.5
        %v4351 = vmul.f32 %v4333, 0.5
        %v4352 = vmul.f32 %v4090, %v4334
        %v4353 = vmul.f32 %v4092, %v4335
        %v4354 = vmul.f32 %v4141, %v4336
        %v4355 = vmul.f32 %v4143, %v4337
        %v4356 = vmul.f32 %v4192, %v4338
        %v4357 = vmul.f32 %v4194, %v4339
        %v4358 = vmul.f32 %v4094, %v4340
        %v4359 = vmul.f32 %v4096, %v4341
        %v4360 = vmul.f32 %v4145, %v4342
        %v4361 = vmul.f32 %v4147, %v4343
        %v4362 = vmul.f32 %v4196, %v4344
        %v4363 = vmul.f32 %v4198, %v4345
        %v4364 = vmul.f32 %v4100, %v4346
        %v4365 = vmul.f32 %v4102, %v4347
        %v4366 = vmul.f32 %v4151, %v4348
        %v4367 = vmul.f32 %v4153, %v4349
        %v4368 = vmul.f32 %v4202, %v4350
        %v4369 = vmul.f32 %v4204, %v4351
        %v4370 = vpack.c.bf16 %v4358, %v4352
        %v4371 = vpack.c.bf16 %v4359, %v4353
        %v4372 = vpack.c.bf16 %v4360, %v4354
        %v4373 = vpack.c.bf16 %v4361, %v4355
        %v4374 = vpack.c.bf16 %v4362, %v4356
        %v4375 = vpack.c.bf16 %v4363, %v4357
        %v4376 = vpack.c.bf16 %v4364, %v4364
        %v4377 = vpack.c.bf16 %v4365, %v4365
        %v4378 = vpack.c.bf16 %v4366, %v4366
        %v4379 = vpack.c.bf16 %v4367, %v4367
        %v4380 = vpack.c.bf16 %v4368, %v4368
        %v4381 = vpack.c.bf16 %v4369, %v4369
        %v4382 = vld [vmem:[%s780] sm:$0xff]
        %v4383 = vld [vmem:[%s780 + $0x8] sm:$0xff]
        %v4384 = vld [vmem:[%s780 + $0x10] sm:$0xff]
        %v4385 = vld [vmem:[%s780 + $0x18] sm:$0xff]
        %v4386 = vld [vmem:[%s780 + $0x20] sm:$0xff]
        %v4387 = vld [vmem:[%s780 + $0x28] sm:$0xff]
        %v4388 = vld [vmem:[%s780 + $0x30] sm:$0xff]
        %v4389 = vld [vmem:[%s780 + $0x38] sm:$0xff]
        %v4390 = vld [vmem:[%s780 + $0x40] sm:$0xff]
        %v4391 = vld [vmem:[%s780 + $0x48] sm:$0xff]
        %v4392 = vld [vmem:[%s780 + $0x50] sm:$0xff]
        %v4393 = vld [vmem:[%s780 + $0x58] sm:$0xff]
        %v4394 = vld [vmem:[%s780 + $0x60] sm:$0xff]
        %v4395 = vld [vmem:[%s780 + $0x68] sm:$0xff]
        %v4396 = vld [vmem:[%s780 + $0x70] sm:$0xff]
        %v4397 = vld [vmem:[%s780 + $0x78] sm:$0xff]
        %v4398 = vld [vmem:[%s780 + $0x80] sm:$0xff]
        %v4399 = vld [vmem:[%s780 + $0x88] sm:$0xff]
        %v4400 = vld [vmem:[%s780 + $0x90] sm:$0xff]
        %v4401 = vld [vmem:[%s780 + $0x98] sm:$0xff]
        %v4402 = vld [vmem:[%s780 + $0xa0] sm:$0xff]
        %v4403 = vld [vmem:[%s780 + $0xa8] sm:$0xff]
        %v4404 = vld [vmem:[%s780 + $0xb0] sm:$0xff]
        %v4405 = vld [vmem:[%s780 + $0xb8] sm:$0xff]
        %v4406 = vld [vmem:[%s780 + $0xc0] sm:$0xff]
        %v4407 = vld [vmem:[%s780 + $0xc8] sm:$0xff]
        %v4408 = vld [vmem:[%s780 + $0xd0] sm:$0xff]
        %v4409 = vld [vmem:[%s780 + $0xd8] sm:$0xff]
        %v4410 = vld [vmem:[%s780 + $0xe0] sm:$0xff]
        %v4411 = vld [vmem:[%s780 + $0xe8] sm:$0xff]
        %v4412 = vld [vmem:[%s780 + $0xf0] sm:$0xff]
        %v4413 = vld [vmem:[%s780 + $0xf8] sm:$0xff]
        %v4414 = vld [vmem:[%s780 + $0x100] sm:$0xff]
        %v4415 = vld [vmem:[%s780 + $0x108] sm:$0xff]
        %v4416 = vld [vmem:[%s780 + $0x110] sm:$0xff]
        %v4417 = vld [vmem:[%s780 + $0x118] sm:$0xff]
        %v4418 = vld [vmem:[%s780 + $0x120] sm:$0xff]
        %v4419 = vld [vmem:[%s780 + $0x128] sm:$0xff]
        %v4420 = vld [vmem:[%s780 + $0x130] sm:$0xff]
        %v4421 = vld [vmem:[%s780 + $0x138] sm:$0xff]
        %v4422 = vld [vmem:[%s780 + $0x140] sm:$0xff]
        %v4423 = vld [vmem:[%s780 + $0x148] sm:$0xff]
        %v4424 = vld [vmem:[%s780 + $0x150] sm:$0xff]
        %v4425 = vld [vmem:[%s780 + $0x158] sm:$0xff]
        %v4426 = vld [vmem:[%s780 + $0x160] sm:$0xff]
        %v4427 = vld [vmem:[%s780 + $0x168] sm:$0xff]
        %v4428 = vld [vmem:[%s780 + $0x170] sm:$0xff]
        %v4429 = vld [vmem:[%s780 + $0x178] sm:$0xff]
        %v4430 = vld [vmem:[%s780 + $0x180] sm:$0xff]
        %v4431 = vld [vmem:[%s780 + $0x188] sm:$0xff]
        %v4432 = vld [vmem:[%s780 + $0x190] sm:$0xff]
        %v4433 = vld [vmem:[%s780 + $0x198] sm:$0xff]
        %v4434 = vld [vmem:[%s780 + $0x1a0] sm:$0xff]
        %v4435 = vld [vmem:[%s780 + $0x1a8] sm:$0xff]
        %v4436 = vld [vmem:[%s780 + $0x1b0] sm:$0xff]
        %v4437 = vld [vmem:[%s780 + $0x1b8] sm:$0xff]
        %v4438 = vld [vmem:[%s780 + $0x1c0] sm:$0xff]
        %v4439 = vld [vmem:[%s780 + $0x1c8] sm:$0xff]
        %v4440 = vld [vmem:[%s780 + $0x1d0] sm:$0xff]
        %v4441 = vld [vmem:[%s780 + $0x1d8] sm:$0xff]
        %v4442 = vld [vmem:[%s780 + $0x1e0] sm:$0xff]
        %v4443 = vld [vmem:[%s780 + $0x1e8] sm:$0xff]
        %v4444 = vld [vmem:[%s780 + $0x1f0] sm:$0xff]
        %v4445 = vld [vmem:[%s780 + $0x1f8] sm:$0xff]
        %v4446 = vld [vmem:[%s780 + $0x200] sm:$0xff]
        %v4447 = vld [vmem:[%s780 + $0x208] sm:$0xff]
        %v4448 = vld [vmem:[%s780 + $0x210] sm:$0xff]
        %v4449 = vld [vmem:[%s780 + $0x218] sm:$0xff]
        %v4450 = vld [vmem:[%s780 + $0x220] sm:$0xff]
        %v4451 = vld [vmem:[%s780 + $0x228] sm:$0xff]
        %v4452 = vld [vmem:[%s780 + $0x230] sm:$0xff]
        %v4453 = vld [vmem:[%s780 + $0x238] sm:$0xff]
        %v4454 = vld [vmem:[%s780 + $0x240] sm:$0xff]
        %v4455 = vld [vmem:[%s780 + $0x248] sm:$0xff]
        %v4456 = vld [vmem:[%s780 + $0x250] sm:$0xff]
        %v4457 = vld [vmem:[%s780 + $0x258] sm:$0xff]
        %v4458 = vld [vmem:[%s780 + $0x260] sm:$0xff]
        %v4459 = vld [vmem:[%s780 + $0x268] sm:$0xff]
        %v4460 = vld [vmem:[%s780 + $0x270] sm:$0xff]
        %v4461 = vld [vmem:[%s780 + $0x278] sm:$0xff]
        %v4462 = vld [vmem:[%s780 + $0x280] sm:$0xff]
        %v4463 = vld [vmem:[%s780 + $0x288] sm:$0xff]
        %v4464 = vld [vmem:[%s780 + $0x290] sm:$0xff]
        %v4465 = vld [vmem:[%s780 + $0x298] sm:$0xff]
        %v4466 = vld [vmem:[%s780 + $0x2a0] sm:$0xff]
        %v4467 = vld [vmem:[%s780 + $0x2a8] sm:$0xff]
        %v4468 = vld [vmem:[%s780 + $0x2b0] sm:$0xff]
        %v4469 = vld [vmem:[%s780 + $0x2b8] sm:$0xff]
        %v4470 = vld [vmem:[%s780 + $0x2c0] sm:$0xff]
        %v4471 = vld [vmem:[%s780 + $0x2c8] sm:$0xff]
        %v4472 = vld [vmem:[%s780 + $0x2d0] sm:$0xff]
        %v4473 = vld [vmem:[%s780 + $0x2d8] sm:$0xff]
        %v4474 = vld [vmem:[%s780 + $0x2e0] sm:$0xff]
        %v4475 = vld [vmem:[%s780 + $0x2e8] sm:$0xff]
        %v4476 = vld [vmem:[%s780 + $0x2f0] sm:$0xff]
        %v4477 = vld [vmem:[%s780 + $0x2f8] sm:$0xff]
        %v4478 = vld [vmem:[%s784] sm:$0x3]
        %v4480 = vlaneseq
        %v4481 = vshrl.u32 %v4480, 7
        %v4482 = vsub.s32 0, %v4481
        %v4483 = vrot.slane %v4478, %v4482
        %v4484 = vlaneseq
        %v4485 = vshrl.u32 %v4484, 7
        %v4486 = vsub.s32 1, %v4485
        %v4487 = vrot.slane %v4478, %v4486
        %v4586 = vunpack.c.l.b16 %v4382
        %v4587 = vunpack.c.h.b16 %v4382
        %v4588 = vunpack.c.l.b16 %v4383
        %v4589 = vunpack.c.h.b16 %v4383
        %v4590 = vunpack.c.l.b16 %v4384
        %v4591 = vunpack.c.h.b16 %v4384
        %v4592 = vunpack.c.l.b16 %v4385
        %v4593 = vunpack.c.h.b16 %v4385
        %v4594 = vunpack.c.l.b16 %v4386
        %v4595 = vunpack.c.h.b16 %v4386
        %v4596 = vunpack.c.l.b16 %v4387
        %v4597 = vunpack.c.h.b16 %v4387
        %v4598 = vunpack.c.l.b16 %v4388
        %v4599 = vunpack.c.h.b16 %v4388
        %v4600 = vunpack.c.l.b16 %v4389
        %v4601 = vunpack.c.h.b16 %v4389
        %v4602 = vunpack.c.l.b16 %v4390
        %v4603 = vunpack.c.h.b16 %v4390
        %v4604 = vunpack.c.l.b16 %v4391
        %v4605 = vunpack.c.h.b16 %v4391
        %v4606 = vunpack.c.l.b16 %v4392
        %v4607 = vunpack.c.h.b16 %v4392
        %v4608 = vunpack.c.l.b16 %v4393
        %v4609 = vunpack.c.h.b16 %v4393
        %v4610 = vunpack.c.l.b16 %v4394
        %v4611 = vunpack.c.h.b16 %v4394
        %v4612 = vunpack.c.l.b16 %v4395
        %v4613 = vunpack.c.h.b16 %v4395
        %v4614 = vunpack.c.l.b16 %v4396
        %v4615 = vunpack.c.h.b16 %v4396
        %v4616 = vunpack.c.l.b16 %v4397
        %v4617 = vunpack.c.h.b16 %v4397
        %v4618 = vunpack.c.l.b16 %v4398
        %v4619 = vunpack.c.h.b16 %v4398
        %v4620 = vunpack.c.l.b16 %v4399
        %v4621 = vunpack.c.h.b16 %v4399
        %v4622 = vunpack.c.l.b16 %v4400
        %v4623 = vunpack.c.h.b16 %v4400
        %v4624 = vunpack.c.l.b16 %v4401
        %v4625 = vunpack.c.h.b16 %v4401
        %v4626 = vunpack.c.l.b16 %v4402
        %v4627 = vunpack.c.h.b16 %v4402
        %v4628 = vunpack.c.l.b16 %v4403
        %v4629 = vunpack.c.h.b16 %v4403
        %v4630 = vunpack.c.l.b16 %v4404
        %v4631 = vunpack.c.h.b16 %v4404
        %v4632 = vunpack.c.l.b16 %v4405
        %v4633 = vunpack.c.h.b16 %v4405
        %v4634 = vunpack.c.l.b16 %v4406
        %v4635 = vunpack.c.h.b16 %v4406
        %v4636 = vunpack.c.l.b16 %v4407
        %v4637 = vunpack.c.h.b16 %v4407
        %v4638 = vunpack.c.l.b16 %v4408
        %v4639 = vunpack.c.h.b16 %v4408
        %v4640 = vunpack.c.l.b16 %v4409
        %v4641 = vunpack.c.h.b16 %v4409
        %v4642 = vunpack.c.l.b16 %v4410
        %v4643 = vunpack.c.h.b16 %v4410
        %v4644 = vunpack.c.l.b16 %v4411
        %v4645 = vunpack.c.h.b16 %v4411
        %v4646 = vunpack.c.l.b16 %v4412
        %v4647 = vunpack.c.h.b16 %v4412
        %v4648 = vunpack.c.l.b16 %v4413
        %v4649 = vunpack.c.h.b16 %v4413
        %v4650 = vunpack.c.l.b16 %v4414
        %v4651 = vunpack.c.h.b16 %v4414
        %v4652 = vunpack.c.l.b16 %v4415
        %v4653 = vunpack.c.h.b16 %v4415
        %v4654 = vunpack.c.l.b16 %v4416
        %v4655 = vunpack.c.h.b16 %v4416
        %v4656 = vunpack.c.l.b16 %v4417
        %v4657 = vunpack.c.h.b16 %v4417
        %v4658 = vunpack.c.l.b16 %v4418
        %v4659 = vunpack.c.h.b16 %v4418
        %v4660 = vunpack.c.l.b16 %v4419
        %v4661 = vunpack.c.h.b16 %v4419
        %v4662 = vunpack.c.l.b16 %v4420
        %v4663 = vunpack.c.h.b16 %v4420
        %v4664 = vunpack.c.l.b16 %v4421
        %v4665 = vunpack.c.h.b16 %v4421
        %v4666 = vunpack.c.l.b16 %v4422
        %v4667 = vunpack.c.h.b16 %v4422
        %v4668 = vunpack.c.l.b16 %v4423
        %v4669 = vunpack.c.h.b16 %v4423
        %v4670 = vunpack.c.l.b16 %v4424
        %v4671 = vunpack.c.h.b16 %v4424
        %v4672 = vunpack.c.l.b16 %v4425
        %v4673 = vunpack.c.h.b16 %v4425
        %v4674 = vunpack.c.l.b16 %v4426
        %v4675 = vunpack.c.h.b16 %v4426
        %v4676 = vunpack.c.l.b16 %v4427
        %v4677 = vunpack.c.h.b16 %v4427
        %v4678 = vunpack.c.l.b16 %v4428
        %v4679 = vunpack.c.h.b16 %v4428
        %v4680 = vunpack.c.l.b16 %v4429
        %v4681 = vunpack.c.h.b16 %v4429
        %v4682 = vunpack.c.l.b16 %v4430
        %v4683 = vunpack.c.h.b16 %v4430
        %v4684 = vunpack.c.l.b16 %v4431
        %v4685 = vunpack.c.h.b16 %v4431
        %v4686 = vunpack.c.l.b16 %v4432
        %v4687 = vunpack.c.h.b16 %v4432
        %v4688 = vunpack.c.l.b16 %v4433
        %v4689 = vunpack.c.h.b16 %v4433
        %v4690 = vunpack.c.l.b16 %v4434
        %v4691 = vunpack.c.h.b16 %v4434
        %v4692 = vunpack.c.l.b16 %v4435
        %v4693 = vunpack.c.h.b16 %v4435
        %v4694 = vunpack.c.l.b16 %v4436
        %v4695 = vunpack.c.h.b16 %v4436
        %v4696 = vunpack.c.l.b16 %v4437
        %v4697 = vunpack.c.h.b16 %v4437
        %v4698 = vunpack.c.l.b16 %v4438
        %v4699 = vunpack.c.h.b16 %v4438
        %v4700 = vunpack.c.l.b16 %v4439
        %v4701 = vunpack.c.h.b16 %v4439
        %v4702 = vunpack.c.l.b16 %v4440
        %v4703 = vunpack.c.h.b16 %v4440
        %v4704 = vunpack.c.l.b16 %v4441
        %v4705 = vunpack.c.h.b16 %v4441
        %v4706 = vunpack.c.l.b16 %v4442
        %v4707 = vunpack.c.h.b16 %v4442
        %v4708 = vunpack.c.l.b16 %v4443
        %v4709 = vunpack.c.h.b16 %v4443
        %v4710 = vunpack.c.l.b16 %v4444
        %v4711 = vunpack.c.h.b16 %v4444
        %v4712 = vunpack.c.l.b16 %v4445
        %v4713 = vunpack.c.h.b16 %v4445
        %v4714 = vunpack.c.l.b16 %v4446
        %v4715 = vunpack.c.h.b16 %v4446
        %v4716 = vunpack.c.l.b16 %v4447
        %v4717 = vunpack.c.h.b16 %v4447
        %v4718 = vunpack.c.l.b16 %v4448
        %v4719 = vunpack.c.h.b16 %v4448
        %v4720 = vunpack.c.l.b16 %v4449
        %v4721 = vunpack.c.h.b16 %v4449
        %v4722 = vunpack.c.l.b16 %v4450
        %v4723 = vunpack.c.h.b16 %v4450
        %v4724 = vunpack.c.l.b16 %v4451
        %v4725 = vunpack.c.h.b16 %v4451
        %v4726 = vunpack.c.l.b16 %v4452
        %v4727 = vunpack.c.h.b16 %v4452
        %v4728 = vunpack.c.l.b16 %v4453
        %v4729 = vunpack.c.h.b16 %v4453
        %v4730 = vunpack.c.l.b16 %v4454
        %v4731 = vunpack.c.h.b16 %v4454
        %v4732 = vunpack.c.l.b16 %v4455
        %v4733 = vunpack.c.h.b16 %v4455
        %v4734 = vunpack.c.l.b16 %v4456
        %v4735 = vunpack.c.h.b16 %v4456
        %v4736 = vunpack.c.l.b16 %v4457
        %v4737 = vunpack.c.h.b16 %v4457
        %v4738 = vunpack.c.l.b16 %v4458
        %v4739 = vunpack.c.h.b16 %v4458
        %v4740 = vunpack.c.l.b16 %v4459
        %v4741 = vunpack.c.h.b16 %v4459
        %v4742 = vunpack.c.l.b16 %v4460
        %v4743 = vunpack.c.h.b16 %v4460
        %v4744 = vunpack.c.l.b16 %v4461
        %v4745 = vunpack.c.h.b16 %v4461
        %v4746 = vunpack.c.l.b16 %v4462
        %v4747 = vunpack.c.h.b16 %v4462
        %v4748 = vunpack.c.l.b16 %v4463
        %v4749 = vunpack.c.h.b16 %v4463
        %v4750 = vunpack.c.l.b16 %v4464
        %v4751 = vunpack.c.h.b16 %v4464
        %v4752 = vunpack.c.l.b16 %v4465
        %v4753 = vunpack.c.h.b16 %v4465
        %v4754 = vunpack.c.l.b16 %v4466
        %v4755 = vunpack.c.h.b16 %v4466
        %v4756 = vunpack.c.l.b16 %v4467
        %v4757 = vunpack.c.h.b16 %v4467
        %v4758 = vunpack.c.l.b16 %v4468
        %v4759 = vunpack.c.h.b16 %v4468
        %v4760 = vunpack.c.l.b16 %v4469
        %v4761 = vunpack.c.h.b16 %v4469
        %v4762 = vunpack.c.l.b16 %v4470
        %v4763 = vunpack.c.h.b16 %v4470
        %v4764 = vunpack.c.l.b16 %v4471
        %v4765 = vunpack.c.h.b16 %v4471
        %v4766 = vunpack.c.l.b16 %v4472
        %v4767 = vunpack.c.h.b16 %v4472
        %v4768 = vunpack.c.l.b16 %v4473
        %v4769 = vunpack.c.h.b16 %v4473
        %v4770 = vunpack.c.l.b16 %v4474
        %v4771 = vunpack.c.h.b16 %v4474
        %v4772 = vunpack.c.l.b16 %v4475
        %v4773 = vunpack.c.h.b16 %v4475
        %v4774 = vunpack.c.l.b16 %v4476
        %v4775 = vunpack.c.h.b16 %v4476
        %v4776 = vunpack.c.l.b16 %v4477
        %v4777 = vunpack.c.h.b16 %v4477
        %v4778 = vpack.c.b16 %v4588, %v4586
        %v4779 = vpack.c.b16 %v4589, %v4587
        %v4780 = vpack.c.b16 %v4592, %v4590
        %v4781 = vpack.c.b16 %v4593, %v4591
        %v4782 = vpack.c.b16 %v4596, %v4594
        %v4783 = vpack.c.b16 %v4597, %v4595
        %v4784 = vpack.c.b16 %v4600, %v4598
        %v4785 = vpack.c.b16 %v4601, %v4599
        %v4786 = vpack.c.b16 %v4604, %v4602
        %v4787 = vpack.c.b16 %v4605, %v4603
        %v4788 = vpack.c.b16 %v4608, %v4606
        %v4789 = vpack.c.b16 %v4609, %v4607
        %v4790 = vpack.c.b16 %v4612, %v4610
        %v4791 = vpack.c.b16 %v4613, %v4611
        %v4792 = vpack.c.b16 %v4616, %v4614
        %v4793 = vpack.c.b16 %v4617, %v4615
        %v4794 = vpack.c.b16 %v4620, %v4618
        %v4795 = vpack.c.b16 %v4621, %v4619
        %v4796 = vpack.c.b16 %v4624, %v4622
        %v4797 = vpack.c.b16 %v4625, %v4623
        %v4798 = vpack.c.b16 %v4628, %v4626
        %v4799 = vpack.c.b16 %v4629, %v4627
        %v4800 = vpack.c.b16 %v4632, %v4630
        %v4801 = vpack.c.b16 %v4633, %v4631
        %v4802 = vpack.c.b16 %v4636, %v4634
        %v4803 = vpack.c.b16 %v4637, %v4635
        %v4804 = vpack.c.b16 %v4640, %v4638
        %v4805 = vpack.c.b16 %v4641, %v4639
        %v4806 = vpack.c.b16 %v4644, %v4642
        %v4807 = vpack.c.b16 %v4645, %v4643
        %v4808 = vpack.c.b16 %v4648, %v4646
        %v4809 = vpack.c.b16 %v4649, %v4647
        %v4810 = vpack.c.b16 %v4652, %v4650
        %v4811 = vpack.c.b16 %v4653, %v4651
        %v4812 = vpack.c.b16 %v4656, %v4654
        %v4813 = vpack.c.b16 %v4657, %v4655
        %v4814 = vpack.c.b16 %v4660, %v4658
        %v4815 = vpack.c.b16 %v4661, %v4659
        %v4816 = vpack.c.b16 %v4664, %v4662
        %v4817 = vpack.c.b16 %v4665, %v4663
        %v4818 = vpack.c.b16 %v4668, %v4666
        %v4819 = vpack.c.b16 %v4669, %v4667
        %v4820 = vpack.c.b16 %v4672, %v4670
        %v4821 = vpack.c.b16 %v4673, %v4671
        %v4822 = vpack.c.b16 %v4676, %v4674
        %v4823 = vpack.c.b16 %v4677, %v4675
        %v4824 = vpack.c.b16 %v4680, %v4678
        %v4825 = vpack.c.b16 %v4681, %v4679
        %v4826 = vpack.c.b16 %v4684, %v4682
        %v4827 = vpack.c.b16 %v4685, %v4683
        %v4828 = vpack.c.b16 %v4688, %v4686
        %v4829 = vpack.c.b16 %v4689, %v4687
        %v4830 = vpack.c.b16 %v4692, %v4690
        %v4831 = vpack.c.b16 %v4693, %v4691
        %v4832 = vpack.c.b16 %v4696, %v4694
        %v4833 = vpack.c.b16 %v4697, %v4695
        %v4834 = vpack.c.b16 %v4700, %v4698
        %v4835 = vpack.c.b16 %v4701, %v4699
        %v4836 = vpack.c.b16 %v4704, %v4702
        %v4837 = vpack.c.b16 %v4705, %v4703
        %v4838 = vpack.c.b16 %v4708, %v4706
        %v4839 = vpack.c.b16 %v4709, %v4707
        %v4840 = vpack.c.b16 %v4712, %v4710
        %v4841 = vpack.c.b16 %v4713, %v4711
        %v4842 = vpack.c.b16 %v4716, %v4714
        %v4843 = vpack.c.b16 %v4717, %v4715
        %v4844 = vpack.c.b16 %v4720, %v4718
        %v4845 = vpack.c.b16 %v4721, %v4719
        %v4846 = vpack.c.b16 %v4724, %v4722
        %v4847 = vpack.c.b16 %v4725, %v4723
        %v4848 = vpack.c.b16 %v4728, %v4726
        %v4849 = vpack.c.b16 %v4729, %v4727
        %v4850 = vpack.c.b16 %v4732, %v4730
        %v4851 = vpack.c.b16 %v4733, %v4731
        %v4852 = vpack.c.b16 %v4736, %v4734
        %v4853 = vpack.c.b16 %v4737, %v4735
        %v4854 = vpack.c.b16 %v4740, %v4738
        %v4855 = vpack.c.b16 %v4741, %v4739
        %v4856 = vpack.c.b16 %v4744, %v4742
        %v4857 = vpack.c.b16 %v4745, %v4743
        %v4858 = vpack.c.b16 %v4748, %v4746
        %v4859 = vpack.c.b16 %v4749, %v4747
        %v4860 = vpack.c.b16 %v4752, %v4750
        %v4861 = vpack.c.b16 %v4753, %v4751
        %v4862 = vpack.c.b16 %v4756, %v4754
        %v4863 = vpack.c.b16 %v4757, %v4755
        %v4864 = vpack.c.b16 %v4760, %v4758
        %v4865 = vpack.c.b16 %v4761, %v4759
        %v4866 = vpack.c.b16 %v4764, %v4762
        %v4867 = vpack.c.b16 %v4765, %v4763
        %v4868 = vpack.c.b16 %v4768, %v4766
        %v4869 = vpack.c.b16 %v4769, %v4767
        %v4870 = vpack.c.b16 %v4772, %v4770
        %v4871 = vpack.c.b16 %v4773, %v4771
        %v4872 = vpack.c.b16 %v4776, %v4774
        %v4873 = vpack.c.b16 %v4777, %v4775
        %4970 = vmatprep.subr.bf16.mxu0 %v4779
        %4971 = vmatpush1.bf16.msra.mxu0 %v4778
        %4972 = vmatprep.subr.bf16.mxu0 %v4781
        %4973 = vmatpush1.bf16.msra.mxu0 %v4780
        %4974 = vmatprep.subr.bf16.mxu0 %v4783
        %4975 = vmatpush1.bf16.msra.mxu0 %v4782
        %4976 = vmatprep.subr.bf16.mxu0 %v4785
        %4977 = vmatpush1.bf16.msra.mxu0 %v4784
        %4978 = vmatprep.subr.bf16.mxu0 %v4787
        %4979 = vmatpush1.bf16.msra.mxu0 %v4786
        %4980 = vmatprep.subr.bf16.mxu0 %v4789
        %4981 = vmatpush1.bf16.msra.mxu0 %v4788
        %4982 = vmatprep.subr.bf16.mxu0 %v4791
        %4983 = vmatpush1.bf16.msra.mxu0 %v4790
        %4984 = vmatprep.subr.bf16.mxu0 %v4793
        %4985 = vmatpush1.bf16.msra.mxu0 %v4792
        %4986 = vmatprep.subr.bf16.mxu0 %v4795
        %4987 = vmatpush1.bf16.msra.mxu0 %v4794
        %4988 = vmatprep.subr.bf16.mxu0 %v4797
        %4989 = vmatpush1.bf16.msra.mxu0 %v4796
        %4990 = vmatprep.subr.bf16.mxu0 %v4799
        %4991 = vmatpush1.bf16.msra.mxu0 %v4798
        %4992 = vmatprep.subr.bf16.mxu0 %v4801
        %4993 = vmatpush1.bf16.msra.mxu0 %v4800
        %4994 = vmatprep.subr.bf16.mxu0 %v4803
        %4995 = vmatpush1.bf16.msra.mxu0 %v4802
        %4996 = vmatprep.subr.bf16.mxu0 %v4805
        %4997 = vmatpush1.bf16.msra.mxu0 %v4804
        %4998 = vmatprep.subr.bf16.mxu0 %v4807
        %4999 = vmatpush1.bf16.msra.mxu0 %v4806
        %5000 = vmatprep.subr.bf16.mxu0 %v4809
        %5001 = vmatpush1.bf16.msra.mxu0 %v4808
        %5002 = vmatprep.mubr.bf16.mxu0 %v4371
        %5003 = vmatmul.mubr.bf16.gmra.mrb[0].mxu0 %v4370
        %v5004 = vpop.f32.mrb[0].mxu0
        %v5005 = vadd.f32 %v4483, %v5004
        %v5006 = vpop.f32.mrb[0].mxu0
        %v5007 = vadd.f32 %v4487, %v5006
        %v5008 = vpop.f32.mrb[0].mxu0
        %v5009 = vadd.f32 %v4483, %v5008
        %v5010 = vpop.f32.mrb[0].mxu0
        %v5011 = vadd.f32 %v4487, %v5010
        %5012 = vmatprep.mubr.bf16.mxu0 %v4377
        %5013 = vmatmul.mubr.bf16.gmra.mrb[0].mxu0 %v4376
        %v5014 = vpop.f32.mrb[0].mxu0
        %v5015 = vadd.f32 %v4483, %v5014
        %v5016 = vpop.f32.mrb[0].mxu0
        %v5017 = vadd.f32 %v4487, %v5016
        %v5018 = vpop.f32.mrb[0].mxu0
        %v5019 = vpop.f32.mrb[0].mxu0
        %5020 = vdwg.mxu0
        %5021 = vmatprep.subr.bf16.mxu0 %v4811
        %5022 = vmatpush1.bf16.msra.mxu0 %v4810
        %5023 = vmatprep.subr.bf16.mxu0 %v4813
        %5024 = vmatpush1.bf16.msra.mxu0 %v4812
        %5025 = vmatprep.subr.bf16.mxu0 %v4815
        %5026 = vmatpush1.bf16.msra.mxu0 %v4814
        %5027 = vmatprep.subr.bf16.mxu0 %v4817
        %5028 = vmatpush1.bf16.msra.mxu0 %v4816
        %5029 = vmatprep.subr.bf16.mxu0 %v4819
        %5030 = vmatpush1.bf16.msra.mxu0 %v4818
        %5031 = vmatprep.subr.bf16.mxu0 %v4821
        %5032 = vmatpush1.bf16.msra.mxu0 %v4820
        %5033 = vmatprep.subr.bf16.mxu0 %v4823
        %5034 = vmatpush1.bf16.msra.mxu0 %v4822
        %5035 = vmatprep.subr.bf16.mxu0 %v4825
        %5036 = vmatpush1.bf16.msra.mxu0 %v4824
        %5037 = vmatprep.subr.bf16.mxu0 %v4827
        %5038 = vmatpush1.bf16.msra.mxu0 %v4826
        %5039 = vmatprep.subr.bf16.mxu0 %v4829
        %5040 = vmatpush1.bf16.msra.mxu0 %v4828
        %5041 = vmatprep.subr.bf16.mxu0 %v4831
        %5042 = vmatpush1.bf16.msra.mxu0 %v4830
        %5043 = vmatprep.subr.bf16.mxu0 %v4833
        %5044 = vmatpush1.bf16.msra.mxu0 %v4832
        %5045 = vmatprep.subr.bf16.mxu0 %v4835
        %5046 = vmatpush1.bf16.msra.mxu0 %v4834
        %5047 = vmatprep.subr.bf16.mxu0 %v4837
        %5048 = vmatpush1.bf16.msra.mxu0 %v4836
        %5049 = vmatprep.subr.bf16.mxu0 %v4839
        %5050 = vmatpush1.bf16.msra.mxu0 %v4838
        %5051 = vmatprep.subr.bf16.mxu0 %v4841
        %5052 = vmatpush1.bf16.msra.mxu0 %v4840
        %5053 = vmatprep.mubr.bf16.mxu0 %v4373
        %5054 = vmatmul.mubr.bf16.gmra.mrb[0].mxu0 %v4372
        %v5055 = vpop.f32.mrb[0].mxu0
        %v5056 = vadd.f32 %v5005, %v5055
        %v5057 = vpop.f32.mrb[0].mxu0
        %v5058 = vadd.f32 %v5007, %v5057
        %v5059 = vpop.f32.mrb[0].mxu0
        %v5060 = vadd.f32 %v5009, %v5059
        %v5061 = vpop.f32.mrb[0].mxu0
        %v5062 = vadd.f32 %v5011, %v5061
        %5063 = vmatprep.mubr.bf16.mxu0 %v4379
        %5064 = vmatmul.mubr.bf16.gmra.mrb[0].mxu0 %v4378
        %v5065 = vpop.f32.mrb[0].mxu0
        %v5066 = vadd.f32 %v5015, %v5065
        %v5067 = vpop.f32.mrb[0].mxu0
        %v5068 = vadd.f32 %v5017, %v5067
        %v5069 = vpop.f32.mrb[0].mxu0
        %v5070 = vpop.f32.mrb[0].mxu0
        %5071 = vdwg.mxu0
        %5072 = vmatprep.subr.bf16.mxu0 %v4843
        %5073 = vmatpush1.bf16.msra.mxu0 %v4842
        %5074 = vmatprep.subr.bf16.mxu0 %v4845
        %5075 = vmatpush1.bf16.msra.mxu0 %v4844
        %5076 = vmatprep.subr.bf16.mxu0 %v4847
        %5077 = vmatpush1.bf16.msra.mxu0 %v4846
        %5078 = vmatprep.subr.bf16.mxu0 %v4849
        %5079 = vmatpush1.bf16.msra.mxu0 %v4848
        %5080 = vmatprep.subr.bf16.mxu0 %v4851
        %5081 = vmatpush1.bf16.msra.mxu0 %v4850
        %5082 = vmatprep.subr.bf16.mxu0 %v4853
        %5083 = vmatpush1.bf16.msra.mxu0 %v4852
        %5084 = vmatprep.subr.bf16.mxu0 %v4855
        %5085 = vmatpush1.bf16.msra.mxu0 %v4854
        %5086 = vmatprep.subr.bf16.mxu0 %v4857
        %5087 = vmatpush1.bf16.msra.mxu0 %v4856
        %5088 = vmatprep.subr.bf16.mxu0 %v4859
        %5089 = vmatpush1.bf16.msra.mxu0 %v4858
        %5090 = vmatprep.subr.bf16.mxu0 %v4861
        %5091 = vmatpush1.bf16.msra.mxu0 %v4860
        %5092 = vmatprep.subr.bf16.mxu0 %v4863
        %5093 = vmatpush1.bf16.msra.mxu0 %v4862
        %5094 = vmatprep.subr.bf16.mxu0 %v4865
        %5095 = vmatpush1.bf16.msra.mxu0 %v4864
        %5096 = vmatprep.subr.bf16.mxu0 %v4867
        %5097 = vmatpush1.bf16.msra.mxu0 %v4866
        %5098 = vmatprep.subr.bf16.mxu0 %v4869
        %5099 = vmatpush1.bf16.msra.mxu0 %v4868
        %5100 = vmatprep.subr.bf16.mxu0 %v4871
        %5101 = vmatpush1.bf16.msra.mxu0 %v4870
        %5102 = vmatprep.subr.bf16.mxu0 %v4873
        %5103 = vmatpush1.bf16.msra.mxu0 %v4872
        %5104 = vmatprep.mubr.bf16.mxu0 %v4375
        %5105 = vmatmul.mubr.bf16.gmra.mrb[0].mxu0 %v4374
        %v5106 = vpop.f32.mrb[0].mxu0
        %v5107 = vadd.f32 %v5056, %v5106
        %v5108 = vpop.f32.mrb[0].mxu0
        %v5109 = vadd.f32 %v5058, %v5108
        %v5110 = vpop.f32.mrb[0].mxu0
        %v5111 = vadd.f32 %v5060, %v5110
        %v5112 = vpop.f32.mrb[0].mxu0
        %v5113 = vadd.f32 %v5062, %v5112
        %5114 = vmatprep.mubr.bf16.mxu0 %v4381
        %5115 = vmatmul.mubr.bf16.gmra.mrb[0].mxu0 %v4380
        %v5116 = vpop.f32.mrb[0].mxu0
        %v5117 = vadd.f32 %v5066, %v5116
        %v5118 = vpop.f32.mrb[0].mxu0
        %v5119 = vadd.f32 %v5068, %v5118
        %v5120 = vpop.f32.mrb[0].mxu0
        %v5121 = vpop.f32.mrb[0].mxu0
        %5122 = vdwg.mxu0
        %v5123 = vadd.f32 %v3483, %v5107
        %v5124 = vadd.f32 %v3484, %v5109
        %v5125 = vadd.f32 %v3485, %v5111
        %v5126 = vadd.f32 %v3486, %v5113
        %v5127 = vadd.f32 %v3487, %v5117
        %v5128 = vadd.f32 %v3488, %v5119
        %5129 = vst [vmem:[#allocation2] sm:$0xff] %v5123
        %5130 = vst.msk [vmem:[#allocation2 + $0x8] sm:$0xff] %vm812, %v5124
        %5131 = vst [vmem:[#allocation2 + $0x10] sm:$0xff] %v5125
        %5132 = vst.msk [vmem:[#allocation2 + $0x18] sm:$0xff] %vm812, %v5126
        %5133 = vst [vmem:[#allocation2 + $0x20] sm:$0x3] %v5127
        %5134 = vst.msk [vmem:[#allocation2 + $0x28] sm:$0x3] %vm823, %v5128
        %p5135 = scmp.eq.s32.totalorder %s31, 11
        // Predicated region
        $region101: #{emonet_ssast_forward.3} parent=95 // pred_check
          %p5136 = pneg %p5135
        $region102: #{emonet_ssast_forward.3} parent=95 // pred_check_branch
          %5138 = sbr.rel (%p5136) target = $region104
        $region103: #{emonet_ssast_forward.3} parent=95 // pred_region
          %v5139 = vld [vmem:[%s13] sm:$0x3]
          %v5140 = vld [vmem:[%s14] sm:$0x3]
          %v5141 = vsel %vm812, %v5124, 0.0
          %v5142 = vadd.f32 %v5123, %v5141
          %5143 = vadd.xlane.f32.xlu0 %v5142
          %v5144 = vpop.xlane.xlu0 %5143
          %v5145 = vsel %vm812, %v5126, 0.0
          %v5146 = vadd.f32 %v5125, %v5145
          %5147 = vadd.xlane.f32.xlu0 %v5146
          %v5148 = vpop.xlane.xlu0 %5147
          %v5149 = vsel %vm821, %v5127, 0.0
          %v5150 = vsel %vm823, %v5128, 0.0
          %v5151 = vadd.f32 %v5149, %v5150
          %5152 = vadd.xlane.f32.xlu0 %v5151
          %v5153 = vpop.xlane.xlu0 %5152
          %v5154 = vmul.f32 %v5144, %v828
          %v5155 = vmul.f32 %v5148, %v828
          %v5156 = vmul.f32 %v5153, %v828
          %v5157 = vsub.f32 %v5123, %v5154
          %v5158 = vsub.f32 %v5124, %v5154
          %v5159 = vsub.f32 %v5125, %v5155
          %v5160 = vsub.f32 %v5126, %v5155
          %v5161 = vsub.f32 %v5127, %v5156
          %v5162 = vsub.f32 %v5128, %v5156
          %v5163 = vmul.f32 %v5157, %v5157
          %v5164 = vmul.f32 %v5158, %v5158
          %v5165 = vmul.f32 %v5159, %v5159
          %v5166 = vmul.f32 %v5160, %v5160
          %v5167 = vmul.f32 %v5161, %v5161
          %v5168 = vmul.f32 %v5162, %v5162
          %v5169 = vsel %vm812, %v5164, 0.0
          %v5170 = vadd.f32 %v5163, %v5169
          %5171 = vadd.xlane.f32.xlu0 %v5170
          %v5172 = vpop.xlane.xlu0 %5171
          %v5173 = vsel %vm812, %v5166, 0.0
          %v5174 = vadd.f32 %v5165, %v5173
          %5175 = vadd.xlane.f32.xlu0 %v5174
          %v5176 = vpop.xlane.xlu0 %5175
          %v5177 = vsel %vm821, %v5167, 0.0
          %v5178 = vsel %vm823, %v5168, 0.0
          %v5179 = vadd.f32 %v5177, %v5178
          %5180 = vadd.xlane.f32.xlu0 %v5179
          %v5181 = vpop.xlane.xlu0 %5180
          %v5182 = vmul.f32 %v5172, %v828
          %v5183 = vmul.f32 %v5176, %v828
          %v5184 = vmul.f32 %v5181, %v828
          %v5185 = vadd.f32 %v5182, 1e-06
          %v5186 = vadd.f32 %v5183, 1e-06
          %v5187 = vadd.f32 %v5184, 1e-06
          %v5188 = vrsqrt.pop %v5185
          %v5189 = vrsqrt.pop %v5186
          %v5190 = vrsqrt.pop %v5187
          %v5191 = vmul.f32 %v5157, %v5188
          %v5192 = vmul.f32 %v5158, %v5188
          %v5193 = vmul.f32 %v5159, %v5189
          %v5194 = vmul.f32 %v5160, %v5189
          %v5195 = vmul.f32 %v5161, %v5190
          %v5196 = vmul.f32 %v5162, %v5190
          %v5198 = vlaneseq
          %v5199 = vshrl.u32 %v5198, 7
          %v5200 = vsub.s32 0, %v5199
          %v5201 = vrot.slane %v5139, %v5200
          %v5202 = vlaneseq
          %v5203 = vshrl.u32 %v5202, 7
          %v5204 = vsub.s32 1, %v5203
          %v5205 = vrot.slane %v5139, %v5204
          %v5208 = vmul.f32 %v5191, %v5201
          %v5209 = vmul.f32 %v5192, %v5205
          %v5210 = vmul.f32 %v5193, %v5201
          %v5211 = vmul.f32 %v5194, %v5205
          %v5212 = vmul.f32 %v5195, %v5201
          %v5213 = vmul.f32 %v5196, %v5205
          %v5215 = vlaneseq
          %v5216 = vshrl.u32 %v5215, 7
          %v5217 = vsub.s32 0, %v5216
          %v5218 = vrot.slane %v5140, %v5217
          %v5219 = vlaneseq
          %v5220 = vshrl.u32 %v5219, 7
          %v5221 = vsub.s32 1, %v5220
          %v5222 = vrot.slane %v5140, %v5221
          %v5225 = vadd.f32 %v5208, %v5218
          %v5226 = vadd.f32 %v5209, %v5222
          %v5227 = vadd.f32 %v5210, %v5218
          %v5228 = vadd.f32 %v5211, %v5222
          %v5229 = vadd.f32 %v5212, %v5218
          %v5230 = vadd.f32 %v5213, %v5222
          %vm5235 = vcmask 1045504
          %v5236 = vrot.slane %v5225, 2
          %v5237 = vrot.slane %v5227, 2
          %v5238 = vsel %vm5235, %v5236, %v5237
          %v5239 = vrot.slane %v5226, 2
          %v5240 = vrot.slane %v5228, 2
          %v5241 = vsel %vm5235, %v5239, %v5240
          %v5244 = vsel %vm2443, %v5238, 0.0
          %v5245 = vrot.slane %v5244, 4
          %v5246 = vadd.f32 %v5244, %v5245
          %v5247 = vrot.slane %v5246, 2
          %v5248 = vadd.f32 %v5246, %v5247
          %v5249 = vrot.slane %v5248, 1
          %v5250 = vadd.f32 %v5248, %v5249
          %vm5251 = vcmask 522240
          %v5252 = vsel %vm5251, %v5241, 0.0
          %v5253 = vrot.slane %v5252, 4
          %v5254 = vadd.f32 %v5252, %v5253
          %v5255 = vrot.slane %v5254, 2
          %v5256 = vadd.f32 %v5254, %v5255
          %v5257 = vrot.slane %v5256, 1
          %v5258 = vadd.f32 %v5256, %v5257
          %v5259 = vrcp.pop 7.0
          %v5260 = vmul.f32 %v5250, %v5259
          %v5261 = vmul.f32 %v5258, %v5259
          %vm5264 = vcmask 1044480
          %v5265 = vrot.slane %v5227, 3
          %v5266 = vrot.slane %v5229, 3
          %v5267 = vsel %vm5264, %v5265, %v5266
          %v5268 = vrot.slane %v5228, 3
          %v5269 = vrot.slane %v5230, 3
          %v5270 = vsel %vm5264, %v5268, %v5269
          %v5273 = vsel %vm2443, %v5267, 0.0
          %v5274 = vrot.slane %v5273, 4
          %v5275 = vadd.f32 %v5273, %v5274
          %v5276 = vrot.slane %v5275, 2
          %v5277 = vadd.f32 %v5275, %v5276
          %v5278 = vrot.slane %v5277, 1
          %v5279 = vadd.f32 %v5277, %v5278
          %v5280 = vsel %vm5251, %v5270, 0.0
          %v5281 = vrot.slane %v5280, 4
          %v5282 = vadd.f32 %v5280, %v5281
          %v5283 = vrot.slane %v5282, 2
          %v5284 = vadd.f32 %v5282, %v5283
          %v5285 = vrot.slane %v5284, 1
          %v5286 = vadd.f32 %v5284, %v5285
          %v5287 = vmul.f32 %v5279, %v5259
          %v5288 = vmul.f32 %v5286, %v5259
          %v5289 = vsel %vm1996, %v5260, %v5287
          %v5290 = vsel %vm1996, %v5261, %v5288
          %v5291 = vld [vmem:[%s15] sm:$0x3]
          %v5292 = vld [vmem:[%s16] sm:$0x3]
          %v5293 = vsel %vm821, %v5289, 0.0
          %v5294 = vsel %vm823, %v5290, 0.0
          %v5295 = vadd.f32 %v5293, %v5294
          %5296 = vadd.xlane.f32.xlu0 %v5295
          %v5297 = vpop.xlane.xlu0 %5296
          %v5298 = vmul.f32 %v5297, %v828
          %v5299 = vsub.f32 %v5289, %v5298
          %v5300 = vsub.f32 %v5290, %v5298
          %v5301 = vmul.f32 %v5299, %v5299
          %v5302 = vmul.f32 %v5300, %v5300
          %v5303 = vsel %vm821, %v5301, 0.0
          %v5304 = vsel %vm823, %v5302, 0.0
          %v5305 = vadd.f32 %v5303, %v5304
          %5306 = vadd.xlane.f32.xlu0 %v5305
          %v5307 = vpop.xlane.xlu0 %5306
          %v5308 = vmul.f32 %v5307, %v828
          %v5309 = vadd.f32 %v5308, 1e-05
          %v5310 = vrsqrt.pop %v5309
          %v5311 = vmul.f32 %v5299, %v5310
          %v5312 = vmul.f32 %v5300, %v5310
          %v5314 = vlaneseq
          %v5315 = vshrl.u32 %v5314, 7
          %v5316 = vsub.s32 0, %v5315
          %v5317 = vrot.slane %v5291, %v5316
          %v5318 = vlaneseq
          %v5319 = vshrl.u32 %v5318, 7
          %v5320 = vsub.s32 1, %v5319
          %v5321 = vrot.slane %v5291, %v5320
          %v5324 = vmul.f32 %v5311, %v5317
          %v5325 = vmul.f32 %v5312, %v5321
          %v5327 = vlaneseq
          %v5328 = vshrl.u32 %v5327, 7
          %v5329 = vsub.s32 0, %v5328
          %v5330 = vrot.slane %v5292, %v5329
          %v5331 = vlaneseq
          %v5332 = vshrl.u32 %v5331, 7
          %v5333 = vsub.s32 1, %v5332
          %v5334 = vrot.slane %v5292, %v5333
          %v5337 = vadd.f32 %v5324, %v5330
          %v5338 = vadd.f32 %v5325, %v5334
          %v5339 = vld [vmem:[%s17] sm:$0xff]
          %v5340 = vld [vmem:[%s17 + $0x8] sm:$0xff]
          %v5341 = vld [vmem:[%s17 + $0x10] sm:$0xff]
          %v5342 = vld [vmem:[%s17 + $0x18] sm:$0xff]
          %v5343 = vld [vmem:[%s17 + $0x20] sm:$0xff]
          %v5344 = vld [vmem:[%s17 + $0x28] sm:$0xff]
          %v5345 = vld [vmem:[%s17 + $0x30] sm:$0xff]
          %v5346 = vld [vmem:[%s17 + $0x38] sm:$0xff]
          %v5347 = vld [vmem:[%s17 + $0x40] sm:$0xff]
          %v5348 = vld [vmem:[%s17 + $0x48] sm:$0xff]
          %v5349 = vld [vmem:[%s17 + $0x50] sm:$0xff]
          %v5350 = vld [vmem:[%s17 + $0x58] sm:$0xff]
          %v5351 = vld [vmem:[%s17 + $0x60] sm:$0xff]
          %v5352 = vld [vmem:[%s17 + $0x68] sm:$0xff]
          %v5353 = vld [vmem:[%s17 + $0x70] sm:$0xff]
          %v5354 = vld [vmem:[%s17 + $0x78] sm:$0xff]
          %v5355 = vld [vmem:[%s17 + $0x80] sm:$0xff]
          %v5356 = vld [vmem:[%s17 + $0x88] sm:$0xff]
          %v5357 = vld [vmem:[%s17 + $0x90] sm:$0xff]
          %v5358 = vld [vmem:[%s17 + $0x98] sm:$0xff]
          %v5359 = vld [vmem:[%s17 + $0xa0] sm:$0xff]
          %v5360 = vld [vmem:[%s17 + $0xa8] sm:$0xff]
          %v5361 = vld [vmem:[%s17 + $0xb0] sm:$0xff]
          %v5362 = vld [vmem:[%s17 + $0xb8] sm:$0xff]
          %v5363 = vld [vmem:[%s18] sm:$0x1]
          %v5365 = vlaneseq
          %v5366 = vshrl.u32 %v5365, 7
          %v5367 = vsub.s32 0, %v5366
          %v5368 = vrot.slane %v5363, %v5367
          %v5371 = vsel %vm812, %v5338, 0
          %5373 = vmatprep.subr.mxu0 0.0
          %5374 = vmatpush1.msra.mxu0 %v5339
          %5375 = vmatprep.subr.mxu0 0.0
          %5376 = vmatpush1.msra.mxu0 %v5340
          %5377 = vmatprep.subr.mxu0 0.0
          %5378 = vmatpush1.msra.mxu0 %v5341
          %5379 = vmatprep.subr.mxu0 0.0
          %5380 = vmatpush1.msra.mxu0 %v5342
          %5381 = vmatprep.subr.mxu0 0.0
          %5382 = vmatpush1.msra.mxu0 %v5343
          %5383 = vmatprep.subr.mxu0 0.0
          %5384 = vmatpush1.msra.mxu0 %v5344
          %5385 = vmatprep.subr.mxu0 0.0
          %5386 = vmatpush1.msra.mxu0 %v5345
          %5387 = vmatprep.subr.mxu0 0.0
          %5388 = vmatpush1.msra.mxu0 %v5346
          %5389 = vmatprep.subr.mxu0 0.0
          %5390 = vmatpush1.msra.mxu0 %v5347
          %5391 = vmatprep.subr.mxu0 0.0
          %5392 = vmatpush1.msra.mxu0 %v5348
          %5393 = vmatprep.subr.mxu0 0.0
          %5394 = vmatpush1.msra.mxu0 %v5349
          %5395 = vmatprep.subr.mxu0 0.0
          %5396 = vmatpush1.msra.mxu0 %v5350
          %5397 = vmatprep.subr.mxu0 0.0
          %5398 = vmatpush1.msra.mxu0 %v5351
          %5399 = vmatprep.subr.mxu0 0.0
          %5400 = vmatpush1.msra.mxu0 %v5352
          %5401 = vmatprep.subr.mxu0 0.0
          %5402 = vmatpush1.msra.mxu0 %v5353
          %5403 = vmatprep.subr.mxu0 0.0
          %5404 = vmatpush1.msra.mxu0 %v5354
          %5405 = vmatprep.subr.mxu0 0.0
          %5406 = vmatpush1.msra.mxu0 %v5355
          %5407 = vmatprep.subr.mxu0 0.0
          %5408 = vmatpush1.msra.mxu0 %v5356
          %5409 = vmatprep.subr.mxu0 0.0
          %5410 = vmatpush1.msra.mxu0 %v5357
          %5411 = vmatprep.subr.mxu0 0.0
          %5412 = vmatpush1.msra.mxu0 %v5358
          %5413 = vmatprep.subr.mxu0 0.0
          %5414 = vmatpush1.msra.mxu0 %v5359
          %5415 = vmatprep.subr.mxu0 0.0
          %5416 = vmatpush1.msra.mxu0 %v5360
          %5417 = vmatprep.subr.mxu0 0.0
          %5418 = vmatpush1.msra.mxu0 %v5361
          %5419 = vmatprep.subr.mxu0 0.0
          %5420 = vmatpush1.msra.mxu0 %v5362
          %5421 = vmatprep.subr.mxu0 0.0
          %5422 = vmatpush1.msra.mxu0 0.0
          %5423 = vmatprep.subr.mxu0 0.0
          %5424 = vmatpush1.msra.mxu0 0.0
          %5425 = vmatprep.subr.mxu0 0.0
          %5426 = vmatpush1.msra.mxu0 0.0
          %5427 = vmatprep.subr.mxu0 0.0
          %5428 = vmatpush1.msra.mxu0 0.0
          %5429 = vmatprep.subr.mxu0 0.0
          %5430 = vmatpush1.msra.mxu0 0.0
          %5431 = vmatprep.subr.mxu0 0.0
          %5432 = vmatpush1.msra.mxu0 0.0
          %5433 = vmatprep.subr.mxu0 0.0
          %5434 = vmatpush1.msra.mxu0 0.0
          %5435 = vmatprep.subr.mxu0 0.0
          %5436 = vmatpush1.msra.mxu0 0.0
          %5437 = vmatprep.mubr.f32.mxu0 %v5371
          %5438 = vmatmul.mubr.f32.gmra.mrb[0].mxu0 %v5337
          %v5439 = vpop.f32.mrb[0].mxu0
          %v5440 = vadd.f32 %v5368, %v5439
          %v5441 = vpop.f32.mrb[0].mxu0
          %5442 = vdwg.mxu0
          %vm5443 = vcmask 25600
          %5444 = vst.msk [vmem:[#allocation3] sm:$0x3] %vm5443, %v5440
        $region104: #{emonet_ssast_forward.3} parent=95 // pred_fallthru
          _
        // Predicated region
        $region105: #{emonet_ssast_forward.3} parent=95 // pred_check
          %p5445 = pneg %p503
        $region106: #{emonet_ssast_forward.3} parent=95 // pred_check_branch
          %5447 = sbr.rel (%p5445) target = $region108
        $region107: #{emonet_ssast_forward.3} parent=95 // pred_region
          %s5449 = ssub.s32 32, 32
          %5450 = vsyncadd [#allocation4], %s5449
          %s5452 = sshll.u32 [#allocation3], 4
          %s5453 = int_to_ptr.vmem [resolvable:$true] %s5452
          %5455 = dma.vmem_to_hbm [thread:$0]  %s5453, 32, %s19, [#allocation4]
        $region108: #{emonet_ssast_forward.3} parent=95 // pred_fallthru
          _
        // Predicated region
        $region109: #{emonet_ssast_forward.3} parent=95 // pred_check
          %p5456 = pneg %p503
        $region110: #{emonet_ssast_forward.3} parent=95 // pred_check_branch
          %5458 = sbr.rel (%p5456) target = $region112
        $region111: #{emonet_ssast_forward.3} parent=95 // pred_region
          %5459 = dma.done [#allocation4], 32
        $region112: #{emonet_ssast_forward.3} parent=95 // pred_fallthru
          _
      $region96: #{emonet_ssast_forward.3} parent=5 // pred_fallthru
        _
      %p5460 = scmp.le.s32.totalorder 2, %s26
      // Predicated region
      $region113: #{emonet_ssast_forward.3} parent=5 // pred_check
        %p5461 = pneg %p5460
      $region114: #{emonet_ssast_forward.3} parent=5 // pred_check_branch
        %5463 = sbr.rel (%p5461) target = $region116
      $region115: #{emonet_ssast_forward.3} parent=5 // pred_region
        %s5464 = ssub.s32 %s26, 2
      $region116: #{emonet_ssast_forward.3} parent=5 // pred_fallthru
        _
    $region6: #{emonet_ssast_forward.3} parent=1 // loop_footer
      %s30 = sadd.s32 1, %s26
    $region7: #{emonet_ssast_forward.3} parent=1 // loop_footer_branch
      %25 = sbr.rel target = $region3
    $region8: #{emonet_ssast_forward.3} parent=1 // loop_exit
      _
    %5465 = vsyncpa [#allocation4], 1
    %s5466 = scalar_lea.sflag [#allocation4], 1
    %5467 = vsyncpa %s5466, 1

</llo_original>
